<compile_context>
chip_gen: v6e
topology: v6e:2x2x1
jax: 0.10.0
libtpu: 0.0.40
codegen_flags: <defaults>
</compile_context>

<pallas_src>
import functools

import jax
import jax.numpy as jnp
from jax import lax
from jax.experimental import pallas as pl
from jax.experimental.pallas import tpu as pltpu

ACT_DTYPE = jnp.bfloat16          # activations / weights at kernel boundaries
BLOCK_N = 1024                    # token-dim tile for the 1x1-conv kernels
TQ_MAX = 128                      # query-row tile for attention
VMEM_LIMIT_BYTES = 48 * 1024 * 1024   # <= ~48 MiB: fits v7x (64 MiB phys), fine on v5e/v6e


def _round_up(n, m):
    return ((n + m - 1) // m) * m


def _tile_rows(n, block_n):
    """Row-tile size and padded row count.  Padding only triggers when n is not a
    multiple of the chosen tile (never in the demo), so no extra HBM copies."""
    tn = _round_up(n, 8) if n <= block_n else block_n
    return tn, _round_up(n, tn)


def _pad_rows(x, n_to):
    n = x.shape[0]
    if n == n_to:
        return x
    pad = [(0, n_to - n)] + [(0, 0)] * (x.ndim - 1)
    return jnp.pad(x, pad)


def _q_tile(l, tmax=TQ_MAX):
    t = min(tmax, l)
    while t > 8 and l % t != 0:
        t -= 8
    return t if l % t == 0 else l


def _tpu_params(ngrid=1):
    # TODO(synk): pipeline_mode=pl.Buffered(1) on the constant-index weight BlockSpecs
    # would reclaim VMEM headroom on v7x (weights are DMA'd once but double-buffered).
    return pltpu.CompilerParams(
        dimension_semantics=("parallel",) * ngrid,
        vmem_limit_bytes=VMEM_LIMIT_BYTES,
    )


# ----------------------------------------------------------------------------
# Kernel 1: (x @ w) * scale + shift (+ ReLU)   -- shortcut conv (im2col) + BN
# ----------------------------------------------------------------------------

def _matmul_affine_kernel(x_ref, w_ref, scale_ref, shift_ref, o_ref, *, relu):
    y = jnp.dot(x_ref[...], w_ref[...], preferred_element_type=jnp.float32)
    y = y * scale_ref[...] + shift_ref[...]
    if relu:
        y = jnp.maximum(y, 0.0)
    o_ref[...] = y.astype(o_ref.dtype)


def matmul_affine(x, w, scale, shift, *, relu, block_n=BLOCK_N):
    N, K = x.shape
    _, C = w.shape
    tn, Np = _tile_rows(N, block_n)
    xp = _pad_rows(x.astype(ACT_DTYPE), Np)
    out = pl.pallas_call(
        functools.partial(_matmul_affine_kernel, relu=relu),
        grid=(Np // tn,),
        in_specs=[
            pl.BlockSpec((tn, K), lambda i: (i, 0)),
            pl.BlockSpec((K, C), lambda i: (0, 0)),
            pl.BlockSpec((1, C), lambda i: (0, 0)),
            pl.BlockSpec((1, C), lambda i: (0, 0)),
        ],
        out_specs=pl.BlockSpec((tn, C), lambda i: (i, 0)),
        out_shape=jax.ShapeDtypeStruct((Np, C), ACT_DTYPE),
        compiler_params=_tpu_params(1),
    )(xp, w.astype(ACT_DTYPE),
      scale.reshape(1, C).astype(jnp.float32),
      shift.reshape(1, C).astype(jnp.float32))
    return out[:N]


# ----------------------------------------------------------------------------
# Kernel 2: fused  conv1(1x1) + BN + ReLU + qkv projection (q columns pre-scaled)
# ----------------------------------------------------------------------------

def _conv1_qkv_kernel(x_ref, w1_ref, s1_ref, b1_ref, wqkv_ref, o_ref):
    y = jnp.dot(x_ref[...], w1_ref[...], preferred_element_type=jnp.float32)
    y = jnp.maximum(y * s1_ref[...] + b1_ref[...], 0.0)
    qkv = jnp.dot(y.astype(wqkv_ref.dtype), wqkv_ref[...],
                  preferred_element_type=jnp.float32)
    o_ref[...] = qkv.astype(o_ref.dtype)


def conv1_qkv(x, w1, s1, b1, wqkv, *, block_n=BLOCK_N):
    N, K = x.shape
    C1 = w1.shape[1]
    C2 = wqkv.shape[1]
    tn, Np = _tile_rows(N, block_n)
    xp = _pad_rows(x.astype(ACT_DTYPE), Np)
    out = pl.pallas_call(
        _conv1_qkv_kernel,
        grid=(Np // tn,),
        in_specs=[
            pl.BlockSpec((tn, K), lambda i: (i, 0)),
            pl.BlockSpec((K, C1), lambda i: (0, 0)),
            pl.BlockSpec((1, C1), lambda i: (0, 0)),
            pl.BlockSpec((1, C1), lambda i: (0, 0)),
            pl.BlockSpec((C1, C2), lambda i: (0, 0)),
        ],
        out_specs=pl.BlockSpec((tn, C2), lambda i: (i, 0)),
        out_shape=jax.ShapeDtypeStruct((Np, C2), ACT_DTYPE),
        compiler_params=_tpu_params(1),
    )(xp, w1.astype(ACT_DTYPE),
      s1.reshape(1, C1).astype(jnp.float32),
      b1.reshape(1, C1).astype(jnp.float32),
      wqkv.astype(ACT_DTYPE))
    return out[:N]


# ----------------------------------------------------------------------------
# Kernel 3: attention (AbsPosEmb), token-major layout, q-row tiled
#   grid = (B, L // TQ); per step, loop heads in-register:
#     sim = q_h @ (k_h + emb)^T ; softmax ; out_h = (p @ v_h) * 1/denom
#   q/k/v are read as per-head column slices of the (TQ|L, 3*heads*dh) qkv block;
#   output written token-major (TQ, heads*dh).  No head transposes anywhere.
# ----------------------------------------------------------------------------

def _attention_kernel(q_ref, kv_ref, emb_ref, o_ref, *, heads, dh):
    qq = q_ref[...]                                  # (TQ, 3*heads*dh) bf16, q pre-scaled
    kv = kv_ref[...]                                 # (L,  3*heads*dh) bf16
    emb = emb_ref[...]                               # (L, dh) f32
    hd = heads * dh
    outs = []
    for h in range(heads):                           # static unroll over heads
        q = qq[:, h * dh:(h + 1) * dh]                                   # (TQ, dh)
        k = (kv[:, hd + h * dh: hd + (h + 1) * dh].astype(jnp.float32)
             + emb).astype(qq.dtype)                                     # (L, dh)
        v = kv[:, 2 * hd + h * dh: 2 * hd + (h + 1) * dh]                # (L, dh)
        # single MXU matmul replaces q@k^T + q@emb^T (algebraically identical)
        sim = lax.dot_general(q, k, (((1,), (1,)), ((), ())),
                              preferred_element_type=jnp.float32)        # (TQ, L)
        sim = sim - jnp.max(sim, axis=-1, keepdims=True)
        p = jnp.exp(sim)
        denom = jnp.sum(p, axis=-1, keepdims=True)                       # (TQ, 1)
        o = jnp.dot(p.astype(v.dtype), v, preferred_element_type=jnp.float32)
        outs.append(o * pl.reciprocal(denom, approx=True))               # (TQ, dh)
    o_ref[...] = jnp.concatenate(outs, axis=-1).astype(o_ref.dtype)


def attention_pallas(qkv, emb, *, heads, dh):
    """qkv: (B, L, 3*heads*dh) token-major; emb: (L, dh).  Returns (B, L, heads*dh)."""
    B, L, C3 = qkv.shape
    Cout = heads * dh
    tq = _q_tile(L)
    return pl.pallas_call(
        functools.partial(_attention_kernel, heads=heads, dh=dh),
        grid=(B, L // tq),
        in_specs=[
            pl.BlockSpec((None, tq, C3), lambda b, i: (b, i, 0)),   # q rows
            pl.BlockSpec((None, L, C3), lambda b, i: (b, 0, 0)),    # k/v rows (full L)
            pl.BlockSpec((L, dh), lambda b, i: (0, 0)),             # abs pos emb
        ],
        out_specs=pl.BlockSpec((None, tq, Cout), lambda b, i: (b, i, 0)),
        out_shape=jax.ShapeDtypeStruct((B, L, Cout), ACT_DTYPE),
        compiler_params=_tpu_params(2),
    )(qkv.astype(ACT_DTYPE), qkv.astype(ACT_DTYPE), emb.astype(jnp.float32))


# ----------------------------------------------------------------------------
# Kernel 4a: fused  BN + ReLU + conv2(1x1) + BN + residual add + ReLU  (no pool)
# ----------------------------------------------------------------------------

def _conv2_res_kernel(x_ref, s2_ref, b2_ref, w2_ref, s3_ref, b3_ref, sc_ref, o_ref):
    y = x_ref[...].astype(jnp.float32)
    y = jnp.maximum(y * s2_ref[...] + b2_ref[...], 0.0)               # BN2 + ReLU
    z = jnp.dot(y.astype(w2_ref.dtype), w2_ref[...],
                preferred_element_type=jnp.float32)                   # 1x1 conv2
    z = z * s3_ref[...] + b3_ref[...] + sc_ref[...].astype(jnp.float32)
    o_ref[...] = jnp.maximum(z, 0.0).astype(o_ref.dtype)              # final ReLU


def conv2_residual(x, s2, b2, w2, s3, b3, shortcut, *, block_n=BLOCK_N):
    N, Ci = x.shape
    Co = w2.shape[1]
    tn, Np = _tile_rows(N, block_n)
    xp = _pad_rows(x.astype(ACT_DTYPE), Np)
    scp = _pad_rows(shortcut.astype(ACT_DTYPE), Np)
    out = pl.pallas_call(
        _conv2_res_kernel,
        grid=(Np // tn,),
        in_specs=[
            pl.BlockSpec((tn, Ci), lambda i: (i, 0)),
            pl.BlockSpec((1, Ci), lambda i: (0, 0)),
            pl.BlockSpec((1, Ci), lambda i: (0, 0)),
            pl.BlockSpec((Ci, Co), lambda i: (0, 0)),
            pl.BlockSpec((1, Co), lambda i: (0, 0)),
            pl.BlockSpec((1, Co), lambda i: (0, 0)),
            pl.BlockSpec((tn, Co), lambda i: (i, 0)),
        ],
        out_specs=pl.BlockSpec((tn, Co), lambda i: (i, 0)),
        out_shape=jax.ShapeDtypeStruct((Np, Co), ACT_DTYPE),
        compiler_params=_tpu_params(1),
    )(xp,
      s2.reshape(1, Ci).astype(jnp.float32), b2.reshape(1, Ci).astype(jnp.float32),
      w2.astype(ACT_DTYPE),
      s3.reshape(1, Co).astype(jnp.float32), b3.reshape(1, Co).astype(jnp.float32),
      scp)
    return out[:N]


# ----------------------------------------------------------------------------
# Kernel 4b: fused  AvgPool2d(2x2) + BN + ReLU + conv2(1x1) + BN + residual + ReLU
#   Input is the attention output viewed (free reshapes only) as
#   (B*Hp, 2, Wp, 2*Ci): axis1 = the two H rows of the pool window, the 2*Ci lane dim
#   interleaves the two W columns of the window.  No wrapper-side transpose.
# ----------------------------------------------------------------------------

def _pool2x2_conv2_res_kernel(x_ref, s2_ref, b2_ref, w2_ref, s3_ref, b3_ref,
                              sc_ref, o_ref):
    x = x_ref[...].astype(jnp.float32)               # (2, Wp, 2*Ci)
    r = x[0] + x[1]                                  # sum over the H pair  (Wp, 2*Ci)
    ci = r.shape[-1] // 2
    y = (r[:, :ci] + r[:, ci:]) * 0.25               # sum over the W pair, /4
    y = jnp.maximum(y * s2_ref[...] + b2_ref[...], 0.0)              # BN2 + ReLU
    z = jnp.dot(y.astype(w2_ref.dtype), w2_ref[...],
                preferred_element_type=jnp.float32)                  # 1x1 conv2
    z = z * s3_ref[...] + b3_ref[...] + sc_ref[...].astype(jnp.float32)
    o_ref[...] = jnp.maximum(z, 0.0).astype(o_ref.dtype)


def pool_conv2_residual_ds(x_view, s2, b2, w2, s3, b3, shortcut_view):
    """x_view: (B*Hp, 2, Wp, 2*Ci); shortcut_view: (B*Hp, Wp, Co) -> (B*Hp, Wp, Co)."""
    G, _, Wp, C2 = x_view.shape
    Ci = C2 // 2
    Co = w2.shape[1]
    out = pl.pallas_call(
        _pool2x2_conv2_res_kernel,
        grid=(G,),
        in_specs=[
            pl.BlockSpec((None, 2, Wp, C2), lambda i: (i, 0, 0, 0)),
            pl.BlockSpec((1, Ci), lambda i: (0, 0)),
            pl.BlockSpec((1, Ci), lambda i: (0, 0)),
            pl.BlockSpec((Ci, Co), lambda i: (0, 0)),
            pl.BlockSpec((1, Co), lambda i: (0, 0)),
            pl.BlockSpec((1, Co), lambda i: (0, 0)),
            pl.BlockSpec((None, Wp, Co), lambda i: (i, 0, 0)),
        ],
        out_specs=pl.BlockSpec((None, Wp, Co), lambda i: (i, 0, 0)),
        out_shape=jax.ShapeDtypeStruct((G, Wp, Co), ACT_DTYPE),
        compiler_params=_tpu_params(1),
    )(x_view.astype(ACT_DTYPE),
      s2.reshape(1, Ci).astype(jnp.float32), b2.reshape(1, Ci).astype(jnp.float32),
      w2.astype(ACT_DTYPE),
      s3.reshape(1, Co).astype(jnp.float32), b3.reshape(1, Co).astype(jnp.float32),
      shortcut_view.astype(ACT_DTYPE))
    return out


# ----------------------------------------------------------------------------
# Plain-JAX glue (layout plumbing + parameter setup)
# ----------------------------------------------------------------------------

# TODO(synk): the 3x3 stride-2 shortcut conv still uses wrapper-side im2col (runs once
# per stack at the pooled resolution); an in-kernel 9-tap strided-gather accumulation
# would avoid the 9x HBM expansion for large feature maps.
def im2col(x, ksize, stride, pad):
    """x: NHWC -> (B*Ho*Wo, ksize*ksize*C) patches (kh, kw, c order)."""
    B, H, W, C = x.shape
    Ho = (H + 2 * pad - ksize) // stride + 1
    Wo = (W + 2 * pad - ksize) // stride + 1
    xp = jnp.pad(x, ((0, 0), (pad, pad), (pad, pad), (0, 0)))
    patches = []
    for kh in range(ksize):
        for kw in range(ksize):
            patches.append(
                xp[:, kh:kh + stride * (Ho - 1) + 1:stride,
                      kw:kw + stride * (Wo - 1) + 1:stride, :])
    pat = jnp.stack(patches, axis=3)            # (B, Ho, Wo, K*K, C)
    return pat.reshape(B * Ho * Wo, ksize * ksize * C), Ho, Wo


def bn_fold_params(key, c, eps=1e-5):
    k1, k2, k3, k4 = jax.random.split(key, 4)
    gamma = 1.0 + 0.1 * jax.random.normal(k1, (c,), jnp.float32)
    beta = 0.1 * jax.random.normal(k2, (c,), jnp.float32)
    r_mean = 0.1 * jax.random.normal(k3, (c,), jnp.float32)
    r_var = jax.random.uniform(k4, (c,), jnp.float32, 0.5, 1.5)
    scale = gamma / jnp.sqrt(r_var + eps)
    shift = beta - r_mean * scale
    return scale, shift


def init_bottle_stack(key, *, dim, fmap_size, dim_out, proj_factor, num_layers,
                      heads, dim_head, downsample):
    """Returns (statics, weights): statics is pure-Python config, weights are arrays."""
    H, W = fmap_size
    statics, weights = [], []
    attn_dim_in = dim_out // proj_factor
    attn_dim_out = heads * dim_head
    for i in range(num_layers):
        is_first = (i == 0)
        d_in = dim if is_first else dim_out
        layer_downsample = is_first and downsample
        divisor = 2 if (downsample and not is_first) else 1
        lh, lw = H // divisor, W // divisor
        has_shortcut = (d_in != dim_out) or layer_downsample

        key, *ks = jax.random.split(key, 11)
        cfg = dict(downsample=layer_downsample, fmap=(lh, lw), heads=heads,
                   dim_head=dim_head, has_shortcut=has_shortcut)
        wts = {}
        if has_shortcut:
            ksz = 3 if layer_downsample else 1
            wts['shortcut_w'] = 0.1 * jax.random.normal(
                ks[0], (ksz, ksz, d_in, dim_out), jnp.float32)        # HWIO
            wts['shortcut_bn'] = bn_fold_params(ks[1], dim_out)
        wts['conv1_w'] = 0.1 * jax.random.normal(ks[2], (d_in, attn_dim_in), jnp.float32)
        wts['bn1'] = bn_fold_params(ks[3], attn_dim_in)
        qkv_w = 0.1 * jax.random.normal(ks[4], (attn_dim_in, 3 * attn_dim_out),
                                        jnp.float32)
        # fold the softmax scale (dim_head**-0.5) into the q columns once at init
        qkv_w = qkv_w.at[:, :attn_dim_out].multiply(dim_head ** -0.5)
        wts['qkv_w'] = qkv_w
        wts['pos_h'] = (dim_head ** -0.5) * jax.random.normal(ks[5], (lh, dim_head),
                                                              jnp.float32)
        wts['pos_w'] = (dim_head ** -0.5) * jax.random.normal(ks[6], (lw, dim_head),
                                                              jnp.float32)
        wts['bn2'] = bn_fold_params(ks[7], attn_dim_out)
        wts['conv2_w'] = 0.1 * jax.random.normal(ks[8], (attn_dim_out, dim_out),
                                                 jnp.float32)
        wts['bn3'] = bn_fold_params(ks[9], dim_out)
        statics.append(cfg)
        weights.append(wts)
    return tuple(statics), weights


def bottle_block_forward(x_nhwc, cfg, wts):
    B, H, W, Cin = x_nhwc.shape
    heads, dh = cfg['heads'], cfg['dim_head']
    attn_dim_out = heads * dh
    dim_out = wts['conv2_w'].shape[1]
    assert (H, W) == cfg['fmap']        # static python ints -> safe under jit

    # ---- shortcut branch -----------------------------------------------------
    if cfg['has_shortcut']:
        ksz = wts['shortcut_w'].shape[0]
        stride = 2 if cfg['downsample'] else 1
        pad = 1 if ksz == 3 else 0
        # cast BEFORE im2col: halves the patch-buffer HBM traffic
        cols, Ho, Wo = im2col(x_nhwc.astype(ACT_DTYPE), ksz, stride, pad)
        w_flat = wts['shortcut_w'].reshape(-1, wts['shortcut_w'].shape[-1])
        sc_scale, sc_shift = wts['shortcut_bn']
        shortcut = matmul_affine(cols, w_flat, sc_scale, sc_shift, relu=True)
    else:
        shortcut = x_nhwc.reshape(B * H * W, Cin)          # Cin == dim_out here

    # ---- main branch: fused conv1+BN+ReLU + (pre-scaled) qkv projection --------
    xf = x_nhwc.reshape(B * H * W, Cin)
    s1, b1 = wts['bn1']
    qkv = conv1_qkv(xf, wts['conv1_w'], s1, b1, wts['qkv_w'])   # (BHW, 3*inner), bf16

    emb = (wts['pos_h'][:, None, :] + wts['pos_w'][None, :, :]).reshape(H * W, dh)
    out = attention_pallas(qkv.reshape(B, H * W, 3 * attn_dim_out), emb,
                           heads=heads, dh=dh)                  # (B, L, heads*dh)

    # ---- fused (AvgPool|Identity)+BN+ReLU+conv2+BN+residual+ReLU ---------------
    s2, b2 = wts['bn2']
    s3, b3 = wts['bn3']
    if cfg['downsample']:
        Hp, Wp = H // 2, W // 2
        # free reshapes only (no transpose): (B,L,C) -> (B*Hp, 2, Wp, 2*C)
        x_view = out.reshape(B * Hp, 2, Wp, 2 * attn_dim_out)
        sc_view = shortcut.reshape(B * Hp, Wp, dim_out)
        y = pool_conv2_residual_ds(x_view, s2, b2, wts['conv2_w'], s3, b3, sc_view)
        return y.reshape(B, Hp, Wp, dim_out)
    else:
        y = conv2_residual(out.reshape(B * H * W, attn_dim_out),
                           s2, b2, wts['conv2_w'], s3, b3, shortcut)
        return y.reshape(B, H, W, dim_out)


def bottle_stack_forward(x_nchw, weights, *, statics, dim, fmap_size):
    _, c, h, w = x_nchw.shape
    assert c == dim, f'channels {c} must match {dim}'
    assert (h, w) == tuple(fmap_size), f'spatial {(h, w)} must match {fmap_size}'
    x = jnp.transpose(x_nchw, (0, 2, 3, 1))        # NCHW -> NHWC (interface boundary)
    for cfg, wts in zip(statics, weights):
        x = bottle_block_forward(x, cfg, wts)
    return jnp.transpose(x, (0, 3, 1, 2)).astype(jnp.float32)   # NHWC -> NCHW


# ----------------------------------------------------------------------------
# Demo
# ----------------------------------------------------------------------------

if __name__ == "__main__":
    key = jax.random.PRNGKey(0)
    kp, kx = jax.random.split(key)

    cfg = dict(dim=4, fmap_size=(16, 16), dim_out=32, proj_factor=4,
               num_layers=3, heads=2, dim_head=16, downsample=True)

    statics, weights = init_bottle_stack(kp, **cfg)
    x = jax.random.normal(kx, (2, 4, 16, 16), jnp.float32)   # NCHW, like PyTorch

    fwd = jax.jit(functools.partial(bottle_stack_forward, statics=statics,
                                    dim=cfg['dim'], fmap_size=cfg['fmap_size']))
    out = jax.block_until_ready(fwd(x, weights))

    assert out.shape == (2, 32, 8, 8), out.shape
    assert out.dtype == jnp.float32
    assert bool(jnp.all(jnp.isfinite(out)))
    print("KERNEL_OK")
</pallas_src>

<mosaic_0001>
module attributes {stable_mosaic.version = 11 : i64} {
  func.func @_matmul_affine_kernel(%arg0: i32, %arg1: memref<128x36xbf16, #tpu.memory_space<vmem>>, %arg2: memref<36x32xbf16, #tpu.memory_space<vmem>>, %arg3: memref<1x32xf32, #tpu.memory_space<vmem>>, %arg4: memref<1x32xf32, #tpu.memory_space<vmem>>, %arg5: memref<128x32xbf16, #tpu.memory_space<vmem>>) attributes {dimension_semantics = [#tpu.dimension_semantics<parallel>], iteration_bounds = array<i64: 1>, scalar_prefetch = 0 : i64, scratch_operands = 0 : i64, tpu.core_type = #tpu.core_type<tc>, window_params = [{transform_indices = @transform_0, window_bounds = array<i64: 128, 36>}, {pipeline_mode = #tpu.pipeline_mode<synchronous>, transform_indices = @transform_1, window_bounds = array<i64: 36, 32>}, {pipeline_mode = #tpu.pipeline_mode<synchronous>, transform_indices = @transform_2, window_bounds = array<i64: 1, 32>}, {pipeline_mode = #tpu.pipeline_mode<synchronous>, transform_indices = @transform_3, window_bounds = array<i64: 1, 32>}, {transform_indices = @transform_4, window_bounds = array<i64: 128, 32>}]} {
    %c0 = arith.constant 0 : index
    %c0_0 = arith.constant 0 : index
    %0 = vector.load %arg1[%c0, %c0_0] : memref<128x36xbf16, #tpu.memory_space<vmem>>, vector<128x36xbf16>
    %c0_1 = arith.constant 0 : index
    %c0_2 = arith.constant 0 : index
    %1 = vector.load %arg2[%c0_1, %c0_2] : memref<36x32xbf16, #tpu.memory_space<vmem>>, vector<36x32xbf16>
    %cst = arith.constant dense<0.000000e+00> : vector<128x32xf32>
    %2 = tpu.matmul %0, %1, %cst {dimension_numbers = #tpu.dot_dimension_numbers<[1], [0], [0], [1], [0, 0, 1, 1], [], []>} : vector<128x36xbf16>, vector<36x32xbf16>, vector<128x32xf32> -> vector<128x32xf32>
    %c0_3 = arith.constant 0 : index
    %c0_4 = arith.constant 0 : index
    %3 = vector.load %arg3[%c0_3, %c0_4] : memref<1x32xf32, #tpu.memory_space<vmem>>, vector<1x32xf32>
    %4 = vector.broadcast %3 : vector<1x32xf32> to vector<128x32xf32>
    %5 = arith.mulf %2, %4 : vector<128x32xf32>
    %c0_5 = arith.constant 0 : index
    %c0_6 = arith.constant 0 : index
    %6 = vector.load %arg4[%c0_5, %c0_6] : memref<1x32xf32, #tpu.memory_space<vmem>>, vector<1x32xf32>
    %7 = vector.broadcast %6 : vector<1x32xf32> to vector<128x32xf32>
    %8 = arith.addf %5, %7 : vector<128x32xf32>
    %cst_7 = arith.constant 0.000000e+00 : f32
    %9 = vector.broadcast %cst_7 : f32 to vector<128x32xf32>
    %10 = arith.maximumf %8, %9 : vector<128x32xf32>
    %11 = arith.truncf %10 : vector<128x32xf32> to vector<128x32xbf16>
    %c0_8 = arith.constant 0 : index
    %c0_9 = arith.constant 0 : index
    %12 = vector.load %arg5[%c0_8, %c0_9] : memref<128x32xbf16, #tpu.memory_space<vmem>>, vector<128x32xbf16>
    tpu.vector_store %arg5[%c0_8, %c0_9], %11 {strides = array<i32>} : memref<128x32xbf16, #tpu.memory_space<vmem>>, vector<128x32xbf16>,
    return
  }
  func.func @transform_0(%arg0: i32) -> (i32, i32) {
    %c0_i32 = arith.constant 0 : i32
    %c0_i32_0 = arith.constant 0 : i32
    return %arg0, %c0_i32 : i32, i32
  }
  func.func @transform_1(%arg0: i32) -> (i32, i32) {
    %c0_i32 = arith.constant 0 : i32
    %c0_i32_0 = arith.constant 0 : i32
    %c0_i32_1 = arith.constant 0 : i32
    return %c0_i32, %c0_i32_0 : i32, i32
  }
  func.func @transform_2(%arg0: i32) -> (i32, i32) {
    %c0_i32 = arith.constant 0 : i32
    %c0_i32_0 = arith.constant 0 : i32
    %c0_i32_1 = arith.constant 0 : i32
    return %c0_i32, %c0_i32_0 : i32, i32
  }
  func.func @transform_3(%arg0: i32) -> (i32, i32) {
    %c0_i32 = arith.constant 0 : i32
    %c0_i32_0 = arith.constant 0 : i32
    %c0_i32_1 = arith.constant 0 : i32
    return %c0_i32, %c0_i32_0 : i32, i32
  }
  func.func @transform_4(%arg0: i32) -> (i32, i32) {
    %c0_i32 = arith.constant 0 : i32
    %c0_i32_0 = arith.constant 0 : i32
    return %arg0, %c0_i32 : i32, i32
  }
}

module attributes {stable_mosaic.version = 11 : i64} {
  func.func @_conv1_qkv_kernel(%arg0: i32, %arg1: memref<512x4xbf16, #tpu.memory_space<vmem>>, %arg2: memref<4x8xbf16, #tpu.memory_space<vmem>>, %arg3: memref<1x8xf32, #tpu.memory_space<vmem>>, %arg4: memref<1x8xf32, #tpu.memory_space<vmem>>, %arg5: memref<8x96xbf16, #tpu.memory_space<vmem>>, %arg6: memref<512x96xbf16, #tpu.memory_space<vmem>>) attributes {dimension_semantics = [#tpu.dimension_semantics<parallel>], iteration_bounds = array<i64: 1>, scalar_prefetch = 0 : i64, scratch_operands = 0 : i64, tpu.core_type = #tpu.core_type<tc>, window_params = [{transform_indices = @transform_0, window_bounds = array<i64: 512, 4>}, {pipeline_mode = #tpu.pipeline_mode<synchronous>, transform_indices = @transform_1, window_bounds = array<i64: 4, 8>}, {pipeline_mode = #tpu.pipeline_mode<synchronous>, transform_indices = @transform_2, window_bounds = array<i64: 1, 8>}, {pipeline_mode = #tpu.pipeline_mode<synchronous>, transform_indices = @transform_3, window_bounds = array<i64: 1, 8>}, {pipeline_mode = #tpu.pipeline_mode<synchronous>, transform_indices = @transform_4, window_bounds = array<i64: 8, 96>}, {transform_indices = @transform_5, window_bounds = array<i64: 512, 96>}]} {
    %c0 = arith.constant 0 : index
    %c0_0 = arith.constant 0 : index
    %0 = vector.load %arg1[%c0, %c0_0] : memref<512x4xbf16, #tpu.memory_space<vmem>>, vector<512x4xbf16>
    %c0_1 = arith.constant 0 : index
    %c0_2 = arith.constant 0 : index
    %1 = vector.load %arg2[%c0_1, %c0_2] : memref<4x8xbf16, #tpu.memory_space<vmem>>, vector<4x8xbf16>
    %cst = arith.constant dense<0.000000e+00> : vector<512x8xf32>
    %2 = tpu.matmul %0, %1, %cst {dimension_numbers = #tpu.dot_dimension_numbers<[1], [0], [0], [1], [0, 0, 1, 1], [], []>} : vector<512x4xbf16>, vector<4x8xbf16>, vector<512x8xf32> -> vector<512x8xf32>
    %c0_3 = arith.constant 0 : index
    %c0_4 = arith.constant 0 : index
    %3 = vector.load %arg3[%c0_3, %c0_4] : memref<1x8xf32, #tpu.memory_space<vmem>>, vector<1x8xf32>
    %4 = vector.broadcast %3 : vector<1x8xf32> to vector<512x8xf32>
    %5 = arith.mulf %2, %4 : vector<512x8xf32>
    %c0_5 = arith.constant 0 : index
    %c0_6 = arith.constant 0 : index
    %6 = vector.load %arg4[%c0_5, %c0_6] : memref<1x8xf32, #tpu.memory_space<vmem>>, vector<1x8xf32>
    %7 = vector.broadcast %6 : vector<1x8xf32> to vector<512x8xf32>
    %8 = arith.addf %5, %7 : vector<512x8xf32>
    %cst_7 = arith.constant 0.000000e+00 : f32
    %9 = vector.broadcast %cst_7 : f32 to vector<512x8xf32>
    %10 = arith.maximumf %8, %9 : vector<512x8xf32>
    %11 = arith.truncf %10 : vector<512x8xf32> to vector<512x8xbf16>
    %c0_8 = arith.constant 0 : index
    %c0_9 = arith.constant 0 : index
    %12 = vector.load %arg5[%c0_8, %c0_9] : memref<8x96xbf16, #tpu.memory_space<vmem>>, vector<8x96xbf16>
    %cst_10 = arith.constant dense<0.000000e+00> : vector<512x96xf32>
    %13 = tpu.matmul %11, %12, %cst_10 {dimension_numbers = #tpu.dot_dimension_numbers<[1], [0], [0], [1], [0, 0, 1, 1], [], []>} : vector<512x8xbf16>, vector<8x96xbf16>, vector<512x96xf32> -> vector<512x96xf32>
    %14 = arith.truncf %13 : vector<512x96xf32> to vector<512x96xbf16>
    %c0_11 = arith.constant 0 : index
    %c0_12 = arith.constant 0 : index
    %15 = vector.load %arg6[%c0_11, %c0_12] : memref<512x96xbf16, #tpu.memory_space<vmem>>, vector<512x96xbf16>
    tpu.vector_store %arg6[%c0_11, %c0_12], %14 {strides = array<i32>} : memref<512x96xbf16, #tpu.memory_space<vmem>>, vector<512x96xbf16>,
    return
  }
  func.func @transform_0(%arg0: i32) -> (i32, i32) {
    %c0_i32 = arith.constant 0 : i32
    %c0_i32_0 = arith.constant 0 : i32
    return %arg0, %c0_i32 : i32, i32
  }
  func.func @transform_1(%arg0: i32) -> (i32, i32) {
    %c0_i32 = arith.constant 0 : i32
    %c0_i32_0 = arith.constant 0 : i32
    %c0_i32_1 = arith.constant 0 : i32
    return %c0_i32, %c0_i32_0 : i32, i32
  }
  func.func @transform_2(%arg0: i32) -> (i32, i32) {
    %c0_i32 = arith.constant 0 : i32
    %c0_i32_0 = arith.constant 0 : i32
    %c0_i32_1 = arith.constant 0 : i32
    return %c0_i32, %c0_i32_0 : i32, i32
  }
  func.func @transform_3(%arg0: i32) -> (i32, i32) {
    %c0_i32 = arith.constant 0 : i32
    %c0_i32_0 = arith.constant 0 : i32
    %c0_i32_1 = arith.constant 0 : i32
    return %c0_i32, %c0_i32_0 : i32, i32
  }
  func.func @transform_4(%arg0: i32) -> (i32, i32) {
    %c0_i32 = arith.constant 0 : i32
    %c0_i32_0 = arith.constant 0 : i32
    %c0_i32_1 = arith.constant 0 : i32
    return %c0_i32, %c0_i32_0 : i32, i32
  }
  func.func @transform_5(%arg0: i32) -> (i32, i32) {
    %c0_i32 = arith.constant 0 : i32
    %c0_i32_0 = arith.constant 0 : i32
    return %arg0, %c0_i32 : i32, i32
  }
}

module attributes {stable_mosaic.version = 11 : i64} {
  func.func @_attention_kernel(%arg0: i32, %arg1: i32, %arg2: memref<1x128x96xbf16, #tpu.memory_space<vmem>>, %arg3: memref<1x256x96xbf16, #tpu.memory_space<vmem>>, %arg4: memref<256x16xf32, #tpu.memory_space<vmem>>, %arg5: memref<1x128x32xbf16, #tpu.memory_space<vmem>>) attributes {dimension_semantics = [#tpu.dimension_semantics<parallel>, #tpu.dimension_semantics<parallel>], iteration_bounds = array<i64: 2, 2>, scalar_prefetch = 0 : i64, scratch_operands = 0 : i64, tpu.core_type = #tpu.core_type<tc>, window_params = [{transform_indices = @transform_0, window_bounds = array<i64: 1, 128, 96>}, {transform_indices = @transform_1, window_bounds = array<i64: 1, 256, 96>}, {pipeline_mode = #tpu.pipeline_mode<synchronous>, transform_indices = @transform_2, window_bounds = array<i64: 256, 16>}, {transform_indices = @transform_3, window_bounds = array<i64: 1, 128, 32>}]} {
    %c0 = arith.constant 0 : index
    %c0_0 = arith.constant 0 : index
    %c0_1 = arith.constant 0 : index
    %0 = vector.load %arg2[%c0, %c0_0, %c0_1] : memref<1x128x96xbf16, #tpu.memory_space<vmem>>, vector<1x128x96xbf16>
    %1 = vector.shape_cast %0 : vector<1x128x96xbf16> to vector<128x96xbf16>
    %c0_2 = arith.constant 0 : index
    %c0_3 = arith.constant 0 : index
    %c0_4 = arith.constant 0 : index
    %2 = vector.load %arg3[%c0_2, %c0_3, %c0_4] : memref<1x256x96xbf16, #tpu.memory_space<vmem>>, vector<1x256x96xbf16>
    %3 = vector.shape_cast %2 : vector<1x256x96xbf16> to vector<256x96xbf16>
    %c0_5 = arith.constant 0 : index
    %c0_6 = arith.constant 0 : index
    %4 = vector.load %arg4[%c0_5, %c0_6] : memref<256x16xf32, #tpu.memory_space<vmem>>, vector<256x16xf32>
    %5 = vector.extract_strided_slice %1 {offsets = [0, 0], sizes = [128, 16], strides = [1, 1]} : vector<128x96xbf16> to vector<128x16xbf16>
    %6 = vector.extract_strided_slice %3 {offsets = [0, 32], sizes = [256, 16], strides = [1, 1]} : vector<256x96xbf16> to vector<256x16xbf16>
    %7 = arith.extf %6 : vector<256x16xbf16> to vector<256x16xf32>
    %8 = arith.addf %7, %4 : vector<256x16xf32>
    %9 = arith.truncf %8 : vector<256x16xf32> to vector<256x16xbf16>
    %10 = vector.extract_strided_slice %3 {offsets = [0, 64], sizes = [256, 16], strides = [1, 1]} : vector<256x96xbf16> to vector<256x16xbf16>
    %cst = arith.constant dense<0.000000e+00> : vector<128x256xf32>
    %11 = tpu.matmul %5, %9, %cst {dimension_numbers = #tpu.dot_dimension_numbers<[1], [1], [0], [0], [0, 0, 1, 0], [], []>} : vector<128x16xbf16>, vector<256x16xbf16>, vector<128x256xf32> -> vector<128x256xf32>
    %cst_7 = arith.constant dense<0xFF800000> : vector<128xf32>
    %12 = vector.multi_reduction <maximumf>, %11, %cst_7 [1] : vector<128x256xf32> to vector<128xf32>
    %13 = vector.shape_cast %12 : vector<128xf32> to vector<128x1xf32>
    %14 = vector.broadcast %13 : vector<128x1xf32> to vector<128x256xf32>
    %15 = arith.subf %11, %14 : vector<128x256xf32>
    %16 = math.exp %15 : vector<128x256xf32>
    %cst_8 = arith.constant dense<0.000000e+00> : vector<128xf32>
    %17 = vector.multi_reduction <add>, %16, %cst_8 [1] : vector<128x256xf32> to vector<128xf32>
    %18 = vector.shape_cast %17 : vector<128xf32> to vector<128x1xf32>
    %19 = arith.truncf %16 : vector<128x256xf32> to vector<128x256xbf16>
    %cst_9 = arith.constant dense<0.000000e+00> : vector<128x16xf32>
    %20 = tpu.matmul %19, %10, %cst_9 {dimension_numbers = #tpu.dot_dimension_numbers<[1], [0], [0], [1], [0, 0, 1, 1], [], []>} : vector<128x256xbf16>, vector<256x16xbf16>, vector<128x16xf32> -> vector<128x16xf32>
    %21 = tpu.reciprocal %18 {approx = true} : vector<128x1xf32> -> vector<128x1xf32>
    %22 = vector.broadcast %21 : vector<128x1xf32> to vector<128x16xf32>
    %23 = arith.mulf %20, %22 : vector<128x16xf32>
    %24 = vector.extract_strided_slice %1 {offsets = [0, 16], sizes = [128, 16], strides = [1, 1]} : vector<128x96xbf16> to vector<128x16xbf16>
    %25 = vector.extract_strided_slice %3 {offsets = [0, 48], sizes = [256, 16], strides = [1, 1]} : vector<256x96xbf16> to vector<256x16xbf16>
    %26 = arith.extf %25 : vector<256x16xbf16> to vector<256x16xf32>
    %27 = arith.addf %26, %4 : vector<256x16xf32>
    %28 = arith.truncf %27 : vector<256x16xf32> to vector<256x16xbf16>
    %29 = vector.extract_strided_slice %3 {offsets = [0, 80], sizes = [256, 16], strides = [1, 1]} : vector<256x96xbf16> to vector<256x16xbf16>
    %cst_10 = arith.constant dense<0.000000e+00> : vector<128x256xf32>
    %30 = tpu.matmul %24, %28, %cst_10 {dimension_numbers = #tpu.dot_dimension_numbers<[1], [1], [0], [0], [0, 0, 1, 0], [], []>} : vector<128x16xbf16>, vector<256x16xbf16>, vector<128x256xf32> -> vector<128x256xf32>
    %cst_11 = arith.constant dense<0xFF800000> : vector<128xf32>
    %31 = vector.multi_reduction <maximumf>, %30, %cst_11 [1] : vector<128x256xf32> to vector<128xf32>
    %32 = vector.shape_cast %31 : vector<128xf32> to vector<128x1xf32>
    %33 = vector.broadcast %32 : vector<128x1xf32> to vector<128x256xf32>
    %34 = arith.subf %30, %33 : vector<128x256xf32>
    %35 = math.exp %34 : vector<128x256xf32>
    %cst_12 = arith.constant dense<0.000000e+00> : vector<128xf32>
    %36 = vector.multi_reduction <add>, %35, %cst_12 [1] : vector<128x256xf32> to vector<128xf32>
    %37 = vector.shape_cast %36 : vector<128xf32> to vector<128x1xf32>
    %38 = arith.truncf %35 : vector<128x256xf32> to vector<128x256xbf16>
    %cst_13 = arith.constant dense<0.000000e+00> : vector<128x16xf32>
    %39 = tpu.matmul %38, %29, %cst_13 {dimension_numbers = #tpu.dot_dimension_numbers<[1], [0], [0], [1], [0, 0, 1, 1], [], []>} : vector<128x256xbf16>, vector<256x16xbf16>, vector<128x16xf32> -> vector<128x16xf32>
    %40 = tpu.reciprocal %37 {approx = true} : vector<128x1xf32> -> vector<128x1xf32>
    %41 = vector.broadcast %40 : vector<128x1xf32> to vector<128x16xf32>
    %42 = arith.mulf %39, %41 : vector<128x16xf32>
    %43 = tpu.concatenate %23, %42 in 1 : vector<128x16xf32>, vector<128x16xf32> -> vector<128x32xf32>
    %44 = arith.truncf %43 : vector<128x32xf32> to vector<128x32xbf16>
    %c0_14 = arith.constant 0 : index
    %c0_15 = arith.constant 0 : index
    %c0_16 = arith.constant 0 : index
    %45 = vector.load %arg5[%c0_14, %c0_15, %c0_16] : memref<1x128x32xbf16, #tpu.memory_space<vmem>>, vector<1x128x32xbf16>
    %46 = vector.shape_cast %45 : vector<1x128x32xbf16> to vector<128x32xbf16>
    %47 = vector.shape_cast %44 : vector<128x32xbf16> to vector<1x128x32xbf16>
    tpu.vector_store %arg5[%c0_14, %c0_15, %c0_16], %47 {strides = array<i32>} : memref<1x128x32xbf16, #tpu.memory_space<vmem>>, vector<1x128x32xbf16>,
    return
  }
  func.func @transform_0(%arg0: i32, %arg1: i32) -> (i32, i32, i32) {
    %c0_i32 = arith.constant 0 : i32
    %c0_i32_0 = arith.constant 0 : i32
    return %arg0, %arg1, %c0_i32 : i32, i32, i32
  }
  func.func @transform_1(%arg0: i32, %arg1: i32) -> (i32, i32, i32) {
    %c0_i32 = arith.constant 0 : i32
    %c0_i32_0 = arith.constant 0 : i32
    %c0_i32_1 = arith.constant 0 : i32
    return %arg0, %c0_i32, %c0_i32_0 : i32, i32, i32
  }
  func.func @transform_2(%arg0: i32, %arg1: i32) -> (i32, i32) {
    %c0_i32 = arith.constant 0 : i32
    %c0_i32_0 = arith.constant 0 : i32
    %c0_i32_1 = arith.constant 0 : i32
    return %c0_i32, %c0_i32_0 : i32, i32
  }
  func.func @transform_3(%arg0: i32, %arg1: i32) -> (i32, i32, i32) {
    %c0_i32 = arith.constant 0 : i32
    %c0_i32_0 = arith.constant 0 : i32
    return %arg0, %arg1, %c0_i32 : i32, i32, i32
  }
}

module attributes {stable_mosaic.version = 11 : i64} {
  func.func @_pool2x2_conv2_res_kernel(%arg0: i32, %arg1: memref<1x2x8x64xbf16, #tpu.memory_space<vmem>>, %arg2: memref<1x32xf32, #tpu.memory_space<vmem>>, %arg3: memref<1x32xf32, #tpu.memory_space<vmem>>, %arg4: memref<32x32xbf16, #tpu.memory_space<vmem>>, %arg5: memref<1x32xf32, #tpu.memory_space<vmem>>, %arg6: memref<1x32xf32, #tpu.memory_space<vmem>>, %arg7: memref<1x8x32xbf16, #tpu.memory_space<vmem>>, %arg8: memref<1x8x32xbf16, #tpu.memory_space<vmem>>) attributes {dimension_semantics = [#tpu.dimension_semantics<parallel>], iteration_bounds = array<i64: 16>, scalar_prefetch = 0 : i64, scratch_operands = 0 : i64, tpu.core_type = #tpu.core_type<tc>, window_params = [{transform_indices = @transform_0, window_bounds = array<i64: 1, 2, 8, 64>}, {pipeline_mode = #tpu.pipeline_mode<synchronous>, transform_indices = @transform_1, window_bounds = array<i64: 1, 32>}, {pipeline_mode = #tpu.pipeline_mode<synchronous>, transform_indices = @transform_2, window_bounds = array<i64: 1, 32>}, {pipeline_mode = #tpu.pipeline_mode<synchronous>, transform_indices = @transform_3, window_bounds = array<i64: 32, 32>}, {pipeline_mode = #tpu.pipeline_mode<synchronous>, transform_indices = @transform_4, window_bounds = array<i64: 1, 32>}, {pipeline_mode = #tpu.pipeline_mode<synchronous>, transform_indices = @transform_5, window_bounds = array<i64: 1, 32>}, {transform_indices = @transform_6, window_bounds = array<i64: 1, 8, 32>}, {transform_indices = @transform_7, window_bounds = array<i64: 1, 8, 32>}]} {
    %c0 = arith.constant 0 : index
    %c0_0 = arith.constant 0 : index
    %c0_1 = arith.constant 0 : index
    %c0_2 = arith.constant 0 : index
    %0 = vector.load %arg1[%c0, %c0_0, %c0_1, %c0_2] : memref<1x2x8x64xbf16, #tpu.memory_space<vmem>>, vector<1x2x8x64xbf16>
    %1 = vector.shape_cast %0 : vector<1x2x8x64xbf16> to vector<2x8x64xbf16>
    %2 = arith.extf %1 : vector<2x8x64xbf16> to vector<2x8x64xf32>
    %3 = vector.extract_strided_slice %2 {offsets = [0, 0, 0], sizes = [1, 8, 64], strides = [1, 1, 1]} : vector<2x8x64xf32> to vector<1x8x64xf32>
    %4 = vector.shape_cast %3 : vector<1x8x64xf32> to vector<8x64xf32>
    %5 = vector.extract_strided_slice %2 {offsets = [1, 0, 0], sizes = [1, 8, 64], strides = [1, 1, 1]} : vector<2x8x64xf32> to vector<1x8x64xf32>
    %6 = vector.shape_cast %5 : vector<1x8x64xf32> to vector<8x64xf32>
    %7 = arith.addf %4, %6 : vector<8x64xf32>
    %8 = vector.extract_strided_slice %7 {offsets = [0, 0], sizes = [8, 32], strides = [1, 1]} : vector<8x64xf32> to vector<8x32xf32>
    %9 = vector.extract_strided_slice %7 {offsets = [0, 32], sizes = [8, 32], strides = [1, 1]} : vector<8x64xf32> to vector<8x32xf32>
    %10 = arith.addf %8, %9 : vector<8x32xf32>
    %cst = arith.constant 2.500000e-01 : f32
    %11 = vector.broadcast %cst : f32 to vector<8x32xf32>
    %12 = arith.mulf %10, %11 : vector<8x32xf32>
    %c0_3 = arith.constant 0 : index
    %c0_4 = arith.constant 0 : index
    %13 = vector.load %arg2[%c0_3, %c0_4] : memref<1x32xf32, #tpu.memory_space<vmem>>, vector<1x32xf32>
    %14 = vector.broadcast %13 : vector<1x32xf32> to vector<8x32xf32>
    %15 = arith.mulf %12, %14 : vector<8x32xf32>
    %c0_5 = arith.constant 0 : index
    %c0_6 = arith.constant 0 : index
    %16 = vector.load %arg3[%c0_5, %c0_6] : memref<1x32xf32, #tpu.memory_space<vmem>>, vector<1x32xf32>
    %17 = vector.broadcast %16 : vector<1x32xf32> to vector<8x32xf32>
    %18 = arith.addf %15, %17 : vector<8x32xf32>
    %cst_7 = arith.constant 0.000000e+00 : f32
    %19 = vector.broadcast %cst_7 : f32 to vector<8x32xf32>
    %20 = arith.maximumf %18, %19 : vector<8x32xf32>
    %21 = arith.truncf %20 : vector<8x32xf32> to vector<8x32xbf16>
    %c0_8 = arith.constant 0 : index
    %c0_9 = arith.constant 0 : index
    %22 = vector.load %arg4[%c0_8, %c0_9] : memref<32x32xbf16, #tpu.memory_space<vmem>>, vector<32x32xbf16>
    %cst_10 = arith.constant dense<0.000000e+00> : vector<8x32xf32>
    %23 = tpu.matmul %21, %22, %cst_10 {dimension_numbers = #tpu.dot_dimension_numbers<[1], [0], [0], [1], [0, 0, 1, 1], [], []>} : vector<8x32xbf16>, vector<32x32xbf16>, vector<8x32xf32> -> vector<8x32xf32>
    %c0_11 = arith.constant 0 : index
    %c0_12 = arith.constant 0 : index
    %24 = vector.load %arg5[%c0_11, %c0_12] : memref<1x32xf32, #tpu.memory_space<vmem>>, vector<1x32xf32>
    %25 = vector.broadcast %24 : vector<1x32xf32> to vector<8x32xf32>
    %26 = arith.mulf %23, %25 : vector<8x32xf32>
    %c0_13 = arith.constant 0 : index
    %c0_14 = arith.constant 0 : index
    %27 = vector.load %arg6[%c0_13, %c0_14] : memref<1x32xf32, #tpu.memory_space<vmem>>, vector<1x32xf32>
    %28 = vector.broadcast %27 : vector<1x32xf32> to vector<8x32xf32>
    %29 = arith.addf %26, %28 : vector<8x32xf32>
    %c0_15 = arith.constant 0 : index
    %c0_16 = arith.constant 0 : index
    %c0_17 = arith.constant 0 : index
    %30 = vector.load %arg7[%c0_15, %c0_16, %c0_17] : memref<1x8x32xbf16, #tpu.memory_space<vmem>>, vector<1x8x32xbf16>
    %31 = vector.shape_cast %30 : vector<1x8x32xbf16> to vector<8x32xbf16>
    %32 = arith.extf %31 : vector<8x32xbf16> to vector<8x32xf32>
    %33 = arith.addf %29, %32 : vector<8x32xf32>
    %cst_18 = arith.constant 0.000000e+00 : f32
    %34 = vector.broadcast %cst_18 : f32 to vector<8x32xf32>
    %35 = arith.maximumf %33, %34 : vector<8x32xf32>
    %36 = arith.truncf %35 : vector<8x32xf32> to vector<8x32xbf16>
    %c0_19 = arith.constant 0 : index
    %c0_20 = arith.constant 0 : index
    %c0_21 = arith.constant 0 : index
    %37 = vector.load %arg8[%c0_19, %c0_20, %c0_21] : memref<1x8x32xbf16, #tpu.memory_space<vmem>>, vector<1x8x32xbf16>
    %38 = vector.shape_cast %37 : vector<1x8x32xbf16> to vector<8x32xbf16>
    %39 = vector.shape_cast %36 : vector<8x32xbf16> to vector<1x8x32xbf16>
    tpu.vector_store %arg8[%c0_19, %c0_20, %c0_21], %39 {strides = array<i32>} : memref<1x8x32xbf16, #tpu.memory_space<vmem>>, vector<1x8x32xbf16>,
    return
  }
  func.func @transform_0(%arg0: i32) -> (i32, i32, i32, i32) {
    %c0_i32 = arith.constant 0 : i32
    %c0_i32_0 = arith.constant 0 : i32
    %c0_i32_1 = arith.constant 0 : i32
    %c0_i32_2 = arith.constant 0 : i32
    return %arg0, %c0_i32, %c0_i32_0, %c0_i32_1 : i32, i32, i32, i32
  }
  func.func @transform_1(%arg0: i32) -> (i32, i32) {
    %c0_i32 = arith.constant 0 : i32
    %c0_i32_0 = arith.constant 0 : i32
    %c0_i32_1 = arith.constant 0 : i32
    return %c0_i32, %c0_i32_0 : i32, i32
  }
  func.func @transform_2(%arg0: i32) -> (i32, i32) {
    %c0_i32 = arith.constant 0 : i32
    %c0_i32_0 = arith.constant 0 : i32
    %c0_i32_1 = arith.constant 0 : i32
    return %c0_i32, %c0_i32_0 : i32, i32
  }
  func.func @transform_3(%arg0: i32) -> (i32, i32) {
    %c0_i32 = arith.constant 0 : i32
    %c0_i32_0 = arith.constant 0 : i32
    %c0_i32_1 = arith.constant 0 : i32
    return %c0_i32, %c0_i32_0 : i32, i32
  }
  func.func @transform_4(%arg0: i32) -> (i32, i32) {
    %c0_i32 = arith.constant 0 : i32
    %c0_i32_0 = arith.constant 0 : i32
    %c0_i32_1 = arith.constant 0 : i32
    return %c0_i32, %c0_i32_0 : i32, i32
  }
  func.func @transform_5(%arg0: i32) -> (i32, i32) {
    %c0_i32 = arith.constant 0 : i32
    %c0_i32_0 = arith.constant 0 : i32
    %c0_i32_1 = arith.constant 0 : i32
    return %c0_i32, %c0_i32_0 : i32, i32
  }
  func.func @transform_6(%arg0: i32) -> (i32, i32, i32) {
    %c0_i32 = arith.constant 0 : i32
    %c0_i32_0 = arith.constant 0 : i32
    %c0_i32_1 = arith.constant 0 : i32
    return %arg0, %c0_i32, %c0_i32_0 : i32, i32, i32
  }
  func.func @transform_7(%arg0: i32) -> (i32, i32, i32) {
    %c0_i32 = arith.constant 0 : i32
    %c0_i32_0 = arith.constant 0 : i32
    %c0_i32_1 = arith.constant 0 : i32
    return %arg0, %c0_i32, %c0_i32_0 : i32, i32, i32
  }
}

module attributes {stable_mosaic.version = 11 : i64} {
  func.func @_conv1_qkv_kernel(%arg0: i32, %arg1: memref<128x32xbf16, #tpu.memory_space<vmem>>, %arg2: memref<32x8xbf16, #tpu.memory_space<vmem>>, %arg3: memref<1x8xf32, #tpu.memory_space<vmem>>, %arg4: memref<1x8xf32, #tpu.memory_space<vmem>>, %arg5: memref<8x96xbf16, #tpu.memory_space<vmem>>, %arg6: memref<128x96xbf16, #tpu.memory_space<vmem>>) attributes {dimension_semantics = [#tpu.dimension_semantics<parallel>], iteration_bounds = array<i64: 1>, scalar_prefetch = 0 : i64, scratch_operands = 0 : i64, tpu.core_type = #tpu.core_type<tc>, window_params = [{transform_indices = @transform_0, window_bounds = array<i64: 128, 32>}, {pipeline_mode = #tpu.pipeline_mode<synchronous>, transform_indices = @transform_1, window_bounds = array<i64: 32, 8>}, {pipeline_mode = #tpu.pipeline_mode<synchronous>, transform_indices = @transform_2, window_bounds = array<i64: 1, 8>}, {pipeline_mode = #tpu.pipeline_mode<synchronous>, transform_indices = @transform_3, window_bounds = array<i64: 1, 8>}, {pipeline_mode = #tpu.pipeline_mode<synchronous>, transform_indices = @transform_4, window_bounds = array<i64: 8, 96>}, {transform_indices = @transform_5, window_bounds = array<i64: 128, 96>}]} {
    %c0 = arith.constant 0 : index
    %c0_0 = arith.constant 0 : index
    %0 = vector.load %arg1[%c0, %c0_0] : memref<128x32xbf16, #tpu.memory_space<vmem>>, vector<128x32xbf16>
    %c0_1 = arith.constant 0 : index
    %c0_2 = arith.constant 0 : index
    %1 = vector.load %arg2[%c0_1, %c0_2] : memref<32x8xbf16, #tpu.memory_space<vmem>>, vector<32x8xbf16>
    %cst = arith.constant dense<0.000000e+00> : vector<128x8xf32>
    %2 = tpu.matmul %0, %1, %cst {dimension_numbers = #tpu.dot_dimension_numbers<[1], [0], [0], [1], [0, 0, 1, 1], [], []>} : vector<128x32xbf16>, vector<32x8xbf16>, vector<128x8xf32> -> vector<128x8xf32>
    %c0_3 = arith.constant 0 : index
    %c0_4 = arith.constant 0 : index
    %3 = vector.load %arg3[%c0_3, %c0_4] : memref<1x8xf32, #tpu.memory_space<vmem>>, vector<1x8xf32>
    %4 = vector.broadcast %3 : vector<1x8xf32> to vector<128x8xf32>
    %5 = arith.mulf %2, %4 : vector<128x8xf32>
    %c0_5 = arith.constant 0 : index
    %c0_6 = arith.constant 0 : index
    %6 = vector.load %arg4[%c0_5, %c0_6] : memref<1x8xf32, #tpu.memory_space<vmem>>, vector<1x8xf32>
    %7 = vector.broadcast %6 : vector<1x8xf32> to vector<128x8xf32>
    %8 = arith.addf %5, %7 : vector<128x8xf32>
    %cst_7 = arith.constant 0.000000e+00 : f32
    %9 = vector.broadcast %cst_7 : f32 to vector<128x8xf32>
    %10 = arith.maximumf %8, %9 : vector<128x8xf32>
    %11 = arith.truncf %10 : vector<128x8xf32> to vector<128x8xbf16>
    %c0_8 = arith.constant 0 : index
    %c0_9 = arith.constant 0 : index
    %12 = vector.load %arg5[%c0_8, %c0_9] : memref<8x96xbf16, #tpu.memory_space<vmem>>, vector<8x96xbf16>
    %cst_10 = arith.constant dense<0.000000e+00> : vector<128x96xf32>
    %13 = tpu.matmul %11, %12, %cst_10 {dimension_numbers = #tpu.dot_dimension_numbers<[1], [0], [0], [1], [0, 0, 1, 1], [], []>} : vector<128x8xbf16>, vector<8x96xbf16>, vector<128x96xf32> -> vector<128x96xf32>
    %14 = arith.truncf %13 : vector<128x96xf32> to vector<128x96xbf16>
    %c0_11 = arith.constant 0 : index
    %c0_12 = arith.constant 0 : index
    %15 = vector.load %arg6[%c0_11, %c0_12] : memref<128x96xbf16, #tpu.memory_space<vmem>>, vector<128x96xbf16>
    tpu.vector_store %arg6[%c0_11, %c0_12], %14 {strides = array<i32>} : memref<128x96xbf16, #tpu.memory_space<vmem>>, vector<128x96xbf16>,
    return
  }
  func.func @transform_0(%arg0: i32) -> (i32, i32) {
    %c0_i32 = arith.constant 0 : i32
    %c0_i32_0 = arith.constant 0 : i32
    return %arg0, %c0_i32 : i32, i32
  }
  func.func @transform_1(%arg0: i32) -> (i32, i32) {
    %c0_i32 = arith.constant 0 : i32
    %c0_i32_0 = arith.constant 0 : i32
    %c0_i32_1 = arith.constant 0 : i32
    return %c0_i32, %c0_i32_0 : i32, i32
  }
  func.func @transform_2(%arg0: i32) -> (i32, i32) {
    %c0_i32 = arith.constant 0 : i32
    %c0_i32_0 = arith.constant 0 : i32
    %c0_i32_1 = arith.constant 0 : i32
    return %c0_i32, %c0_i32_0 : i32, i32
  }
  func.func @transform_3(%arg0: i32) -> (i32, i32) {
    %c0_i32 = arith.constant 0 : i32
    %c0_i32_0 = arith.constant 0 : i32
    %c0_i32_1 = arith.constant 0 : i32
    return %c0_i32, %c0_i32_0 : i32, i32
  }
  func.func @transform_4(%arg0: i32) -> (i32, i32) {
    %c0_i32 = arith.constant 0 : i32
    %c0_i32_0 = arith.constant 0 : i32
    %c0_i32_1 = arith.constant 0 : i32
    return %c0_i32, %c0_i32_0 : i32, i32
  }
  func.func @transform_5(%arg0: i32) -> (i32, i32) {
    %c0_i32 = arith.constant 0 : i32
    %c0_i32_0 = arith.constant 0 : i32
    return %arg0, %c0_i32 : i32, i32
  }
}

module attributes {stable_mosaic.version = 11 : i64} {
  func.func @_attention_kernel(%arg0: i32, %arg1: i32, %arg2: memref<1x64x96xbf16, #tpu.memory_space<vmem>>, %arg3: memref<1x64x96xbf16, #tpu.memory_space<vmem>>, %arg4: memref<64x16xf32, #tpu.memory_space<vmem>>, %arg5: memref<1x64x32xbf16, #tpu.memory_space<vmem>>) attributes {dimension_semantics = [#tpu.dimension_semantics<parallel>, #tpu.dimension_semantics<parallel>], iteration_bounds = array<i64: 2, 1>, scalar_prefetch = 0 : i64, scratch_operands = 0 : i64, tpu.core_type = #tpu.core_type<tc>, window_params = [{transform_indices = @transform_0, window_bounds = array<i64: 1, 64, 96>}, {transform_indices = @transform_1, window_bounds = array<i64: 1, 64, 96>}, {pipeline_mode = #tpu.pipeline_mode<synchronous>, transform_indices = @transform_2, window_bounds = array<i64: 64, 16>}, {transform_indices = @transform_3, window_bounds = array<i64: 1, 64, 32>}]} {
    %c0 = arith.constant 0 : index
    %c0_0 = arith.constant 0 : index
    %c0_1 = arith.constant 0 : index
    %0 = vector.load %arg2[%c0, %c0_0, %c0_1] : memref<1x64x96xbf16, #tpu.memory_space<vmem>>, vector<1x64x96xbf16>
    %1 = vector.shape_cast %0 : vector<1x64x96xbf16> to vector<64x96xbf16>
    %c0_2 = arith.constant 0 : index
    %c0_3 = arith.constant 0 : index
    %c0_4 = arith.constant 0 : index
    %2 = vector.load %arg3[%c0_2, %c0_3, %c0_4] : memref<1x64x96xbf16, #tpu.memory_space<vmem>>, vector<1x64x96xbf16>
    %3 = vector.shape_cast %2 : vector<1x64x96xbf16> to vector<64x96xbf16>
    %c0_5 = arith.constant 0 : index
    %c0_6 = arith.constant 0 : index
    %4 = vector.load %arg4[%c0_5, %c0_6] : memref<64x16xf32, #tpu.memory_space<vmem>>, vector<64x16xf32>
    %5 = vector.extract_strided_slice %1 {offsets = [0, 0], sizes = [64, 16], strides = [1, 1]} : vector<64x96xbf16> to vector<64x16xbf16>
    %6 = vector.extract_strided_slice %3 {offsets = [0, 32], sizes = [64, 16], strides = [1, 1]} : vector<64x96xbf16> to vector<64x16xbf16>
    %7 = arith.extf %6 : vector<64x16xbf16> to vector<64x16xf32>
    %8 = arith.addf %7, %4 : vector<64x16xf32>
    %9 = arith.truncf %8 : vector<64x16xf32> to vector<64x16xbf16>
    %10 = vector.extract_strided_slice %3 {offsets = [0, 64], sizes = [64, 16], strides = [1, 1]} : vector<64x96xbf16> to vector<64x16xbf16>
    %cst = arith.constant dense<0.000000e+00> : vector<64x64xf32>
    %11 = tpu.matmul %5, %9, %cst {dimension_numbers = #tpu.dot_dimension_numbers<[1], [1], [0], [0], [0, 0, 1, 0], [], []>} : vector<64x16xbf16>, vector<64x16xbf16>, vector<64x64xf32> -> vector<64x64xf32>
    %cst_7 = arith.constant dense<0xFF800000> : vector<64xf32>
    %12 = vector.multi_reduction <maximumf>, %11, %cst_7 [1] : vector<64x64xf32> to vector<64xf32>
    %13 = vector.shape_cast %12 : vector<64xf32> to vector<64x1xf32>
    %14 = vector.broadcast %13 : vector<64x1xf32> to vector<64x64xf32>
    %15 = arith.subf %11, %14 : vector<64x64xf32>
    %16 = math.exp %15 : vector<64x64xf32>
    %cst_8 = arith.constant dense<0.000000e+00> : vector<64xf32>
    %17 = vector.multi_reduction <add>, %16, %cst_8 [1] : vector<64x64xf32> to vector<64xf32>
    %18 = vector.shape_cast %17 : vector<64xf32> to vector<64x1xf32>
    %19 = arith.truncf %16 : vector<64x64xf32> to vector<64x64xbf16>
    %cst_9 = arith.constant dense<0.000000e+00> : vector<64x16xf32>
    %20 = tpu.matmul %19, %10, %cst_9 {dimension_numbers = #tpu.dot_dimension_numbers<[1], [0], [0], [1], [0, 0, 1, 1], [], []>} : vector<64x64xbf16>, vector<64x16xbf16>, vector<64x16xf32> -> vector<64x16xf32>
    %21 = tpu.reciprocal %18 {approx = true} : vector<64x1xf32> -> vector<64x1xf32>
    %22 = vector.broadcast %21 : vector<64x1xf32> to vector<64x16xf32>
    %23 = arith.mulf %20, %22 : vector<64x16xf32>
    %24 = vector.extract_strided_slice %1 {offsets = [0, 16], sizes = [64, 16], strides = [1, 1]} : vector<64x96xbf16> to vector<64x16xbf16>
    %25 = vector.extract_strided_slice %3 {offsets = [0, 48], sizes = [64, 16], strides = [1, 1]} : vector<64x96xbf16> to vector<64x16xbf16>
    %26 = arith.extf %25 : vector<64x16xbf16> to vector<64x16xf32>
    %27 = arith.addf %26, %4 : vector<64x16xf32>
    %28 = arith.truncf %27 : vector<64x16xf32> to vector<64x16xbf16>
    %29 = vector.extract_strided_slice %3 {offsets = [0, 80], sizes = [64, 16], strides = [1, 1]} : vector<64x96xbf16> to vector<64x16xbf16>
    %cst_10 = arith.constant dense<0.000000e+00> : vector<64x64xf32>
    %30 = tpu.matmul %24, %28, %cst_10 {dimension_numbers = #tpu.dot_dimension_numbers<[1], [1], [0], [0], [0, 0, 1, 0], [], []>} : vector<64x16xbf16>, vector<64x16xbf16>, vector<64x64xf32> -> vector<64x64xf32>
    %cst_11 = arith.constant dense<0xFF800000> : vector<64xf32>
    %31 = vector.multi_reduction <maximumf>, %30, %cst_11 [1] : vector<64x64xf32> to vector<64xf32>
    %32 = vector.shape_cast %31 : vector<64xf32> to vector<64x1xf32>
    %33 = vector.broadcast %32 : vector<64x1xf32> to vector<64x64xf32>
    %34 = arith.subf %30, %33 : vector<64x64xf32>
    %35 = math.exp %34 : vector<64x64xf32>
    %cst_12 = arith.constant dense<0.000000e+00> : vector<64xf32>
    %36 = vector.multi_reduction <add>, %35, %cst_12 [1] : vector<64x64xf32> to vector<64xf32>
    %37 = vector.shape_cast %36 : vector<64xf32> to vector<64x1xf32>
    %38 = arith.truncf %35 : vector<64x64xf32> to vector<64x64xbf16>
    %cst_13 = arith.constant dense<0.000000e+00> : vector<64x16xf32>
    %39 = tpu.matmul %38, %29, %cst_13 {dimension_numbers = #tpu.dot_dimension_numbers<[1], [0], [0], [1], [0, 0, 1, 1], [], []>} : vector<64x64xbf16>, vector<64x16xbf16>, vector<64x16xf32> -> vector<64x16xf32>
    %40 = tpu.reciprocal %37 {approx = true} : vector<64x1xf32> -> vector<64x1xf32>
    %41 = vector.broadcast %40 : vector<64x1xf32> to vector<64x16xf32>
    %42 = arith.mulf %39, %41 : vector<64x16xf32>
    %43 = tpu.concatenate %23, %42 in 1 : vector<64x16xf32>, vector<64x16xf32> -> vector<64x32xf32>
    %44 = arith.truncf %43 : vector<64x32xf32> to vector<64x32xbf16>
    %c0_14 = arith.constant 0 : index
    %c0_15 = arith.constant 0 : index
    %c0_16 = arith.constant 0 : index
    %45 = vector.load %arg5[%c0_14, %c0_15, %c0_16] : memref<1x64x32xbf16, #tpu.memory_space<vmem>>, vector<1x64x32xbf16>
    %46 = vector.shape_cast %45 : vector<1x64x32xbf16> to vector<64x32xbf16>
    %47 = vector.shape_cast %44 : vector<64x32xbf16> to vector<1x64x32xbf16>
    tpu.vector_store %arg5[%c0_14, %c0_15, %c0_16], %47 {strides = array<i32>} : memref<1x64x32xbf16, #tpu.memory_space<vmem>>, vector<1x64x32xbf16>,
    return
  }
  func.func @transform_0(%arg0: i32, %arg1: i32) -> (i32, i32, i32) {
    %c0_i32 = arith.constant 0 : i32
    %c0_i32_0 = arith.constant 0 : i32
    return %arg0, %arg1, %c0_i32 : i32, i32, i32
  }
  func.func @transform_1(%arg0: i32, %arg1: i32) -> (i32, i32, i32) {
    %c0_i32 = arith.constant 0 : i32
    %c0_i32_0 = arith.constant 0 : i32
    %c0_i32_1 = arith.constant 0 : i32
    return %arg0, %c0_i32, %c0_i32_0 : i32, i32, i32
  }
  func.func @transform_2(%arg0: i32, %arg1: i32) -> (i32, i32) {
    %c0_i32 = arith.constant 0 : i32
    %c0_i32_0 = arith.constant 0 : i32
    %c0_i32_1 = arith.constant 0 : i32
    return %c0_i32, %c0_i32_0 : i32, i32
  }
  func.func @transform_3(%arg0: i32, %arg1: i32) -> (i32, i32, i32) {
    %c0_i32 = arith.constant 0 : i32
    %c0_i32_0 = arith.constant 0 : i32
    return %arg0, %arg1, %c0_i32 : i32, i32, i32
  }
}

module attributes {stable_mosaic.version = 11 : i64} {
  func.func @_conv2_res_kernel(%arg0: i32, %arg1: memref<128x32xbf16, #tpu.memory_space<vmem>>, %arg2: memref<1x32xf32, #tpu.memory_space<vmem>>, %arg3: memref<1x32xf32, #tpu.memory_space<vmem>>, %arg4: memref<32x32xbf16, #tpu.memory_space<vmem>>, %arg5: memref<1x32xf32, #tpu.memory_space<vmem>>, %arg6: memref<1x32xf32, #tpu.memory_space<vmem>>, %arg7: memref<128x32xbf16, #tpu.memory_space<vmem>>, %arg8: memref<128x32xbf16, #tpu.memory_space<vmem>>) attributes {dimension_semantics = [#tpu.dimension_semantics<parallel>], iteration_bounds = array<i64: 1>, scalar_prefetch = 0 : i64, scratch_operands = 0 : i64, tpu.core_type = #tpu.core_type<tc>, window_params = [{transform_indices = @transform_0, window_bounds = array<i64: 128, 32>}, {pipeline_mode = #tpu.pipeline_mode<synchronous>, transform_indices = @transform_1, window_bounds = array<i64: 1, 32>}, {pipeline_mode = #tpu.pipeline_mode<synchronous>, transform_indices = @transform_2, window_bounds = array<i64: 1, 32>}, {pipeline_mode = #tpu.pipeline_mode<synchronous>, transform_indices = @transform_3, window_bounds = array<i64: 32, 32>}, {pipeline_mode = #tpu.pipeline_mode<synchronous>, transform_indices = @transform_4, window_bounds = array<i64: 1, 32>}, {pipeline_mode = #tpu.pipeline_mode<synchronous>, transform_indices = @transform_5, window_bounds = array<i64: 1, 32>}, {transform_indices = @transform_6, window_bounds = array<i64: 128, 32>}, {transform_indices = @transform_7, window_bounds = array<i64: 128, 32>}]} {
    %c0 = arith.constant 0 : index
    %c0_0 = arith.constant 0 : index
    %0 = vector.load %arg1[%c0, %c0_0] : memref<128x32xbf16, #tpu.memory_space<vmem>>, vector<128x32xbf16>
    %1 = arith.extf %0 : vector<128x32xbf16> to vector<128x32xf32>
    %c0_1 = arith.constant 0 : index
    %c0_2 = arith.constant 0 : index
    %2 = vector.load %arg2[%c0_1, %c0_2] : memref<1x32xf32, #tpu.memory_space<vmem>>, vector<1x32xf32>
    %3 = vector.broadcast %2 : vector<1x32xf32> to vector<128x32xf32>
    %4 = arith.mulf %1, %3 : vector<128x32xf32>
    %c0_3 = arith.constant 0 : index
    %c0_4 = arith.constant 0 : index
    %5 = vector.load %arg3[%c0_3, %c0_4] : memref<1x32xf32, #tpu.memory_space<vmem>>, vector<1x32xf32>
    %6 = vector.broadcast %5 : vector<1x32xf32> to vector<128x32xf32>
    %7 = arith.addf %4, %6 : vector<128x32xf32>
    %cst = arith.constant 0.000000e+00 : f32
    %8 = vector.broadcast %cst : f32 to vector<128x32xf32>
    %9 = arith.maximumf %7, %8 : vector<128x32xf32>
    %10 = arith.truncf %9 : vector<128x32xf32> to vector<128x32xbf16>
    %c0_5 = arith.constant 0 : index
    %c0_6 = arith.constant 0 : index
    %11 = vector.load %arg4[%c0_5, %c0_6] : memref<32x32xbf16, #tpu.memory_space<vmem>>, vector<32x32xbf16>
    %cst_7 = arith.constant dense<0.000000e+00> : vector<128x32xf32>
    %12 = tpu.matmul %10, %11, %cst_7 {dimension_numbers = #tpu.dot_dimension_numbers<[1], [0], [0], [1], [0, 0, 1, 1], [], []>} : vector<128x32xbf16>, vector<32x32xbf16>, vector<128x32xf32> -> vector<128x32xf32>
    %c0_8 = arith.constant 0 : index
    %c0_9 = arith.constant 0 : index
    %13 = vector.load %arg5[%c0_8, %c0_9] : memref<1x32xf32, #tpu.memory_space<vmem>>, vector<1x32xf32>
    %14 = vector.broadcast %13 : vector<1x32xf32> to vector<128x32xf32>
    %15 = arith.mulf %12, %14 : vector<128x32xf32>
    %c0_10 = arith.constant 0 : index
    %c0_11 = arith.constant 0 : index
    %16 = vector.load %arg6[%c0_10, %c0_11] : memref<1x32xf32, #tpu.memory_space<vmem>>, vector<1x32xf32>
    %17 = vector.broadcast %16 : vector<1x32xf32> to vector<128x32xf32>
    %18 = arith.addf %15, %17 : vector<128x32xf32>
    %c0_12 = arith.constant 0 : index
    %c0_13 = arith.constant 0 : index
    %19 = vector.load %arg7[%c0_12, %c0_13] : memref<128x32xbf16, #tpu.memory_space<vmem>>, vector<128x32xbf16>
    %20 = arith.extf %19 : vector<128x32xbf16> to vector<128x32xf32>
    %21 = arith.addf %18, %20 : vector<128x32xf32>
    %cst_14 = arith.constant 0.000000e+00 : f32
    %22 = vector.broadcast %cst_14 : f32 to vector<128x32xf32>
    %23 = arith.maximumf %21, %22 : vector<128x32xf32>
    %24 = arith.truncf %23 : vector<128x32xf32> to vector<128x32xbf16>
    %c0_15 = arith.constant 0 : index
    %c0_16 = arith.constant 0 : index
    %25 = vector.load %arg8[%c0_15, %c0_16] : memref<128x32xbf16, #tpu.memory_space<vmem>>, vector<128x32xbf16>
    tpu.vector_store %arg8[%c0_15, %c0_16], %24 {strides = array<i32>} : memref<128x32xbf16, #tpu.memory_space<vmem>>, vector<128x32xbf16>,
    return
  }
  func.func @transform_0(%arg0: i32) -> (i32, i32) {
    %c0_i32 = arith.constant 0 : i32
    %c0_i32_0 = arith.constant 0 : i32
    return %arg0, %c0_i32 : i32, i32
  }
  func.func @transform_1(%arg0: i32) -> (i32, i32) {
    %c0_i32 = arith.constant 0 : i32
    %c0_i32_0 = arith.constant 0 : i32
    %c0_i32_1 = arith.constant 0 : i32
    return %c0_i32, %c0_i32_0 : i32, i32
  }
  func.func @transform_2(%arg0: i32) -> (i32, i32) {
    %c0_i32 = arith.constant 0 : i32
    %c0_i32_0 = arith.constant 0 : i32
    %c0_i32_1 = arith.constant 0 : i32
    return %c0_i32, %c0_i32_0 : i32, i32
  }
  func.func @transform_3(%arg0: i32) -> (i32, i32) {
    %c0_i32 = arith.constant 0 : i32
    %c0_i32_0 = arith.constant 0 : i32
    %c0_i32_1 = arith.constant 0 : i32
    return %c0_i32, %c0_i32_0 : i32, i32
  }
  func.func @transform_4(%arg0: i32) -> (i32, i32) {
    %c0_i32 = arith.constant 0 : i32
    %c0_i32_0 = arith.constant 0 : i32
    %c0_i32_1 = arith.constant 0 : i32
    return %c0_i32, %c0_i32_0 : i32, i32
  }
  func.func @transform_5(%arg0: i32) -> (i32, i32) {
    %c0_i32 = arith.constant 0 : i32
    %c0_i32_0 = arith.constant 0 : i32
    %c0_i32_1 = arith.constant 0 : i32
    return %c0_i32, %c0_i32_0 : i32, i32
  }
  func.func @transform_6(%arg0: i32) -> (i32, i32) {
    %c0_i32 = arith.constant 0 : i32
    %c0_i32_0 = arith.constant 0 : i32
    return %arg0, %c0_i32 : i32, i32
  }
  func.func @transform_7(%arg0: i32) -> (i32, i32) {
    %c0_i32 = arith.constant 0 : i32
    %c0_i32_0 = arith.constant 0 : i32
    return %arg0, %c0_i32 : i32, i32
  }
}

</mosaic_0001>

<llo_original>
// kernel: bottle_stack_forward.10
$region0: #{bottle_stack_forward.10}
  #allocation0 [shape = 'u32[]', space=smem, size = 0x4, offset = 0x4, fixed_abs, tag = 'smem constant byte address 0x4 - core index']
  #allocation1 [shape = 'u32[144,128]{1,0:T(1,128)}', space=vmem, size = 0x12000, scoped, tag = 'internal scratch']
  %s0 = inlined_call_operand.vmem [shape: bf16[128,36], index: 0, kind: input, shape index: {}]
  %s1 = inlined_call_operand.vmem [shape: bf16[36,32], index: 1, kind: input, shape index: {}]
  %s2 = inlined_call_operand.vmem [shape: f32[1,32], index: 2, kind: input, shape index: {}]
  %s3 = inlined_call_operand.vmem [shape: f32[1,32], index: 3, kind: input, shape index: {}]
  %s4 = inlined_call_operand.vmem [shape: bf16[128,32], index: 4, kind: output, shape index: {}]
  %s5 = sld [smem:[#allocation0]]
  $region26: #{bottle_stack_forward.10} parent=0
    _
  %s7 = ssub.s32 1, %s5
  %s8 = scalar_select 0, %s7, %s5
  // Predicated region
  $region2: #{bottle_stack_forward.10} parent=0 // pred_check
    _
  $region3: #{bottle_stack_forward.10} parent=0 // pred_check_branch
    %10 = sbr.rel (0) target = $region5
  $region4: #{bottle_stack_forward.10} parent=0 // pred_region
    _
  $region5: #{bottle_stack_forward.10} parent=0 // pred_fallthru
    _
  // Predicated region
  $region6: #{bottle_stack_forward.10} parent=0 // pred_check
    _
  $region7: #{bottle_stack_forward.10} parent=0 // pred_check_branch
    %12 = sbr.rel (0) target = $region9
  $region8: #{bottle_stack_forward.10} parent=0 // pred_region
    _
  $region9: #{bottle_stack_forward.10} parent=0 // pred_fallthru
    _
  // Predicated region
  $region10: #{bottle_stack_forward.10} parent=0 // pred_check
    _
  $region11: #{bottle_stack_forward.10} parent=0 // pred_check_branch
    %14 = sbr.rel (0) target = $region13
  $region12: #{bottle_stack_forward.10} parent=0 // pred_region
    _
  $region13: #{bottle_stack_forward.10} parent=0 // pred_fallthru
    _
  // Predicated region
  $region14: #{bottle_stack_forward.10} parent=0 // pred_check
    _
  $region15: #{bottle_stack_forward.10} parent=0 // pred_check_branch
    %16 = sbr.rel (0) target = $region17
  $region16: #{bottle_stack_forward.10} parent=0 // pred_region
    _
  $region17: #{bottle_stack_forward.10} parent=0 // pred_fallthru
    _
  %v18 = vld [vmem:[%s0] sm:$0xf]
  %v19 = vld [vmem:[%s0 + $0x4] sm:$0xf]
  %v20 = vld [vmem:[%s0 + $0x8] sm:$0xf]
  %v21 = vld [vmem:[%s0 + $0xc] sm:$0xf]
  %v22 = vld [vmem:[%s0 + $0x10] sm:$0xf]
  %v23 = vld [vmem:[%s0 + $0x14] sm:$0xf]
  %v24 = vld [vmem:[%s0 + $0x18] sm:$0xf]
  %v25 = vld [vmem:[%s0 + $0x1c] sm:$0xf]
  %v26 = vld [vmem:[%s0 + $0x20] sm:$0xf]
  %v27 = vld [vmem:[%s0 + $0x24] sm:$0xf]
  %v28 = vld [vmem:[%s0 + $0x28] sm:$0xf]
  %v29 = vld [vmem:[%s0 + $0x2c] sm:$0xf]
  %v30 = vld [vmem:[%s0 + $0x30] sm:$0xf]
  %v31 = vld [vmem:[%s0 + $0x34] sm:$0xf]
  %v32 = vld [vmem:[%s0 + $0x38] sm:$0xf]
  %v33 = vld [vmem:[%s0 + $0x3c] sm:$0xf]
  %v34 = vld [vmem:[%s1] sm:$0xf]
  %v35 = vld [vmem:[%s1 + $0x4] sm:$0xf]
  %v36 = vld [vmem:[%s1 + $0x8] sm:$0xf]
  %v37 = vld [vmem:[%s1 + $0xc] sm:$0xf]
  %v38 = vld [vmem:[%s1 + $0x10] sm:$0x3]
  %v55 = vunpack.c.l.b16 %v18
  %v56 = vunpack.c.l.b16 %v19
  %v57 = vunpack.c.l.b16 %v20
  %v58 = vunpack.c.l.b16 %v21
  %v59 = vunpack.c.l.b16 %v22
  %v60 = vunpack.c.l.b16 %v23
  %v61 = vunpack.c.l.b16 %v24
  %v62 = vunpack.c.l.b16 %v25
  %v63 = vunpack.c.l.b16 %v26
  %v64 = vunpack.c.l.b16 %v27
  %v65 = vunpack.c.l.b16 %v28
  %v66 = vunpack.c.l.b16 %v29
  %v67 = vunpack.c.l.b16 %v30
  %v68 = vunpack.c.l.b16 %v31
  %v69 = vunpack.c.l.b16 %v32
  %v70 = vunpack.c.l.b16 %v33
  %v71 = vpack.c.b16 %v56, %v55
  %v72 = vpack.c.b16 %v58, %v57
  %v73 = vpack.c.b16 %v60, %v59
  %v74 = vpack.c.b16 %v62, %v61
  %v75 = vpack.c.b16 %v64, %v63
  %v76 = vpack.c.b16 %v66, %v65
  %v77 = vpack.c.b16 %v68, %v67
  %v78 = vpack.c.b16 %v70, %v69
  %v84 = vunpack.c.l.b16 %v34
  %v85 = vunpack.c.l.b16 %v35
  %v86 = vunpack.c.l.b16 %v36
  %v87 = vunpack.c.l.b16 %v37
  %v88 = vunpack.c.l.b16 %v38
  %v89 = vpack.c.b16 %v85, %v84
  %v90 = vpack.c.b16 %v87, %v86
  %v91 = vpack.c.b16 %v88, %v88
  %vm94 = vcmask 293888
  %v96 = vsel %vm94, %v71, 0
  %v99 = vsel %vm94, %v72, 0
  %v102 = vsel %vm94, %v73, 0
  %v105 = vsel %vm94, %v74, 0
  %v108 = vsel %vm94, %v75, 0
  %v111 = vsel %vm94, %v76, 0
  %v114 = vsel %vm94, %v77, 0
  %v117 = vsel %vm94, %v78, 0
  %vm119 = vcmask 1041408
  %v121 = vsel %vm119, %v91, 0
  %123 = vmatprep.subr.bf16.mxu0 0
  %124 = vmatpush1.bf16.msra.mxu0 0
  %125 = vmatprep.subr.bf16.mxu0 0
  %126 = vmatpush1.bf16.msra.mxu0 0
  %127 = vmatprep.subr.bf16.mxu0 0
  %128 = vmatpush1.bf16.msra.mxu0 0
  %129 = vmatprep.subr.bf16.mxu0 0
  %130 = vmatpush1.bf16.msra.mxu0 0
  %131 = vmatprep.subr.bf16.mxu0 0
  %132 = vmatpush1.bf16.msra.mxu0 0
  %133 = vmatprep.subr.bf16.mxu0 0
  %134 = vmatpush1.bf16.msra.mxu0 %v121
  %135 = vmatprep.subr.bf16.mxu0 0
  %136 = vmatpush1.bf16.msra.mxu0 %v90
  %137 = vmatprep.subr.bf16.mxu0 0
  %138 = vmatpush1.bf16.msra.mxu0 %v89
  %139 = vmatprep.subr.bf16.mxu0 0
  %140 = vmatpush2.bf16.msra.mxu0 0
  %141 = vmatprep.subr.bf16.mxu0 0
  %142 = vmatpush2.bf16.msra.mxu0 0
  %143 = vmatprep.subr.bf16.mxu0 0
  %144 = vmatpush2.bf16.msra.mxu0 0
  %145 = vmatprep.subr.bf16.mxu0 0
  %146 = vmatpush2.bf16.msra.mxu0 0
  %147 = vmatprep.subr.bf16.mxu0 0
  %148 = vmatpush2.bf16.msra.mxu0 0
  %149 = vmatprep.subr.bf16.mxu0 0
  %150 = vmatpush2.bf16.msra.mxu0 0
  %151 = vmatprep.subr.bf16.mxu0 0
  %152 = vmatpush2.bf16.msra.mxu0 0
  %153 = vmatprep.subr.bf16.mxu0 0
  %154 = vmatpush2.bf16.msra.mxu0 0
  %155 = vmatprep.mubr.bf16.mxu0 0
  %156 = vmatmul.mubr.bf16.gmra.mxu0 %v96
  %v157 = vpop.f32.mrf.mxu0
  %v158 = vadd.f32 0.0, %v157
  %v159 = vpop.f32.mrf.mxu0
  %v160 = vpop.f32.mrf.mxu0
  %v161 = vadd.f32 0.0, %v160
  %v162 = vpop.f32.mrf.mxu0
  %163 = vmatprep.mubr.bf16.mxu0 0
  %164 = vmatmul.mubr.bf16.gmra.mxu0 %v99
  %v165 = vpop.f32.mrf.mxu0
  %v166 = vadd.f32 0.0, %v165
  %v167 = vpop.f32.mrf.mxu0
  %v168 = vpop.f32.mrf.mxu0
  %v169 = vadd.f32 0.0, %v168
  %v170 = vpop.f32.mrf.mxu0
  %171 = vmatprep.mubr.bf16.mxu0 0
  %172 = vmatmul.mubr.bf16.gmra.mxu0 %v102
  %v173 = vpop.f32.mrf.mxu0
  %v174 = vadd.f32 0.0, %v173
  %v175 = vpop.f32.mrf.mxu0
  %v176 = vpop.f32.mrf.mxu0
  %v177 = vadd.f32 0.0, %v176
  %v178 = vpop.f32.mrf.mxu0
  %179 = vmatprep.mubr.bf16.mxu0 0
  %180 = vmatmul.mubr.bf16.gmra.mxu0 %v105
  %v181 = vpop.f32.mrf.mxu0
  %v182 = vadd.f32 0.0, %v181
  %v183 = vpop.f32.mrf.mxu0
  %v184 = vpop.f32.mrf.mxu0
  %v185 = vadd.f32 0.0, %v184
  %v186 = vpop.f32.mrf.mxu0
  %187 = vmatprep.mubr.bf16.mxu0 0
  %188 = vmatmul.mubr.bf16.gmra.mxu0 %v108
  %v189 = vpop.f32.mrf.mxu0
  %v190 = vadd.f32 0.0, %v189
  %v191 = vpop.f32.mrf.mxu0
  %v192 = vpop.f32.mrf.mxu0
  %v193 = vadd.f32 0.0, %v192
  %v194 = vpop.f32.mrf.mxu0
  %195 = vmatprep.mubr.bf16.mxu0 0
  %196 = vmatmul.mubr.bf16.gmra.mxu0 %v111
  %v197 = vpop.f32.mrf.mxu0
  %v198 = vadd.f32 0.0, %v197
  %v199 = vpop.f32.mrf.mxu0
  %v200 = vpop.f32.mrf.mxu0
  %v201 = vadd.f32 0.0, %v200
  %v202 = vpop.f32.mrf.mxu0
  %203 = vmatprep.mubr.bf16.mxu0 0
  %204 = vmatmul.mubr.bf16.gmra.mxu0 %v114
  %v205 = vpop.f32.mrf.mxu0
  %v206 = vadd.f32 0.0, %v205
  %v207 = vpop.f32.mrf.mxu0
  %v208 = vpop.f32.mrf.mxu0
  %v209 = vadd.f32 0.0, %v208
  %v210 = vpop.f32.mrf.mxu0
  %211 = vmatprep.mubr.bf16.mxu0 0
  %212 = vmatmul.mubr.bf16.gmra.mxu0 %v117
  %v213 = vpop.f32.mrf.mxu0
  %v214 = vadd.f32 0.0, %v213
  %v215 = vpop.f32.mrf.mxu0
  %v216 = vpop.f32.mrf.mxu0
  %v217 = vadd.f32 0.0, %v216
  %v218 = vpop.f32.mrf.mxu0
  %219 = vdwg.mxu0
  %v220 = vld [vmem:[%s2] sm:$0x1]
  %v222 = vlaneseq
  %v223 = vshrl.u32 %v222, 7
  %v224 = vsub.s32 0, %v223
  %v225 = vrot.slane %v220, %v224
  %v227 = vmul.f32 %v158, %v225
  %v228 = vmul.f32 %v161, %v225
  %v229 = vmul.f32 %v166, %v225
  %v230 = vmul.f32 %v169, %v225
  %v231 = vmul.f32 %v174, %v225
  %v232 = vmul.f32 %v177, %v225
  %v233 = vmul.f32 %v182, %v225
  %v234 = vmul.f32 %v185, %v225
  %v235 = vmul.f32 %v190, %v225
  %v236 = vmul.f32 %v193, %v225
  %v237 = vmul.f32 %v198, %v225
  %v238 = vmul.f32 %v201, %v225
  %v239 = vmul.f32 %v206, %v225
  %v240 = vmul.f32 %v209, %v225
  %v241 = vmul.f32 %v214, %v225
  %v242 = vmul.f32 %v217, %v225
  %v243 = vld [vmem:[%s3] sm:$0x1]
  %v245 = vlaneseq
  %v246 = vshrl.u32 %v245, 7
  %v247 = vsub.s32 0, %v246
  %v248 = vrot.slane %v243, %v247
  %v250 = vadd.f32 %v227, %v248
  %v251 = vadd.f32 %v228, %v248
  %v252 = vadd.f32 %v229, %v248
  %v253 = vadd.f32 %v230, %v248
  %v254 = vadd.f32 %v231, %v248
  %v255 = vadd.f32 %v232, %v248
  %v256 = vadd.f32 %v233, %v248
  %v257 = vadd.f32 %v234, %v248
  %v258 = vadd.f32 %v235, %v248
  %v259 = vadd.f32 %v236, %v248
  %v260 = vadd.f32 %v237, %v248
  %v261 = vadd.f32 %v238, %v248
  %v262 = vadd.f32 %v239, %v248
  %v263 = vadd.f32 %v240, %v248
  %v264 = vadd.f32 %v241, %v248
  %v265 = vadd.f32 %v242, %v248
  %v266 = vmax.f32 %v250, 0.0
  %v267 = vmax.f32 %v251, 0.0
  %v268 = vmax.f32 %v252, 0.0
  %v269 = vmax.f32 %v253, 0.0
  %v270 = vmax.f32 %v254, 0.0
  %v271 = vmax.f32 %v255, 0.0
  %v272 = vmax.f32 %v256, 0.0
  %v273 = vmax.f32 %v257, 0.0
  %v274 = vmax.f32 %v258, 0.0
  %v275 = vmax.f32 %v259, 0.0
  %v276 = vmax.f32 %v260, 0.0
  %v277 = vmax.f32 %v261, 0.0
  %v278 = vmax.f32 %v262, 0.0
  %v279 = vmax.f32 %v263, 0.0
  %v280 = vmax.f32 %v264, 0.0
  %v281 = vmax.f32 %v265, 0.0
  %v282 = vpack.c.bf16 %v267, %v266
  %v283 = vpack.c.bf16 %v269, %v268
  %v284 = vpack.c.bf16 %v271, %v270
  %v285 = vpack.c.bf16 %v273, %v272
  %v286 = vpack.c.bf16 %v275, %v274
  %v287 = vpack.c.bf16 %v277, %v276
  %v288 = vpack.c.bf16 %v279, %v278
  %v289 = vpack.c.bf16 %v281, %v280
  %v298 = vunpack.c.l.b16 %v282
  %v299 = vunpack.c.h.b16 %v282
  %v300 = vunpack.c.l.b16 %v283
  %v301 = vunpack.c.h.b16 %v283
  %v302 = vunpack.c.l.b16 %v284
  %v303 = vunpack.c.h.b16 %v284
  %v304 = vunpack.c.l.b16 %v285
  %v305 = vunpack.c.h.b16 %v285
  %v306 = vunpack.c.l.b16 %v286
  %v307 = vunpack.c.h.b16 %v286
  %v308 = vunpack.c.l.b16 %v287
  %v309 = vunpack.c.h.b16 %v287
  %v310 = vunpack.c.l.b16 %v288
  %v311 = vunpack.c.h.b16 %v288
  %v312 = vunpack.c.l.b16 %v289
  %v313 = vunpack.c.h.b16 %v289
  %v314 = vpack.c.b16 %v298, %v298
  %v315 = vpack.c.b16 %v299, %v299
  %v316 = vpack.c.b16 %v300, %v300
  %v317 = vpack.c.b16 %v301, %v301
  %v318 = vpack.c.b16 %v302, %v302
  %v319 = vpack.c.b16 %v303, %v303
  %v320 = vpack.c.b16 %v304, %v304
  %v321 = vpack.c.b16 %v305, %v305
  %v322 = vpack.c.b16 %v306, %v306
  %v323 = vpack.c.b16 %v307, %v307
  %v324 = vpack.c.b16 %v308, %v308
  %v325 = vpack.c.b16 %v309, %v309
  %v326 = vpack.c.b16 %v310, %v310
  %v327 = vpack.c.b16 %v311, %v311
  %v328 = vpack.c.b16 %v312, %v312
  %v329 = vpack.c.b16 %v313, %v313
  %vm346 = vcmask 257024
  %347 = vst.msk [vmem:[%s4] sm:$0xf] %vm346, %v314
  %348 = vst.msk [vmem:[%s4 + $0x4] sm:$0xf] %vm346, %v315
  %349 = vst.msk [vmem:[%s4 + $0x8] sm:$0xf] %vm346, %v316
  %350 = vst.msk [vmem:[%s4 + $0xc] sm:$0xf] %vm346, %v317
  %351 = vst.msk [vmem:[%s4 + $0x10] sm:$0xf] %vm346, %v318
  %352 = vst.msk [vmem:[%s4 + $0x14] sm:$0xf] %vm346, %v319
  %353 = vst.msk [vmem:[%s4 + $0x18] sm:$0xf] %vm346, %v320
  %354 = vst.msk [vmem:[%s4 + $0x1c] sm:$0xf] %vm346, %v321
  %355 = vst.msk [vmem:[%s4 + $0x20] sm:$0xf] %vm346, %v322
  %356 = vst.msk [vmem:[%s4 + $0x24] sm:$0xf] %vm346, %v323
  %357 = vst.msk [vmem:[%s4 + $0x28] sm:$0xf] %vm346, %v324
  %358 = vst.msk [vmem:[%s4 + $0x2c] sm:$0xf] %vm346, %v325
  %359 = vst.msk [vmem:[%s4 + $0x30] sm:$0xf] %vm346, %v326
  %360 = vst.msk [vmem:[%s4 + $0x34] sm:$0xf] %vm346, %v327
  %361 = vst.msk [vmem:[%s4 + $0x38] sm:$0xf] %vm346, %v328
  %362 = vst.msk [vmem:[%s4 + $0x3c] sm:$0xf] %vm346, %v329
  // Predicated region
  $region18: #{bottle_stack_forward.10} parent=0 // pred_check
    _
  $region19: #{bottle_stack_forward.10} parent=0 // pred_check_branch
    %364 = sbr.rel (0) target = $region21
  $region20: #{bottle_stack_forward.10} parent=0 // pred_region
    _
  $region21: #{bottle_stack_forward.10} parent=0 // pred_fallthru
    _
  // Predicated region
  $region22: #{bottle_stack_forward.10} parent=0 // pred_check
    _
  $region23: #{bottle_stack_forward.10} parent=0 // pred_check_branch
    %366 = sbr.rel (0) target = $region25
  $region24: #{bottle_stack_forward.10} parent=0 // pred_region
    _
  $region25: #{bottle_stack_forward.10} parent=0 // pred_fallthru
    _

// kernel: bottle_stack_forward.11
$region0: #{bottle_stack_forward.11}
  #allocation0 [shape = 'u32[]', space=smem, size = 0x4, offset = 0x4, fixed_abs, tag = 'smem constant byte address 0x4 - core index']
  #allocation1 [shape = 'u32[144,128]{1,0:T(1,128)}', space=vmem, size = 0x12000, scoped, tag = 'internal scratch']
  %s0 = inlined_call_operand.vmem [shape: bf16[512,4], index: 0, kind: input, shape index: {}]
  %s1 = inlined_call_operand.vmem [shape: bf16[4,8], index: 1, kind: input, shape index: {}]
  %s2 = inlined_call_operand.vmem [shape: f32[1,8], index: 2, kind: input, shape index: {}]
  %s3 = inlined_call_operand.vmem [shape: f32[1,8], index: 3, kind: input, shape index: {}]
  %s4 = inlined_call_operand.vmem [shape: bf16[8,96], index: 4, kind: input, shape index: {}]
  %s5 = inlined_call_operand.vmem [shape: bf16[512,96], index: 5, kind: output, shape index: {}]
  %s6 = sld [smem:[#allocation0]]
  $region30: #{bottle_stack_forward.11} parent=0
    _
  %s8 = ssub.s32 1, %s6
  %s9 = scalar_select 0, %s8, %s6
  // Predicated region
  $region2: #{bottle_stack_forward.11} parent=0 // pred_check
    _
  $region3: #{bottle_stack_forward.11} parent=0 // pred_check_branch
    %11 = sbr.rel (0) target = $region5
  $region4: #{bottle_stack_forward.11} parent=0 // pred_region
    _
  $region5: #{bottle_stack_forward.11} parent=0 // pred_fallthru
    _
  // Predicated region
  $region6: #{bottle_stack_forward.11} parent=0 // pred_check
    _
  $region7: #{bottle_stack_forward.11} parent=0 // pred_check_branch
    %13 = sbr.rel (0) target = $region9
  $region8: #{bottle_stack_forward.11} parent=0 // pred_region
    _
  $region9: #{bottle_stack_forward.11} parent=0 // pred_fallthru
    _
  // Predicated region
  $region10: #{bottle_stack_forward.11} parent=0 // pred_check
    _
  $region11: #{bottle_stack_forward.11} parent=0 // pred_check_branch
    %15 = sbr.rel (0) target = $region13
  $region12: #{bottle_stack_forward.11} parent=0 // pred_region
    _
  $region13: #{bottle_stack_forward.11} parent=0 // pred_fallthru
    _
  // Predicated region
  $region14: #{bottle_stack_forward.11} parent=0 // pred_check
    _
  $region15: #{bottle_stack_forward.11} parent=0 // pred_check_branch
    %17 = sbr.rel (0) target = $region17
  $region16: #{bottle_stack_forward.11} parent=0 // pred_region
    _
  $region17: #{bottle_stack_forward.11} parent=0 // pred_fallthru
    _
  // Predicated region
  $region18: #{bottle_stack_forward.11} parent=0 // pred_check
    _
  $region19: #{bottle_stack_forward.11} parent=0 // pred_check_branch
    %19 = sbr.rel (0) target = $region21
  $region20: #{bottle_stack_forward.11} parent=0 // pred_region
    _
  $region21: #{bottle_stack_forward.11} parent=0 // pred_fallthru
    _
  %v21 = vld [vmem:[%s0] sm:$0xf]
  %v22 = vld [vmem:[%s0 + $0x4] sm:$0xf]
  %v23 = vld [vmem:[%s0 + $0x8] sm:$0xf]
  %v24 = vld [vmem:[%s0 + $0xc] sm:$0xf]
  %v25 = vld [vmem:[%s0 + $0x10] sm:$0xf]
  %v26 = vld [vmem:[%s0 + $0x14] sm:$0xf]
  %v27 = vld [vmem:[%s0 + $0x18] sm:$0xf]
  %v28 = vld [vmem:[%s0 + $0x1c] sm:$0xf]
  %v29 = vld [vmem:[%s0 + $0x20] sm:$0xf]
  %v30 = vld [vmem:[%s0 + $0x24] sm:$0xf]
  %v31 = vld [vmem:[%s0 + $0x28] sm:$0xf]
  %v32 = vld [vmem:[%s0 + $0x2c] sm:$0xf]
  %v33 = vld [vmem:[%s0 + $0x30] sm:$0xf]
  %v34 = vld [vmem:[%s0 + $0x34] sm:$0xf]
  %v35 = vld [vmem:[%s0 + $0x38] sm:$0xf]
  %v36 = vld [vmem:[%s0 + $0x3c] sm:$0xf]
  %v37 = vld [vmem:[%s0 + $0x40] sm:$0xf]
  %v38 = vld [vmem:[%s0 + $0x44] sm:$0xf]
  %v39 = vld [vmem:[%s0 + $0x48] sm:$0xf]
  %v40 = vld [vmem:[%s0 + $0x4c] sm:$0xf]
  %v41 = vld [vmem:[%s0 + $0x50] sm:$0xf]
  %v42 = vld [vmem:[%s0 + $0x54] sm:$0xf]
  %v43 = vld [vmem:[%s0 + $0x58] sm:$0xf]
  %v44 = vld [vmem:[%s0 + $0x5c] sm:$0xf]
  %v45 = vld [vmem:[%s0 + $0x60] sm:$0xf]
  %v46 = vld [vmem:[%s0 + $0x64] sm:$0xf]
  %v47 = vld [vmem:[%s0 + $0x68] sm:$0xf]
  %v48 = vld [vmem:[%s0 + $0x6c] sm:$0xf]
  %v49 = vld [vmem:[%s0 + $0x70] sm:$0xf]
  %v50 = vld [vmem:[%s0 + $0x74] sm:$0xf]
  %v51 = vld [vmem:[%s0 + $0x78] sm:$0xf]
  %v52 = vld [vmem:[%s0 + $0x7c] sm:$0xf]
  %v53 = vld [vmem:[%s0 + $0x80] sm:$0xf]
  %v54 = vld [vmem:[%s0 + $0x84] sm:$0xf]
  %v55 = vld [vmem:[%s0 + $0x88] sm:$0xf]
  %v56 = vld [vmem:[%s0 + $0x8c] sm:$0xf]
  %v57 = vld [vmem:[%s0 + $0x90] sm:$0xf]
  %v58 = vld [vmem:[%s0 + $0x94] sm:$0xf]
  %v59 = vld [vmem:[%s0 + $0x98] sm:$0xf]
  %v60 = vld [vmem:[%s0 + $0x9c] sm:$0xf]
  %v61 = vld [vmem:[%s0 + $0xa0] sm:$0xf]
  %v62 = vld [vmem:[%s0 + $0xa4] sm:$0xf]
  %v63 = vld [vmem:[%s0 + $0xa8] sm:$0xf]
  %v64 = vld [vmem:[%s0 + $0xac] sm:$0xf]
  %v65 = vld [vmem:[%s0 + $0xb0] sm:$0xf]
  %v66 = vld [vmem:[%s0 + $0xb4] sm:$0xf]
  %v67 = vld [vmem:[%s0 + $0xb8] sm:$0xf]
  %v68 = vld [vmem:[%s0 + $0xbc] sm:$0xf]
  %v69 = vld [vmem:[%s0 + $0xc0] sm:$0xf]
  %v70 = vld [vmem:[%s0 + $0xc4] sm:$0xf]
  %v71 = vld [vmem:[%s0 + $0xc8] sm:$0xf]
  %v72 = vld [vmem:[%s0 + $0xcc] sm:$0xf]
  %v73 = vld [vmem:[%s0 + $0xd0] sm:$0xf]
  %v74 = vld [vmem:[%s0 + $0xd4] sm:$0xf]
  %v75 = vld [vmem:[%s0 + $0xd8] sm:$0xf]
  %v76 = vld [vmem:[%s0 + $0xdc] sm:$0xf]
  %v77 = vld [vmem:[%s0 + $0xe0] sm:$0xf]
  %v78 = vld [vmem:[%s0 + $0xe4] sm:$0xf]
  %v79 = vld [vmem:[%s0 + $0xe8] sm:$0xf]
  %v80 = vld [vmem:[%s0 + $0xec] sm:$0xf]
  %v81 = vld [vmem:[%s0 + $0xf0] sm:$0xf]
  %v82 = vld [vmem:[%s0 + $0xf4] sm:$0xf]
  %v83 = vld [vmem:[%s0 + $0xf8] sm:$0xf]
  %v84 = vld [vmem:[%s0 + $0xfc] sm:$0xf]
  %v85 = vld [vmem:[%s1] sm:$0x3]
  %v150 = vunpack.c.l.b16 %v21
  %v151 = vunpack.c.l.b16 %v22
  %v152 = vunpack.c.l.b16 %v23
  %v153 = vunpack.c.l.b16 %v24
  %v154 = vunpack.c.l.b16 %v25
  %v155 = vunpack.c.l.b16 %v26
  %v156 = vunpack.c.l.b16 %v27
  %v157 = vunpack.c.l.b16 %v28
  %v158 = vunpack.c.l.b16 %v29
  %v159 = vunpack.c.l.b16 %v30
  %v160 = vunpack.c.l.b16 %v31
  %v161 = vunpack.c.l.b16 %v32
  %v162 = vunpack.c.l.b16 %v33
  %v163 = vunpack.c.l.b16 %v34
  %v164 = vunpack.c.l.b16 %v35
  %v165 = vunpack.c.l.b16 %v36
  %v166 = vunpack.c.l.b16 %v37
  %v167 = vunpack.c.l.b16 %v38
  %v168 = vunpack.c.l.b16 %v39
  %v169 = vunpack.c.l.b16 %v40
  %v170 = vunpack.c.l.b16 %v41
  %v171 = vunpack.c.l.b16 %v42
  %v172 = vunpack.c.l.b16 %v43
  %v173 = vunpack.c.l.b16 %v44
  %v174 = vunpack.c.l.b16 %v45
  %v175 = vunpack.c.l.b16 %v46
  %v176 = vunpack.c.l.b16 %v47
  %v177 = vunpack.c.l.b16 %v48
  %v178 = vunpack.c.l.b16 %v49
  %v179 = vunpack.c.l.b16 %v50
  %v180 = vunpack.c.l.b16 %v51
  %v181 = vunpack.c.l.b16 %v52
  %v182 = vunpack.c.l.b16 %v53
  %v183 = vunpack.c.l.b16 %v54
  %v184 = vunpack.c.l.b16 %v55
  %v185 = vunpack.c.l.b16 %v56
  %v186 = vunpack.c.l.b16 %v57
  %v187 = vunpack.c.l.b16 %v58
  %v188 = vunpack.c.l.b16 %v59
  %v189 = vunpack.c.l.b16 %v60
  %v190 = vunpack.c.l.b16 %v61
  %v191 = vunpack.c.l.b16 %v62
  %v192 = vunpack.c.l.b16 %v63
  %v193 = vunpack.c.l.b16 %v64
  %v194 = vunpack.c.l.b16 %v65
  %v195 = vunpack.c.l.b16 %v66
  %v196 = vunpack.c.l.b16 %v67
  %v197 = vunpack.c.l.b16 %v68
  %v198 = vunpack.c.l.b16 %v69
  %v199 = vunpack.c.l.b16 %v70
  %v200 = vunpack.c.l.b16 %v71
  %v201 = vunpack.c.l.b16 %v72
  %v202 = vunpack.c.l.b16 %v73
  %v203 = vunpack.c.l.b16 %v74
  %v204 = vunpack.c.l.b16 %v75
  %v205 = vunpack.c.l.b16 %v76
  %v206 = vunpack.c.l.b16 %v77
  %v207 = vunpack.c.l.b16 %v78
  %v208 = vunpack.c.l.b16 %v79
  %v209 = vunpack.c.l.b16 %v80
  %v210 = vunpack.c.l.b16 %v81
  %v211 = vunpack.c.l.b16 %v82
  %v212 = vunpack.c.l.b16 %v83
  %v213 = vunpack.c.l.b16 %v84
  %v214 = vpack.c.b16 %v151, %v150
  %v215 = vpack.c.b16 %v153, %v152
  %v216 = vpack.c.b16 %v155, %v154
  %v217 = vpack.c.b16 %v157, %v156
  %v218 = vpack.c.b16 %v159, %v158
  %v219 = vpack.c.b16 %v161, %v160
  %v220 = vpack.c.b16 %v163, %v162
  %v221 = vpack.c.b16 %v165, %v164
  %v222 = vpack.c.b16 %v167, %v166
  %v223 = vpack.c.b16 %v169, %v168
  %v224 = vpack.c.b16 %v171, %v170
  %v225 = vpack.c.b16 %v173, %v172
  %v226 = vpack.c.b16 %v175, %v174
  %v227 = vpack.c.b16 %v177, %v176
  %v228 = vpack.c.b16 %v179, %v178
  %v229 = vpack.c.b16 %v181, %v180
  %v230 = vpack.c.b16 %v183, %v182
  %v231 = vpack.c.b16 %v185, %v184
  %v232 = vpack.c.b16 %v187, %v186
  %v233 = vpack.c.b16 %v189, %v188
  %v234 = vpack.c.b16 %v191, %v190
  %v235 = vpack.c.b16 %v193, %v192
  %v236 = vpack.c.b16 %v195, %v194
  %v237 = vpack.c.b16 %v197, %v196
  %v238 = vpack.c.b16 %v199, %v198
  %v239 = vpack.c.b16 %v201, %v200
  %v240 = vpack.c.b16 %v203, %v202
  %v241 = vpack.c.b16 %v205, %v204
  %v242 = vpack.c.b16 %v207, %v206
  %v243 = vpack.c.b16 %v209, %v208
  %v244 = vpack.c.b16 %v211, %v210
  %v245 = vpack.c.b16 %v213, %v212
  %vm246 = vcmask 31744
  %v248 = vsel %vm246, %v214, 0
  %v251 = vsel %vm246, %v215, 0
  %v254 = vsel %vm246, %v216, 0
  %v257 = vsel %vm246, %v217, 0
  %v260 = vsel %vm246, %v218, 0
  %v263 = vsel %vm246, %v219, 0
  %v266 = vsel %vm246, %v220, 0
  %v269 = vsel %vm246, %v221, 0
  %v272 = vsel %vm246, %v222, 0
  %v275 = vsel %vm246, %v223, 0
  %v278 = vsel %vm246, %v224, 0
  %v281 = vsel %vm246, %v225, 0
  %v284 = vsel %vm246, %v226, 0
  %v287 = vsel %vm246, %v227, 0
  %v290 = vsel %vm246, %v228, 0
  %v293 = vsel %vm246, %v229, 0
  %v296 = vsel %vm246, %v230, 0
  %v299 = vsel %vm246, %v231, 0
  %v302 = vsel %vm246, %v232, 0
  %v305 = vsel %vm246, %v233, 0
  %v308 = vsel %vm246, %v234, 0
  %v311 = vsel %vm246, %v235, 0
  %v314 = vsel %vm246, %v236, 0
  %v317 = vsel %vm246, %v237, 0
  %v320 = vsel %vm246, %v238, 0
  %v323 = vsel %vm246, %v239, 0
  %v326 = vsel %vm246, %v240, 0
  %v329 = vsel %vm246, %v241, 0
  %v332 = vsel %vm246, %v242, 0
  %v335 = vsel %vm246, %v243, 0
  %v338 = vsel %vm246, %v244, 0
  %v341 = vsel %vm246, %v245, 0
  %vm343 = vcmask 1041408
  %v345 = vsel %vm343, %v85, 0
  %347 = vmatprep.subr.bf16.mxu0 0
  %348 = vmatpush1.bf16.msra.mxu0 0
  %349 = vmatprep.subr.bf16.mxu0 0
  %350 = vmatpush1.bf16.msra.mxu0 0
  %351 = vmatprep.subr.bf16.mxu0 0
  %352 = vmatpush1.bf16.msra.mxu0 0
  %353 = vmatprep.subr.bf16.mxu0 0
  %354 = vmatpush1.bf16.msra.mxu0 0
  %355 = vmatprep.subr.bf16.mxu0 0
  %356 = vmatpush1.bf16.msra.mxu0 0
  %357 = vmatprep.subr.bf16.mxu0 0
  %358 = vmatpush1.bf16.msra.mxu0 0
  %359 = vmatprep.subr.bf16.mxu0 0
  %360 = vmatpush1.bf16.msra.mxu0 0
  %361 = vmatprep.subr.bf16.mxu0 0
  %362 = vmatpush1.bf16.msra.mxu0 %v345
  %363 = vmatprep.subr.bf16.mxu0 0
  %364 = vmatpush2.bf16.msra.mxu0 0
  %365 = vmatprep.subr.bf16.mxu0 0
  %366 = vmatpush2.bf16.msra.mxu0 0
  %367 = vmatprep.subr.bf16.mxu0 0
  %368 = vmatpush2.bf16.msra.mxu0 0
  %369 = vmatprep.subr.bf16.mxu0 0
  %370 = vmatpush2.bf16.msra.mxu0 0
  %371 = vmatprep.subr.bf16.mxu0 0
  %372 = vmatpush2.bf16.msra.mxu0 0
  %373 = vmatprep.subr.bf16.mxu0 0
  %374 = vmatpush2.bf16.msra.mxu0 0
  %375 = vmatprep.subr.bf16.mxu0 0
  %376 = vmatpush2.bf16.msra.mxu0 0
  %377 = vmatprep.subr.bf16.mxu0 0
  %378 = vmatpush2.bf16.msra.mxu0 0
  %379 = vmatprep.mubr.bf16.mxu0 0
  %380 = vmatmul.mubr.bf16.gmra.mxu0 %v248
  %v381 = vpop.f32.mrf.mxu0
  %v382 = vadd.f32 0.0, %v381
  %v383 = vpop.f32.mrf.mxu0
  %v384 = vpop.f32.mrf.mxu0
  %v385 = vadd.f32 0.0, %v384
  %v386 = vpop.f32.mrf.mxu0
  %387 = vmatprep.mubr.bf16.mxu0 0
  %388 = vmatmul.mubr.bf16.gmra.mxu0 %v251
  %v389 = vpop.f32.mrf.mxu0
  %v390 = vadd.f32 0.0, %v389
  %v391 = vpop.f32.mrf.mxu0
  %v392 = vpop.f32.mrf.mxu0
  %v393 = vadd.f32 0.0, %v392
  %v394 = vpop.f32.mrf.mxu0
  %395 = vmatprep.mubr.bf16.mxu0 0
  %396 = vmatmul.mubr.bf16.gmra.mxu0 %v254
  %v397 = vpop.f32.mrf.mxu0
  %v398 = vadd.f32 0.0, %v397
  %v399 = vpop.f32.mrf.mxu0
  %v400 = vpop.f32.mrf.mxu0
  %v401 = vadd.f32 0.0, %v400
  %v402 = vpop.f32.mrf.mxu0
  %403 = vmatprep.mubr.bf16.mxu0 0
  %404 = vmatmul.mubr.bf16.gmra.mxu0 %v257
  %v405 = vpop.f32.mrf.mxu0
  %v406 = vadd.f32 0.0, %v405
  %v407 = vpop.f32.mrf.mxu0
  %v408 = vpop.f32.mrf.mxu0
  %v409 = vadd.f32 0.0, %v408
  %v410 = vpop.f32.mrf.mxu0
  %411 = vmatprep.mubr.bf16.mxu0 0
  %412 = vmatmul.mubr.bf16.gmra.mxu0 %v260
  %v413 = vpop.f32.mrf.mxu0
  %v414 = vadd.f32 0.0, %v413
  %v415 = vpop.f32.mrf.mxu0
  %v416 = vpop.f32.mrf.mxu0
  %v417 = vadd.f32 0.0, %v416
  %v418 = vpop.f32.mrf.mxu0
  %419 = vmatprep.mubr.bf16.mxu0 0
  %420 = vmatmul.mubr.bf16.gmra.mxu0 %v263
  %v421 = vpop.f32.mrf.mxu0
  %v422 = vadd.f32 0.0, %v421
  %v423 = vpop.f32.mrf.mxu0
  %v424 = vpop.f32.mrf.mxu0
  %v425 = vadd.f32 0.0, %v424
  %v426 = vpop.f32.mrf.mxu0
  %427 = vmatprep.mubr.bf16.mxu0 0
  %428 = vmatmul.mubr.bf16.gmra.mxu0 %v266
  %v429 = vpop.f32.mrf.mxu0
  %v430 = vadd.f32 0.0, %v429
  %v431 = vpop.f32.mrf.mxu0
  %v432 = vpop.f32.mrf.mxu0
  %v433 = vadd.f32 0.0, %v432
  %v434 = vpop.f32.mrf.mxu0
  %435 = vmatprep.mubr.bf16.mxu0 0
  %436 = vmatmul.mubr.bf16.gmra.mxu0 %v269
  %v437 = vpop.f32.mrf.mxu0
  %v438 = vadd.f32 0.0, %v437
  %v439 = vpop.f32.mrf.mxu0
  %v440 = vpop.f32.mrf.mxu0
  %v441 = vadd.f32 0.0, %v440
  %v442 = vpop.f32.mrf.mxu0
  %443 = vmatprep.mubr.bf16.mxu0 0
  %444 = vmatmul.mubr.bf16.gmra.mxu0 %v272
  %v445 = vpop.f32.mrf.mxu0
  %v446 = vadd.f32 0.0, %v445
  %v447 = vpop.f32.mrf.mxu0
  %v448 = vpop.f32.mrf.mxu0
  %v449 = vadd.f32 0.0, %v448
  %v450 = vpop.f32.mrf.mxu0
  %451 = vmatprep.mubr.bf16.mxu0 0
  %452 = vmatmul.mubr.bf16.gmra.mxu0 %v275
  %v453 = vpop.f32.mrf.mxu0
  %v454 = vadd.f32 0.0, %v453
  %v455 = vpop.f32.mrf.mxu0
  %v456 = vpop.f32.mrf.mxu0
  %v457 = vadd.f32 0.0, %v456
  %v458 = vpop.f32.mrf.mxu0
  %459 = vmatprep.mubr.bf16.mxu0 0
  %460 = vmatmul.mubr.bf16.gmra.mxu0 %v278
  %v461 = vpop.f32.mrf.mxu0
  %v462 = vadd.f32 0.0, %v461
  %v463 = vpop.f32.mrf.mxu0
  %v464 = vpop.f32.mrf.mxu0
  %v465 = vadd.f32 0.0, %v464
  %v466 = vpop.f32.mrf.mxu0
  %467 = vmatprep.mubr.bf16.mxu0 0
  %468 = vmatmul.mubr.bf16.gmra.mxu0 %v281
  %v469 = vpop.f32.mrf.mxu0
  %v470 = vadd.f32 0.0, %v469
  %v471 = vpop.f32.mrf.mxu0
  %v472 = vpop.f32.mrf.mxu0
  %v473 = vadd.f32 0.0, %v472
  %v474 = vpop.f32.mrf.mxu0
  %475 = vmatprep.mubr.bf16.mxu0 0
  %476 = vmatmul.mubr.bf16.gmra.mxu0 %v284
  %v477 = vpop.f32.mrf.mxu0
  %v478 = vadd.f32 0.0, %v477
  %v479 = vpop.f32.mrf.mxu0
  %v480 = vpop.f32.mrf.mxu0
  %v481 = vadd.f32 0.0, %v480
  %v482 = vpop.f32.mrf.mxu0
  %483 = vmatprep.mubr.bf16.mxu0 0
  %484 = vmatmul.mubr.bf16.gmra.mxu0 %v287
  %v485 = vpop.f32.mrf.mxu0
  %v486 = vadd.f32 0.0, %v485
  %v487 = vpop.f32.mrf.mxu0
  %v488 = vpop.f32.mrf.mxu0
  %v489 = vadd.f32 0.0, %v488
  %v490 = vpop.f32.mrf.mxu0
  %491 = vmatprep.mubr.bf16.mxu0 0
  %492 = vmatmul.mubr.bf16.gmra.mxu0 %v290
  %v493 = vpop.f32.mrf.mxu0
  %v494 = vadd.f32 0.0, %v493
  %v495 = vpop.f32.mrf.mxu0
  %v496 = vpop.f32.mrf.mxu0
  %v497 = vadd.f32 0.0, %v496
  %v498 = vpop.f32.mrf.mxu0
  %499 = vmatprep.mubr.bf16.mxu0 0
  %500 = vmatmul.mubr.bf16.gmra.mxu0 %v293
  %v501 = vpop.f32.mrf.mxu0
  %v502 = vadd.f32 0.0, %v501
  %v503 = vpop.f32.mrf.mxu0
  %v504 = vpop.f32.mrf.mxu0
  %v505 = vadd.f32 0.0, %v504
  %v506 = vpop.f32.mrf.mxu0
  %507 = vmatprep.mubr.bf16.mxu0 0
  %508 = vmatmul.mubr.bf16.gmra.mxu0 %v296
  %v509 = vpop.f32.mrf.mxu0
  %v510 = vadd.f32 0.0, %v509
  %v511 = vpop.f32.mrf.mxu0
  %v512 = vpop.f32.mrf.mxu0
  %v513 = vadd.f32 0.0, %v512
  %v514 = vpop.f32.mrf.mxu0
  %515 = vmatprep.mubr.bf16.mxu0 0
  %516 = vmatmul.mubr.bf16.gmra.mxu0 %v299
  %v517 = vpop.f32.mrf.mxu0
  %v518 = vadd.f32 0.0, %v517
  %v519 = vpop.f32.mrf.mxu0
  %v520 = vpop.f32.mrf.mxu0
  %v521 = vadd.f32 0.0, %v520
  %v522 = vpop.f32.mrf.mxu0
  %523 = vmatprep.mubr.bf16.mxu0 0
  %524 = vmatmul.mubr.bf16.gmra.mxu0 %v302
  %v525 = vpop.f32.mrf.mxu0
  %v526 = vadd.f32 0.0, %v525
  %v527 = vpop.f32.mrf.mxu0
  %v528 = vpop.f32.mrf.mxu0
  %v529 = vadd.f32 0.0, %v528
  %v530 = vpop.f32.mrf.mxu0
  %531 = vmatprep.mubr.bf16.mxu0 0
  %532 = vmatmul.mubr.bf16.gmra.mxu0 %v305
  %v533 = vpop.f32.mrf.mxu0
  %v534 = vadd.f32 0.0, %v533
  %v535 = vpop.f32.mrf.mxu0
  %v536 = vpop.f32.mrf.mxu0
  %v537 = vadd.f32 0.0, %v536
  %v538 = vpop.f32.mrf.mxu0
  %539 = vmatprep.mubr.bf16.mxu0 0
  %540 = vmatmul.mubr.bf16.gmra.mxu0 %v308
  %v541 = vpop.f32.mrf.mxu0
  %v542 = vadd.f32 0.0, %v541
  %v543 = vpop.f32.mrf.mxu0
  %v544 = vpop.f32.mrf.mxu0
  %v545 = vadd.f32 0.0, %v544
  %v546 = vpop.f32.mrf.mxu0
  %547 = vmatprep.mubr.bf16.mxu0 0
  %548 = vmatmul.mubr.bf16.gmra.mxu0 %v311
  %v549 = vpop.f32.mrf.mxu0
  %v550 = vadd.f32 0.0, %v549
  %v551 = vpop.f32.mrf.mxu0
  %v552 = vpop.f32.mrf.mxu0
  %v553 = vadd.f32 0.0, %v552
  %v554 = vpop.f32.mrf.mxu0
  %555 = vmatprep.mubr.bf16.mxu0 0
  %556 = vmatmul.mubr.bf16.gmra.mxu0 %v314
  %v557 = vpop.f32.mrf.mxu0
  %v558 = vadd.f32 0.0, %v557
  %v559 = vpop.f32.mrf.mxu0
  %v560 = vpop.f32.mrf.mxu0
  %v561 = vadd.f32 0.0, %v560
  %v562 = vpop.f32.mrf.mxu0
  %563 = vmatprep.mubr.bf16.mxu0 0
  %564 = vmatmul.mubr.bf16.gmra.mxu0 %v317
  %v565 = vpop.f32.mrf.mxu0
  %v566 = vadd.f32 0.0, %v565
  %v567 = vpop.f32.mrf.mxu0
  %v568 = vpop.f32.mrf.mxu0
  %v569 = vadd.f32 0.0, %v568
  %v570 = vpop.f32.mrf.mxu0
  %571 = vmatprep.mubr.bf16.mxu0 0
  %572 = vmatmul.mubr.bf16.gmra.mxu0 %v320
  %v573 = vpop.f32.mrf.mxu0
  %v574 = vadd.f32 0.0, %v573
  %v575 = vpop.f32.mrf.mxu0
  %v576 = vpop.f32.mrf.mxu0
  %v577 = vadd.f32 0.0, %v576
  %v578 = vpop.f32.mrf.mxu0
  %579 = vmatprep.mubr.bf16.mxu0 0
  %580 = vmatmul.mubr.bf16.gmra.mxu0 %v323
  %v581 = vpop.f32.mrf.mxu0
  %v582 = vadd.f32 0.0, %v581
  %v583 = vpop.f32.mrf.mxu0
  %v584 = vpop.f32.mrf.mxu0
  %v585 = vadd.f32 0.0, %v584
  %v586 = vpop.f32.mrf.mxu0
  %587 = vmatprep.mubr.bf16.mxu0 0
  %588 = vmatmul.mubr.bf16.gmra.mxu0 %v326
  %v589 = vpop.f32.mrf.mxu0
  %v590 = vadd.f32 0.0, %v589
  %v591 = vpop.f32.mrf.mxu0
  %v592 = vpop.f32.mrf.mxu0
  %v593 = vadd.f32 0.0, %v592
  %v594 = vpop.f32.mrf.mxu0
  %595 = vmatprep.mubr.bf16.mxu0 0
  %596 = vmatmul.mubr.bf16.gmra.mxu0 %v329
  %v597 = vpop.f32.mrf.mxu0
  %v598 = vadd.f32 0.0, %v597
  %v599 = vpop.f32.mrf.mxu0
  %v600 = vpop.f32.mrf.mxu0
  %v601 = vadd.f32 0.0, %v600
  %v602 = vpop.f32.mrf.mxu0
  %603 = vmatprep.mubr.bf16.mxu0 0
  %604 = vmatmul.mubr.bf16.gmra.mxu0 %v332
  %v605 = vpop.f32.mrf.mxu0
  %v606 = vadd.f32 0.0, %v605
  %v607 = vpop.f32.mrf.mxu0
  %v608 = vpop.f32.mrf.mxu0
  %v609 = vadd.f32 0.0, %v608
  %v610 = vpop.f32.mrf.mxu0
  %611 = vmatprep.mubr.bf16.mxu0 0
  %612 = vmatmul.mubr.bf16.gmra.mxu0 %v335
  %v613 = vpop.f32.mrf.mxu0
  %v614 = vadd.f32 0.0, %v613
  %v615 = vpop.f32.mrf.mxu0
  %v616 = vpop.f32.mrf.mxu0
  %v617 = vadd.f32 0.0, %v616
  %v618 = vpop.f32.mrf.mxu0
  %619 = vmatprep.mubr.bf16.mxu0 0
  %620 = vmatmul.mubr.bf16.gmra.mxu0 %v338
  %v621 = vpop.f32.mrf.mxu0
  %v622 = vadd.f32 0.0, %v621
  %v623 = vpop.f32.mrf.mxu0
  %v624 = vpop.f32.mrf.mxu0
  %v625 = vadd.f32 0.0, %v624
  %v626 = vpop.f32.mrf.mxu0
  %627 = vmatprep.mubr.bf16.mxu0 0
  %628 = vmatmul.mubr.bf16.gmra.mxu0 %v341
  %v629 = vpop.f32.mrf.mxu0
  %v630 = vadd.f32 0.0, %v629
  %v631 = vpop.f32.mrf.mxu0
  %v632 = vpop.f32.mrf.mxu0
  %v633 = vadd.f32 0.0, %v632
  %v634 = vpop.f32.mrf.mxu0
  %635 = vdwg.mxu0
  %v636 = vld [vmem:[%s2] sm:$0x1]
  %v638 = vlaneseq
  %v639 = vshrl.u32 %v638, 7
  %v640 = vsub.s32 0, %v639
  %v641 = vrot.slane %v636, %v640
  %v643 = vmul.f32 %v382, %v641
  %v644 = vmul.f32 %v385, %v641
  %v645 = vmul.f32 %v390, %v641
  %v646 = vmul.f32 %v393, %v641
  %v647 = vmul.f32 %v398, %v641
  %v648 = vmul.f32 %v401, %v641
  %v649 = vmul.f32 %v406, %v641
  %v650 = vmul.f32 %v409, %v641
  %v651 = vmul.f32 %v414, %v641
  %v652 = vmul.f32 %v417, %v641
  %v653 = vmul.f32 %v422, %v641
  %v654 = vmul.f32 %v425, %v641
  %v655 = vmul.f32 %v430, %v641
  %v656 = vmul.f32 %v433, %v641
  %v657 = vmul.f32 %v438, %v641
  %v658 = vmul.f32 %v441, %v641
  %v659 = vmul.f32 %v446, %v641
  %v660 = vmul.f32 %v449, %v641
  %v661 = vmul.f32 %v454, %v641
  %v662 = vmul.f32 %v457, %v641
  %v663 = vmul.f32 %v462, %v641
  %v664 = vmul.f32 %v465, %v641
  %v665 = vmul.f32 %v470, %v641
  %v666 = vmul.f32 %v473, %v641
  %v667 = vmul.f32 %v478, %v641
  %v668 = vmul.f32 %v481, %v641
  %v669 = vmul.f32 %v486, %v641
  %v670 = vmul.f32 %v489, %v641
  %v671 = vmul.f32 %v494, %v641
  %v672 = vmul.f32 %v497, %v641
  %v673 = vmul.f32 %v502, %v641
  %v674 = vmul.f32 %v505, %v641
  %v675 = vmul.f32 %v510, %v641
  %v676 = vmul.f32 %v513, %v641
  %v677 = vmul.f32 %v518, %v641
  %v678 = vmul.f32 %v521, %v641
  %v679 = vmul.f32 %v526, %v641
  %v680 = vmul.f32 %v529, %v641
  %v681 = vmul.f32 %v534, %v641
  %v682 = vmul.f32 %v537, %v641
  %v683 = vmul.f32 %v542, %v641
  %v684 = vmul.f32 %v545, %v641
  %v685 = vmul.f32 %v550, %v641
  %v686 = vmul.f32 %v553, %v641
  %v687 = vmul.f32 %v558, %v641
  %v688 = vmul.f32 %v561, %v641
  %v689 = vmul.f32 %v566, %v641
  %v690 = vmul.f32 %v569, %v641
  %v691 = vmul.f32 %v574, %v641
  %v692 = vmul.f32 %v577, %v641
  %v693 = vmul.f32 %v582, %v641
  %v694 = vmul.f32 %v585, %v641
  %v695 = vmul.f32 %v590, %v641
  %v696 = vmul.f32 %v593, %v641
  %v697 = vmul.f32 %v598, %v641
  %v698 = vmul.f32 %v601, %v641
  %v699 = vmul.f32 %v606, %v641
  %v700 = vmul.f32 %v609, %v641
  %v701 = vmul.f32 %v614, %v641
  %v702 = vmul.f32 %v617, %v641
  %v703 = vmul.f32 %v622, %v641
  %v704 = vmul.f32 %v625, %v641
  %v705 = vmul.f32 %v630, %v641
  %v706 = vmul.f32 %v633, %v641
  %v707 = vld [vmem:[%s3] sm:$0x1]
  %v709 = vlaneseq
  %v710 = vshrl.u32 %v709, 7
  %v711 = vsub.s32 0, %v710
  %v712 = vrot.slane %v707, %v711
  %v714 = vadd.f32 %v643, %v712
  %v715 = vadd.f32 %v644, %v712
  %v716 = vadd.f32 %v645, %v712
  %v717 = vadd.f32 %v646, %v712
  %v718 = vadd.f32 %v647, %v712
  %v719 = vadd.f32 %v648, %v712
  %v720 = vadd.f32 %v649, %v712
  %v721 = vadd.f32 %v650, %v712
  %v722 = vadd.f32 %v651, %v712
  %v723 = vadd.f32 %v652, %v712
  %v724 = vadd.f32 %v653, %v712
  %v725 = vadd.f32 %v654, %v712
  %v726 = vadd.f32 %v655, %v712
  %v727 = vadd.f32 %v656, %v712
  %v728 = vadd.f32 %v657, %v712
  %v729 = vadd.f32 %v658, %v712
  %v730 = vadd.f32 %v659, %v712
  %v731 = vadd.f32 %v660, %v712
  %v732 = vadd.f32 %v661, %v712
  %v733 = vadd.f32 %v662, %v712
  %v734 = vadd.f32 %v663, %v712
  %v735 = vadd.f32 %v664, %v712
  %v736 = vadd.f32 %v665, %v712
  %v737 = vadd.f32 %v666, %v712
  %v738 = vadd.f32 %v667, %v712
  %v739 = vadd.f32 %v668, %v712
  %v740 = vadd.f32 %v669, %v712
  %v741 = vadd.f32 %v670, %v712
  %v742 = vadd.f32 %v671, %v712
  %v743 = vadd.f32 %v672, %v712
  %v744 = vadd.f32 %v673, %v712
  %v745 = vadd.f32 %v674, %v712
  %v746 = vadd.f32 %v675, %v712
  %v747 = vadd.f32 %v676, %v712
  %v748 = vadd.f32 %v677, %v712
  %v749 = vadd.f32 %v678, %v712
  %v750 = vadd.f32 %v679, %v712
  %v751 = vadd.f32 %v680, %v712
  %v752 = vadd.f32 %v681, %v712
  %v753 = vadd.f32 %v682, %v712
  %v754 = vadd.f32 %v683, %v712
  %v755 = vadd.f32 %v684, %v712
  %v756 = vadd.f32 %v685, %v712
  %v757 = vadd.f32 %v686, %v712
  %v758 = vadd.f32 %v687, %v712
  %v759 = vadd.f32 %v688, %v712
  %v760 = vadd.f32 %v689, %v712
  %v761 = vadd.f32 %v690, %v712
  %v762 = vadd.f32 %v691, %v712
  %v763 = vadd.f32 %v692, %v712
  %v764 = vadd.f32 %v693, %v712
  %v765 = vadd.f32 %v694, %v712
  %v766 = vadd.f32 %v695, %v712
  %v767 = vadd.f32 %v696, %v712
  %v768 = vadd.f32 %v697, %v712
  %v769 = vadd.f32 %v698, %v712
  %v770 = vadd.f32 %v699, %v712
  %v771 = vadd.f32 %v700, %v712
  %v772 = vadd.f32 %v701, %v712
  %v773 = vadd.f32 %v702, %v712
  %v774 = vadd.f32 %v703, %v712
  %v775 = vadd.f32 %v704, %v712
  %v776 = vadd.f32 %v705, %v712
  %v777 = vadd.f32 %v706, %v712
  %v778 = vmax.f32 %v714, 0.0
  %v779 = vmax.f32 %v715, 0.0
  %v780 = vmax.f32 %v716, 0.0
  %v781 = vmax.f32 %v717, 0.0
  %v782 = vmax.f32 %v718, 0.0
  %v783 = vmax.f32 %v719, 0.0
  %v784 = vmax.f32 %v720, 0.0
  %v785 = vmax.f32 %v721, 0.0
  %v786 = vmax.f32 %v722, 0.0
  %v787 = vmax.f32 %v723, 0.0
  %v788 = vmax.f32 %v724, 0.0
  %v789 = vmax.f32 %v725, 0.0
  %v790 = vmax.f32 %v726, 0.0
  %v791 = vmax.f32 %v727, 0.0
  %v792 = vmax.f32 %v728, 0.0
  %v793 = vmax.f32 %v729, 0.0
  %v794 = vmax.f32 %v730, 0.0
  %v795 = vmax.f32 %v731, 0.0
  %v796 = vmax.f32 %v732, 0.0
  %v797 = vmax.f32 %v733, 0.0
  %v798 = vmax.f32 %v734, 0.0
  %v799 = vmax.f32 %v735, 0.0
  %v800 = vmax.f32 %v736, 0.0
  %v801 = vmax.f32 %v737, 0.0
  %v802 = vmax.f32 %v738, 0.0
  %v803 = vmax.f32 %v739, 0.0
  %v804 = vmax.f32 %v740, 0.0
  %v805 = vmax.f32 %v741, 0.0
  %v806 = vmax.f32 %v742, 0.0
  %v807 = vmax.f32 %v743, 0.0
  %v808 = vmax.f32 %v744, 0.0
  %v809 = vmax.f32 %v745, 0.0
  %v810 = vmax.f32 %v746, 0.0
  %v811 = vmax.f32 %v747, 0.0
  %v812 = vmax.f32 %v748, 0.0
  %v813 = vmax.f32 %v749, 0.0
  %v814 = vmax.f32 %v750, 0.0
  %v815 = vmax.f32 %v751, 0.0
  %v816 = vmax.f32 %v752, 0.0
  %v817 = vmax.f32 %v753, 0.0
  %v818 = vmax.f32 %v754, 0.0
  %v819 = vmax.f32 %v755, 0.0
  %v820 = vmax.f32 %v756, 0.0
  %v821 = vmax.f32 %v757, 0.0
  %v822 = vmax.f32 %v758, 0.0
  %v823 = vmax.f32 %v759, 0.0
  %v824 = vmax.f32 %v760, 0.0
  %v825 = vmax.f32 %v761, 0.0
  %v826 = vmax.f32 %v762, 0.0
  %v827 = vmax.f32 %v763, 0.0
  %v828 = vmax.f32 %v764, 0.0
  %v829 = vmax.f32 %v765, 0.0
  %v830 = vmax.f32 %v766, 0.0
  %v831 = vmax.f32 %v767, 0.0
  %v832 = vmax.f32 %v768, 0.0
  %v833 = vmax.f32 %v769, 0.0
  %v834 = vmax.f32 %v770, 0.0
  %v835 = vmax.f32 %v771, 0.0
  %v836 = vmax.f32 %v772, 0.0
  %v837 = vmax.f32 %v773, 0.0
  %v838 = vmax.f32 %v774, 0.0
  %v839 = vmax.f32 %v775, 0.0
  %v840 = vmax.f32 %v776, 0.0
  %v841 = vmax.f32 %v777, 0.0
  %v842 = vpack.c.bf16 %v779, %v778
  %v843 = vpack.c.bf16 %v781, %v780
  %v844 = vpack.c.bf16 %v783, %v782
  %v845 = vpack.c.bf16 %v785, %v784
  %v846 = vpack.c.bf16 %v787, %v786
  %v847 = vpack.c.bf16 %v789, %v788
  %v848 = vpack.c.bf16 %v791, %v790
  %v849 = vpack.c.bf16 %v793, %v792
  %v850 = vpack.c.bf16 %v795, %v794
  %v851 = vpack.c.bf16 %v797, %v796
  %v852 = vpack.c.bf16 %v799, %v798
  %v853 = vpack.c.bf16 %v801, %v800
  %v854 = vpack.c.bf16 %v803, %v802
  %v855 = vpack.c.bf16 %v805, %v804
  %v856 = vpack.c.bf16 %v807, %v806
  %v857 = vpack.c.bf16 %v809, %v808
  %v858 = vpack.c.bf16 %v811, %v810
  %v859 = vpack.c.bf16 %v813, %v812
  %v860 = vpack.c.bf16 %v815, %v814
  %v861 = vpack.c.bf16 %v817, %v816
  %v862 = vpack.c.bf16 %v819, %v818
  %v863 = vpack.c.bf16 %v821, %v820
  %v864 = vpack.c.bf16 %v823, %v822
  %v865 = vpack.c.bf16 %v825, %v824
  %v866 = vpack.c.bf16 %v827, %v826
  %v867 = vpack.c.bf16 %v829, %v828
  %v868 = vpack.c.bf16 %v831, %v830
  %v869 = vpack.c.bf16 %v833, %v832
  %v870 = vpack.c.bf16 %v835, %v834
  %v871 = vpack.c.bf16 %v837, %v836
  %v872 = vpack.c.bf16 %v839, %v838
  %v873 = vpack.c.bf16 %v841, %v840
  %v874 = vld [vmem:[%s4] sm:$0xf]
  %vm875 = vcmask 64512
  %v877 = vsel %vm875, %v842, 0
  %v880 = vsel %vm875, %v843, 0
  %v883 = vsel %vm875, %v844, 0
  %v886 = vsel %vm875, %v845, 0
  %v889 = vsel %vm875, %v846, 0
  %v892 = vsel %vm875, %v847, 0
  %v895 = vsel %vm875, %v848, 0
  %v898 = vsel %vm875, %v849, 0
  %v901 = vsel %vm875, %v850, 0
  %v904 = vsel %vm875, %v851, 0
  %v907 = vsel %vm875, %v852, 0
  %v910 = vsel %vm875, %v853, 0
  %v913 = vsel %vm875, %v854, 0
  %v916 = vsel %vm875, %v855, 0
  %v919 = vsel %vm875, %v856, 0
  %v922 = vsel %vm875, %v857, 0
  %v925 = vsel %vm875, %v858, 0
  %v928 = vsel %vm875, %v859, 0
  %v931 = vsel %vm875, %v860, 0
  %v934 = vsel %vm875, %v861, 0
  %v937 = vsel %vm875, %v862, 0
  %v940 = vsel %vm875, %v863, 0
  %v943 = vsel %vm875, %v864, 0
  %v946 = vsel %vm875, %v865, 0
  %v949 = vsel %vm875, %v866, 0
  %v952 = vsel %vm875, %v867, 0
  %v955 = vsel %vm875, %v868, 0
  %v958 = vsel %vm875, %v869, 0
  %v961 = vsel %vm875, %v870, 0
  %v964 = vsel %vm875, %v871, 0
  %v967 = vsel %vm875, %v872, 0
  %v970 = vsel %vm875, %v873, 0
  %vm972 = vcmask 1043456
  %v974 = vsel %vm972, %v874, 0
  %976 = vmatprep.subr.bf16.mxu0 0
  %977 = vmatpush1.bf16.msra.mxu0 0
  %978 = vmatprep.subr.bf16.mxu0 0
  %979 = vmatpush1.bf16.msra.mxu0 0
  %980 = vmatprep.subr.bf16.mxu0 0
  %981 = vmatpush1.bf16.msra.mxu0 0
  %982 = vmatprep.subr.bf16.mxu0 0
  %983 = vmatpush1.bf16.msra.mxu0 0
  %984 = vmatprep.subr.bf16.mxu0 0
  %985 = vmatpush1.bf16.msra.mxu0 0
  %986 = vmatprep.subr.bf16.mxu0 0
  %987 = vmatpush1.bf16.msra.mxu0 0
  %988 = vmatprep.subr.bf16.mxu0 0
  %989 = vmatpush1.bf16.msra.mxu0 0
  %990 = vmatprep.subr.bf16.mxu0 0
  %991 = vmatpush1.bf16.msra.mxu0 %v974
  %992 = vmatprep.subr.bf16.mxu0 0
  %993 = vmatpush2.bf16.msra.mxu0 0
  %994 = vmatprep.subr.bf16.mxu0 0
  %995 = vmatpush2.bf16.msra.mxu0 0
  %996 = vmatprep.subr.bf16.mxu0 0
  %997 = vmatpush2.bf16.msra.mxu0 0
  %998 = vmatprep.subr.bf16.mxu0 0
  %999 = vmatpush2.bf16.msra.mxu0 0
  %1000 = vmatprep.subr.bf16.mxu0 0
  %1001 = vmatpush2.bf16.msra.mxu0 0
  %1002 = vmatprep.subr.bf16.mxu0 0
  %1003 = vmatpush2.bf16.msra.mxu0 0
  %1004 = vmatprep.subr.bf16.mxu0 0
  %1005 = vmatpush2.bf16.msra.mxu0 0
  %1006 = vmatprep.subr.bf16.mxu0 0
  %1007 = vmatpush2.bf16.msra.mxu0 0
  %1008 = vmatprep.mubr.bf16.mxu0 0
  %1009 = vmatmul.mubr.bf16.gmra.mxu0 %v877
  %v1010 = vpop.f32.mrf.mxu0
  %v1011 = vadd.f32 0.0, %v1010
  %v1012 = vpop.f32.mrf.mxu0
  %v1013 = vpop.f32.mrf.mxu0
  %v1014 = vadd.f32 0.0, %v1013
  %v1015 = vpop.f32.mrf.mxu0
  %1016 = vmatprep.mubr.bf16.mxu0 0
  %1017 = vmatmul.mubr.bf16.gmra.mxu0 %v880
  %v1018 = vpop.f32.mrf.mxu0
  %v1019 = vadd.f32 0.0, %v1018
  %v1020 = vpop.f32.mrf.mxu0
  %v1021 = vpop.f32.mrf.mxu0
  %v1022 = vadd.f32 0.0, %v1021
  %v1023 = vpop.f32.mrf.mxu0
  %1024 = vmatprep.mubr.bf16.mxu0 0
  %1025 = vmatmul.mubr.bf16.gmra.mxu0 %v883
  %v1026 = vpop.f32.mrf.mxu0
  %v1027 = vadd.f32 0.0, %v1026
  %v1028 = vpop.f32.mrf.mxu0
  %v1029 = vpop.f32.mrf.mxu0
  %v1030 = vadd.f32 0.0, %v1029
  %v1031 = vpop.f32.mrf.mxu0
  %1032 = vmatprep.mubr.bf16.mxu0 0
  %1033 = vmatmul.mubr.bf16.gmra.mxu0 %v886
  %v1034 = vpop.f32.mrf.mxu0
  %v1035 = vadd.f32 0.0, %v1034
  %v1036 = vpop.f32.mrf.mxu0
  %v1037 = vpop.f32.mrf.mxu0
  %v1038 = vadd.f32 0.0, %v1037
  %v1039 = vpop.f32.mrf.mxu0
  %1040 = vmatprep.mubr.bf16.mxu0 0
  %1041 = vmatmul.mubr.bf16.gmra.mxu0 %v889
  %v1042 = vpop.f32.mrf.mxu0
  %v1043 = vadd.f32 0.0, %v1042
  %v1044 = vpop.f32.mrf.mxu0
  %v1045 = vpop.f32.mrf.mxu0
  %v1046 = vadd.f32 0.0, %v1045
  %v1047 = vpop.f32.mrf.mxu0
  %1048 = vmatprep.mubr.bf16.mxu0 0
  %1049 = vmatmul.mubr.bf16.gmra.mxu0 %v892
  %v1050 = vpop.f32.mrf.mxu0
  %v1051 = vadd.f32 0.0, %v1050
  %v1052 = vpop.f32.mrf.mxu0
  %v1053 = vpop.f32.mrf.mxu0
  %v1054 = vadd.f32 0.0, %v1053
  %v1055 = vpop.f32.mrf.mxu0
  %1056 = vmatprep.mubr.bf16.mxu0 0
  %1057 = vmatmul.mubr.bf16.gmra.mxu0 %v895
  %v1058 = vpop.f32.mrf.mxu0
  %v1059 = vadd.f32 0.0, %v1058
  %v1060 = vpop.f32.mrf.mxu0
  %v1061 = vpop.f32.mrf.mxu0
  %v1062 = vadd.f32 0.0, %v1061
  %v1063 = vpop.f32.mrf.mxu0
  %1064 = vmatprep.mubr.bf16.mxu0 0
  %1065 = vmatmul.mubr.bf16.gmra.mxu0 %v898
  %v1066 = vpop.f32.mrf.mxu0
  %v1067 = vadd.f32 0.0, %v1066
  %v1068 = vpop.f32.mrf.mxu0
  %v1069 = vpop.f32.mrf.mxu0
  %v1070 = vadd.f32 0.0, %v1069
  %v1071 = vpop.f32.mrf.mxu0
  %1072 = vmatprep.mubr.bf16.mxu0 0
  %1073 = vmatmul.mubr.bf16.gmra.mxu0 %v901
  %v1074 = vpop.f32.mrf.mxu0
  %v1075 = vadd.f32 0.0, %v1074
  %v1076 = vpop.f32.mrf.mxu0
  %v1077 = vpop.f32.mrf.mxu0
  %v1078 = vadd.f32 0.0, %v1077
  %v1079 = vpop.f32.mrf.mxu0
  %1080 = vmatprep.mubr.bf16.mxu0 0
  %1081 = vmatmul.mubr.bf16.gmra.mxu0 %v904
  %v1082 = vpop.f32.mrf.mxu0
  %v1083 = vadd.f32 0.0, %v1082
  %v1084 = vpop.f32.mrf.mxu0
  %v1085 = vpop.f32.mrf.mxu0
  %v1086 = vadd.f32 0.0, %v1085
  %v1087 = vpop.f32.mrf.mxu0
  %1088 = vmatprep.mubr.bf16.mxu0 0
  %1089 = vmatmul.mubr.bf16.gmra.mxu0 %v907
  %v1090 = vpop.f32.mrf.mxu0
  %v1091 = vadd.f32 0.0, %v1090
  %v1092 = vpop.f32.mrf.mxu0
  %v1093 = vpop.f32.mrf.mxu0
  %v1094 = vadd.f32 0.0, %v1093
  %v1095 = vpop.f32.mrf.mxu0
  %1096 = vmatprep.mubr.bf16.mxu0 0
  %1097 = vmatmul.mubr.bf16.gmra.mxu0 %v910
  %v1098 = vpop.f32.mrf.mxu0
  %v1099 = vadd.f32 0.0, %v1098
  %v1100 = vpop.f32.mrf.mxu0
  %v1101 = vpop.f32.mrf.mxu0
  %v1102 = vadd.f32 0.0, %v1101
  %v1103 = vpop.f32.mrf.mxu0
  %1104 = vmatprep.mubr.bf16.mxu0 0
  %1105 = vmatmul.mubr.bf16.gmra.mxu0 %v913
  %v1106 = vpop.f32.mrf.mxu0
  %v1107 = vadd.f32 0.0, %v1106
  %v1108 = vpop.f32.mrf.mxu0
  %v1109 = vpop.f32.mrf.mxu0
  %v1110 = vadd.f32 0.0, %v1109
  %v1111 = vpop.f32.mrf.mxu0
  %1112 = vmatprep.mubr.bf16.mxu0 0
  %1113 = vmatmul.mubr.bf16.gmra.mxu0 %v916
  %v1114 = vpop.f32.mrf.mxu0
  %v1115 = vadd.f32 0.0, %v1114
  %v1116 = vpop.f32.mrf.mxu0
  %v1117 = vpop.f32.mrf.mxu0
  %v1118 = vadd.f32 0.0, %v1117
  %v1119 = vpop.f32.mrf.mxu0
  %1120 = vmatprep.mubr.bf16.mxu0 0
  %1121 = vmatmul.mubr.bf16.gmra.mxu0 %v919
  %v1122 = vpop.f32.mrf.mxu0
  %v1123 = vadd.f32 0.0, %v1122
  %v1124 = vpop.f32.mrf.mxu0
  %v1125 = vpop.f32.mrf.mxu0
  %v1126 = vadd.f32 0.0, %v1125
  %v1127 = vpop.f32.mrf.mxu0
  %1128 = vmatprep.mubr.bf16.mxu0 0
  %1129 = vmatmul.mubr.bf16.gmra.mxu0 %v922
  %v1130 = vpop.f32.mrf.mxu0
  %v1131 = vadd.f32 0.0, %v1130
  %v1132 = vpop.f32.mrf.mxu0
  %v1133 = vpop.f32.mrf.mxu0
  %v1134 = vadd.f32 0.0, %v1133
  %v1135 = vpop.f32.mrf.mxu0
  %1136 = vmatprep.mubr.bf16.mxu0 0
  %1137 = vmatmul.mubr.bf16.gmra.mxu0 %v925
  %v1138 = vpop.f32.mrf.mxu0
  %v1139 = vadd.f32 0.0, %v1138
  %v1140 = vpop.f32.mrf.mxu0
  %v1141 = vpop.f32.mrf.mxu0
  %v1142 = vadd.f32 0.0, %v1141
  %v1143 = vpop.f32.mrf.mxu0
  %1144 = vmatprep.mubr.bf16.mxu0 0
  %1145 = vmatmul.mubr.bf16.gmra.mxu0 %v928
  %v1146 = vpop.f32.mrf.mxu0
  %v1147 = vadd.f32 0.0, %v1146
  %v1148 = vpop.f32.mrf.mxu0
  %v1149 = vpop.f32.mrf.mxu0
  %v1150 = vadd.f32 0.0, %v1149
  %v1151 = vpop.f32.mrf.mxu0
  %1152 = vmatprep.mubr.bf16.mxu0 0
  %1153 = vmatmul.mubr.bf16.gmra.mxu0 %v931
  %v1154 = vpop.f32.mrf.mxu0
  %v1155 = vadd.f32 0.0, %v1154
  %v1156 = vpop.f32.mrf.mxu0
  %v1157 = vpop.f32.mrf.mxu0
  %v1158 = vadd.f32 0.0, %v1157
  %v1159 = vpop.f32.mrf.mxu0
  %1160 = vmatprep.mubr.bf16.mxu0 0
  %1161 = vmatmul.mubr.bf16.gmra.mxu0 %v934
  %v1162 = vpop.f32.mrf.mxu0
  %v1163 = vadd.f32 0.0, %v1162
  %v1164 = vpop.f32.mrf.mxu0
  %v1165 = vpop.f32.mrf.mxu0
  %v1166 = vadd.f32 0.0, %v1165
  %v1167 = vpop.f32.mrf.mxu0
  %1168 = vmatprep.mubr.bf16.mxu0 0
  %1169 = vmatmul.mubr.bf16.gmra.mxu0 %v937
  %v1170 = vpop.f32.mrf.mxu0
  %v1171 = vadd.f32 0.0, %v1170
  %v1172 = vpop.f32.mrf.mxu0
  %v1173 = vpop.f32.mrf.mxu0
  %v1174 = vadd.f32 0.0, %v1173
  %v1175 = vpop.f32.mrf.mxu0
  %1176 = vmatprep.mubr.bf16.mxu0 0
  %1177 = vmatmul.mubr.bf16.gmra.mxu0 %v940
  %v1178 = vpop.f32.mrf.mxu0
  %v1179 = vadd.f32 0.0, %v1178
  %v1180 = vpop.f32.mrf.mxu0
  %v1181 = vpop.f32.mrf.mxu0
  %v1182 = vadd.f32 0.0, %v1181
  %v1183 = vpop.f32.mrf.mxu0
  %1184 = vmatprep.mubr.bf16.mxu0 0
  %1185 = vmatmul.mubr.bf16.gmra.mxu0 %v943
  %v1186 = vpop.f32.mrf.mxu0
  %v1187 = vadd.f32 0.0, %v1186
  %v1188 = vpop.f32.mrf.mxu0
  %v1189 = vpop.f32.mrf.mxu0
  %v1190 = vadd.f32 0.0, %v1189
  %v1191 = vpop.f32.mrf.mxu0
  %1192 = vmatprep.mubr.bf16.mxu0 0
  %1193 = vmatmul.mubr.bf16.gmra.mxu0 %v946
  %v1194 = vpop.f32.mrf.mxu0
  %v1195 = vadd.f32 0.0, %v1194
  %v1196 = vpop.f32.mrf.mxu0
  %v1197 = vpop.f32.mrf.mxu0
  %v1198 = vadd.f32 0.0, %v1197
  %v1199 = vpop.f32.mrf.mxu0
  %1200 = vmatprep.mubr.bf16.mxu0 0
  %1201 = vmatmul.mubr.bf16.gmra.mxu0 %v949
  %v1202 = vpop.f32.mrf.mxu0
  %v1203 = vadd.f32 0.0, %v1202
  %v1204 = vpop.f32.mrf.mxu0
  %v1205 = vpop.f32.mrf.mxu0
  %v1206 = vadd.f32 0.0, %v1205
  %v1207 = vpop.f32.mrf.mxu0
  %1208 = vmatprep.mubr.bf16.mxu0 0
  %1209 = vmatmul.mubr.bf16.gmra.mxu0 %v952
  %v1210 = vpop.f32.mrf.mxu0
  %v1211 = vadd.f32 0.0, %v1210
  %v1212 = vpop.f32.mrf.mxu0
  %v1213 = vpop.f32.mrf.mxu0
  %v1214 = vadd.f32 0.0, %v1213
  %v1215 = vpop.f32.mrf.mxu0
  %1216 = vmatprep.mubr.bf16.mxu0 0
  %1217 = vmatmul.mubr.bf16.gmra.mxu0 %v955
  %v1218 = vpop.f32.mrf.mxu0
  %v1219 = vadd.f32 0.0, %v1218
  %v1220 = vpop.f32.mrf.mxu0
  %v1221 = vpop.f32.mrf.mxu0
  %v1222 = vadd.f32 0.0, %v1221
  %v1223 = vpop.f32.mrf.mxu0
  %1224 = vmatprep.mubr.bf16.mxu0 0
  %1225 = vmatmul.mubr.bf16.gmra.mxu0 %v958
  %v1226 = vpop.f32.mrf.mxu0
  %v1227 = vadd.f32 0.0, %v1226
  %v1228 = vpop.f32.mrf.mxu0
  %v1229 = vpop.f32.mrf.mxu0
  %v1230 = vadd.f32 0.0, %v1229
  %v1231 = vpop.f32.mrf.mxu0
  %1232 = vmatprep.mubr.bf16.mxu0 0
  %1233 = vmatmul.mubr.bf16.gmra.mxu0 %v961
  %v1234 = vpop.f32.mrf.mxu0
  %v1235 = vadd.f32 0.0, %v1234
  %v1236 = vpop.f32.mrf.mxu0
  %v1237 = vpop.f32.mrf.mxu0
  %v1238 = vadd.f32 0.0, %v1237
  %v1239 = vpop.f32.mrf.mxu0
  %1240 = vmatprep.mubr.bf16.mxu0 0
  %1241 = vmatmul.mubr.bf16.gmra.mxu0 %v964
  %v1242 = vpop.f32.mrf.mxu0
  %v1243 = vadd.f32 0.0, %v1242
  %v1244 = vpop.f32.mrf.mxu0
  %v1245 = vpop.f32.mrf.mxu0
  %v1246 = vadd.f32 0.0, %v1245
  %v1247 = vpop.f32.mrf.mxu0
  %1248 = vmatprep.mubr.bf16.mxu0 0
  %1249 = vmatmul.mubr.bf16.gmra.mxu0 %v967
  %v1250 = vpop.f32.mrf.mxu0
  %v1251 = vadd.f32 0.0, %v1250
  %v1252 = vpop.f32.mrf.mxu0
  %v1253 = vpop.f32.mrf.mxu0
  %v1254 = vadd.f32 0.0, %v1253
  %v1255 = vpop.f32.mrf.mxu0
  %1256 = vmatprep.mubr.bf16.mxu0 0
  %1257 = vmatmul.mubr.bf16.gmra.mxu0 %v970
  %v1258 = vpop.f32.mrf.mxu0
  %v1259 = vadd.f32 0.0, %v1258
  %v1260 = vpop.f32.mrf.mxu0
  %v1261 = vpop.f32.mrf.mxu0
  %v1262 = vadd.f32 0.0, %v1261
  %v1263 = vpop.f32.mrf.mxu0
  %1264 = vdwg.mxu0
  %v1265 = vpack.c.bf16 %v1014, %v1011
  %v1266 = vpack.c.bf16 %v1022, %v1019
  %v1267 = vpack.c.bf16 %v1030, %v1027
  %v1268 = vpack.c.bf16 %v1038, %v1035
  %v1269 = vpack.c.bf16 %v1046, %v1043
  %v1270 = vpack.c.bf16 %v1054, %v1051
  %v1271 = vpack.c.bf16 %v1062, %v1059
  %v1272 = vpack.c.bf16 %v1070, %v1067
  %v1273 = vpack.c.bf16 %v1078, %v1075
  %v1274 = vpack.c.bf16 %v1086, %v1083
  %v1275 = vpack.c.bf16 %v1094, %v1091
  %v1276 = vpack.c.bf16 %v1102, %v1099
  %v1277 = vpack.c.bf16 %v1110, %v1107
  %v1278 = vpack.c.bf16 %v1118, %v1115
  %v1279 = vpack.c.bf16 %v1126, %v1123
  %v1280 = vpack.c.bf16 %v1134, %v1131
  %v1281 = vpack.c.bf16 %v1142, %v1139
  %v1282 = vpack.c.bf16 %v1150, %v1147
  %v1283 = vpack.c.bf16 %v1158, %v1155
  %v1284 = vpack.c.bf16 %v1166, %v1163
  %v1285 = vpack.c.bf16 %v1174, %v1171
  %v1286 = vpack.c.bf16 %v1182, %v1179
  %v1287 = vpack.c.bf16 %v1190, %v1187
  %v1288 = vpack.c.bf16 %v1198, %v1195
  %v1289 = vpack.c.bf16 %v1206, %v1203
  %v1290 = vpack.c.bf16 %v1214, %v1211
  %v1291 = vpack.c.bf16 %v1222, %v1219
  %v1292 = vpack.c.bf16 %v1230, %v1227
  %v1293 = vpack.c.bf16 %v1238, %v1235
  %v1294 = vpack.c.bf16 %v1246, %v1243
  %v1295 = vpack.c.bf16 %v1254, %v1251
  %v1296 = vpack.c.bf16 %v1262, %v1259
  %v1329 = vunpack.c.l.b16 %v1265
  %v1330 = vunpack.c.h.b16 %v1265
  %v1331 = vunpack.c.l.b16 %v1266
  %v1332 = vunpack.c.h.b16 %v1266
  %v1333 = vunpack.c.l.b16 %v1267
  %v1334 = vunpack.c.h.b16 %v1267
  %v1335 = vunpack.c.l.b16 %v1268
  %v1336 = vunpack.c.h.b16 %v1268
  %v1337 = vunpack.c.l.b16 %v1269
  %v1338 = vunpack.c.h.b16 %v1269
  %v1339 = vunpack.c.l.b16 %v1270
  %v1340 = vunpack.c.h.b16 %v1270
  %v1341 = vunpack.c.l.b16 %v1271
  %v1342 = vunpack.c.h.b16 %v1271
  %v1343 = vunpack.c.l.b16 %v1272
  %v1344 = vunpack.c.h.b16 %v1272
  %v1345 = vunpack.c.l.b16 %v1273
  %v1346 = vunpack.c.h.b16 %v1273
  %v1347 = vunpack.c.l.b16 %v1274
  %v1348 = vunpack.c.h.b16 %v1274
  %v1349 = vunpack.c.l.b16 %v1275
  %v1350 = vunpack.c.h.b16 %v1275
  %v1351 = vunpack.c.l.b16 %v1276
  %v1352 = vunpack.c.h.b16 %v1276
  %v1353 = vunpack.c.l.b16 %v1277
  %v1354 = vunpack.c.h.b16 %v1277
  %v1355 = vunpack.c.l.b16 %v1278
  %v1356 = vunpack.c.h.b16 %v1278
  %v1357 = vunpack.c.l.b16 %v1279
  %v1358 = vunpack.c.h.b16 %v1279
  %v1359 = vunpack.c.l.b16 %v1280
  %v1360 = vunpack.c.h.b16 %v1280
  %v1361 = vunpack.c.l.b16 %v1281
  %v1362 = vunpack.c.h.b16 %v1281
  %v1363 = vunpack.c.l.b16 %v1282
  %v1364 = vunpack.c.h.b16 %v1282
  %v1365 = vunpack.c.l.b16 %v1283
  %v1366 = vunpack.c.h.b16 %v1283
  %v1367 = vunpack.c.l.b16 %v1284
  %v1368 = vunpack.c.h.b16 %v1284
  %v1369 = vunpack.c.l.b16 %v1285
  %v1370 = vunpack.c.h.b16 %v1285
  %v1371 = vunpack.c.l.b16 %v1286
  %v1372 = vunpack.c.h.b16 %v1286
  %v1373 = vunpack.c.l.b16 %v1287
  %v1374 = vunpack.c.h.b16 %v1287
  %v1375 = vunpack.c.l.b16 %v1288
  %v1376 = vunpack.c.h.b16 %v1288
  %v1377 = vunpack.c.l.b16 %v1289
  %v1378 = vunpack.c.h.b16 %v1289
  %v1379 = vunpack.c.l.b16 %v1290
  %v1380 = vunpack.c.h.b16 %v1290
  %v1381 = vunpack.c.l.b16 %v1291
  %v1382 = vunpack.c.h.b16 %v1291
  %v1383 = vunpack.c.l.b16 %v1292
  %v1384 = vunpack.c.h.b16 %v1292
  %v1385 = vunpack.c.l.b16 %v1293
  %v1386 = vunpack.c.h.b16 %v1293
  %v1387 = vunpack.c.l.b16 %v1294
  %v1388 = vunpack.c.h.b16 %v1294
  %v1389 = vunpack.c.l.b16 %v1295
  %v1390 = vunpack.c.h.b16 %v1295
  %v1391 = vunpack.c.l.b16 %v1296
  %v1392 = vunpack.c.h.b16 %v1296
  %v1393 = vpack.c.b16 %v1329, %v1329
  %v1394 = vpack.c.b16 %v1330, %v1330
  %v1395 = vpack.c.b16 %v1331, %v1331
  %v1396 = vpack.c.b16 %v1332, %v1332
  %v1397 = vpack.c.b16 %v1333, %v1333
  %v1398 = vpack.c.b16 %v1334, %v1334
  %v1399 = vpack.c.b16 %v1335, %v1335
  %v1400 = vpack.c.b16 %v1336, %v1336
  %v1401 = vpack.c.b16 %v1337, %v1337
  %v1402 = vpack.c.b16 %v1338, %v1338
  %v1403 = vpack.c.b16 %v1339, %v1339
  %v1404 = vpack.c.b16 %v1340, %v1340
  %v1405 = vpack.c.b16 %v1341, %v1341
  %v1406 = vpack.c.b16 %v1342, %v1342
  %v1407 = vpack.c.b16 %v1343, %v1343
  %v1408 = vpack.c.b16 %v1344, %v1344
  %v1409 = vpack.c.b16 %v1345, %v1345
  %v1410 = vpack.c.b16 %v1346, %v1346
  %v1411 = vpack.c.b16 %v1347, %v1347
  %v1412 = vpack.c.b16 %v1348, %v1348
  %v1413 = vpack.c.b16 %v1349, %v1349
  %v1414 = vpack.c.b16 %v1350, %v1350
  %v1415 = vpack.c.b16 %v1351, %v1351
  %v1416 = vpack.c.b16 %v1352, %v1352
  %v1417 = vpack.c.b16 %v1353, %v1353
  %v1418 = vpack.c.b16 %v1354, %v1354
  %v1419 = vpack.c.b16 %v1355, %v1355
  %v1420 = vpack.c.b16 %v1356, %v1356
  %v1421 = vpack.c.b16 %v1357, %v1357
  %v1422 = vpack.c.b16 %v1358, %v1358
  %v1423 = vpack.c.b16 %v1359, %v1359
  %v1424 = vpack.c.b16 %v1360, %v1360
  %v1425 = vpack.c.b16 %v1361, %v1361
  %v1426 = vpack.c.b16 %v1362, %v1362
  %v1427 = vpack.c.b16 %v1363, %v1363
  %v1428 = vpack.c.b16 %v1364, %v1364
  %v1429 = vpack.c.b16 %v1365, %v1365
  %v1430 = vpack.c.b16 %v1366, %v1366
  %v1431 = vpack.c.b16 %v1367, %v1367
  %v1432 = vpack.c.b16 %v1368, %v1368
  %v1433 = vpack.c.b16 %v1369, %v1369
  %v1434 = vpack.c.b16 %v1370, %v1370
  %v1435 = vpack.c.b16 %v1371, %v1371
  %v1436 = vpack.c.b16 %v1372, %v1372
  %v1437 = vpack.c.b16 %v1373, %v1373
  %v1438 = vpack.c.b16 %v1374, %v1374
  %v1439 = vpack.c.b16 %v1375, %v1375
  %v1440 = vpack.c.b16 %v1376, %v1376
  %v1441 = vpack.c.b16 %v1377, %v1377
  %v1442 = vpack.c.b16 %v1378, %v1378
  %v1443 = vpack.c.b16 %v1379, %v1379
  %v1444 = vpack.c.b16 %v1380, %v1380
  %v1445 = vpack.c.b16 %v1381, %v1381
  %v1446 = vpack.c.b16 %v1382, %v1382
  %v1447 = vpack.c.b16 %v1383, %v1383
  %v1448 = vpack.c.b16 %v1384, %v1384
  %v1449 = vpack.c.b16 %v1385, %v1385
  %v1450 = vpack.c.b16 %v1386, %v1386
  %v1451 = vpack.c.b16 %v1387, %v1387
  %v1452 = vpack.c.b16 %v1388, %v1388
  %v1453 = vpack.c.b16 %v1389, %v1389
  %v1454 = vpack.c.b16 %v1390, %v1390
  %v1455 = vpack.c.b16 %v1391, %v1391
  %v1456 = vpack.c.b16 %v1392, %v1392
  %vm1521 = vcmask 781312
  %1522 = vst.msk [vmem:[%s5] sm:$0xf] %vm1521, %v1393
  %1523 = vst.msk [vmem:[%s5 + $0x4] sm:$0xf] %vm1521, %v1394
  %1524 = vst.msk [vmem:[%s5 + $0x8] sm:$0xf] %vm1521, %v1395
  %1525 = vst.msk [vmem:[%s5 + $0xc] sm:$0xf] %vm1521, %v1396
  %1526 = vst.msk [vmem:[%s5 + $0x10] sm:$0xf] %vm1521, %v1397
  %1527 = vst.msk [vmem:[%s5 + $0x14] sm:$0xf] %vm1521, %v1398
  %1528 = vst.msk [vmem:[%s5 + $0x18] sm:$0xf] %vm1521, %v1399
  %1529 = vst.msk [vmem:[%s5 + $0x1c] sm:$0xf] %vm1521, %v1400
  %1530 = vst.msk [vmem:[%s5 + $0x20] sm:$0xf] %vm1521, %v1401
  %1531 = vst.msk [vmem:[%s5 + $0x24] sm:$0xf] %vm1521, %v1402
  %1532 = vst.msk [vmem:[%s5 + $0x28] sm:$0xf] %vm1521, %v1403
  %1533 = vst.msk [vmem:[%s5 + $0x2c] sm:$0xf] %vm1521, %v1404
  %1534 = vst.msk [vmem:[%s5 + $0x30] sm:$0xf] %vm1521, %v1405
  %1535 = vst.msk [vmem:[%s5 + $0x34] sm:$0xf] %vm1521, %v1406
  %1536 = vst.msk [vmem:[%s5 + $0x38] sm:$0xf] %vm1521, %v1407
  %1537 = vst.msk [vmem:[%s5 + $0x3c] sm:$0xf] %vm1521, %v1408
  %1538 = vst.msk [vmem:[%s5 + $0x40] sm:$0xf] %vm1521, %v1409
  %1539 = vst.msk [vmem:[%s5 + $0x44] sm:$0xf] %vm1521, %v1410
  %1540 = vst.msk [vmem:[%s5 + $0x48] sm:$0xf] %vm1521, %v1411
  %1541 = vst.msk [vmem:[%s5 + $0x4c] sm:$0xf] %vm1521, %v1412
  %1542 = vst.msk [vmem:[%s5 + $0x50] sm:$0xf] %vm1521, %v1413
  %1543 = vst.msk [vmem:[%s5 + $0x54] sm:$0xf] %vm1521, %v1414
  %1544 = vst.msk [vmem:[%s5 + $0x58] sm:$0xf] %vm1521, %v1415
  %1545 = vst.msk [vmem:[%s5 + $0x5c] sm:$0xf] %vm1521, %v1416
  %1546 = vst.msk [vmem:[%s5 + $0x60] sm:$0xf] %vm1521, %v1417
  %1547 = vst.msk [vmem:[%s5 + $0x64] sm:$0xf] %vm1521, %v1418
  %1548 = vst.msk [vmem:[%s5 + $0x68] sm:$0xf] %vm1521, %v1419
  %1549 = vst.msk [vmem:[%s5 + $0x6c] sm:$0xf] %vm1521, %v1420
  %1550 = vst.msk [vmem:[%s5 + $0x70] sm:$0xf] %vm1521, %v1421
  %1551 = vst.msk [vmem:[%s5 + $0x74] sm:$0xf] %vm1521, %v1422
  %1552 = vst.msk [vmem:[%s5 + $0x78] sm:$0xf] %vm1521, %v1423
  %1553 = vst.msk [vmem:[%s5 + $0x7c] sm:$0xf] %vm1521, %v1424
  %1554 = vst.msk [vmem:[%s5 + $0x80] sm:$0xf] %vm1521, %v1425
  %1555 = vst.msk [vmem:[%s5 + $0x84] sm:$0xf] %vm1521, %v1426
  %1556 = vst.msk [vmem:[%s5 + $0x88] sm:$0xf] %vm1521, %v1427
  %1557 = vst.msk [vmem:[%s5 + $0x8c] sm:$0xf] %vm1521, %v1428
  %1558 = vst.msk [vmem:[%s5 + $0x90] sm:$0xf] %vm1521, %v1429
  %1559 = vst.msk [vmem:[%s5 + $0x94] sm:$0xf] %vm1521, %v1430
  %1560 = vst.msk [vmem:[%s5 + $0x98] sm:$0xf] %vm1521, %v1431
  %1561 = vst.msk [vmem:[%s5 + $0x9c] sm:$0xf] %vm1521, %v1432
  %1562 = vst.msk [vmem:[%s5 + $0xa0] sm:$0xf] %vm1521, %v1433
  %1563 = vst.msk [vmem:[%s5 + $0xa4] sm:$0xf] %vm1521, %v1434
  %1564 = vst.msk [vmem:[%s5 + $0xa8] sm:$0xf] %vm1521, %v1435
  %1565 = vst.msk [vmem:[%s5 + $0xac] sm:$0xf] %vm1521, %v1436
  %1566 = vst.msk [vmem:[%s5 + $0xb0] sm:$0xf] %vm1521, %v1437
  %1567 = vst.msk [vmem:[%s5 + $0xb4] sm:$0xf] %vm1521, %v1438
  %1568 = vst.msk [vmem:[%s5 + $0xb8] sm:$0xf] %vm1521, %v1439
  %1569 = vst.msk [vmem:[%s5 + $0xbc] sm:$0xf] %vm1521, %v1440
  %1570 = vst.msk [vmem:[%s5 + $0xc0] sm:$0xf] %vm1521, %v1441
  %1571 = vst.msk [vmem:[%s5 + $0xc4] sm:$0xf] %vm1521, %v1442
  %1572 = vst.msk [vmem:[%s5 + $0xc8] sm:$0xf] %vm1521, %v1443
  %1573 = vst.msk [vmem:[%s5 + $0xcc] sm:$0xf] %vm1521, %v1444
  %1574 = vst.msk [vmem:[%s5 + $0xd0] sm:$0xf] %vm1521, %v1445
  %1575 = vst.msk [vmem:[%s5 + $0xd4] sm:$0xf] %vm1521, %v1446
  %1576 = vst.msk [vmem:[%s5 + $0xd8] sm:$0xf] %vm1521, %v1447
  %1577 = vst.msk [vmem:[%s5 + $0xdc] sm:$0xf] %vm1521, %v1448
  %1578 = vst.msk [vmem:[%s5 + $0xe0] sm:$0xf] %vm1521, %v1449
  %1579 = vst.msk [vmem:[%s5 + $0xe4] sm:$0xf] %vm1521, %v1450
  %1580 = vst.msk [vmem:[%s5 + $0xe8] sm:$0xf] %vm1521, %v1451
  %1581 = vst.msk [vmem:[%s5 + $0xec] sm:$0xf] %vm1521, %v1452
  %1582 = vst.msk [vmem:[%s5 + $0xf0] sm:$0xf] %vm1521, %v1453
  %1583 = vst.msk [vmem:[%s5 + $0xf4] sm:$0xf] %vm1521, %v1454
  %1584 = vst.msk [vmem:[%s5 + $0xf8] sm:$0xf] %vm1521, %v1455
  %1585 = vst.msk [vmem:[%s5 + $0xfc] sm:$0xf] %vm1521, %v1456
  // Predicated region
  $region22: #{bottle_stack_forward.11} parent=0 // pred_check
    _
  $region23: #{bottle_stack_forward.11} parent=0 // pred_check_branch
    %1587 = sbr.rel (0) target = $region25
  $region24: #{bottle_stack_forward.11} parent=0 // pred_region
    _
  $region25: #{bottle_stack_forward.11} parent=0 // pred_fallthru
    _
  // Predicated region
  $region26: #{bottle_stack_forward.11} parent=0 // pred_check
    _
  $region27: #{bottle_stack_forward.11} parent=0 // pred_check_branch
    %1589 = sbr.rel (0) target = $region29
  $region28: #{bottle_stack_forward.11} parent=0 // pred_region
    _
  $region29: #{bottle_stack_forward.11} parent=0 // pred_fallthru
    _

// kernel: bottle_stack_forward.12
$region0: #{bottle_stack_forward.12}
  #allocation0 [shape = 'u32[]', space=smem, size = 0x4, offset = 0x4, fixed_abs, tag = 'smem constant byte address 0x4 - core index']
  #allocation1 [shape = 'u32[144,128]{1,0:T(1,128)}', space=vmem, size = 0x12000, scoped, tag = 'internal scratch']
  %s0 = inlined_call_operand.vmem [shape: bf16[2,256,96], index: 0, kind: input, shape index: {}, may-alias: {0,1}]
  %s1 = inlined_call_operand.vmem [shape: bf16[2,256,96], index: 1, kind: input, shape index: {}, may-alias: {0,1}]
  %s2 = inlined_call_operand.vmem [shape: f32[256,16], index: 2, kind: input, shape index: {}]
  %s3 = inlined_call_operand.vmem [shape: bf16[2,256,32], index: 3, kind: output, shape index: {}]
  %s4 = sld [smem:[#allocation0]]
  $region45: #{bottle_stack_forward.12} parent=0
    _
  %s6 = ssub.s32 1, %s4
  %s7 = scalar_select 0, %s6, %s4
  loop: start=0, step=1, limit=6
  $region2: #{bottle_stack_forward.12} parent=0 // loop_pre_header
    _
  $region3: #{bottle_stack_forward.12} parent=0 // loop_header
    %s9 = sphi 0, %s13
    %p10 = scmp.ge.s32.totalorder %s9, 6
    %s16 = sphi 0, %s28
    %s17 = sphi 0, %s24
    %s18 = sphi 0, %s16
    %s19 = sphi 0, %s17
    %s20 = sphi 0, %s18
    %s21 = sphi 0, %s19
    %s33 = sphi 0, %s35
    %s36 = sphi 0, %s33
    %s37 = sphi 0, %s36
    %s53 = sphi 0, %s37
    %s59 = sphi 0, %s61
    %s62 = sphi 0, %s59
    %s63 = sphi 0, %s62
    %s79 = sphi 0, %s63
    %s83 = sphi 0, %s83
    %s85 = sphi 0, %s83
    %s86 = sphi 0, %s85
    %s100 = sphi 0, %s86
    %s108 = sphi 0, %s110
    %s111 = sphi 0, %s108
    %s112 = sphi 0, %s111
    %s128 = sphi 0, %s112
  $region4: #{bottle_stack_forward.12} parent=0 // loop_header_branch
    %12 = sbr.rel (%p10) target = $region8
  $region5: #{bottle_stack_forward.12} parent=0 // loop_body
    %s14 = ssub.s32 %s9, 1
    %s15 = ssub.s32 %s9, 2
    %s22 = sadd.s32 1, %s17
    %p23 = scmp.ge.s32.totalorder %s22, 2
    %s24 = scalar_select %p23, 0, %s22
    %s25 = sadd.s32 1, %s16
    %s26 = scalar_select %p23, %s25, %s16
    %p27 = scmp.ge.s32.totalorder %s26, 2
    %s28 = scalar_select %p27, 0, %s26
    %s29 = ssub.s32 %s16, %s28
    %s30 = ssub.s32 %s17, %s24
    %s31 = sor.u32 %s29, %s30
    %p32 = scmp.eq.s32.totalorder %s31, 0
    %s34 = sadd.s32 %s33, 1
    %s35 = scalar_select %p32, %s33, %s34
    %p38 = pneg %p32
    %p39 = scmp.eq.s32.totalorder %s9, 3
    %p40 = por %p38, %p39
    %p41 = scmp.ne.s32.totalorder %s33, %s36
    %p42 = scmp.eq.s32.totalorder %s9, 0
    %p43 = por %p41, %p42
    %p44 = scmp.ne.s32.totalorder %s33, %s36
    %p45 = scmp.eq.s32.totalorder %s14, 3
    %p46 = por %p44, %p45
    %p47 = scmp.ne.s32.totalorder %s36, %s37
    %p48 = scmp.eq.s32.totalorder %s14, 0
    %p49 = por %p47, %p48
    %p50 = scmp.ne.s32.totalorder %s36, %s37
    %p51 = scmp.eq.s32.totalorder %s15, 3
    %p52 = por %p50, %p51
    %p54 = scmp.ne.s32.totalorder %s37, %s53
    %p55 = scmp.eq.s32.totalorder %s15, 0
    %p56 = por %p54, %p55
    %s57 = ssub.s32 %s16, %s28
    %p58 = scmp.eq.s32.totalorder %s57, 0
    %s60 = sadd.s32 %s59, 1
    %s61 = scalar_select %p58, %s59, %s60
    %p64 = pneg %p58
    %p65 = scmp.eq.s32.totalorder %s9, 3
    %p66 = por %p64, %p65
    %p67 = scmp.ne.s32.totalorder %s59, %s62
    %p68 = scmp.eq.s32.totalorder %s9, 0
    %p69 = por %p67, %p68
    %p70 = scmp.ne.s32.totalorder %s59, %s62
    %p71 = scmp.eq.s32.totalorder %s14, 3
    %p72 = por %p70, %p71
    %p73 = scmp.ne.s32.totalorder %s62, %s63
    %p74 = scmp.eq.s32.totalorder %s14, 0
    %p75 = por %p73, %p74
    %p76 = scmp.ne.s32.totalorder %s62, %s63
    %p77 = scmp.eq.s32.totalorder %s15, 3
    %p78 = por %p76, %p77
    %p80 = scmp.ne.s32.totalorder %s63, %s79
    %p81 = scmp.eq.s32.totalorder %s15, 0
    %p82 = por %p80, %p81
    %s84 = sadd.s32 %s83, 1
    %p87 = scmp.eq.s32.totalorder %s9, 3
    %p88 = scmp.ne.s32.totalorder %s83, %s85
    %p89 = scmp.eq.s32.totalorder %s9, 0
    %p90 = por %p88, %p89
    %p91 = scmp.ne.s32.totalorder %s83, %s85
    %p92 = scmp.eq.s32.totalorder %s14, 3
    %p93 = por %p91, %p92
    %p94 = scmp.ne.s32.totalorder %s85, %s86
    %p95 = scmp.eq.s32.totalorder %s14, 0
    %p96 = por %p94, %p95
    %p97 = scmp.ne.s32.totalorder %s85, %s86
    %p98 = scmp.eq.s32.totalorder %s15, 3
    %p99 = por %p97, %p98
    %p101 = scmp.ne.s32.totalorder %s86, %s100
    %p102 = scmp.eq.s32.totalorder %s15, 0
    %p103 = por %p101, %p102
    %s104 = ssub.s32 %s16, %s28
    %s105 = ssub.s32 %s17, %s24
    %s106 = sor.u32 %s104, %s105
    %p107 = scmp.eq.s32.totalorder %s106, 0
    %s109 = sadd.s32 %s108, 1
    %s110 = scalar_select %p107, %s108, %s109
    %p113 = pneg %p107
    %p114 = scmp.eq.s32.totalorder %s9, 3
    %p115 = por %p113, %p114
    %p116 = scmp.ne.s32.totalorder %s108, %s111
    %p117 = scmp.eq.s32.totalorder %s9, 0
    %p118 = por %p116, %p117
    %p119 = scmp.ne.s32.totalorder %s108, %s111
    %p120 = scmp.eq.s32.totalorder %s14, 3
    %p121 = por %p119, %p120
    %p122 = scmp.ne.s32.totalorder %s111, %s112
    %p123 = scmp.eq.s32.totalorder %s14, 0
    %p124 = por %p122, %p123
    %p125 = scmp.ne.s32.totalorder %s111, %s112
    %p126 = scmp.eq.s32.totalorder %s15, 3
    %p127 = por %p125, %p126
    %p129 = scmp.ne.s32.totalorder %s112, %s128
    %p130 = scmp.eq.s32.totalorder %s15, 0
    %p131 = por %p129, %p130
    %p132 = scmp.le.s32.totalorder 1, %s9
    %p133 = scmp.lt.s32.totalorder %s9, 5
    %p134 = pnand %p132, %p133
    %p135 = pneg %p134
    // Predicated region
    $region9: #{bottle_stack_forward.12} parent=5 // pred_check
      _
    $region10: #{bottle_stack_forward.12} parent=5 // pred_check_branch
      %137 = sbr.rel (%p134) target = $region12
    $region11: #{bottle_stack_forward.12} parent=5 // pred_region
      %s138 = ssub.s32 %s9, 1
      // Predicated region
      $region13: #{bottle_stack_forward.12} parent=11 // pred_check
        %p139 = pneg %p96
      $region14: #{bottle_stack_forward.12} parent=11 // pred_check_branch
        %141 = sbr.rel (%p139) target = $region16
      $region15: #{bottle_stack_forward.12} parent=11 // pred_region
        _
      $region16: #{bottle_stack_forward.12} parent=11 // pred_fallthru
        _
    $region12: #{bottle_stack_forward.12} parent=5 // pred_fallthru
      _
    %p142 = scmp.lt.s32.totalorder %s9, 4
    // Predicated region
    $region17: #{bottle_stack_forward.12} parent=5 // pred_check
      %p143 = pneg %p142
    $region18: #{bottle_stack_forward.12} parent=5 // pred_check_branch
      %145 = sbr.rel (%p143) target = $region20
    $region19: #{bottle_stack_forward.12} parent=5 // pred_region
      // Predicated region
      $region21: #{bottle_stack_forward.12} parent=19 // pred_check
        %p146 = pneg %p43
      $region22: #{bottle_stack_forward.12} parent=19 // pred_check_branch
        %148 = sbr.rel (%p146) target = $region24
      $region23: #{bottle_stack_forward.12} parent=19 // pred_region
        %s149 = smul.u32 16, %s17
        %p150 = scmp.lt.s32.totalorder %s16, 1
        %s151 = scalar_select %p150, %s16, 1
        %p152 = scmp.lt.s32.totalorder %s149, 31
        %s153 = scalar_select %p152, %s149, 31
        %s154 = smul.addr %s151, 32
        %s155 = sadd.s32 %s153, %s154
        %s156 = smul.addr %s155, 4
        %s157 = scalar_lea.vmem %s0, %s156
        %s158 = smul.u32 16, %s17
      $region24: #{bottle_stack_forward.12} parent=19 // pred_fallthru
        _
      // Predicated region
      $region25: #{bottle_stack_forward.12} parent=19 // pred_check
        %p159 = pneg %p69
      $region26: #{bottle_stack_forward.12} parent=19 // pred_check_branch
        %161 = sbr.rel (%p159) target = $region28
      $region27: #{bottle_stack_forward.12} parent=19 // pred_region
        %p162 = scmp.lt.s32.totalorder %s16, 1
        %s163 = scalar_select %p162, %s16, 1
        %s164 = smul.addr %s163, 32
        %s165 = smul.addr %s164, 4
        %s166 = scalar_lea.vmem %s1, %s165
      $region28: #{bottle_stack_forward.12} parent=19 // pred_fallthru
        _
    $region20: #{bottle_stack_forward.12} parent=5 // pred_fallthru
      _
    %p167 = scmp.le.s32.totalorder 1, %s9
    %p168 = scmp.lt.s32.totalorder %s9, 5
    %p169 = pnand %p167, %p168
    %p170 = pneg %p169
    // Predicated region
    $region29: #{bottle_stack_forward.12} parent=5 // pred_check
      _
    $region30: #{bottle_stack_forward.12} parent=5 // pred_check_branch
      %172 = sbr.rel (%p169) target = $region32
    $region31: #{bottle_stack_forward.12} parent=5 // pred_region
      %s173 = ssub.s32 %s9, 1
      %s174 = smul.u32 16, %s19
      %p175 = scmp.lt.s32.totalorder %s18, 1
      %s176 = scalar_select %p175, %s18, 1
      %p177 = scmp.lt.s32.totalorder %s174, 31
      %s178 = scalar_select %p177, %s174, 31
      %s179 = smul.addr %s176, 32
      %s180 = sadd.s32 %s178, %s179
      %s181 = smul.addr %s180, 4
      %s182 = scalar_lea.vmem %s0, %s181
      %p183 = pneg %p49
      %p184 = pneg %p46
      %p185 = scmp.lt.s32.totalorder %s18, 1
      %s186 = scalar_select %p185, %s18, 1
      %s187 = smul.addr %s186, 32
      %s188 = smul.addr %s187, 4
      %s189 = scalar_lea.vmem %s1, %s188
      %p190 = pneg %p75
      %p191 = pneg %p72
      %p192 = pneg %p96
      %p193 = pneg %p93
      %p194 = pneg %p124
      %p195 = pneg %p121
      %s196 = smul.u32 16, %s19
      %p197 = scmp.lt.s32.totalorder %s18, 1
      %s198 = scalar_select %p197, %s18, 1
      %p199 = scmp.lt.s32.totalorder %s196, 31
      %s200 = scalar_select %p199, %s196, 31
      %s201 = smul.addr %s198, 32
      %s202 = sadd.s32 %s200, %s201
      %s203 = smul.addr %s202, 4
      %s204 = scalar_lea.vmem %s3, %s203
      %s205 = smul.u32 16, %s19
      %p206 = scmp.lt.s32.totalorder %s18, 1
      %s207 = scalar_select %p206, %s18, 1
      %p208 = scmp.lt.s32.totalorder %s205, 31
      %s209 = scalar_select %p208, %s205, 31
      %s210 = smul.addr %s207, 32
      %s211 = sadd.s32 %s209, %s210
      %s212 = smul.addr %s211, 4
      %s213 = scalar_lea.vmem %s0, %s212
      %s214 = smul.u32 16, %s19
      %p215 = scmp.lt.s32.totalorder %s18, 1
      %s216 = scalar_select %p215, %s18, 1
      %s217 = smul.addr %s216, 32
      %s218 = smul.addr %s217, 4
      %s219 = scalar_lea.vmem %s1, %s218
      %s220 = smul.u32 16, %s19
      %p221 = scmp.lt.s32.totalorder %s18, 1
      %s222 = scalar_select %p221, %s18, 1
      %p223 = scmp.lt.s32.totalorder %s220, 31
      %s224 = scalar_select %p223, %s220, 31
      %s225 = smul.addr %s222, 32
      %s226 = sadd.s32 %s224, %s225
      %s227 = smul.addr %s226, 4
      %s228 = scalar_lea.vmem %s3, %s227
      %s229 = smul.u32 16, %s19
      %v231 = vld [vmem:[%s213] sm:$0xf]
      %v232 = vld [vmem:[%s213 + $0x4] sm:$0xf]
      %v233 = vld [vmem:[%s213 + $0x8] sm:$0xf]
      %v234 = vld [vmem:[%s213 + $0xc] sm:$0xf]
      %v235 = vld [vmem:[%s213 + $0x10] sm:$0xf]
      %v236 = vld [vmem:[%s213 + $0x14] sm:$0xf]
      %v237 = vld [vmem:[%s213 + $0x18] sm:$0xf]
      %v238 = vld [vmem:[%s213 + $0x1c] sm:$0xf]
      %v239 = vld [vmem:[%s213 + $0x20] sm:$0xf]
      %v240 = vld [vmem:[%s213 + $0x24] sm:$0xf]
      %v241 = vld [vmem:[%s213 + $0x28] sm:$0xf]
      %v242 = vld [vmem:[%s213 + $0x2c] sm:$0xf]
      %v243 = vld [vmem:[%s213 + $0x30] sm:$0xf]
      %v244 = vld [vmem:[%s213 + $0x34] sm:$0xf]
      %v245 = vld [vmem:[%s213 + $0x38] sm:$0xf]
      %v246 = vld [vmem:[%s213 + $0x3c] sm:$0xf]
      %v247 = vld [vmem:[%s219] sm:$0xf]
      %v248 = vld [vmem:[%s219 + $0x4] sm:$0xf]
      %v249 = vld [vmem:[%s219 + $0x8] sm:$0xf]
      %v250 = vld [vmem:[%s219 + $0xc] sm:$0xf]
      %v251 = vld [vmem:[%s219 + $0x10] sm:$0xf]
      %v252 = vld [vmem:[%s219 + $0x14] sm:$0xf]
      %v253 = vld [vmem:[%s219 + $0x18] sm:$0xf]
      %v254 = vld [vmem:[%s219 + $0x1c] sm:$0xf]
      %v255 = vld [vmem:[%s219 + $0x20] sm:$0xf]
      %v256 = vld [vmem:[%s219 + $0x24] sm:$0xf]
      %v257 = vld [vmem:[%s219 + $0x28] sm:$0xf]
      %v258 = vld [vmem:[%s219 + $0x2c] sm:$0xf]
      %v259 = vld [vmem:[%s219 + $0x30] sm:$0xf]
      %v260 = vld [vmem:[%s219 + $0x34] sm:$0xf]
      %v261 = vld [vmem:[%s219 + $0x38] sm:$0xf]
      %v262 = vld [vmem:[%s219 + $0x3c] sm:$0xf]
      %v263 = vld [vmem:[%s219 + $0x40] sm:$0xf]
      %v264 = vld [vmem:[%s219 + $0x44] sm:$0xf]
      %v265 = vld [vmem:[%s219 + $0x48] sm:$0xf]
      %v266 = vld [vmem:[%s219 + $0x4c] sm:$0xf]
      %v267 = vld [vmem:[%s219 + $0x50] sm:$0xf]
      %v268 = vld [vmem:[%s219 + $0x54] sm:$0xf]
      %v269 = vld [vmem:[%s219 + $0x58] sm:$0xf]
      %v270 = vld [vmem:[%s219 + $0x5c] sm:$0xf]
      %v271 = vld [vmem:[%s219 + $0x60] sm:$0xf]
      %v272 = vld [vmem:[%s219 + $0x64] sm:$0xf]
      %v273 = vld [vmem:[%s219 + $0x68] sm:$0xf]
      %v274 = vld [vmem:[%s219 + $0x6c] sm:$0xf]
      %v275 = vld [vmem:[%s219 + $0x70] sm:$0xf]
      %v276 = vld [vmem:[%s219 + $0x74] sm:$0xf]
      %v277 = vld [vmem:[%s219 + $0x78] sm:$0xf]
      %v278 = vld [vmem:[%s219 + $0x7c] sm:$0xf]
      %v279 = vld [vmem:[%s2] sm:$0xff]
      %v280 = vld [vmem:[%s2 + $0x8] sm:$0xff]
      %v281 = vld [vmem:[%s2 + $0x10] sm:$0xff]
      %v282 = vld [vmem:[%s2 + $0x18] sm:$0xff]
      %v283 = vld [vmem:[%s2 + $0x20] sm:$0xff]
      %v284 = vld [vmem:[%s2 + $0x28] sm:$0xff]
      %v285 = vld [vmem:[%s2 + $0x30] sm:$0xff]
      %v286 = vld [vmem:[%s2 + $0x38] sm:$0xff]
      %v287 = vld [vmem:[%s2 + $0x40] sm:$0xff]
      %v288 = vld [vmem:[%s2 + $0x48] sm:$0xff]
      %v289 = vld [vmem:[%s2 + $0x50] sm:$0xff]
      %v290 = vld [vmem:[%s2 + $0x58] sm:$0xff]
      %v291 = vld [vmem:[%s2 + $0x60] sm:$0xff]
      %v292 = vld [vmem:[%s2 + $0x68] sm:$0xff]
      %v293 = vld [vmem:[%s2 + $0x70] sm:$0xff]
      %v294 = vld [vmem:[%s2 + $0x78] sm:$0xff]
      %v295 = vld [vmem:[%s2 + $0x80] sm:$0xff]
      %v296 = vld [vmem:[%s2 + $0x88] sm:$0xff]
      %v297 = vld [vmem:[%s2 + $0x90] sm:$0xff]
      %v298 = vld [vmem:[%s2 + $0x98] sm:$0xff]
      %v299 = vld [vmem:[%s2 + $0xa0] sm:$0xff]
      %v300 = vld [vmem:[%s2 + $0xa8] sm:$0xff]
      %v301 = vld [vmem:[%s2 + $0xb0] sm:$0xff]
      %v302 = vld [vmem:[%s2 + $0xb8] sm:$0xff]
      %v303 = vld [vmem:[%s2 + $0xc0] sm:$0xff]
      %v304 = vld [vmem:[%s2 + $0xc8] sm:$0xff]
      %v305 = vld [vmem:[%s2 + $0xd0] sm:$0xff]
      %v306 = vld [vmem:[%s2 + $0xd8] sm:$0xff]
      %v307 = vld [vmem:[%s2 + $0xe0] sm:$0xff]
      %v308 = vld [vmem:[%s2 + $0xe8] sm:$0xff]
      %v309 = vld [vmem:[%s2 + $0xf0] sm:$0xff]
      %v310 = vld [vmem:[%s2 + $0xf8] sm:$0xff]
      %v311 = vunpack.c.l.bf16 %v247
      %v312 = vunpack.c.l.bf16 %v248
      %v313 = vunpack.c.l.bf16 %v249
      %v314 = vunpack.c.l.bf16 %v250
      %v315 = vunpack.c.l.bf16 %v251
      %v316 = vunpack.c.l.bf16 %v252
      %v317 = vunpack.c.l.bf16 %v253
      %v318 = vunpack.c.l.bf16 %v254
      %v319 = vunpack.c.l.bf16 %v255
      %v320 = vunpack.c.l.bf16 %v256
      %v321 = vunpack.c.l.bf16 %v257
      %v322 = vunpack.c.l.bf16 %v258
      %v323 = vunpack.c.l.bf16 %v259
      %v324 = vunpack.c.l.bf16 %v260
      %v325 = vunpack.c.l.bf16 %v261
      %v326 = vunpack.c.l.bf16 %v262
      %v327 = vunpack.c.l.bf16 %v263
      %v328 = vunpack.c.l.bf16 %v264
      %v329 = vunpack.c.l.bf16 %v265
      %v330 = vunpack.c.l.bf16 %v266
      %v331 = vunpack.c.l.bf16 %v267
      %v332 = vunpack.c.l.bf16 %v268
      %v333 = vunpack.c.l.bf16 %v269
      %v334 = vunpack.c.l.bf16 %v270
      %v335 = vunpack.c.l.bf16 %v271
      %v336 = vunpack.c.l.bf16 %v272
      %v337 = vunpack.c.l.bf16 %v273
      %v338 = vunpack.c.l.bf16 %v274
      %v339 = vunpack.c.l.bf16 %v275
      %v340 = vunpack.c.l.bf16 %v276
      %v341 = vunpack.c.l.bf16 %v277
      %v342 = vunpack.c.l.bf16 %v278
      %375 = vrot.lane.b32.xlu0 %v279, 32
      %v376 = vpop.permute.xlu0 %375
      %377 = vrot.lane.b32.xlu0 %v280, 32
      %v378 = vpop.permute.xlu0 %377
      %379 = vrot.lane.b32.xlu0 %v281, 32
      %v380 = vpop.permute.xlu0 %379
      %381 = vrot.lane.b32.xlu0 %v282, 32
      %v382 = vpop.permute.xlu0 %381
      %383 = vrot.lane.b32.xlu0 %v283, 32
      %v384 = vpop.permute.xlu0 %383
      %385 = vrot.lane.b32.xlu0 %v284, 32
      %v386 = vpop.permute.xlu0 %385
      %387 = vrot.lane.b32.xlu0 %v285, 32
      %v388 = vpop.permute.xlu0 %387
      %389 = vrot.lane.b32.xlu0 %v286, 32
      %v390 = vpop.permute.xlu0 %389
      %391 = vrot.lane.b32.xlu0 %v287, 32
      %v392 = vpop.permute.xlu0 %391
      %393 = vrot.lane.b32.xlu0 %v288, 32
      %v394 = vpop.permute.xlu0 %393
      %395 = vrot.lane.b32.xlu0 %v289, 32
      %v396 = vpop.permute.xlu0 %395
      %397 = vrot.lane.b32.xlu0 %v290, 32
      %v398 = vpop.permute.xlu0 %397
      %399 = vrot.lane.b32.xlu0 %v291, 32
      %v400 = vpop.permute.xlu0 %399
      %401 = vrot.lane.b32.xlu0 %v292, 32
      %v402 = vpop.permute.xlu0 %401
      %403 = vrot.lane.b32.xlu0 %v293, 32
      %v404 = vpop.permute.xlu0 %403
      %405 = vrot.lane.b32.xlu0 %v294, 32
      %v406 = vpop.permute.xlu0 %405
      %407 = vrot.lane.b32.xlu0 %v295, 32
      %v408 = vpop.permute.xlu0 %407
      %409 = vrot.lane.b32.xlu0 %v296, 32
      %v410 = vpop.permute.xlu0 %409
      %411 = vrot.lane.b32.xlu0 %v297, 32
      %v412 = vpop.permute.xlu0 %411
      %413 = vrot.lane.b32.xlu0 %v298, 32
      %v414 = vpop.permute.xlu0 %413
      %415 = vrot.lane.b32.xlu0 %v299, 32
      %v416 = vpop.permute.xlu0 %415
      %417 = vrot.lane.b32.xlu0 %v300, 32
      %v418 = vpop.permute.xlu0 %417
      %419 = vrot.lane.b32.xlu0 %v301, 32
      %v420 = vpop.permute.xlu0 %419
      %421 = vrot.lane.b32.xlu0 %v302, 32
      %v422 = vpop.permute.xlu0 %421
      %423 = vrot.lane.b32.xlu0 %v303, 32
      %v424 = vpop.permute.xlu0 %423
      %425 = vrot.lane.b32.xlu0 %v304, 32
      %v426 = vpop.permute.xlu0 %425
      %427 = vrot.lane.b32.xlu0 %v305, 32
      %v428 = vpop.permute.xlu0 %427
      %429 = vrot.lane.b32.xlu0 %v306, 32
      %v430 = vpop.permute.xlu0 %429
      %431 = vrot.lane.b32.xlu0 %v307, 32
      %v432 = vpop.permute.xlu0 %431
      %433 = vrot.lane.b32.xlu0 %v308, 32
      %v434 = vpop.permute.xlu0 %433
      %435 = vrot.lane.b32.xlu0 %v309, 32
      %v436 = vpop.permute.xlu0 %435
      %437 = vrot.lane.b32.xlu0 %v310, 32
      %v438 = vpop.permute.xlu0 %437
      %v471 = vadd.f32 %v311, %v376
      %v472 = vadd.f32 %v312, %v378
      %v473 = vadd.f32 %v313, %v380
      %v474 = vadd.f32 %v314, %v382
      %v475 = vadd.f32 %v315, %v384
      %v476 = vadd.f32 %v316, %v386
      %v477 = vadd.f32 %v317, %v388
      %v478 = vadd.f32 %v318, %v390
      %v479 = vadd.f32 %v319, %v392
      %v480 = vadd.f32 %v320, %v394
      %v481 = vadd.f32 %v321, %v396
      %v482 = vadd.f32 %v322, %v398
      %v483 = vadd.f32 %v323, %v400
      %v484 = vadd.f32 %v324, %v402
      %v485 = vadd.f32 %v325, %v404
      %v486 = vadd.f32 %v326, %v406
      %v487 = vadd.f32 %v327, %v408
      %v488 = vadd.f32 %v328, %v410
      %v489 = vadd.f32 %v329, %v412
      %v490 = vadd.f32 %v330, %v414
      %v491 = vadd.f32 %v331, %v416
      %v492 = vadd.f32 %v332, %v418
      %v493 = vadd.f32 %v333, %v420
      %v494 = vadd.f32 %v334, %v422
      %v495 = vadd.f32 %v335, %v424
      %v496 = vadd.f32 %v336, %v426
      %v497 = vadd.f32 %v337, %v428
      %v498 = vadd.f32 %v338, %v430
      %v499 = vadd.f32 %v339, %v432
      %v500 = vadd.f32 %v340, %v434
      %v501 = vadd.f32 %v341, %v436
      %v502 = vadd.f32 %v342, %v438
      %v503 = vpack.c.bf16 %v472, %v471
      %v504 = vpack.c.bf16 %v474, %v473
      %v505 = vpack.c.bf16 %v476, %v475
      %v506 = vpack.c.bf16 %v478, %v477
      %v507 = vpack.c.bf16 %v480, %v479
      %v508 = vpack.c.bf16 %v482, %v481
      %v509 = vpack.c.bf16 %v484, %v483
      %v510 = vpack.c.bf16 %v486, %v485
      %v511 = vpack.c.bf16 %v488, %v487
      %v512 = vpack.c.bf16 %v490, %v489
      %v513 = vpack.c.bf16 %v492, %v491
      %v514 = vpack.c.bf16 %v494, %v493
      %v515 = vpack.c.bf16 %v496, %v495
      %v516 = vpack.c.bf16 %v498, %v497
      %v517 = vpack.c.bf16 %v500, %v499
      %v518 = vpack.c.bf16 %v502, %v501
      %v535 = vunpack.c.l.b16 %v231
      %v536 = vunpack.c.l.b16 %v232
      %v537 = vunpack.c.l.b16 %v233
      %v538 = vunpack.c.l.b16 %v234
      %v539 = vunpack.c.l.b16 %v235
      %v540 = vunpack.c.l.b16 %v236
      %v541 = vunpack.c.l.b16 %v237
      %v542 = vunpack.c.l.b16 %v238
      %v543 = vunpack.c.l.b16 %v239
      %v544 = vunpack.c.l.b16 %v240
      %v545 = vunpack.c.l.b16 %v241
      %v546 = vunpack.c.l.b16 %v242
      %v547 = vunpack.c.l.b16 %v243
      %v548 = vunpack.c.l.b16 %v244
      %v549 = vunpack.c.l.b16 %v245
      %v550 = vunpack.c.l.b16 %v246
      %v551 = vpack.c.b16 %v536, %v535
      %v552 = vpack.c.b16 %v538, %v537
      %v553 = vpack.c.b16 %v540, %v539
      %v554 = vpack.c.b16 %v542, %v541
      %v555 = vpack.c.b16 %v544, %v543
      %v556 = vpack.c.b16 %v546, %v545
      %v557 = vpack.c.b16 %v548, %v547
      %v558 = vpack.c.b16 %v550, %v549
      %575 = vrot.lane.b32.xlu0 %v503, 96
      %v576 = vpop.permute.xlu0 %575
      %577 = vrot.lane.b32.xlu0 %v504, 96
      %v578 = vpop.permute.xlu0 %577
      %579 = vrot.lane.b32.xlu0 %v505, 96
      %v580 = vpop.permute.xlu0 %579
      %581 = vrot.lane.b32.xlu0 %v506, 96
      %v582 = vpop.permute.xlu0 %581
      %583 = vrot.lane.b32.xlu0 %v507, 96
      %v584 = vpop.permute.xlu0 %583
      %585 = vrot.lane.b32.xlu0 %v508, 96
      %v586 = vpop.permute.xlu0 %585
      %587 = vrot.lane.b32.xlu0 %v509, 96
      %v588 = vpop.permute.xlu0 %587
      %589 = vrot.lane.b32.xlu0 %v510, 96
      %v590 = vpop.permute.xlu0 %589
      %591 = vrot.lane.b32.xlu0 %v511, 96
      %v592 = vpop.permute.xlu0 %591
      %593 = vrot.lane.b32.xlu0 %v512, 96
      %v594 = vpop.permute.xlu0 %593
      %595 = vrot.lane.b32.xlu0 %v513, 96
      %v596 = vpop.permute.xlu0 %595
      %597 = vrot.lane.b32.xlu0 %v514, 96
      %v598 = vpop.permute.xlu0 %597
      %599 = vrot.lane.b32.xlu0 %v515, 96
      %v600 = vpop.permute.xlu0 %599
      %601 = vrot.lane.b32.xlu0 %v516, 96
      %v602 = vpop.permute.xlu0 %601
      %603 = vrot.lane.b32.xlu0 %v517, 96
      %v604 = vpop.permute.xlu0 %603
      %605 = vrot.lane.b32.xlu0 %v518, 96
      %v606 = vpop.permute.xlu0 %605
      %vm607 = vcmask 130048
      %v609 = vsel %vm607, %v551, 0
      %v612 = vsel %vm607, %v552, 0
      %v615 = vsel %vm607, %v553, 0
      %v618 = vsel %vm607, %v554, 0
      %v621 = vsel %vm607, %v555, 0
      %v624 = vsel %vm607, %v556, 0
      %v627 = vsel %vm607, %v557, 0
      %v630 = vsel %vm607, %v558, 0
      %v633 = vsel %vm607, %v576, 0
      %v636 = vsel %vm607, %v578, 0
      %v639 = vsel %vm607, %v580, 0
      %v642 = vsel %vm607, %v582, 0
      %v645 = vsel %vm607, %v584, 0
      %v648 = vsel %vm607, %v586, 0
      %v651 = vsel %vm607, %v588, 0
      %v654 = vsel %vm607, %v590, 0
      %v657 = vsel %vm607, %v592, 0
      %v660 = vsel %vm607, %v594, 0
      %v663 = vsel %vm607, %v596, 0
      %v666 = vsel %vm607, %v598, 0
      %v669 = vsel %vm607, %v600, 0
      %v672 = vsel %vm607, %v602, 0
      %v675 = vsel %vm607, %v604, 0
      %v678 = vsel %vm607, %v606, 0
      %680 = vmatprep.subr.bf16.mxu0 0
      %681 = vmatpush1.bf16.xpose.msra.mxu0 %v654
      %682 = vmatprep.subr.bf16.mxu0 0
      %683 = vmatpush1.bf16.xpose.msra.mxu0 %v651
      %684 = vmatprep.subr.bf16.mxu0 0
      %685 = vmatpush1.bf16.xpose.msra.mxu0 %v648
      %686 = vmatprep.subr.bf16.mxu0 0
      %687 = vmatpush1.bf16.xpose.msra.mxu0 %v645
      %688 = vmatprep.subr.bf16.mxu0 0
      %689 = vmatpush1.bf16.xpose.msra.mxu0 %v642
      %690 = vmatprep.subr.bf16.mxu0 0
      %691 = vmatpush1.bf16.xpose.msra.mxu0 %v639
      %692 = vmatprep.subr.bf16.mxu0 0
      %693 = vmatpush1.bf16.xpose.msra.mxu0 %v636
      %694 = vmatprep.subr.bf16.mxu0 0
      %695 = vmatpush1.bf16.xpose.msra.mxu0 %v633
      %696 = vmatprep.subr.bf16.mxu0 0
      %697 = vmatpush2.bf16.xpose.msra.mxu0 %v678
      %698 = vmatprep.subr.bf16.mxu0 0
      %699 = vmatpush2.bf16.xpose.msra.mxu0 %v675
      %700 = vmatprep.subr.bf16.mxu0 0
      %701 = vmatpush2.bf16.xpose.msra.mxu0 %v672
      %702 = vmatprep.subr.bf16.mxu0 0
      %703 = vmatpush2.bf16.xpose.msra.mxu0 %v669
      %704 = vmatprep.subr.bf16.mxu0 0
      %705 = vmatpush2.bf16.xpose.msra.mxu0 %v666
      %706 = vmatprep.subr.bf16.mxu0 0
      %707 = vmatpush2.bf16.xpose.msra.mxu0 %v663
      %708 = vmatprep.subr.bf16.mxu0 0
      %709 = vmatpush2.bf16.xpose.msra.mxu0 %v660
      %710 = vmatprep.subr.bf16.mxu0 0
      %711 = vmatpush2.bf16.xpose.msra.mxu0 %v657
      %712 = vmatprep.mubr.bf16.mxu0 0
      %713 = vmatmul.mubr.bf16.gmra.mxu0 %v609
      %v714 = vpop.f32.mrf.mxu0
      %v715 = vadd.f32 0.0, %v714
      %v716 = vpop.f32.mrf.mxu0
      %v717 = vadd.f32 0.0, %v716
      %v718 = vpop.f32.mrf.mxu0
      %v719 = vadd.f32 0.0, %v718
      %v720 = vpop.f32.mrf.mxu0
      %v721 = vadd.f32 0.0, %v720
      %722 = vmatprep.mubr.bf16.mxu0 0
      %723 = vmatmul.mubr.bf16.gmra.mxu0 %v612
      %v724 = vpop.f32.mrf.mxu0
      %v725 = vadd.f32 0.0, %v724
      %v726 = vpop.f32.mrf.mxu0
      %v727 = vadd.f32 0.0, %v726
      %v728 = vpop.f32.mrf.mxu0
      %v729 = vadd.f32 0.0, %v728
      %v730 = vpop.f32.mrf.mxu0
      %v731 = vadd.f32 0.0, %v730
      %732 = vmatprep.mubr.bf16.mxu0 0
      %733 = vmatmul.mubr.bf16.gmra.mxu0 %v615
      %v734 = vpop.f32.mrf.mxu0
      %v735 = vadd.f32 0.0, %v734
      %v736 = vpop.f32.mrf.mxu0
      %v737 = vadd.f32 0.0, %v736
      %v738 = vpop.f32.mrf.mxu0
      %v739 = vadd.f32 0.0, %v738
      %v740 = vpop.f32.mrf.mxu0
      %v741 = vadd.f32 0.0, %v740
      %742 = vmatprep.mubr.bf16.mxu0 0
      %743 = vmatmul.mubr.bf16.gmra.mxu0 %v618
      %v744 = vpop.f32.mrf.mxu0
      %v745 = vadd.f32 0.0, %v744
      %v746 = vpop.f32.mrf.mxu0
      %v747 = vadd.f32 0.0, %v746
      %v748 = vpop.f32.mrf.mxu0
      %v749 = vadd.f32 0.0, %v748
      %v750 = vpop.f32.mrf.mxu0
      %v751 = vadd.f32 0.0, %v750
      %752 = vmatprep.mubr.bf16.mxu0 0
      %753 = vmatmul.mubr.bf16.gmra.mxu0 %v621
      %v754 = vpop.f32.mrf.mxu0
      %v755 = vadd.f32 0.0, %v754
      %v756 = vpop.f32.mrf.mxu0
      %v757 = vadd.f32 0.0, %v756
      %v758 = vpop.f32.mrf.mxu0
      %v759 = vadd.f32 0.0, %v758
      %v760 = vpop.f32.mrf.mxu0
      %v761 = vadd.f32 0.0, %v760
      %762 = vmatprep.mubr.bf16.mxu0 0
      %763 = vmatmul.mubr.bf16.gmra.mxu0 %v624
      %v764 = vpop.f32.mrf.mxu0
      %v765 = vadd.f32 0.0, %v764
      %v766 = vpop.f32.mrf.mxu0
      %v767 = vadd.f32 0.0, %v766
      %v768 = vpop.f32.mrf.mxu0
      %v769 = vadd.f32 0.0, %v768
      %v770 = vpop.f32.mrf.mxu0
      %v771 = vadd.f32 0.0, %v770
      %772 = vmatprep.mubr.bf16.mxu0 0
      %773 = vmatmul.mubr.bf16.gmra.mxu0 %v627
      %v774 = vpop.f32.mrf.mxu0
      %v775 = vadd.f32 0.0, %v774
      %v776 = vpop.f32.mrf.mxu0
      %v777 = vadd.f32 0.0, %v776
      %v778 = vpop.f32.mrf.mxu0
      %v779 = vadd.f32 0.0, %v778
      %v780 = vpop.f32.mrf.mxu0
      %v781 = vadd.f32 0.0, %v780
      %782 = vmatprep.mubr.bf16.mxu0 0
      %783 = vmatmul.mubr.bf16.gmra.mxu0 %v630
      %v784 = vpop.f32.mrf.mxu0
      %v785 = vadd.f32 0.0, %v784
      %v786 = vpop.f32.mrf.mxu0
      %v787 = vadd.f32 0.0, %v786
      %v788 = vpop.f32.mrf.mxu0
      %v789 = vadd.f32 0.0, %v788
      %v790 = vpop.f32.mrf.mxu0
      %v791 = vadd.f32 0.0, %v790
      %792 = vdwg.mxu0
      %v793 = vmax.f32 %v715, %v717
      %794 = vmax.xlane.f32.xlu0 %v793
      %v795 = vpop.xlane.xlu0 %794
      %v796 = vmax.f32 %v719, %v721
      %797 = vmax.xlane.f32.xlu0 %v796
      %v798 = vpop.xlane.xlu0 %797
      %v799 = vmax.f32 %v725, %v727
      %800 = vmax.xlane.f32.xlu0 %v799
      %v801 = vpop.xlane.xlu0 %800
      %v802 = vmax.f32 %v729, %v731
      %803 = vmax.xlane.f32.xlu0 %v802
      %v804 = vpop.xlane.xlu0 %803
      %v805 = vmax.f32 %v735, %v737
      %806 = vmax.xlane.f32.xlu0 %v805
      %v807 = vpop.xlane.xlu0 %806
      %v808 = vmax.f32 %v739, %v741
      %809 = vmax.xlane.f32.xlu0 %v808
      %v810 = vpop.xlane.xlu0 %809
      %v811 = vmax.f32 %v745, %v747
      %812 = vmax.xlane.f32.xlu0 %v811
      %v813 = vpop.xlane.xlu0 %812
      %v814 = vmax.f32 %v749, %v751
      %815 = vmax.xlane.f32.xlu0 %v814
      %v816 = vpop.xlane.xlu0 %815
      %v817 = vmax.f32 %v755, %v757
      %818 = vmax.xlane.f32.xlu0 %v817
      %v819 = vpop.xlane.xlu0 %818
      %v820 = vmax.f32 %v759, %v761
      %821 = vmax.xlane.f32.xlu0 %v820
      %v822 = vpop.xlane.xlu0 %821
      %v823 = vmax.f32 %v765, %v767
      %824 = vmax.xlane.f32.xlu0 %v823
      %v825 = vpop.xlane.xlu0 %824
      %v826 = vmax.f32 %v769, %v771
      %827 = vmax.xlane.f32.xlu0 %v826
      %v828 = vpop.xlane.xlu0 %827
      %v829 = vmax.f32 %v775, %v777
      %830 = vmax.xlane.f32.xlu0 %v829
      %v831 = vpop.xlane.xlu0 %830
      %v832 = vmax.f32 %v779, %v781
      %833 = vmax.xlane.f32.xlu0 %v832
      %v834 = vpop.xlane.xlu0 %833
      %v835 = vmax.f32 %v785, %v787
      %836 = vmax.xlane.f32.xlu0 %v835
      %v837 = vpop.xlane.xlu0 %836
      %v838 = vmax.f32 %v789, %v791
      %839 = vmax.xlane.f32.xlu0 %v838
      %v840 = vpop.xlane.xlu0 %839
      %v841 = vsub.f32 %v715, %v795
      %v842 = vsub.f32 %v717, %v795
      %v843 = vsub.f32 %v719, %v798
      %v844 = vsub.f32 %v721, %v798
      %v845 = vsub.f32 %v725, %v801
      %v846 = vsub.f32 %v727, %v801
      %v847 = vsub.f32 %v729, %v804
      %v848 = vsub.f32 %v731, %v804
      %v849 = vsub.f32 %v735, %v807
      %v850 = vsub.f32 %v737, %v807
      %v851 = vsub.f32 %v739, %v810
      %v852 = vsub.f32 %v741, %v810
      %v853 = vsub.f32 %v745, %v813
      %v854 = vsub.f32 %v747, %v813
      %v855 = vsub.f32 %v749, %v816
      %v856 = vsub.f32 %v751, %v816
      %v857 = vsub.f32 %v755, %v819
      %v858 = vsub.f32 %v757, %v819
      %v859 = vsub.f32 %v759, %v822
      %v860 = vsub.f32 %v761, %v822
      %v861 = vsub.f32 %v765, %v825
      %v862 = vsub.f32 %v767, %v825
      %v863 = vsub.f32 %v769, %v828
      %v864 = vsub.f32 %v771, %v828
      %v865 = vsub.f32 %v775, %v831
      %v866 = vsub.f32 %v777, %v831
      %v867 = vsub.f32 %v779, %v834
      %v868 = vsub.f32 %v781, %v834
      %v869 = vsub.f32 %v785, %v837
      %v870 = vsub.f32 %v787, %v837
      %v871 = vsub.f32 %v789, %v840
      %v872 = vsub.f32 %v791, %v840
      %v873 = vmul.f32 %v841, 1.442695
      %v874 = vpow.pop %v873
      %v875 = vmul.f32 %v842, 1.442695
      %v876 = vpow.pop %v875
      %v877 = vmul.f32 %v843, 1.442695
      %v878 = vpow.pop %v877
      %v879 = vmul.f32 %v844, 1.442695
      %v880 = vpow.pop %v879
      %v881 = vmul.f32 %v845, 1.442695
      %v882 = vpow.pop %v881
      %v883 = vmul.f32 %v846, 1.442695
      %v884 = vpow.pop %v883
      %v885 = vmul.f32 %v847, 1.442695
      %v886 = vpow.pop %v885
      %v887 = vmul.f32 %v848, 1.442695
      %v888 = vpow.pop %v887
      %v889 = vmul.f32 %v849, 1.442695
      %v890 = vpow.pop %v889
      %v891 = vmul.f32 %v850, 1.442695
      %v892 = vpow.pop %v891
      %v893 = vmul.f32 %v851, 1.442695
      %v894 = vpow.pop %v893
      %v895 = vmul.f32 %v852, 1.442695
      %v896 = vpow.pop %v895
      %v897 = vmul.f32 %v853, 1.442695
      %v898 = vpow.pop %v897
      %v899 = vmul.f32 %v854, 1.442695
      %v900 = vpow.pop %v899
      %v901 = vmul.f32 %v855, 1.442695
      %v902 = vpow.pop %v901
      %v903 = vmul.f32 %v856, 1.442695
      %v904 = vpow.pop %v903
      %v905 = vmul.f32 %v857, 1.442695
      %v906 = vpow.pop %v905
      %v907 = vmul.f32 %v858, 1.442695
      %v908 = vpow.pop %v907
      %v909 = vmul.f32 %v859, 1.442695
      %v910 = vpow.pop %v909
      %v911 = vmul.f32 %v860, 1.442695
      %v912 = vpow.pop %v911
      %v913 = vmul.f32 %v861, 1.442695
      %v914 = vpow.pop %v913
      %v915 = vmul.f32 %v862, 1.442695
      %v916 = vpow.pop %v915
      %v917 = vmul.f32 %v863, 1.442695
      %v918 = vpow.pop %v917
      %v919 = vmul.f32 %v864, 1.442695
      %v920 = vpow.pop %v919
      %v921 = vmul.f32 %v865, 1.442695
      %v922 = vpow.pop %v921
      %v923 = vmul.f32 %v866, 1.442695
      %v924 = vpow.pop %v923
      %v925 = vmul.f32 %v867, 1.442695
      %v926 = vpow.pop %v925
      %v927 = vmul.f32 %v868, 1.442695
      %v928 = vpow.pop %v927
      %v929 = vmul.f32 %v869, 1.442695
      %v930 = vpow.pop %v929
      %v931 = vmul.f32 %v870, 1.442695
      %v932 = vpow.pop %v931
      %v933 = vmul.f32 %v871, 1.442695
      %v934 = vpow.pop %v933
      %v935 = vmul.f32 %v872, 1.442695
      %v936 = vpow.pop %v935
      %v937 = vadd.f32 %v874, %v876
      %938 = vadd.xlane.f32.xlu0 %v937
      %v939 = vpop.xlane.xlu0 %938
      %v940 = vadd.f32 %v878, %v880
      %941 = vadd.xlane.f32.xlu0 %v940
      %v942 = vpop.xlane.xlu0 %941
      %v943 = vadd.f32 %v882, %v884
      %944 = vadd.xlane.f32.xlu0 %v943
      %v945 = vpop.xlane.xlu0 %944
      %v946 = vadd.f32 %v886, %v888
      %947 = vadd.xlane.f32.xlu0 %v946
      %v948 = vpop.xlane.xlu0 %947
      %v949 = vadd.f32 %v890, %v892
      %950 = vadd.xlane.f32.xlu0 %v949
      %v951 = vpop.xlane.xlu0 %950
      %v952 = vadd.f32 %v894, %v896
      %953 = vadd.xlane.f32.xlu0 %v952
      %v954 = vpop.xlane.xlu0 %953
      %v955 = vadd.f32 %v898, %v900
      %956 = vadd.xlane.f32.xlu0 %v955
      %v957 = vpop.xlane.xlu0 %956
      %v958 = vadd.f32 %v902, %v904
      %959 = vadd.xlane.f32.xlu0 %v958
      %v960 = vpop.xlane.xlu0 %959
      %v961 = vadd.f32 %v906, %v908
      %962 = vadd.xlane.f32.xlu0 %v961
      %v963 = vpop.xlane.xlu0 %962
      %v964 = vadd.f32 %v910, %v912
      %965 = vadd.xlane.f32.xlu0 %v964
      %v966 = vpop.xlane.xlu0 %965
      %v967 = vadd.f32 %v914, %v916
      %968 = vadd.xlane.f32.xlu0 %v967
      %v969 = vpop.xlane.xlu0 %968
      %v970 = vadd.f32 %v918, %v920
      %971 = vadd.xlane.f32.xlu0 %v970
      %v972 = vpop.xlane.xlu0 %971
      %v973 = vadd.f32 %v922, %v924
      %974 = vadd.xlane.f32.xlu0 %v973
      %v975 = vpop.xlane.xlu0 %974
      %v976 = vadd.f32 %v926, %v928
      %977 = vadd.xlane.f32.xlu0 %v976
      %v978 = vpop.xlane.xlu0 %977
      %v979 = vadd.f32 %v930, %v932
      %980 = vadd.xlane.f32.xlu0 %v979
      %v981 = vpop.xlane.xlu0 %980
      %v982 = vadd.f32 %v934, %v936
      %983 = vadd.xlane.f32.xlu0 %v982
      %v984 = vpop.xlane.xlu0 %983
      %v985 = vpack.c.bf16 %v878, %v874
      %v986 = vpack.c.bf16 %v880, %v876
      %v987 = vpack.c.bf16 %v886, %v882
      %v988 = vpack.c.bf16 %v888, %v884
      %v989 = vpack.c.bf16 %v894, %v890
      %v990 = vpack.c.bf16 %v896, %v892
      %v991 = vpack.c.bf16 %v902, %v898
      %v992 = vpack.c.bf16 %v904, %v900
      %v993 = vpack.c.bf16 %v910, %v906
      %v994 = vpack.c.bf16 %v912, %v908
      %v995 = vpack.c.bf16 %v918, %v914
      %v996 = vpack.c.bf16 %v920, %v916
      %v997 = vpack.c.bf16 %v926, %v922
      %v998 = vpack.c.bf16 %v928, %v924
      %v999 = vpack.c.bf16 %v934, %v930
      %v1000 = vpack.c.bf16 %v936, %v932
      %v1033 = vunpack.c.l.b16 %v247
      %v1034 = vunpack.c.l.b16 %v248
      %v1035 = vunpack.c.l.b16 %v249
      %v1036 = vunpack.c.l.b16 %v250
      %v1037 = vunpack.c.l.b16 %v251
      %v1038 = vunpack.c.l.b16 %v252
      %v1039 = vunpack.c.l.b16 %v253
      %v1040 = vunpack.c.l.b16 %v254
      %v1041 = vunpack.c.l.b16 %v255
      %v1042 = vunpack.c.l.b16 %v256
      %v1043 = vunpack.c.l.b16 %v257
      %v1044 = vunpack.c.l.b16 %v258
      %v1045 = vunpack.c.l.b16 %v259
      %v1046 = vunpack.c.l.b16 %v260
      %v1047 = vunpack.c.l.b16 %v261
      %v1048 = vunpack.c.l.b16 %v262
      %v1049 = vunpack.c.l.b16 %v263
      %v1050 = vunpack.c.l.b16 %v264
      %v1051 = vunpack.c.l.b16 %v265
      %v1052 = vunpack.c.l.b16 %v266
      %v1053 = vunpack.c.l.b16 %v267
      %v1054 = vunpack.c.l.b16 %v268
      %v1055 = vunpack.c.l.b16 %v269
      %v1056 = vunpack.c.l.b16 %v270
      %v1057 = vunpack.c.l.b16 %v271
      %v1058 = vunpack.c.l.b16 %v272
      %v1059 = vunpack.c.l.b16 %v273
      %v1060 = vunpack.c.l.b16 %v274
      %v1061 = vunpack.c.l.b16 %v275
      %v1062 = vunpack.c.l.b16 %v276
      %v1063 = vunpack.c.l.b16 %v277
      %v1064 = vunpack.c.l.b16 %v278
      %v1065 = vpack.c.b16 %v1034, %v1033
      %v1066 = vpack.c.b16 %v1036, %v1035
      %v1067 = vpack.c.b16 %v1038, %v1037
      %v1068 = vpack.c.b16 %v1040, %v1039
      %v1069 = vpack.c.b16 %v1042, %v1041
      %v1070 = vpack.c.b16 %v1044, %v1043
      %v1071 = vpack.c.b16 %v1046, %v1045
      %v1072 = vpack.c.b16 %v1048, %v1047
      %v1073 = vpack.c.b16 %v1050, %v1049
      %v1074 = vpack.c.b16 %v1052, %v1051
      %v1075 = vpack.c.b16 %v1054, %v1053
      %v1076 = vpack.c.b16 %v1056, %v1055
      %v1077 = vpack.c.b16 %v1058, %v1057
      %v1078 = vpack.c.b16 %v1060, %v1059
      %v1079 = vpack.c.b16 %v1062, %v1061
      %v1080 = vpack.c.b16 %v1064, %v1063
      %1081 = vrot.lane.b32.xlu0 %v1065, 64
      %v1082 = vpop.permute.xlu0 %1081
      %1083 = vrot.lane.b32.xlu0 %v1066, 64
      %v1084 = vpop.permute.xlu0 %1083
      %1085 = vrot.lane.b32.xlu0 %v1067, 64
      %v1086 = vpop.permute.xlu0 %1085
      %1087 = vrot.lane.b32.xlu0 %v1068, 64
      %v1088 = vpop.permute.xlu0 %1087
      %1089 = vrot.lane.b32.xlu0 %v1069, 64
      %v1090 = vpop.permute.xlu0 %1089
      %1091 = vrot.lane.b32.xlu0 %v1070, 64
      %v1092 = vpop.permute.xlu0 %1091
      %1093 = vrot.lane.b32.xlu0 %v1071, 64
      %v1094 = vpop.permute.xlu0 %1093
      %1095 = vrot.lane.b32.xlu0 %v1072, 64
      %v1096 = vpop.permute.xlu0 %1095
      %1097 = vrot.lane.b32.xlu0 %v1073, 64
      %v1098 = vpop.permute.xlu0 %1097
      %1099 = vrot.lane.b32.xlu0 %v1074, 64
      %v1100 = vpop.permute.xlu0 %1099
      %1101 = vrot.lane.b32.xlu0 %v1075, 64
      %v1102 = vpop.permute.xlu0 %1101
      %1103 = vrot.lane.b32.xlu0 %v1076, 64
      %v1104 = vpop.permute.xlu0 %1103
      %1105 = vrot.lane.b32.xlu0 %v1077, 64
      %v1106 = vpop.permute.xlu0 %1105
      %1107 = vrot.lane.b32.xlu0 %v1078, 64
      %v1108 = vpop.permute.xlu0 %1107
      %1109 = vrot.lane.b32.xlu0 %v1079, 64
      %v1110 = vpop.permute.xlu0 %1109
      %1111 = vrot.lane.b32.xlu0 %v1080, 64
      %v1112 = vpop.permute.xlu0 %1111
      %1129 = vmatprep.subr.bf16.mxu0 0
      %1130 = vmatpush1.bf16.msra.mxu0 %v1096
      %1131 = vmatprep.subr.bf16.mxu0 0
      %1132 = vmatpush1.bf16.msra.mxu0 %v1094
      %1133 = vmatprep.subr.bf16.mxu0 0
      %1134 = vmatpush1.bf16.msra.mxu0 %v1092
      %1135 = vmatprep.subr.bf16.mxu0 0
      %1136 = vmatpush1.bf16.msra.mxu0 %v1090
      %1137 = vmatprep.subr.bf16.mxu0 0
      %1138 = vmatpush1.bf16.msra.mxu0 %v1088
      %1139 = vmatprep.subr.bf16.mxu0 0
      %1140 = vmatpush1.bf16.msra.mxu0 %v1086
      %1141 = vmatprep.subr.bf16.mxu0 0
      %1142 = vmatpush1.bf16.msra.mxu0 %v1084
      %1143 = vmatprep.subr.bf16.mxu0 0
      %1144 = vmatpush1.bf16.msra.mxu0 %v1082
      %1145 = vmatprep.subr.bf16.mxu0 0
      %1146 = vmatpush2.bf16.msra.mxu0 %v1112
      %1147 = vmatprep.subr.bf16.mxu0 0
      %1148 = vmatpush2.bf16.msra.mxu0 %v1110
      %1149 = vmatprep.subr.bf16.mxu0 0
      %1150 = vmatpush2.bf16.msra.mxu0 %v1108
      %1151 = vmatprep.subr.bf16.mxu0 0
      %1152 = vmatpush2.bf16.msra.mxu0 %v1106
      %1153 = vmatprep.subr.bf16.mxu0 0
      %1154 = vmatpush2.bf16.msra.mxu0 %v1104
      %1155 = vmatprep.subr.bf16.mxu0 0
      %1156 = vmatpush2.bf16.msra.mxu0 %v1102
      %1157 = vmatprep.subr.bf16.mxu0 0
      %1158 = vmatpush2.bf16.msra.mxu0 %v1100
      %1159 = vmatprep.subr.bf16.mxu0 0
      %1160 = vmatpush2.bf16.msra.mxu0 %v1098
      %1161 = vmatprep.mubr.bf16.mxu0 %v986
      %1162 = vmatmul.mubr.bf16.gmra.mxu0 %v985
      %v1163 = vpop.f32.mrf.mxu0
      %v1164 = vadd.f32 0.0, %v1163
      %v1165 = vpop.f32.mrf.mxu0
      %v1166 = vpop.f32.mrf.mxu0
      %v1167 = vadd.f32 0.0, %v1166
      %v1168 = vpop.f32.mrf.mxu0
      %1169 = vmatprep.mubr.bf16.mxu0 %v988
      %1170 = vmatmul.mubr.bf16.gmra.mxu0 %v987
      %v1171 = vpop.f32.mrf.mxu0
      %v1172 = vadd.f32 0.0, %v1171
      %v1173 = vpop.f32.mrf.mxu0
      %v1174 = vpop.f32.mrf.mxu0
      %v1175 = vadd.f32 0.0, %v1174
      %v1176 = vpop.f32.mrf.mxu0
      %1177 = vmatprep.mubr.bf16.mxu0 %v990
      %1178 = vmatmul.mubr.bf16.gmra.mxu0 %v989
      %v1179 = vpop.f32.mrf.mxu0
      %v1180 = vadd.f32 0.0, %v1179
      %v1181 = vpop.f32.mrf.mxu0
      %v1182 = vpop.f32.mrf.mxu0
      %v1183 = vadd.f32 0.0, %v1182
      %v1184 = vpop.f32.mrf.mxu0
      %1185 = vmatprep.mubr.bf16.mxu0 %v992
      %1186 = vmatmul.mubr.bf16.gmra.mxu0 %v991
      %v1187 = vpop.f32.mrf.mxu0
      %v1188 = vadd.f32 0.0, %v1187
      %v1189 = vpop.f32.mrf.mxu0
      %v1190 = vpop.f32.mrf.mxu0
      %v1191 = vadd.f32 0.0, %v1190
      %v1192 = vpop.f32.mrf.mxu0
      %1193 = vmatprep.mubr.bf16.mxu0 %v994
      %1194 = vmatmul.mubr.bf16.gmra.mxu0 %v993
      %v1195 = vpop.f32.mrf.mxu0
      %v1196 = vadd.f32 0.0, %v1195
      %v1197 = vpop.f32.mrf.mxu0
      %v1198 = vpop.f32.mrf.mxu0
      %v1199 = vadd.f32 0.0, %v1198
      %v1200 = vpop.f32.mrf.mxu0
      %1201 = vmatprep.mubr.bf16.mxu0 %v996
      %1202 = vmatmul.mubr.bf16.gmra.mxu0 %v995
      %v1203 = vpop.f32.mrf.mxu0
      %v1204 = vadd.f32 0.0, %v1203
      %v1205 = vpop.f32.mrf.mxu0
      %v1206 = vpop.f32.mrf.mxu0
      %v1207 = vadd.f32 0.0, %v1206
      %v1208 = vpop.f32.mrf.mxu0
      %1209 = vmatprep.mubr.bf16.mxu0 %v998
      %1210 = vmatmul.mubr.bf16.gmra.mxu0 %v997
      %v1211 = vpop.f32.mrf.mxu0
      %v1212 = vadd.f32 0.0, %v1211
      %v1213 = vpop.f32.mrf.mxu0
      %v1214 = vpop.f32.mrf.mxu0
      %v1215 = vadd.f32 0.0, %v1214
      %v1216 = vpop.f32.mrf.mxu0
      %1217 = vmatprep.mubr.bf16.mxu0 %v1000
      %1218 = vmatmul.mubr.bf16.gmra.mxu0 %v999
      %v1219 = vpop.f32.mrf.mxu0
      %v1220 = vadd.f32 0.0, %v1219
      %v1221 = vpop.f32.mrf.mxu0
      %v1222 = vpop.f32.mrf.mxu0
      %v1223 = vadd.f32 0.0, %v1222
      %v1224 = vpop.f32.mrf.mxu0
      %1225 = vdwg.mxu0
      %v1226 = vrcp.pop %v939
      %v1227 = vrcp.pop %v942
      %v1228 = vrcp.pop %v945
      %v1229 = vrcp.pop %v948
      %v1230 = vrcp.pop %v951
      %v1231 = vrcp.pop %v954
      %v1232 = vrcp.pop %v957
      %v1233 = vrcp.pop %v960
      %v1234 = vrcp.pop %v963
      %v1235 = vrcp.pop %v966
      %v1236 = vrcp.pop %v969
      %v1237 = vrcp.pop %v972
      %v1238 = vrcp.pop %v975
      %v1239 = vrcp.pop %v978
      %v1240 = vrcp.pop %v981
      %v1241 = vrcp.pop %v984
      %v1242 = vmul.f32 %v1164, %v1226
      %v1243 = vmul.f32 %v1167, %v1227
      %v1244 = vmul.f32 %v1172, %v1228
      %v1245 = vmul.f32 %v1175, %v1229
      %v1246 = vmul.f32 %v1180, %v1230
      %v1247 = vmul.f32 %v1183, %v1231
      %v1248 = vmul.f32 %v1188, %v1232
      %v1249 = vmul.f32 %v1191, %v1233
      %v1250 = vmul.f32 %v1196, %v1234
      %v1251 = vmul.f32 %v1199, %v1235
      %v1252 = vmul.f32 %v1204, %v1236
      %v1253 = vmul.f32 %v1207, %v1237
      %v1254 = vmul.f32 %v1212, %v1238
      %v1255 = vmul.f32 %v1215, %v1239
      %v1256 = vmul.f32 %v1220, %v1240
      %v1257 = vmul.f32 %v1223, %v1241
      %1258 = vrot.lane.b32.xlu0 %v279, 48
      %v1259 = vpop.permute.xlu0 %1258
      %1260 = vrot.lane.b32.xlu0 %v280, 48
      %v1261 = vpop.permute.xlu0 %1260
      %1262 = vrot.lane.b32.xlu0 %v281, 48
      %v1263 = vpop.permute.xlu0 %1262
      %1264 = vrot.lane.b32.xlu0 %v282, 48
      %v1265 = vpop.permute.xlu0 %1264
      %1266 = vrot.lane.b32.xlu0 %v283, 48
      %v1267 = vpop.permute.xlu0 %1266
      %1268 = vrot.lane.b32.xlu0 %v284, 48
      %v1269 = vpop.permute.xlu0 %1268
      %1270 = vrot.lane.b32.xlu0 %v285, 48
      %v1271 = vpop.permute.xlu0 %1270
      %1272 = vrot.lane.b32.xlu0 %v286, 48
      %v1273 = vpop.permute.xlu0 %1272
      %1274 = vrot.lane.b32.xlu0 %v287, 48
      %v1275 = vpop.permute.xlu0 %1274
      %1276 = vrot.lane.b32.xlu0 %v288, 48
      %v1277 = vpop.permute.xlu0 %1276
      %1278 = vrot.lane.b32.xlu0 %v289, 48
      %v1279 = vpop.permute.xlu0 %1278
      %1280 = vrot.lane.b32.xlu0 %v290, 48
      %v1281 = vpop.permute.xlu0 %1280
      %1282 = vrot.lane.b32.xlu0 %v291, 48
      %v1283 = vpop.permute.xlu0 %1282
      %1284 = vrot.lane.b32.xlu0 %v292, 48
      %v1285 = vpop.permute.xlu0 %1284
      %1286 = vrot.lane.b32.xlu0 %v293, 48
      %v1287 = vpop.permute.xlu0 %1286
      %1288 = vrot.lane.b32.xlu0 %v294, 48
      %v1289 = vpop.permute.xlu0 %1288
      %1290 = vrot.lane.b32.xlu0 %v295, 48
      %v1291 = vpop.permute.xlu0 %1290
      %1292 = vrot.lane.b32.xlu0 %v296, 48
      %v1293 = vpop.permute.xlu0 %1292
      %1294 = vrot.lane.b32.xlu0 %v297, 48
      %v1295 = vpop.permute.xlu0 %1294
      %1296 = vrot.lane.b32.xlu0 %v298, 48
      %v1297 = vpop.permute.xlu0 %1296
      %1298 = vrot.lane.b32.xlu0 %v299, 48
      %v1299 = vpop.permute.xlu0 %1298
      %1300 = vrot.lane.b32.xlu0 %v300, 48
      %v1301 = vpop.permute.xlu0 %1300
      %1302 = vrot.lane.b32.xlu0 %v301, 48
      %v1303 = vpop.permute.xlu0 %1302
      %1304 = vrot.lane.b32.xlu0 %v302, 48
      %v1305 = vpop.permute.xlu0 %1304
      %1306 = vrot.lane.b32.xlu0 %v303, 48
      %v1307 = vpop.permute.xlu0 %1306
      %1308 = vrot.lane.b32.xlu0 %v304, 48
      %v1309 = vpop.permute.xlu0 %1308
      %1310 = vrot.lane.b32.xlu0 %v305, 48
      %v1311 = vpop.permute.xlu0 %1310
      %1312 = vrot.lane.b32.xlu0 %v306, 48
      %v1313 = vpop.permute.xlu0 %1312
      %1314 = vrot.lane.b32.xlu0 %v307, 48
      %v1315 = vpop.permute.xlu0 %1314
      %1316 = vrot.lane.b32.xlu0 %v308, 48
      %v1317 = vpop.permute.xlu0 %1316
      %1318 = vrot.lane.b32.xlu0 %v309, 48
      %v1319 = vpop.permute.xlu0 %1318
      %1320 = vrot.lane.b32.xlu0 %v310, 48
      %v1321 = vpop.permute.xlu0 %1320
      %v1354 = vadd.f32 %v311, %v1259
      %v1355 = vadd.f32 %v312, %v1261
      %v1356 = vadd.f32 %v313, %v1263
      %v1357 = vadd.f32 %v314, %v1265
      %v1358 = vadd.f32 %v315, %v1267
      %v1359 = vadd.f32 %v316, %v1269
      %v1360 = vadd.f32 %v317, %v1271
      %v1361 = vadd.f32 %v318, %v1273
      %v1362 = vadd.f32 %v319, %v1275
      %v1363 = vadd.f32 %v320, %v1277
      %v1364 = vadd.f32 %v321, %v1279
      %v1365 = vadd.f32 %v322, %v1281
      %v1366 = vadd.f32 %v323, %v1283
      %v1367 = vadd.f32 %v324, %v1285
      %v1368 = vadd.f32 %v325, %v1287
      %v1369 = vadd.f32 %v326, %v1289
      %v1370 = vadd.f32 %v327, %v1291
      %v1371 = vadd.f32 %v328, %v1293
      %v1372 = vadd.f32 %v329, %v1295
      %v1373 = vadd.f32 %v330, %v1297
      %v1374 = vadd.f32 %v331, %v1299
      %v1375 = vadd.f32 %v332, %v1301
      %v1376 = vadd.f32 %v333, %v1303
      %v1377 = vadd.f32 %v334, %v1305
      %v1378 = vadd.f32 %v335, %v1307
      %v1379 = vadd.f32 %v336, %v1309
      %v1380 = vadd.f32 %v337, %v1311
      %v1381 = vadd.f32 %v338, %v1313
      %v1382 = vadd.f32 %v339, %v1315
      %v1383 = vadd.f32 %v340, %v1317
      %v1384 = vadd.f32 %v341, %v1319
      %v1385 = vadd.f32 %v342, %v1321
      %v1386 = vpack.c.bf16 %v1355, %v1354
      %v1387 = vpack.c.bf16 %v1357, %v1356
      %v1388 = vpack.c.bf16 %v1359, %v1358
      %v1389 = vpack.c.bf16 %v1361, %v1360
      %v1390 = vpack.c.bf16 %v1363, %v1362
      %v1391 = vpack.c.bf16 %v1365, %v1364
      %v1392 = vpack.c.bf16 %v1367, %v1366
      %v1393 = vpack.c.bf16 %v1369, %v1368
      %v1394 = vpack.c.bf16 %v1371, %v1370
      %v1395 = vpack.c.bf16 %v1373, %v1372
      %v1396 = vpack.c.bf16 %v1375, %v1374
      %v1397 = vpack.c.bf16 %v1377, %v1376
      %v1398 = vpack.c.bf16 %v1379, %v1378
      %v1399 = vpack.c.bf16 %v1381, %v1380
      %v1400 = vpack.c.bf16 %v1383, %v1382
      %v1401 = vpack.c.bf16 %v1385, %v1384
      %1402 = vrot.lane.b32.xlu0 %v551, 112
      %v1403 = vpop.permute.xlu0 %1402
      %1404 = vrot.lane.b32.xlu0 %v552, 112
      %v1405 = vpop.permute.xlu0 %1404
      %1406 = vrot.lane.b32.xlu0 %v553, 112
      %v1407 = vpop.permute.xlu0 %1406
      %1408 = vrot.lane.b32.xlu0 %v554, 112
      %v1409 = vpop.permute.xlu0 %1408
      %1410 = vrot.lane.b32.xlu0 %v555, 112
      %v1411 = vpop.permute.xlu0 %1410
      %1412 = vrot.lane.b32.xlu0 %v556, 112
      %v1413 = vpop.permute.xlu0 %1412
      %1414 = vrot.lane.b32.xlu0 %v557, 112
      %v1415 = vpop.permute.xlu0 %1414
      %1416 = vrot.lane.b32.xlu0 %v558, 112
      %v1417 = vpop.permute.xlu0 %1416
      %1434 = vrot.lane.b32.xlu0 %v1386, 80
      %v1435 = vpop.permute.xlu0 %1434
      %1436 = vrot.lane.b32.xlu0 %v1387, 80
      %v1437 = vpop.permute.xlu0 %1436
      %1438 = vrot.lane.b32.xlu0 %v1388, 80
      %v1439 = vpop.permute.xlu0 %1438
      %1440 = vrot.lane.b32.xlu0 %v1389, 80
      %v1441 = vpop.permute.xlu0 %1440
      %1442 = vrot.lane.b32.xlu0 %v1390, 80
      %v1443 = vpop.permute.xlu0 %1442
      %1444 = vrot.lane.b32.xlu0 %v1391, 80
      %v1445 = vpop.permute.xlu0 %1444
      %1446 = vrot.lane.b32.xlu0 %v1392, 80
      %v1447 = vpop.permute.xlu0 %1446
      %1448 = vrot.lane.b32.xlu0 %v1393, 80
      %v1449 = vpop.permute.xlu0 %1448
      %1450 = vrot.lane.b32.xlu0 %v1394, 80
      %v1451 = vpop.permute.xlu0 %1450
      %1452 = vrot.lane.b32.xlu0 %v1395, 80
      %v1453 = vpop.permute.xlu0 %1452
      %1454 = vrot.lane.b32.xlu0 %v1396, 80
      %v1455 = vpop.permute.xlu0 %1454
      %1456 = vrot.lane.b32.xlu0 %v1397, 80
      %v1457 = vpop.permute.xlu0 %1456
      %1458 = vrot.lane.b32.xlu0 %v1398, 80
      %v1459 = vpop.permute.xlu0 %1458
      %1460 = vrot.lane.b32.xlu0 %v1399, 80
      %v1461 = vpop.permute.xlu0 %1460
      %1462 = vrot.lane.b32.xlu0 %v1400, 80
      %v1463 = vpop.permute.xlu0 %1462
      %1464 = vrot.lane.b32.xlu0 %v1401, 80
      %v1465 = vpop.permute.xlu0 %1464
      %v1467 = vsel %vm607, %v1403, 0
      %v1470 = vsel %vm607, %v1405, 0
      %v1473 = vsel %vm607, %v1407, 0
      %v1476 = vsel %vm607, %v1409, 0
      %v1479 = vsel %vm607, %v1411, 0
      %v1482 = vsel %vm607, %v1413, 0
      %v1485 = vsel %vm607, %v1415, 0
      %v1488 = vsel %vm607, %v1417, 0
      %v1491 = vsel %vm607, %v1435, 0
      %v1494 = vsel %vm607, %v1437, 0
      %v1497 = vsel %vm607, %v1439, 0
      %v1500 = vsel %vm607, %v1441, 0
      %v1503 = vsel %vm607, %v1443, 0
      %v1506 = vsel %vm607, %v1445, 0
      %v1509 = vsel %vm607, %v1447, 0
      %v1512 = vsel %vm607, %v1449, 0
      %v1515 = vsel %vm607, %v1451, 0
      %v1518 = vsel %vm607, %v1453, 0
      %v1521 = vsel %vm607, %v1455, 0
      %v1524 = vsel %vm607, %v1457, 0
      %v1527 = vsel %vm607, %v1459, 0
      %v1530 = vsel %vm607, %v1461, 0
      %v1533 = vsel %vm607, %v1463, 0
      %v1536 = vsel %vm607, %v1465, 0
      %1538 = vmatprep.subr.bf16.mxu0 0
      %1539 = vmatpush1.bf16.xpose.msra.mxu0 %v1512
      %1540 = vmatprep.subr.bf16.mxu0 0
      %1541 = vmatpush1.bf16.xpose.msra.mxu0 %v1509
      %1542 = vmatprep.subr.bf16.mxu0 0
      %1543 = vmatpush1.bf16.xpose.msra.mxu0 %v1506
      %1544 = vmatprep.subr.bf16.mxu0 0
      %1545 = vmatpush1.bf16.xpose.msra.mxu0 %v1503
      %1546 = vmatprep.subr.bf16.mxu0 0
      %1547 = vmatpush1.bf16.xpose.msra.mxu0 %v1500
      %1548 = vmatprep.subr.bf16.mxu0 0
      %1549 = vmatpush1.bf16.xpose.msra.mxu0 %v1497
      %1550 = vmatprep.subr.bf16.mxu0 0
      %1551 = vmatpush1.bf16.xpose.msra.mxu0 %v1494
      %1552 = vmatprep.subr.bf16.mxu0 0
      %1553 = vmatpush1.bf16.xpose.msra.mxu0 %v1491
      %1554 = vmatprep.subr.bf16.mxu0 0
      %1555 = vmatpush2.bf16.xpose.msra.mxu0 %v1536
      %1556 = vmatprep.subr.bf16.mxu0 0
      %1557 = vmatpush2.bf16.xpose.msra.mxu0 %v1533
      %1558 = vmatprep.subr.bf16.mxu0 0
      %1559 = vmatpush2.bf16.xpose.msra.mxu0 %v1530
      %1560 = vmatprep.subr.bf16.mxu0 0
      %1561 = vmatpush2.bf16.xpose.msra.mxu0 %v1527
      %1562 = vmatprep.subr.bf16.mxu0 0
      %1563 = vmatpush2.bf16.xpose.msra.mxu0 %v1524
      %1564 = vmatprep.subr.bf16.mxu0 0
      %1565 = vmatpush2.bf16.xpose.msra.mxu0 %v1521
      %1566 = vmatprep.subr.bf16.mxu0 0
      %1567 = vmatpush2.bf16.xpose.msra.mxu0 %v1518
      %1568 = vmatprep.subr.bf16.mxu0 0
      %1569 = vmatpush2.bf16.xpose.msra.mxu0 %v1515
      %1570 = vmatprep.mubr.bf16.mxu0 0
      %1571 = vmatmul.mubr.bf16.gmra.mxu0 %v1467
      %v1572 = vpop.f32.mrf.mxu0
      %v1573 = vadd.f32 0.0, %v1572
      %v1574 = vpop.f32.mrf.mxu0
      %v1575 = vadd.f32 0.0, %v1574
      %v1576 = vpop.f32.mrf.mxu0
      %v1577 = vadd.f32 0.0, %v1576
      %v1578 = vpop.f32.mrf.mxu0
      %v1579 = vadd.f32 0.0, %v1578
      %1580 = vmatprep.mubr.bf16.mxu0 0
      %1581 = vmatmul.mubr.bf16.gmra.mxu0 %v1470
      %v1582 = vpop.f32.mrf.mxu0
      %v1583 = vadd.f32 0.0, %v1582
      %v1584 = vpop.f32.mrf.mxu0
      %v1585 = vadd.f32 0.0, %v1584
      %v1586 = vpop.f32.mrf.mxu0
      %v1587 = vadd.f32 0.0, %v1586
      %v1588 = vpop.f32.mrf.mxu0
      %v1589 = vadd.f32 0.0, %v1588
      %1590 = vmatprep.mubr.bf16.mxu0 0
      %1591 = vmatmul.mubr.bf16.gmra.mxu0 %v1473
      %v1592 = vpop.f32.mrf.mxu0
      %v1593 = vadd.f32 0.0, %v1592
      %v1594 = vpop.f32.mrf.mxu0
      %v1595 = vadd.f32 0.0, %v1594
      %v1596 = vpop.f32.mrf.mxu0
      %v1597 = vadd.f32 0.0, %v1596
      %v1598 = vpop.f32.mrf.mxu0
      %v1599 = vadd.f32 0.0, %v1598
      %1600 = vmatprep.mubr.bf16.mxu0 0
      %1601 = vmatmul.mubr.bf16.gmra.mxu0 %v1476
      %v1602 = vpop.f32.mrf.mxu0
      %v1603 = vadd.f32 0.0, %v1602
      %v1604 = vpop.f32.mrf.mxu0
      %v1605 = vadd.f32 0.0, %v1604
      %v1606 = vpop.f32.mrf.mxu0
      %v1607 = vadd.f32 0.0, %v1606
      %v1608 = vpop.f32.mrf.mxu0
      %v1609 = vadd.f32 0.0, %v1608
      %1610 = vmatprep.mubr.bf16.mxu0 0
      %1611 = vmatmul.mubr.bf16.gmra.mxu0 %v1479
      %v1612 = vpop.f32.mrf.mxu0
      %v1613 = vadd.f32 0.0, %v1612
      %v1614 = vpop.f32.mrf.mxu0
      %v1615 = vadd.f32 0.0, %v1614
      %v1616 = vpop.f32.mrf.mxu0
      %v1617 = vadd.f32 0.0, %v1616
      %v1618 = vpop.f32.mrf.mxu0
      %v1619 = vadd.f32 0.0, %v1618
      %1620 = vmatprep.mubr.bf16.mxu0 0
      %1621 = vmatmul.mubr.bf16.gmra.mxu0 %v1482
      %v1622 = vpop.f32.mrf.mxu0
      %v1623 = vadd.f32 0.0, %v1622
      %v1624 = vpop.f32.mrf.mxu0
      %v1625 = vadd.f32 0.0, %v1624
      %v1626 = vpop.f32.mrf.mxu0
      %v1627 = vadd.f32 0.0, %v1626
      %v1628 = vpop.f32.mrf.mxu0
      %v1629 = vadd.f32 0.0, %v1628
      %1630 = vmatprep.mubr.bf16.mxu0 0
      %1631 = vmatmul.mubr.bf16.gmra.mxu0 %v1485
      %v1632 = vpop.f32.mrf.mxu0
      %v1633 = vadd.f32 0.0, %v1632
      %v1634 = vpop.f32.mrf.mxu0
      %v1635 = vadd.f32 0.0, %v1634
      %v1636 = vpop.f32.mrf.mxu0
      %v1637 = vadd.f32 0.0, %v1636
      %v1638 = vpop.f32.mrf.mxu0
      %v1639 = vadd.f32 0.0, %v1638
      %1640 = vmatprep.mubr.bf16.mxu0 0
      %1641 = vmatmul.mubr.bf16.gmra.mxu0 %v1488
      %v1642 = vpop.f32.mrf.mxu0
      %v1643 = vadd.f32 0.0, %v1642
      %v1644 = vpop.f32.mrf.mxu0
      %v1645 = vadd.f32 0.0, %v1644
      %v1646 = vpop.f32.mrf.mxu0
      %v1647 = vadd.f32 0.0, %v1646
      %v1648 = vpop.f32.mrf.mxu0
      %v1649 = vadd.f32 0.0, %v1648
      %1650 = vdwg.mxu0
      %v1651 = vmax.f32 %v1573, %v1575
      %1652 = vmax.xlane.f32.xlu0 %v1651
      %v1653 = vpop.xlane.xlu0 %1652
      %v1654 = vmax.f32 %v1577, %v1579
      %1655 = vmax.xlane.f32.xlu0 %v1654
      %v1656 = vpop.xlane.xlu0 %1655
      %v1657 = vmax.f32 %v1583, %v1585
      %1658 = vmax.xlane.f32.xlu0 %v1657
      %v1659 = vpop.xlane.xlu0 %1658
      %v1660 = vmax.f32 %v1587, %v1589
      %1661 = vmax.xlane.f32.xlu0 %v1660
      %v1662 = vpop.xlane.xlu0 %1661
      %v1663 = vmax.f32 %v1593, %v1595
      %1664 = vmax.xlane.f32.xlu0 %v1663
      %v1665 = vpop.xlane.xlu0 %1664
      %v1666 = vmax.f32 %v1597, %v1599
      %1667 = vmax.xlane.f32.xlu0 %v1666
      %v1668 = vpop.xlane.xlu0 %1667
      %v1669 = vmax.f32 %v1603, %v1605
      %1670 = vmax.xlane.f32.xlu0 %v1669
      %v1671 = vpop.xlane.xlu0 %1670
      %v1672 = vmax.f32 %v1607, %v1609
      %1673 = vmax.xlane.f32.xlu0 %v1672
      %v1674 = vpop.xlane.xlu0 %1673
      %v1675 = vmax.f32 %v1613, %v1615
      %1676 = vmax.xlane.f32.xlu0 %v1675
      %v1677 = vpop.xlane.xlu0 %1676
      %v1678 = vmax.f32 %v1617, %v1619
      %1679 = vmax.xlane.f32.xlu0 %v1678
      %v1680 = vpop.xlane.xlu0 %1679
      %v1681 = vmax.f32 %v1623, %v1625
      %1682 = vmax.xlane.f32.xlu0 %v1681
      %v1683 = vpop.xlane.xlu0 %1682
      %v1684 = vmax.f32 %v1627, %v1629
      %1685 = vmax.xlane.f32.xlu0 %v1684
      %v1686 = vpop.xlane.xlu0 %1685
      %v1687 = vmax.f32 %v1633, %v1635
      %1688 = vmax.xlane.f32.xlu0 %v1687
      %v1689 = vpop.xlane.xlu0 %1688
      %v1690 = vmax.f32 %v1637, %v1639
      %1691 = vmax.xlane.f32.xlu0 %v1690
      %v1692 = vpop.xlane.xlu0 %1691
      %v1693 = vmax.f32 %v1643, %v1645
      %1694 = vmax.xlane.f32.xlu0 %v1693
      %v1695 = vpop.xlane.xlu0 %1694
      %v1696 = vmax.f32 %v1647, %v1649
      %1697 = vmax.xlane.f32.xlu0 %v1696
      %v1698 = vpop.xlane.xlu0 %1697
      %v1699 = vsub.f32 %v1573, %v1653
      %v1700 = vsub.f32 %v1575, %v1653
      %v1701 = vsub.f32 %v1577, %v1656
      %v1702 = vsub.f32 %v1579, %v1656
      %v1703 = vsub.f32 %v1583, %v1659
      %v1704 = vsub.f32 %v1585, %v1659
      %v1705 = vsub.f32 %v1587, %v1662
      %v1706 = vsub.f32 %v1589, %v1662
      %v1707 = vsub.f32 %v1593, %v1665
      %v1708 = vsub.f32 %v1595, %v1665
      %v1709 = vsub.f32 %v1597, %v1668
      %v1710 = vsub.f32 %v1599, %v1668
      %v1711 = vsub.f32 %v1603, %v1671
      %v1712 = vsub.f32 %v1605, %v1671
      %v1713 = vsub.f32 %v1607, %v1674
      %v1714 = vsub.f32 %v1609, %v1674
      %v1715 = vsub.f32 %v1613, %v1677
      %v1716 = vsub.f32 %v1615, %v1677
      %v1717 = vsub.f32 %v1617, %v1680
      %v1718 = vsub.f32 %v1619, %v1680
      %v1719 = vsub.f32 %v1623, %v1683
      %v1720 = vsub.f32 %v1625, %v1683
      %v1721 = vsub.f32 %v1627, %v1686
      %v1722 = vsub.f32 %v1629, %v1686
      %v1723 = vsub.f32 %v1633, %v1689
      %v1724 = vsub.f32 %v1635, %v1689
      %v1725 = vsub.f32 %v1637, %v1692
      %v1726 = vsub.f32 %v1639, %v1692
      %v1727 = vsub.f32 %v1643, %v1695
      %v1728 = vsub.f32 %v1645, %v1695
      %v1729 = vsub.f32 %v1647, %v1698
      %v1730 = vsub.f32 %v1649, %v1698
      %v1731 = vmul.f32 %v1699, 1.442695
      %v1732 = vpow.pop %v1731
      %v1733 = vmul.f32 %v1700, 1.442695
      %v1734 = vpow.pop %v1733
      %v1735 = vmul.f32 %v1701, 1.442695
      %v1736 = vpow.pop %v1735
      %v1737 = vmul.f32 %v1702, 1.442695
      %v1738 = vpow.pop %v1737
      %v1739 = vmul.f32 %v1703, 1.442695
      %v1740 = vpow.pop %v1739
      %v1741 = vmul.f32 %v1704, 1.442695
      %v1742 = vpow.pop %v1741
      %v1743 = vmul.f32 %v1705, 1.442695
      %v1744 = vpow.pop %v1743
      %v1745 = vmul.f32 %v1706, 1.442695
      %v1746 = vpow.pop %v1745
      %v1747 = vmul.f32 %v1707, 1.442695
      %v1748 = vpow.pop %v1747
      %v1749 = vmul.f32 %v1708, 1.442695
      %v1750 = vpow.pop %v1749
      %v1751 = vmul.f32 %v1709, 1.442695
      %v1752 = vpow.pop %v1751
      %v1753 = vmul.f32 %v1710, 1.442695
      %v1754 = vpow.pop %v1753
      %v1755 = vmul.f32 %v1711, 1.442695
      %v1756 = vpow.pop %v1755
      %v1757 = vmul.f32 %v1712, 1.442695
      %v1758 = vpow.pop %v1757
      %v1759 = vmul.f32 %v1713, 1.442695
      %v1760 = vpow.pop %v1759
      %v1761 = vmul.f32 %v1714, 1.442695
      %v1762 = vpow.pop %v1761
      %v1763 = vmul.f32 %v1715, 1.442695
      %v1764 = vpow.pop %v1763
      %v1765 = vmul.f32 %v1716, 1.442695
      %v1766 = vpow.pop %v1765
      %v1767 = vmul.f32 %v1717, 1.442695
      %v1768 = vpow.pop %v1767
      %v1769 = vmul.f32 %v1718, 1.442695
      %v1770 = vpow.pop %v1769
      %v1771 = vmul.f32 %v1719, 1.442695
      %v1772 = vpow.pop %v1771
      %v1773 = vmul.f32 %v1720, 1.442695
      %v1774 = vpow.pop %v1773
      %v1775 = vmul.f32 %v1721, 1.442695
      %v1776 = vpow.pop %v1775
      %v1777 = vmul.f32 %v1722, 1.442695
      %v1778 = vpow.pop %v1777
      %v1779 = vmul.f32 %v1723, 1.442695
      %v1780 = vpow.pop %v1779
      %v1781 = vmul.f32 %v1724, 1.442695
      %v1782 = vpow.pop %v1781
      %v1783 = vmul.f32 %v1725, 1.442695
      %v1784 = vpow.pop %v1783
      %v1785 = vmul.f32 %v1726, 1.442695
      %v1786 = vpow.pop %v1785
      %v1787 = vmul.f32 %v1727, 1.442695
      %v1788 = vpow.pop %v1787
      %v1789 = vmul.f32 %v1728, 1.442695
      %v1790 = vpow.pop %v1789
      %v1791 = vmul.f32 %v1729, 1.442695
      %v1792 = vpow.pop %v1791
      %v1793 = vmul.f32 %v1730, 1.442695
      %v1794 = vpow.pop %v1793
      %v1795 = vadd.f32 %v1732, %v1734
      %1796 = vadd.xlane.f32.xlu0 %v1795
      %v1797 = vpop.xlane.xlu0 %1796
      %v1798 = vadd.f32 %v1736, %v1738
      %1799 = vadd.xlane.f32.xlu0 %v1798
      %v1800 = vpop.xlane.xlu0 %1799
      %v1801 = vadd.f32 %v1740, %v1742
      %1802 = vadd.xlane.f32.xlu0 %v1801
      %v1803 = vpop.xlane.xlu0 %1802
      %v1804 = vadd.f32 %v1744, %v1746
      %1805 = vadd.xlane.f32.xlu0 %v1804
      %v1806 = vpop.xlane.xlu0 %1805
      %v1807 = vadd.f32 %v1748, %v1750
      %1808 = vadd.xlane.f32.xlu0 %v1807
      %v1809 = vpop.xlane.xlu0 %1808
      %v1810 = vadd.f32 %v1752, %v1754
      %1811 = vadd.xlane.f32.xlu0 %v1810
      %v1812 = vpop.xlane.xlu0 %1811
      %v1813 = vadd.f32 %v1756, %v1758
      %1814 = vadd.xlane.f32.xlu0 %v1813
      %v1815 = vpop.xlane.xlu0 %1814
      %v1816 = vadd.f32 %v1760, %v1762
      %1817 = vadd.xlane.f32.xlu0 %v1816
      %v1818 = vpop.xlane.xlu0 %1817
      %v1819 = vadd.f32 %v1764, %v1766
      %1820 = vadd.xlane.f32.xlu0 %v1819
      %v1821 = vpop.xlane.xlu0 %1820
      %v1822 = vadd.f32 %v1768, %v1770
      %1823 = vadd.xlane.f32.xlu0 %v1822
      %v1824 = vpop.xlane.xlu0 %1823
      %v1825 = vadd.f32 %v1772, %v1774
      %1826 = vadd.xlane.f32.xlu0 %v1825
      %v1827 = vpop.xlane.xlu0 %1826
      %v1828 = vadd.f32 %v1776, %v1778
      %1829 = vadd.xlane.f32.xlu0 %v1828
      %v1830 = vpop.xlane.xlu0 %1829
      %v1831 = vadd.f32 %v1780, %v1782
      %1832 = vadd.xlane.f32.xlu0 %v1831
      %v1833 = vpop.xlane.xlu0 %1832
      %v1834 = vadd.f32 %v1784, %v1786
      %1835 = vadd.xlane.f32.xlu0 %v1834
      %v1836 = vpop.xlane.xlu0 %1835
      %v1837 = vadd.f32 %v1788, %v1790
      %1838 = vadd.xlane.f32.xlu0 %v1837
      %v1839 = vpop.xlane.xlu0 %1838
      %v1840 = vadd.f32 %v1792, %v1794
      %1841 = vadd.xlane.f32.xlu0 %v1840
      %v1842 = vpop.xlane.xlu0 %1841
      %v1843 = vpack.c.bf16 %v1736, %v1732
      %v1844 = vpack.c.bf16 %v1738, %v1734
      %v1845 = vpack.c.bf16 %v1744, %v1740
      %v1846 = vpack.c.bf16 %v1746, %v1742
      %v1847 = vpack.c.bf16 %v1752, %v1748
      %v1848 = vpack.c.bf16 %v1754, %v1750
      %v1849 = vpack.c.bf16 %v1760, %v1756
      %v1850 = vpack.c.bf16 %v1762, %v1758
      %v1851 = vpack.c.bf16 %v1768, %v1764
      %v1852 = vpack.c.bf16 %v1770, %v1766
      %v1853 = vpack.c.bf16 %v1776, %v1772
      %v1854 = vpack.c.bf16 %v1778, %v1774
      %v1855 = vpack.c.bf16 %v1784, %v1780
      %v1856 = vpack.c.bf16 %v1786, %v1782
      %v1857 = vpack.c.bf16 %v1792, %v1788
      %v1858 = vpack.c.bf16 %v1794, %v1790
      %1859 = vrot.lane.b32.xlu0 %v1065, 48
      %v1860 = vpop.permute.xlu0 %1859
      %1861 = vrot.lane.b32.xlu0 %v1066, 48
      %v1862 = vpop.permute.xlu0 %1861
      %1863 = vrot.lane.b32.xlu0 %v1067, 48
      %v1864 = vpop.permute.xlu0 %1863
      %1865 = vrot.lane.b32.xlu0 %v1068, 48
      %v1866 = vpop.permute.xlu0 %1865
      %1867 = vrot.lane.b32.xlu0 %v1069, 48
      %v1868 = vpop.permute.xlu0 %1867
      %1869 = vrot.lane.b32.xlu0 %v1070, 48
      %v1870 = vpop.permute.xlu0 %1869
      %1871 = vrot.lane.b32.xlu0 %v1071, 48
      %v1872 = vpop.permute.xlu0 %1871
      %1873 = vrot.lane.b32.xlu0 %v1072, 48
      %v1874 = vpop.permute.xlu0 %1873
      %1875 = vrot.lane.b32.xlu0 %v1073, 48
      %v1876 = vpop.permute.xlu0 %1875
      %1877 = vrot.lane.b32.xlu0 %v1074, 48
      %v1878 = vpop.permute.xlu0 %1877
      %1879 = vrot.lane.b32.xlu0 %v1075, 48
      %v1880 = vpop.permute.xlu0 %1879
      %1881 = vrot.lane.b32.xlu0 %v1076, 48
      %v1882 = vpop.permute.xlu0 %1881
      %1883 = vrot.lane.b32.xlu0 %v1077, 48
      %v1884 = vpop.permute.xlu0 %1883
      %1885 = vrot.lane.b32.xlu0 %v1078, 48
      %v1886 = vpop.permute.xlu0 %1885
      %1887 = vrot.lane.b32.xlu0 %v1079, 48
      %v1888 = vpop.permute.xlu0 %1887
      %1889 = vrot.lane.b32.xlu0 %v1080, 48
      %v1890 = vpop.permute.xlu0 %1889
      %1907 = vmatprep.subr.bf16.mxu0 0
      %1908 = vmatpush1.bf16.msra.mxu0 %v1874
      %1909 = vmatprep.subr.bf16.mxu0 0
      %1910 = vmatpush1.bf16.msra.mxu0 %v1872
      %1911 = vmatprep.subr.bf16.mxu0 0
      %1912 = vmatpush1.bf16.msra.mxu0 %v1870
      %1913 = vmatprep.subr.bf16.mxu0 0
      %1914 = vmatpush1.bf16.msra.mxu0 %v1868
      %1915 = vmatprep.subr.bf16.mxu0 0
      %1916 = vmatpush1.bf16.msra.mxu0 %v1866
      %1917 = vmatprep.subr.bf16.mxu0 0
      %1918 = vmatpush1.bf16.msra.mxu0 %v1864
      %1919 = vmatprep.subr.bf16.mxu0 0
      %1920 = vmatpush1.bf16.msra.mxu0 %v1862
      %1921 = vmatprep.subr.bf16.mxu0 0
      %1922 = vmatpush1.bf16.msra.mxu0 %v1860
      %1923 = vmatprep.subr.bf16.mxu0 0
      %1924 = vmatpush2.bf16.msra.mxu0 %v1890
      %1925 = vmatprep.subr.bf16.mxu0 0
      %1926 = vmatpush2.bf16.msra.mxu0 %v1888
      %1927 = vmatprep.subr.bf16.mxu0 0
      %1928 = vmatpush2.bf16.msra.mxu0 %v1886
      %1929 = vmatprep.subr.bf16.mxu0 0
      %1930 = vmatpush2.bf16.msra.mxu0 %v1884
      %1931 = vmatprep.subr.bf16.mxu0 0
      %1932 = vmatpush2.bf16.msra.mxu0 %v1882
      %1933 = vmatprep.subr.bf16.mxu0 0
      %1934 = vmatpush2.bf16.msra.mxu0 %v1880
      %1935 = vmatprep.subr.bf16.mxu0 0
      %1936 = vmatpush2.bf16.msra.mxu0 %v1878
      %1937 = vmatprep.subr.bf16.mxu0 0
      %1938 = vmatpush2.bf16.msra.mxu0 %v1876
      %1939 = vmatprep.mubr.bf16.mxu0 %v1844
      %1940 = vmatmul.mubr.bf16.gmra.mxu0 %v1843
      %v1941 = vpop.f32.mrf.mxu0
      %v1942 = vadd.f32 0.0, %v1941
      %v1943 = vpop.f32.mrf.mxu0
      %v1944 = vpop.f32.mrf.mxu0
      %v1945 = vadd.f32 0.0, %v1944
      %v1946 = vpop.f32.mrf.mxu0
      %1947 = vmatprep.mubr.bf16.mxu0 %v1846
      %1948 = vmatmul.mubr.bf16.gmra.mxu0 %v1845
      %v1949 = vpop.f32.mrf.mxu0
      %v1950 = vadd.f32 0.0, %v1949
      %v1951 = vpop.f32.mrf.mxu0
      %v1952 = vpop.f32.mrf.mxu0
      %v1953 = vadd.f32 0.0, %v1952
      %v1954 = vpop.f32.mrf.mxu0
      %1955 = vmatprep.mubr.bf16.mxu0 %v1848
      %1956 = vmatmul.mubr.bf16.gmra.mxu0 %v1847
      %v1957 = vpop.f32.mrf.mxu0
      %v1958 = vadd.f32 0.0, %v1957
      %v1959 = vpop.f32.mrf.mxu0
      %v1960 = vpop.f32.mrf.mxu0
      %v1961 = vadd.f32 0.0, %v1960
      %v1962 = vpop.f32.mrf.mxu0
      %1963 = vmatprep.mubr.bf16.mxu0 %v1850
      %1964 = vmatmul.mubr.bf16.gmra.mxu0 %v1849
      %v1965 = vpop.f32.mrf.mxu0
      %v1966 = vadd.f32 0.0, %v1965
      %v1967 = vpop.f32.mrf.mxu0
      %v1968 = vpop.f32.mrf.mxu0
      %v1969 = vadd.f32 0.0, %v1968
      %v1970 = vpop.f32.mrf.mxu0
      %1971 = vmatprep.mubr.bf16.mxu0 %v1852
      %1972 = vmatmul.mubr.bf16.gmra.mxu0 %v1851
      %v1973 = vpop.f32.mrf.mxu0
      %v1974 = vadd.f32 0.0, %v1973
      %v1975 = vpop.f32.mrf.mxu0
      %v1976 = vpop.f32.mrf.mxu0
      %v1977 = vadd.f32 0.0, %v1976
      %v1978 = vpop.f32.mrf.mxu0
      %1979 = vmatprep.mubr.bf16.mxu0 %v1854
      %1980 = vmatmul.mubr.bf16.gmra.mxu0 %v1853
      %v1981 = vpop.f32.mrf.mxu0
      %v1982 = vadd.f32 0.0, %v1981
      %v1983 = vpop.f32.mrf.mxu0
      %v1984 = vpop.f32.mrf.mxu0
      %v1985 = vadd.f32 0.0, %v1984
      %v1986 = vpop.f32.mrf.mxu0
      %1987 = vmatprep.mubr.bf16.mxu0 %v1856
      %1988 = vmatmul.mubr.bf16.gmra.mxu0 %v1855
      %v1989 = vpop.f32.mrf.mxu0
      %v1990 = vadd.f32 0.0, %v1989
      %v1991 = vpop.f32.mrf.mxu0
      %v1992 = vpop.f32.mrf.mxu0
      %v1993 = vadd.f32 0.0, %v1992
      %v1994 = vpop.f32.mrf.mxu0
      %1995 = vmatprep.mubr.bf16.mxu0 %v1858
      %1996 = vmatmul.mubr.bf16.gmra.mxu0 %v1857
      %v1997 = vpop.f32.mrf.mxu0
      %v1998 = vadd.f32 0.0, %v1997
      %v1999 = vpop.f32.mrf.mxu0
      %v2000 = vpop.f32.mrf.mxu0
      %v2001 = vadd.f32 0.0, %v2000
      %v2002 = vpop.f32.mrf.mxu0
      %2003 = vdwg.mxu0
      %v2004 = vrcp.pop %v1797
      %v2005 = vrcp.pop %v1800
      %v2006 = vrcp.pop %v1803
      %v2007 = vrcp.pop %v1806
      %v2008 = vrcp.pop %v1809
      %v2009 = vrcp.pop %v1812
      %v2010 = vrcp.pop %v1815
      %v2011 = vrcp.pop %v1818
      %v2012 = vrcp.pop %v1821
      %v2013 = vrcp.pop %v1824
      %v2014 = vrcp.pop %v1827
      %v2015 = vrcp.pop %v1830
      %v2016 = vrcp.pop %v1833
      %v2017 = vrcp.pop %v1836
      %v2018 = vrcp.pop %v1839
      %v2019 = vrcp.pop %v1842
      %v2020 = vmul.f32 %v1942, %v2004
      %v2021 = vmul.f32 %v1945, %v2005
      %v2022 = vmul.f32 %v1950, %v2006
      %v2023 = vmul.f32 %v1953, %v2007
      %v2024 = vmul.f32 %v1958, %v2008
      %v2025 = vmul.f32 %v1961, %v2009
      %v2026 = vmul.f32 %v1966, %v2010
      %v2027 = vmul.f32 %v1969, %v2011
      %v2028 = vmul.f32 %v1974, %v2012
      %v2029 = vmul.f32 %v1977, %v2013
      %v2030 = vmul.f32 %v1982, %v2014
      %v2031 = vmul.f32 %v1985, %v2015
      %v2032 = vmul.f32 %v1990, %v2016
      %v2033 = vmul.f32 %v1993, %v2017
      %v2034 = vmul.f32 %v1998, %v2018
      %v2035 = vmul.f32 %v2001, %v2019
      %2052 = vrot.lane.b32.xlu0 %v2020, 16
      %v2053 = vpop.permute.xlu0 %2052
      %2054 = vrot.lane.b32.xlu0 %v2021, 16
      %v2055 = vpop.permute.xlu0 %2054
      %2056 = vrot.lane.b32.xlu0 %v2022, 16
      %v2057 = vpop.permute.xlu0 %2056
      %2058 = vrot.lane.b32.xlu0 %v2023, 16
      %v2059 = vpop.permute.xlu0 %2058
      %2060 = vrot.lane.b32.xlu0 %v2024, 16
      %v2061 = vpop.permute.xlu0 %2060
      %2062 = vrot.lane.b32.xlu0 %v2025, 16
      %v2063 = vpop.permute.xlu0 %2062
      %2064 = vrot.lane.b32.xlu0 %v2026, 16
      %v2065 = vpop.permute.xlu0 %2064
      %2066 = vrot.lane.b32.xlu0 %v2027, 16
      %v2067 = vpop.permute.xlu0 %2066
      %2068 = vrot.lane.b32.xlu0 %v2028, 16
      %v2069 = vpop.permute.xlu0 %2068
      %2070 = vrot.lane.b32.xlu0 %v2029, 16
      %v2071 = vpop.permute.xlu0 %2070
      %2072 = vrot.lane.b32.xlu0 %v2030, 16
      %v2073 = vpop.permute.xlu0 %2072
      %2074 = vrot.lane.b32.xlu0 %v2031, 16
      %v2075 = vpop.permute.xlu0 %2074
      %2076 = vrot.lane.b32.xlu0 %v2032, 16
      %v2077 = vpop.permute.xlu0 %2076
      %2078 = vrot.lane.b32.xlu0 %v2033, 16
      %v2079 = vpop.permute.xlu0 %2078
      %2080 = vrot.lane.b32.xlu0 %v2034, 16
      %v2081 = vpop.permute.xlu0 %2080
      %2082 = vrot.lane.b32.xlu0 %v2035, 16
      %v2083 = vpop.permute.xlu0 %2082
      %v2100 = vsel %vm607, %v1242, %v2053
      %v2101 = vsel %vm607, %v1243, %v2055
      %v2102 = vsel %vm607, %v1244, %v2057
      %v2103 = vsel %vm607, %v1245, %v2059
      %v2104 = vsel %vm607, %v1246, %v2061
      %v2105 = vsel %vm607, %v1247, %v2063
      %v2106 = vsel %vm607, %v1248, %v2065
      %v2107 = vsel %vm607, %v1249, %v2067
      %v2108 = vsel %vm607, %v1250, %v2069
      %v2109 = vsel %vm607, %v1251, %v2071
      %v2110 = vsel %vm607, %v1252, %v2073
      %v2111 = vsel %vm607, %v1253, %v2075
      %v2112 = vsel %vm607, %v1254, %v2077
      %v2113 = vsel %vm607, %v1255, %v2079
      %v2114 = vsel %vm607, %v1256, %v2081
      %v2115 = vsel %vm607, %v1257, %v2083
      %v2116 = vpack.c.bf16 %v2101, %v2100
      %v2117 = vpack.c.bf16 %v2103, %v2102
      %v2118 = vpack.c.bf16 %v2105, %v2104
      %v2119 = vpack.c.bf16 %v2107, %v2106
      %v2120 = vpack.c.bf16 %v2109, %v2108
      %v2121 = vpack.c.bf16 %v2111, %v2110
      %v2122 = vpack.c.bf16 %v2113, %v2112
      %v2123 = vpack.c.bf16 %v2115, %v2114
      %v2132 = vunpack.c.l.b16 %v2116
      %v2133 = vunpack.c.h.b16 %v2116
      %v2134 = vunpack.c.l.b16 %v2117
      %v2135 = vunpack.c.h.b16 %v2117
      %v2136 = vunpack.c.l.b16 %v2118
      %v2137 = vunpack.c.h.b16 %v2118
      %v2138 = vunpack.c.l.b16 %v2119
      %v2139 = vunpack.c.h.b16 %v2119
      %v2140 = vunpack.c.l.b16 %v2120
      %v2141 = vunpack.c.h.b16 %v2120
      %v2142 = vunpack.c.l.b16 %v2121
      %v2143 = vunpack.c.h.b16 %v2121
      %v2144 = vunpack.c.l.b16 %v2122
      %v2145 = vunpack.c.h.b16 %v2122
      %v2146 = vunpack.c.l.b16 %v2123
      %v2147 = vunpack.c.h.b16 %v2123
      %v2148 = vpack.c.b16 %v2132, %v2132
      %v2149 = vpack.c.b16 %v2133, %v2133
      %v2150 = vpack.c.b16 %v2134, %v2134
      %v2151 = vpack.c.b16 %v2135, %v2135
      %v2152 = vpack.c.b16 %v2136, %v2136
      %v2153 = vpack.c.b16 %v2137, %v2137
      %v2154 = vpack.c.b16 %v2138, %v2138
      %v2155 = vpack.c.b16 %v2139, %v2139
      %v2156 = vpack.c.b16 %v2140, %v2140
      %v2157 = vpack.c.b16 %v2141, %v2141
      %v2158 = vpack.c.b16 %v2142, %v2142
      %v2159 = vpack.c.b16 %v2143, %v2143
      %v2160 = vpack.c.b16 %v2144, %v2144
      %v2161 = vpack.c.b16 %v2145, %v2145
      %v2162 = vpack.c.b16 %v2146, %v2146
      %v2163 = vpack.c.b16 %v2147, %v2147
      %vm2180 = vcmask 257024
      %2181 = vst.msk [vmem:[%s228] sm:$0xf] %vm2180, %v2148
      %2182 = vst.msk [vmem:[%s228 + $0x4] sm:$0xf] %vm2180, %v2149
      %2183 = vst.msk [vmem:[%s228 + $0x8] sm:$0xf] %vm2180, %v2150
      %2184 = vst.msk [vmem:[%s228 + $0xc] sm:$0xf] %vm2180, %v2151
      %2185 = vst.msk [vmem:[%s228 + $0x10] sm:$0xf] %vm2180, %v2152
      %2186 = vst.msk [vmem:[%s228 + $0x14] sm:$0xf] %vm2180, %v2153
      %2187 = vst.msk [vmem:[%s228 + $0x18] sm:$0xf] %vm2180, %v2154
      %2188 = vst.msk [vmem:[%s228 + $0x1c] sm:$0xf] %vm2180, %v2155
      %2189 = vst.msk [vmem:[%s228 + $0x20] sm:$0xf] %vm2180, %v2156
      %2190 = vst.msk [vmem:[%s228 + $0x24] sm:$0xf] %vm2180, %v2157
      %2191 = vst.msk [vmem:[%s228 + $0x28] sm:$0xf] %vm2180, %v2158
      %2192 = vst.msk [vmem:[%s228 + $0x2c] sm:$0xf] %vm2180, %v2159
      %2193 = vst.msk [vmem:[%s228 + $0x30] sm:$0xf] %vm2180, %v2160
      %2194 = vst.msk [vmem:[%s228 + $0x34] sm:$0xf] %vm2180, %v2161
      %2195 = vst.msk [vmem:[%s228 + $0x38] sm:$0xf] %vm2180, %v2162
      %2196 = vst.msk [vmem:[%s228 + $0x3c] sm:$0xf] %vm2180, %v2163
      %s2197 = smul.u32 16, %s19
      %p2198 = scmp.lt.s32.totalorder %s18, 1
      %s2199 = scalar_select %p2198, %s18, 1
      %p2200 = scmp.lt.s32.totalorder %s2197, 31
      %s2201 = scalar_select %p2200, %s2197, 31
      %s2202 = smul.addr %s2199, 32
      %s2203 = sadd.s32 %s2201, %s2202
      %s2204 = smul.addr %s2203, 4
      %s2205 = scalar_lea.vmem %s3, %s2204
      // Predicated region
      $region33: #{bottle_stack_forward.12} parent=31 // pred_check
        %p2206 = pneg %p121
      $region34: #{bottle_stack_forward.12} parent=31 // pred_check_branch
        %2208 = sbr.rel (%p2206) target = $region36
      $region35: #{bottle_stack_forward.12} parent=31 // pred_region
        %s2209 = smul.u32 16, %s19
      $region36: #{bottle_stack_forward.12} parent=31 // pred_fallthru
        _
    $region32: #{bottle_stack_forward.12} parent=5 // pred_fallthru
      _
    %p2210 = scmp.le.s32.totalorder 2, %s9
    // Predicated region
    $region37: #{bottle_stack_forward.12} parent=5 // pred_check
      %p2211 = pneg %p2210
    $region38: #{bottle_stack_forward.12} parent=5 // pred_check_branch
      %2213 = sbr.rel (%p2211) target = $region40
    $region39: #{bottle_stack_forward.12} parent=5 // pred_region
      %s2214 = ssub.s32 %s9, 2
      // Predicated region
      $region41: #{bottle_stack_forward.12} parent=39 // pred_check
        %p2215 = pneg %p127
      $region42: #{bottle_stack_forward.12} parent=39 // pred_check_branch
        %2217 = sbr.rel (%p2215) target = $region44
      $region43: #{bottle_stack_forward.12} parent=39 // pred_region
        %s2218 = smul.u32 16, %s21
        %p2219 = scmp.lt.s32.totalorder %s20, 1
        %s2220 = scalar_select %p2219, %s20, 1
        %p2221 = scmp.lt.s32.totalorder %s2218, 31
        %s2222 = scalar_select %p2221, %s2218, 31
        %s2223 = smul.addr %s2220, 32
        %s2224 = sadd.s32 %s2222, %s2223
        %s2225 = smul.addr %s2224, 4
        %s2226 = scalar_lea.vmem %s3, %s2225
      $region44: #{bottle_stack_forward.12} parent=39 // pred_fallthru
        _
    $region40: #{bottle_stack_forward.12} parent=5 // pred_fallthru
      _
  $region6: #{bottle_stack_forward.12} parent=0 // loop_footer
    %s13 = sadd.s32 1, %s9
  $region7: #{bottle_stack_forward.12} parent=0 // loop_footer_branch
    %8 = sbr.rel target = $region3
  $region8: #{bottle_stack_forward.12} parent=0 // loop_exit
    _

// kernel: bottle_stack_forward.13
$region0: #{bottle_stack_forward.13}
  #allocation0 [shape = 'u32[]', space=smem, size = 0x4, offset = 0x4, fixed_abs, tag = 'smem constant byte address 0x4 - core index']
  #allocation1 [shape = 'u32[144,128]{1,0:T(1,128)}', space=vmem, size = 0x12000, scoped, tag = 'internal scratch']
  %s0 = inlined_call_operand.vmem [shape: bf16[16,2,8,64], index: 0, kind: input, shape index: {}]
  %s1 = inlined_call_operand.vmem [shape: f32[1,32], index: 1, kind: input, shape index: {}]
  %s2 = inlined_call_operand.vmem [shape: f32[1,32], index: 2, kind: input, shape index: {}]
  %s3 = inlined_call_operand.vmem [shape: bf16[32,32], index: 3, kind: input, shape index: {}]
  %s4 = inlined_call_operand.vmem [shape: f32[1,32], index: 4, kind: input, shape index: {}]
  %s5 = inlined_call_operand.vmem [shape: f32[1,32], index: 5, kind: input, shape index: {}]
  %s6 = inlined_call_operand.vmem [shape: bf16[16,8,32], index: 6, kind: input, shape index: {}]
  %s7 = inlined_call_operand.vmem [shape: bf16[16,8,32], index: 7, kind: output, shape index: {}]
  %s8 = sld [smem:[#allocation0]]
  $region61: #{bottle_stack_forward.13} parent=0
    _
  %s10 = ssub.s32 1, %s8
  %s11 = scalar_select 0, %s10, %s8
  loop: start=0, step=1, limit=18
  $region2: #{bottle_stack_forward.13} parent=0 // loop_pre_header
    _
  $region3: #{bottle_stack_forward.13} parent=0 // loop_header
    %s13 = sphi 0, %s17
    %p14 = scmp.ge.s32.totalorder %s13, 18
    %s23 = sphi 0, %s25
    %s26 = sphi 0, %s23
    %s27 = sphi 0, %s26
    %s43 = sphi 0, %s27
    %s47 = sphi 0, %s47
    %s49 = sphi 0, %s47
    %s50 = sphi 0, %s49
    %s64 = sphi 0, %s50
    %s68 = sphi 0, %s68
    %s70 = sphi 0, %s68
    %s71 = sphi 0, %s70
    %s85 = sphi 0, %s71
    %s89 = sphi 0, %s89
    %s91 = sphi 0, %s89
    %s92 = sphi 0, %s91
    %s106 = sphi 0, %s92
    %s110 = sphi 0, %s110
    %s112 = sphi 0, %s110
    %s113 = sphi 0, %s112
    %s127 = sphi 0, %s113
    %s131 = sphi 0, %s131
    %s133 = sphi 0, %s131
    %s134 = sphi 0, %s133
    %s148 = sphi 0, %s134
    %s154 = sphi 0, %s156
    %s157 = sphi 0, %s154
    %s158 = sphi 0, %s157
    %s174 = sphi 0, %s158
    %s180 = sphi 0, %s182
    %s183 = sphi 0, %s180
    %s184 = sphi 0, %s183
    %s200 = sphi 0, %s184
  $region4: #{bottle_stack_forward.13} parent=0 // loop_header_branch
    %16 = sbr.rel (%p14) target = $region8
  $region5: #{bottle_stack_forward.13} parent=0 // loop_body
    %s18 = ssub.s32 %s13, 1
    %s19 = ssub.s32 %s13, 2
    %s20 = sadd.s32 %s13, 1
    %s21 = ssub.s32 %s13, %s20
    %p22 = scmp.eq.s32.totalorder %s21, 0
    %s24 = sadd.s32 %s23, 1
    %s25 = scalar_select %p22, %s23, %s24
    %p28 = pneg %p22
    %p29 = scmp.eq.s32.totalorder %s13, 15
    %p30 = por %p28, %p29
    %p31 = scmp.ne.s32.totalorder %s23, %s26
    %p32 = scmp.eq.s32.totalorder %s13, 0
    %p33 = por %p31, %p32
    %p34 = scmp.ne.s32.totalorder %s23, %s26
    %p35 = scmp.eq.s32.totalorder %s18, 15
    %p36 = por %p34, %p35
    %p37 = scmp.ne.s32.totalorder %s26, %s27
    %p38 = scmp.eq.s32.totalorder %s18, 0
    %p39 = por %p37, %p38
    %p40 = scmp.ne.s32.totalorder %s26, %s27
    %p41 = scmp.eq.s32.totalorder %s19, 15
    %p42 = por %p40, %p41
    %p44 = scmp.ne.s32.totalorder %s27, %s43
    %p45 = scmp.eq.s32.totalorder %s19, 0
    %p46 = por %p44, %p45
    %s48 = sadd.s32 %s47, 1
    %p51 = scmp.eq.s32.totalorder %s13, 15
    %p52 = scmp.ne.s32.totalorder %s47, %s49
    %p53 = scmp.eq.s32.totalorder %s13, 0
    %p54 = por %p52, %p53
    %p55 = scmp.ne.s32.totalorder %s47, %s49
    %p56 = scmp.eq.s32.totalorder %s18, 15
    %p57 = por %p55, %p56
    %p58 = scmp.ne.s32.totalorder %s49, %s50
    %p59 = scmp.eq.s32.totalorder %s18, 0
    %p60 = por %p58, %p59
    %p61 = scmp.ne.s32.totalorder %s49, %s50
    %p62 = scmp.eq.s32.totalorder %s19, 15
    %p63 = por %p61, %p62
    %p65 = scmp.ne.s32.totalorder %s50, %s64
    %p66 = scmp.eq.s32.totalorder %s19, 0
    %p67 = por %p65, %p66
    %s69 = sadd.s32 %s68, 1
    %p72 = scmp.eq.s32.totalorder %s13, 15
    %p73 = scmp.ne.s32.totalorder %s68, %s70
    %p74 = scmp.eq.s32.totalorder %s13, 0
    %p75 = por %p73, %p74
    %p76 = scmp.ne.s32.totalorder %s68, %s70
    %p77 = scmp.eq.s32.totalorder %s18, 15
    %p78 = por %p76, %p77
    %p79 = scmp.ne.s32.totalorder %s70, %s71
    %p80 = scmp.eq.s32.totalorder %s18, 0
    %p81 = por %p79, %p80
    %p82 = scmp.ne.s32.totalorder %s70, %s71
    %p83 = scmp.eq.s32.totalorder %s19, 15
    %p84 = por %p82, %p83
    %p86 = scmp.ne.s32.totalorder %s71, %s85
    %p87 = scmp.eq.s32.totalorder %s19, 0
    %p88 = por %p86, %p87
    %s90 = sadd.s32 %s89, 1
    %p93 = scmp.eq.s32.totalorder %s13, 15
    %p94 = scmp.ne.s32.totalorder %s89, %s91
    %p95 = scmp.eq.s32.totalorder %s13, 0
    %p96 = por %p94, %p95
    %p97 = scmp.ne.s32.totalorder %s89, %s91
    %p98 = scmp.eq.s32.totalorder %s18, 15
    %p99 = por %p97, %p98
    %p100 = scmp.ne.s32.totalorder %s91, %s92
    %p101 = scmp.eq.s32.totalorder %s18, 0
    %p102 = por %p100, %p101
    %p103 = scmp.ne.s32.totalorder %s91, %s92
    %p104 = scmp.eq.s32.totalorder %s19, 15
    %p105 = por %p103, %p104
    %p107 = scmp.ne.s32.totalorder %s92, %s106
    %p108 = scmp.eq.s32.totalorder %s19, 0
    %p109 = por %p107, %p108
    %s111 = sadd.s32 %s110, 1
    %p114 = scmp.eq.s32.totalorder %s13, 15
    %p115 = scmp.ne.s32.totalorder %s110, %s112
    %p116 = scmp.eq.s32.totalorder %s13, 0
    %p117 = por %p115, %p116
    %p118 = scmp.ne.s32.totalorder %s110, %s112
    %p119 = scmp.eq.s32.totalorder %s18, 15
    %p120 = por %p118, %p119
    %p121 = scmp.ne.s32.totalorder %s112, %s113
    %p122 = scmp.eq.s32.totalorder %s18, 0
    %p123 = por %p121, %p122
    %p124 = scmp.ne.s32.totalorder %s112, %s113
    %p125 = scmp.eq.s32.totalorder %s19, 15
    %p126 = por %p124, %p125
    %p128 = scmp.ne.s32.totalorder %s113, %s127
    %p129 = scmp.eq.s32.totalorder %s19, 0
    %p130 = por %p128, %p129
    %s132 = sadd.s32 %s131, 1
    %p135 = scmp.eq.s32.totalorder %s13, 15
    %p136 = scmp.ne.s32.totalorder %s131, %s133
    %p137 = scmp.eq.s32.totalorder %s13, 0
    %p138 = por %p136, %p137
    %p139 = scmp.ne.s32.totalorder %s131, %s133
    %p140 = scmp.eq.s32.totalorder %s18, 15
    %p141 = por %p139, %p140
    %p142 = scmp.ne.s32.totalorder %s133, %s134
    %p143 = scmp.eq.s32.totalorder %s18, 0
    %p144 = por %p142, %p143
    %p145 = scmp.ne.s32.totalorder %s133, %s134
    %p146 = scmp.eq.s32.totalorder %s19, 15
    %p147 = por %p145, %p146
    %p149 = scmp.ne.s32.totalorder %s134, %s148
    %p150 = scmp.eq.s32.totalorder %s19, 0
    %p151 = por %p149, %p150
    %s152 = ssub.s32 %s13, %s20
    %p153 = scmp.eq.s32.totalorder %s152, 0
    %s155 = sadd.s32 %s154, 1
    %s156 = scalar_select %p153, %s154, %s155
    %p159 = pneg %p153
    %p160 = scmp.eq.s32.totalorder %s13, 15
    %p161 = por %p159, %p160
    %p162 = scmp.ne.s32.totalorder %s154, %s157
    %p163 = scmp.eq.s32.totalorder %s13, 0
    %p164 = por %p162, %p163
    %p165 = scmp.ne.s32.totalorder %s154, %s157
    %p166 = scmp.eq.s32.totalorder %s18, 15
    %p167 = por %p165, %p166
    %p168 = scmp.ne.s32.totalorder %s157, %s158
    %p169 = scmp.eq.s32.totalorder %s18, 0
    %p170 = por %p168, %p169
    %p171 = scmp.ne.s32.totalorder %s157, %s158
    %p172 = scmp.eq.s32.totalorder %s19, 15
    %p173 = por %p171, %p172
    %p175 = scmp.ne.s32.totalorder %s158, %s174
    %p176 = scmp.eq.s32.totalorder %s19, 0
    %p177 = por %p175, %p176
    %s178 = ssub.s32 %s13, %s20
    %p179 = scmp.eq.s32.totalorder %s178, 0
    %s181 = sadd.s32 %s180, 1
    %s182 = scalar_select %p179, %s180, %s181
    %p185 = pneg %p179
    %p186 = scmp.eq.s32.totalorder %s13, 15
    %p187 = por %p185, %p186
    %p188 = scmp.ne.s32.totalorder %s180, %s183
    %p189 = scmp.eq.s32.totalorder %s13, 0
    %p190 = por %p188, %p189
    %p191 = scmp.ne.s32.totalorder %s180, %s183
    %p192 = scmp.eq.s32.totalorder %s18, 15
    %p193 = por %p191, %p192
    %p194 = scmp.ne.s32.totalorder %s183, %s184
    %p195 = scmp.eq.s32.totalorder %s18, 0
    %p196 = por %p194, %p195
    %p197 = scmp.ne.s32.totalorder %s183, %s184
    %p198 = scmp.eq.s32.totalorder %s19, 15
    %p199 = por %p197, %p198
    %p201 = scmp.ne.s32.totalorder %s184, %s200
    %p202 = scmp.eq.s32.totalorder %s19, 0
    %p203 = por %p201, %p202
    %p204 = scmp.le.s32.totalorder 1, %s13
    %p205 = scmp.lt.s32.totalorder %s13, 17
    %p206 = pnand %p204, %p205
    %p207 = pneg %p206
    // Predicated region
    $region9: #{bottle_stack_forward.13} parent=5 // pred_check
      _
    $region10: #{bottle_stack_forward.13} parent=5 // pred_check_branch
      %209 = sbr.rel (%p206) target = $region12
    $region11: #{bottle_stack_forward.13} parent=5 // pred_region
      %s210 = ssub.s32 %s13, 1
      // Predicated region
      $region13: #{bottle_stack_forward.13} parent=11 // pred_check
        %p211 = pneg %p60
      $region14: #{bottle_stack_forward.13} parent=11 // pred_check_branch
        %213 = sbr.rel (%p211) target = $region16
      $region15: #{bottle_stack_forward.13} parent=11 // pred_region
        _
      $region16: #{bottle_stack_forward.13} parent=11 // pred_fallthru
        _
      // Predicated region
      $region17: #{bottle_stack_forward.13} parent=11 // pred_check
        %p214 = pneg %p81
      $region18: #{bottle_stack_forward.13} parent=11 // pred_check_branch
        %216 = sbr.rel (%p214) target = $region20
      $region19: #{bottle_stack_forward.13} parent=11 // pred_region
        _
      $region20: #{bottle_stack_forward.13} parent=11 // pred_fallthru
        _
      // Predicated region
      $region21: #{bottle_stack_forward.13} parent=11 // pred_check
        %p217 = pneg %p102
      $region22: #{bottle_stack_forward.13} parent=11 // pred_check_branch
        %219 = sbr.rel (%p217) target = $region24
      $region23: #{bottle_stack_forward.13} parent=11 // pred_region
        _
      $region24: #{bottle_stack_forward.13} parent=11 // pred_fallthru
        _
      // Predicated region
      $region25: #{bottle_stack_forward.13} parent=11 // pred_check
        %p220 = pneg %p123
      $region26: #{bottle_stack_forward.13} parent=11 // pred_check_branch
        %222 = sbr.rel (%p220) target = $region28
      $region27: #{bottle_stack_forward.13} parent=11 // pred_region
        _
      $region28: #{bottle_stack_forward.13} parent=11 // pred_fallthru
        _
      // Predicated region
      $region29: #{bottle_stack_forward.13} parent=11 // pred_check
        %p223 = pneg %p144
      $region30: #{bottle_stack_forward.13} parent=11 // pred_check_branch
        %225 = sbr.rel (%p223) target = $region32
      $region31: #{bottle_stack_forward.13} parent=11 // pred_region
        _
      $region32: #{bottle_stack_forward.13} parent=11 // pred_fallthru
        _
    $region12: #{bottle_stack_forward.13} parent=5 // pred_fallthru
      _
    %p226 = scmp.lt.s32.totalorder %s13, 16
    // Predicated region
    $region33: #{bottle_stack_forward.13} parent=5 // pred_check
      %p227 = pneg %p226
    $region34: #{bottle_stack_forward.13} parent=5 // pred_check_branch
      %229 = sbr.rel (%p227) target = $region36
    $region35: #{bottle_stack_forward.13} parent=5 // pred_region
      // Predicated region
      $region37: #{bottle_stack_forward.13} parent=35 // pred_check
        %p230 = pneg %p33
      $region38: #{bottle_stack_forward.13} parent=35 // pred_check_branch
        %232 = sbr.rel (%p230) target = $region40
      $region39: #{bottle_stack_forward.13} parent=35 // pred_region
        %p233 = scmp.lt.s32.totalorder %s13, 15
        %s234 = scalar_select %p233, %s13, 15
        %s235 = smul.addr %s234, 2
        %s236 = smul.addr %s235, 4
        %s237 = scalar_lea.vmem %s0, %s236
      $region40: #{bottle_stack_forward.13} parent=35 // pred_fallthru
        _
      // Predicated region
      $region41: #{bottle_stack_forward.13} parent=35 // pred_check
        %p238 = pneg %p164
      $region42: #{bottle_stack_forward.13} parent=35 // pred_check_branch
        %240 = sbr.rel (%p238) target = $region44
      $region43: #{bottle_stack_forward.13} parent=35 // pred_region
        %p241 = scmp.lt.s32.totalorder %s13, 15
        %s242 = scalar_select %p241, %s13, 15
        %s243 = smul.addr %s242, 4
        %s244 = scalar_lea.vmem %s6, %s243
      $region44: #{bottle_stack_forward.13} parent=35 // pred_fallthru
        _
    $region36: #{bottle_stack_forward.13} parent=5 // pred_fallthru
      _
    %p245 = scmp.le.s32.totalorder 1, %s13
    %p246 = scmp.lt.s32.totalorder %s13, 17
    %p247 = pnand %p245, %p246
    %p248 = pneg %p247
    // Predicated region
    $region45: #{bottle_stack_forward.13} parent=5 // pred_check
      _
    $region46: #{bottle_stack_forward.13} parent=5 // pred_check_branch
      %250 = sbr.rel (%p247) target = $region48
    $region47: #{bottle_stack_forward.13} parent=5 // pred_region
      %s251 = ssub.s32 %s13, 1
      %p252 = scmp.lt.s32.totalorder %s18, 15
      %s253 = scalar_select %p252, %s18, 15
      %s254 = smul.addr %s253, 2
      %s255 = smul.addr %s254, 4
      %s256 = scalar_lea.vmem %s0, %s255
      %p257 = pneg %p39
      %p258 = pneg %p36
      %p259 = pneg %p60
      %p260 = pneg %p57
      %p261 = pneg %p81
      %p262 = pneg %p78
      %p263 = pneg %p102
      %p264 = pneg %p99
      %p265 = pneg %p123
      %p266 = pneg %p120
      %p267 = pneg %p144
      %p268 = pneg %p141
      %p269 = scmp.lt.s32.totalorder %s18, 15
      %s270 = scalar_select %p269, %s18, 15
      %s271 = smul.addr %s270, 4
      %s272 = scalar_lea.vmem %s6, %s271
      %p273 = pneg %p170
      %p274 = pneg %p167
      %p275 = pneg %p196
      %p276 = pneg %p193
      %p277 = scmp.lt.s32.totalorder %s18, 15
      %s278 = scalar_select %p277, %s18, 15
      %s279 = smul.addr %s278, 4
      %s280 = scalar_lea.vmem %s7, %s279
      %p281 = scmp.lt.s32.totalorder %s18, 15
      %s282 = scalar_select %p281, %s18, 15
      %s283 = smul.addr %s282, 2
      %s284 = smul.addr %s283, 4
      %s285 = scalar_lea.vmem %s0, %s284
      %p286 = scmp.lt.s32.totalorder %s18, 15
      %s287 = scalar_select %p286, %s18, 15
      %s288 = smul.addr %s287, 4
      %s289 = scalar_lea.vmem %s6, %s288
      %p290 = scmp.lt.s32.totalorder %s18, 15
      %s291 = scalar_select %p290, %s18, 15
      %s292 = smul.addr %s291, 4
      %s293 = scalar_lea.vmem %s7, %s292
      %v295 = vld [vmem:[%s285] sm:$0xf]
      %v296 = vld [vmem:[%s285 + $0x4] sm:$0xf]
      %v297 = vunpack.c.l.bf16 %v295
      %v298 = vunpack.c.l.bf16 %v296
      %v299 = vadd.f32 %v297, %v298
      %301 = vrot.lane.b32.xlu0 %v299, 96
      %v302 = vpop.permute.xlu0 %301
      %v304 = vadd.f32 %v299, %v302
      %v305 = vmul.f32 %v304, 0.25
      %v306 = vld [vmem:[%s1] sm:$0x1]
      %v308 = vlaneseq
      %v309 = vshrl.u32 %v308, 7
      %v310 = vsub.s32 0, %v309
      %v311 = vrot.slane %v306, %v310
      %v313 = vmul.f32 %v305, %v311
      %v314 = vld [vmem:[%s2] sm:$0x1]
      %v316 = vlaneseq
      %v317 = vshrl.u32 %v316, 7
      %v318 = vsub.s32 0, %v317
      %v319 = vrot.slane %v314, %v318
      %v321 = vadd.f32 %v313, %v319
      %v322 = vmax.f32 %v321, 0.0
      %v323 = vpack.c.bf16 %v322, %v322
      %v324 = vld [vmem:[%s3] sm:$0xf]
      %v325 = vld [vmem:[%s3 + $0x4] sm:$0xf]
      %v326 = vld [vmem:[%s3 + $0x8] sm:$0xf]
      %v327 = vld [vmem:[%s3 + $0xc] sm:$0xf]
      %v332 = vunpack.c.l.b16 %v324
      %v333 = vunpack.c.l.b16 %v325
      %v334 = vunpack.c.l.b16 %v326
      %v335 = vunpack.c.l.b16 %v327
      %v336 = vpack.c.b16 %v333, %v332
      %v337 = vpack.c.b16 %v335, %v334
      %vm340 = vcmask 261120
      %v342 = vsel %vm340, %v323, 0
      %344 = vmatprep.subr.bf16.mxu0 0
      %345 = vmatpush1.bf16.msra.mxu0 0
      %346 = vmatprep.subr.bf16.mxu0 0
      %347 = vmatpush1.bf16.msra.mxu0 0
      %348 = vmatprep.subr.bf16.mxu0 0
      %349 = vmatpush1.bf16.msra.mxu0 0
      %350 = vmatprep.subr.bf16.mxu0 0
      %351 = vmatpush1.bf16.msra.mxu0 0
      %352 = vmatprep.subr.bf16.mxu0 0
      %353 = vmatpush1.bf16.msra.mxu0 0
      %354 = vmatprep.subr.bf16.mxu0 0
      %355 = vmatpush1.bf16.msra.mxu0 0
      %356 = vmatprep.subr.bf16.mxu0 0
      %357 = vmatpush1.bf16.msra.mxu0 %v337
      %358 = vmatprep.subr.bf16.mxu0 0
      %359 = vmatpush1.bf16.msra.mxu0 %v336
      %360 = vmatprep.subr.bf16.mxu0 0
      %361 = vmatpush2.bf16.msra.mxu0 0
      %362 = vmatprep.subr.bf16.mxu0 0
      %363 = vmatpush2.bf16.msra.mxu0 0
      %364 = vmatprep.subr.bf16.mxu0 0
      %365 = vmatpush2.bf16.msra.mxu0 0
      %366 = vmatprep.subr.bf16.mxu0 0
      %367 = vmatpush2.bf16.msra.mxu0 0
      %368 = vmatprep.subr.bf16.mxu0 0
      %369 = vmatpush2.bf16.msra.mxu0 0
      %370 = vmatprep.subr.bf16.mxu0 0
      %371 = vmatpush2.bf16.msra.mxu0 0
      %372 = vmatprep.subr.bf16.mxu0 0
      %373 = vmatpush2.bf16.msra.mxu0 0
      %374 = vmatprep.subr.bf16.mxu0 0
      %375 = vmatpush2.bf16.msra.mxu0 0
      %376 = vmatprep.mubr.bf16.mxu0 0
      %377 = vmatmul.mubr.bf16.gmra.mxu0 %v342
      %v378 = vpop.f32.mrf.mxu0
      %v379 = vadd.f32 0.0, %v378
      %v380 = vpop.f32.mrf.mxu0
      %v381 = vpop.f32.mrf.mxu0
      %v382 = vpop.f32.mrf.mxu0
      %383 = vdwg.mxu0
      %v384 = vld [vmem:[%s4] sm:$0x1]
      %v386 = vlaneseq
      %v387 = vshrl.u32 %v386, 7
      %v388 = vsub.s32 0, %v387
      %v389 = vrot.slane %v384, %v388
      %v391 = vmul.f32 %v379, %v389
      %v392 = vld [vmem:[%s5] sm:$0x1]
      %v394 = vlaneseq
      %v395 = vshrl.u32 %v394, 7
      %v396 = vsub.s32 0, %v395
      %v397 = vrot.slane %v392, %v396
      %v399 = vadd.f32 %v391, %v397
      %v400 = vld [vmem:[%s289] sm:$0xf]
      %v401 = vunpack.c.l.bf16 %v400
      %v402 = vadd.f32 %v399, %v401
      %v403 = vmax.f32 %v402, 0.0
      %v404 = vpack.c.bf16 %v403, %v403
      %vm405 = vcmask 257024
      %406 = vst.msk [vmem:[%s293] sm:$0xf] %vm405, %v404
      %p407 = scmp.lt.s32.totalorder %s18, 15
      %s408 = scalar_select %p407, %s18, 15
      %s409 = smul.addr %s408, 4
      %s410 = scalar_lea.vmem %s7, %s409
      // Predicated region
      $region49: #{bottle_stack_forward.13} parent=47 // pred_check
        %p411 = pneg %p193
      $region50: #{bottle_stack_forward.13} parent=47 // pred_check_branch
        %413 = sbr.rel (%p411) target = $region52
      $region51: #{bottle_stack_forward.13} parent=47 // pred_region
        _
      $region52: #{bottle_stack_forward.13} parent=47 // pred_fallthru
        _
    $region48: #{bottle_stack_forward.13} parent=5 // pred_fallthru
      _
    %p414 = scmp.le.s32.totalorder 2, %s13
    // Predicated region
    $region53: #{bottle_stack_forward.13} parent=5 // pred_check
      %p415 = pneg %p414
    $region54: #{bottle_stack_forward.13} parent=5 // pred_check_branch
      %417 = sbr.rel (%p415) target = $region56
    $region55: #{bottle_stack_forward.13} parent=5 // pred_region
      %s418 = ssub.s32 %s13, 2
      // Predicated region
      $region57: #{bottle_stack_forward.13} parent=55 // pred_check
        %p419 = pneg %p199
      $region58: #{bottle_stack_forward.13} parent=55 // pred_check_branch
        %421 = sbr.rel (%p419) target = $region60
      $region59: #{bottle_stack_forward.13} parent=55 // pred_region
        %p422 = scmp.lt.s32.totalorder %s19, 15
        %s423 = scalar_select %p422, %s19, 15
        %s424 = smul.addr %s423, 4
        %s425 = scalar_lea.vmem %s7, %s424
      $region60: #{bottle_stack_forward.13} parent=55 // pred_fallthru
        _
    $region56: #{bottle_stack_forward.13} parent=5 // pred_fallthru
      _
  $region6: #{bottle_stack_forward.13} parent=0 // loop_footer
    %s17 = sadd.s32 1, %s13
  $region7: #{bottle_stack_forward.13} parent=0 // loop_footer_branch
    %12 = sbr.rel target = $region3
  $region8: #{bottle_stack_forward.13} parent=0 // loop_exit
    _

// kernel: bottle_stack_forward.14
$region0: #{bottle_stack_forward.14}
  #allocation0 [shape = 'u32[]', space=smem, size = 0x4, offset = 0x4, fixed_abs, tag = 'smem constant byte address 0x4 - core index']
  #allocation1 [shape = 'u32[144,128]{1,0:T(1,128)}', space=vmem, size = 0x12000, scoped, tag = 'internal scratch']
  %s0 = inlined_call_operand.vmem [shape: bf16[128,32], index: 0, kind: input, shape index: {}]
  %s1 = inlined_call_operand.vmem [shape: bf16[32,8], index: 1, kind: input, shape index: {}]
  %s2 = inlined_call_operand.vmem [shape: f32[1,8], index: 2, kind: input, shape index: {}]
  %s3 = inlined_call_operand.vmem [shape: f32[1,8], index: 3, kind: input, shape index: {}]
  %s4 = inlined_call_operand.vmem [shape: bf16[8,96], index: 4, kind: input, shape index: {}]
  %s5 = inlined_call_operand.vmem [shape: bf16[128,96], index: 5, kind: output, shape index: {}]
  %s6 = sld [smem:[#allocation0]]
  $region30: #{bottle_stack_forward.14} parent=0
    _
  %s8 = ssub.s32 1, %s6
  %s9 = scalar_select 0, %s8, %s6
  // Predicated region
  $region2: #{bottle_stack_forward.14} parent=0 // pred_check
    _
  $region3: #{bottle_stack_forward.14} parent=0 // pred_check_branch
    %11 = sbr.rel (0) target = $region5
  $region4: #{bottle_stack_forward.14} parent=0 // pred_region
    _
  $region5: #{bottle_stack_forward.14} parent=0 // pred_fallthru
    _
  // Predicated region
  $region6: #{bottle_stack_forward.14} parent=0 // pred_check
    _
  $region7: #{bottle_stack_forward.14} parent=0 // pred_check_branch
    %13 = sbr.rel (0) target = $region9
  $region8: #{bottle_stack_forward.14} parent=0 // pred_region
    _
  $region9: #{bottle_stack_forward.14} parent=0 // pred_fallthru
    _
  // Predicated region
  $region10: #{bottle_stack_forward.14} parent=0 // pred_check
    _
  $region11: #{bottle_stack_forward.14} parent=0 // pred_check_branch
    %15 = sbr.rel (0) target = $region13
  $region12: #{bottle_stack_forward.14} parent=0 // pred_region
    _
  $region13: #{bottle_stack_forward.14} parent=0 // pred_fallthru
    _
  // Predicated region
  $region14: #{bottle_stack_forward.14} parent=0 // pred_check
    _
  $region15: #{bottle_stack_forward.14} parent=0 // pred_check_branch
    %17 = sbr.rel (0) target = $region17
  $region16: #{bottle_stack_forward.14} parent=0 // pred_region
    _
  $region17: #{bottle_stack_forward.14} parent=0 // pred_fallthru
    _
  // Predicated region
  $region18: #{bottle_stack_forward.14} parent=0 // pred_check
    _
  $region19: #{bottle_stack_forward.14} parent=0 // pred_check_branch
    %19 = sbr.rel (0) target = $region21
  $region20: #{bottle_stack_forward.14} parent=0 // pred_region
    _
  $region21: #{bottle_stack_forward.14} parent=0 // pred_fallthru
    _
  %v21 = vld [vmem:[%s0] sm:$0xf]
  %v22 = vld [vmem:[%s0 + $0x4] sm:$0xf]
  %v23 = vld [vmem:[%s0 + $0x8] sm:$0xf]
  %v24 = vld [vmem:[%s0 + $0xc] sm:$0xf]
  %v25 = vld [vmem:[%s0 + $0x10] sm:$0xf]
  %v26 = vld [vmem:[%s0 + $0x14] sm:$0xf]
  %v27 = vld [vmem:[%s0 + $0x18] sm:$0xf]
  %v28 = vld [vmem:[%s0 + $0x1c] sm:$0xf]
  %v29 = vld [vmem:[%s0 + $0x20] sm:$0xf]
  %v30 = vld [vmem:[%s0 + $0x24] sm:$0xf]
  %v31 = vld [vmem:[%s0 + $0x28] sm:$0xf]
  %v32 = vld [vmem:[%s0 + $0x2c] sm:$0xf]
  %v33 = vld [vmem:[%s0 + $0x30] sm:$0xf]
  %v34 = vld [vmem:[%s0 + $0x34] sm:$0xf]
  %v35 = vld [vmem:[%s0 + $0x38] sm:$0xf]
  %v36 = vld [vmem:[%s0 + $0x3c] sm:$0xf]
  %v37 = vld [vmem:[%s1] sm:$0xf]
  %v38 = vld [vmem:[%s1 + $0x4] sm:$0xf]
  %v39 = vld [vmem:[%s1 + $0x8] sm:$0xf]
  %v40 = vld [vmem:[%s1 + $0xc] sm:$0xf]
  %v57 = vunpack.c.l.b16 %v21
  %v58 = vunpack.c.l.b16 %v22
  %v59 = vunpack.c.l.b16 %v23
  %v60 = vunpack.c.l.b16 %v24
  %v61 = vunpack.c.l.b16 %v25
  %v62 = vunpack.c.l.b16 %v26
  %v63 = vunpack.c.l.b16 %v27
  %v64 = vunpack.c.l.b16 %v28
  %v65 = vunpack.c.l.b16 %v29
  %v66 = vunpack.c.l.b16 %v30
  %v67 = vunpack.c.l.b16 %v31
  %v68 = vunpack.c.l.b16 %v32
  %v69 = vunpack.c.l.b16 %v33
  %v70 = vunpack.c.l.b16 %v34
  %v71 = vunpack.c.l.b16 %v35
  %v72 = vunpack.c.l.b16 %v36
  %v73 = vpack.c.b16 %v58, %v57
  %v74 = vpack.c.b16 %v60, %v59
  %v75 = vpack.c.b16 %v62, %v61
  %v76 = vpack.c.b16 %v64, %v63
  %v77 = vpack.c.b16 %v66, %v65
  %v78 = vpack.c.b16 %v68, %v67
  %v79 = vpack.c.b16 %v70, %v69
  %v80 = vpack.c.b16 %v72, %v71
  %v85 = vunpack.c.l.b16 %v37
  %v86 = vunpack.c.l.b16 %v38
  %v87 = vunpack.c.l.b16 %v39
  %v88 = vunpack.c.l.b16 %v40
  %v89 = vpack.c.b16 %v86, %v85
  %v90 = vpack.c.b16 %v88, %v87
  %vm93 = vcmask 261120
  %v95 = vsel %vm93, %v73, 0
  %v98 = vsel %vm93, %v74, 0
  %v101 = vsel %vm93, %v75, 0
  %v104 = vsel %vm93, %v76, 0
  %v107 = vsel %vm93, %v77, 0
  %v110 = vsel %vm93, %v78, 0
  %v113 = vsel %vm93, %v79, 0
  %v116 = vsel %vm93, %v80, 0
  %118 = vmatprep.subr.bf16.mxu0 0
  %119 = vmatpush1.bf16.msra.mxu0 0
  %120 = vmatprep.subr.bf16.mxu0 0
  %121 = vmatpush1.bf16.msra.mxu0 0
  %122 = vmatprep.subr.bf16.mxu0 0
  %123 = vmatpush1.bf16.msra.mxu0 0
  %124 = vmatprep.subr.bf16.mxu0 0
  %125 = vmatpush1.bf16.msra.mxu0 0
  %126 = vmatprep.subr.bf16.mxu0 0
  %127 = vmatpush1.bf16.msra.mxu0 0
  %128 = vmatprep.subr.bf16.mxu0 0
  %129 = vmatpush1.bf16.msra.mxu0 0
  %130 = vmatprep.subr.bf16.mxu0 0
  %131 = vmatpush1.bf16.msra.mxu0 %v90
  %132 = vmatprep.subr.bf16.mxu0 0
  %133 = vmatpush1.bf16.msra.mxu0 %v89
  %134 = vmatprep.subr.bf16.mxu0 0
  %135 = vmatpush2.bf16.msra.mxu0 0
  %136 = vmatprep.subr.bf16.mxu0 0
  %137 = vmatpush2.bf16.msra.mxu0 0
  %138 = vmatprep.subr.bf16.mxu0 0
  %139 = vmatpush2.bf16.msra.mxu0 0
  %140 = vmatprep.subr.bf16.mxu0 0
  %141 = vmatpush2.bf16.msra.mxu0 0
  %142 = vmatprep.subr.bf16.mxu0 0
  %143 = vmatpush2.bf16.msra.mxu0 0
  %144 = vmatprep.subr.bf16.mxu0 0
  %145 = vmatpush2.bf16.msra.mxu0 0
  %146 = vmatprep.subr.bf16.mxu0 0
  %147 = vmatpush2.bf16.msra.mxu0 0
  %148 = vmatprep.subr.bf16.mxu0 0
  %149 = vmatpush2.bf16.msra.mxu0 0
  %150 = vmatprep.mubr.bf16.mxu0 0
  %151 = vmatmul.mubr.bf16.gmra.mxu0 %v95
  %v152 = vpop.f32.mrf.mxu0
  %v153 = vadd.f32 0.0, %v152
  %v154 = vpop.f32.mrf.mxu0
  %v155 = vpop.f32.mrf.mxu0
  %v156 = vadd.f32 0.0, %v155
  %v157 = vpop.f32.mrf.mxu0
  %158 = vmatprep.mubr.bf16.mxu0 0
  %159 = vmatmul.mubr.bf16.gmra.mxu0 %v98
  %v160 = vpop.f32.mrf.mxu0
  %v161 = vadd.f32 0.0, %v160
  %v162 = vpop.f32.mrf.mxu0
  %v163 = vpop.f32.mrf.mxu0
  %v164 = vadd.f32 0.0, %v163
  %v165 = vpop.f32.mrf.mxu0
  %166 = vmatprep.mubr.bf16.mxu0 0
  %167 = vmatmul.mubr.bf16.gmra.mxu0 %v101
  %v168 = vpop.f32.mrf.mxu0
  %v169 = vadd.f32 0.0, %v168
  %v170 = vpop.f32.mrf.mxu0
  %v171 = vpop.f32.mrf.mxu0
  %v172 = vadd.f32 0.0, %v171
  %v173 = vpop.f32.mrf.mxu0
  %174 = vmatprep.mubr.bf16.mxu0 0
  %175 = vmatmul.mubr.bf16.gmra.mxu0 %v104
  %v176 = vpop.f32.mrf.mxu0
  %v177 = vadd.f32 0.0, %v176
  %v178 = vpop.f32.mrf.mxu0
  %v179 = vpop.f32.mrf.mxu0
  %v180 = vadd.f32 0.0, %v179
  %v181 = vpop.f32.mrf.mxu0
  %182 = vmatprep.mubr.bf16.mxu0 0
  %183 = vmatmul.mubr.bf16.gmra.mxu0 %v107
  %v184 = vpop.f32.mrf.mxu0
  %v185 = vadd.f32 0.0, %v184
  %v186 = vpop.f32.mrf.mxu0
  %v187 = vpop.f32.mrf.mxu0
  %v188 = vadd.f32 0.0, %v187
  %v189 = vpop.f32.mrf.mxu0
  %190 = vmatprep.mubr.bf16.mxu0 0
  %191 = vmatmul.mubr.bf16.gmra.mxu0 %v110
  %v192 = vpop.f32.mrf.mxu0
  %v193 = vadd.f32 0.0, %v192
  %v194 = vpop.f32.mrf.mxu0
  %v195 = vpop.f32.mrf.mxu0
  %v196 = vadd.f32 0.0, %v195
  %v197 = vpop.f32.mrf.mxu0
  %198 = vmatprep.mubr.bf16.mxu0 0
  %199 = vmatmul.mubr.bf16.gmra.mxu0 %v113
  %v200 = vpop.f32.mrf.mxu0
  %v201 = vadd.f32 0.0, %v200
  %v202 = vpop.f32.mrf.mxu0
  %v203 = vpop.f32.mrf.mxu0
  %v204 = vadd.f32 0.0, %v203
  %v205 = vpop.f32.mrf.mxu0
  %206 = vmatprep.mubr.bf16.mxu0 0
  %207 = vmatmul.mubr.bf16.gmra.mxu0 %v116
  %v208 = vpop.f32.mrf.mxu0
  %v209 = vadd.f32 0.0, %v208
  %v210 = vpop.f32.mrf.mxu0
  %v211 = vpop.f32.mrf.mxu0
  %v212 = vadd.f32 0.0, %v211
  %v213 = vpop.f32.mrf.mxu0
  %214 = vdwg.mxu0
  %v215 = vld [vmem:[%s2] sm:$0x1]
  %v217 = vlaneseq
  %v218 = vshrl.u32 %v217, 7
  %v219 = vsub.s32 0, %v218
  %v220 = vrot.slane %v215, %v219
  %v222 = vmul.f32 %v153, %v220
  %v223 = vmul.f32 %v156, %v220
  %v224 = vmul.f32 %v161, %v220
  %v225 = vmul.f32 %v164, %v220
  %v226 = vmul.f32 %v169, %v220
  %v227 = vmul.f32 %v172, %v220
  %v228 = vmul.f32 %v177, %v220
  %v229 = vmul.f32 %v180, %v220
  %v230 = vmul.f32 %v185, %v220
  %v231 = vmul.f32 %v188, %v220
  %v232 = vmul.f32 %v193, %v220
  %v233 = vmul.f32 %v196, %v220
  %v234 = vmul.f32 %v201, %v220
  %v235 = vmul.f32 %v204, %v220
  %v236 = vmul.f32 %v209, %v220
  %v237 = vmul.f32 %v212, %v220
  %v238 = vld [vmem:[%s3] sm:$0x1]
  %v240 = vlaneseq
  %v241 = vshrl.u32 %v240, 7
  %v242 = vsub.s32 0, %v241
  %v243 = vrot.slane %v238, %v242
  %v245 = vadd.f32 %v222, %v243
  %v246 = vadd.f32 %v223, %v243
  %v247 = vadd.f32 %v224, %v243
  %v248 = vadd.f32 %v225, %v243
  %v249 = vadd.f32 %v226, %v243
  %v250 = vadd.f32 %v227, %v243
  %v251 = vadd.f32 %v228, %v243
  %v252 = vadd.f32 %v229, %v243
  %v253 = vadd.f32 %v230, %v243
  %v254 = vadd.f32 %v231, %v243
  %v255 = vadd.f32 %v232, %v243
  %v256 = vadd.f32 %v233, %v243
  %v257 = vadd.f32 %v234, %v243
  %v258 = vadd.f32 %v235, %v243
  %v259 = vadd.f32 %v236, %v243
  %v260 = vadd.f32 %v237, %v243
  %v261 = vmax.f32 %v245, 0.0
  %v262 = vmax.f32 %v246, 0.0
  %v263 = vmax.f32 %v247, 0.0
  %v264 = vmax.f32 %v248, 0.0
  %v265 = vmax.f32 %v249, 0.0
  %v266 = vmax.f32 %v250, 0.0
  %v267 = vmax.f32 %v251, 0.0
  %v268 = vmax.f32 %v252, 0.0
  %v269 = vmax.f32 %v253, 0.0
  %v270 = vmax.f32 %v254, 0.0
  %v271 = vmax.f32 %v255, 0.0
  %v272 = vmax.f32 %v256, 0.0
  %v273 = vmax.f32 %v257, 0.0
  %v274 = vmax.f32 %v258, 0.0
  %v275 = vmax.f32 %v259, 0.0
  %v276 = vmax.f32 %v260, 0.0
  %v277 = vpack.c.bf16 %v262, %v261
  %v278 = vpack.c.bf16 %v264, %v263
  %v279 = vpack.c.bf16 %v266, %v265
  %v280 = vpack.c.bf16 %v268, %v267
  %v281 = vpack.c.bf16 %v270, %v269
  %v282 = vpack.c.bf16 %v272, %v271
  %v283 = vpack.c.bf16 %v274, %v273
  %v284 = vpack.c.bf16 %v276, %v275
  %v285 = vld [vmem:[%s4] sm:$0xf]
  %vm286 = vcmask 64512
  %v288 = vsel %vm286, %v277, 0
  %v291 = vsel %vm286, %v278, 0
  %v294 = vsel %vm286, %v279, 0
  %v297 = vsel %vm286, %v280, 0
  %v300 = vsel %vm286, %v281, 0
  %v303 = vsel %vm286, %v282, 0
  %v306 = vsel %vm286, %v283, 0
  %v309 = vsel %vm286, %v284, 0
  %vm311 = vcmask 1043456
  %v313 = vsel %vm311, %v285, 0
  %315 = vmatprep.subr.bf16.mxu0 0
  %316 = vmatpush1.bf16.msra.mxu0 0
  %317 = vmatprep.subr.bf16.mxu0 0
  %318 = vmatpush1.bf16.msra.mxu0 0
  %319 = vmatprep.subr.bf16.mxu0 0
  %320 = vmatpush1.bf16.msra.mxu0 0
  %321 = vmatprep.subr.bf16.mxu0 0
  %322 = vmatpush1.bf16.msra.mxu0 0
  %323 = vmatprep.subr.bf16.mxu0 0
  %324 = vmatpush1.bf16.msra.mxu0 0
  %325 = vmatprep.subr.bf16.mxu0 0
  %326 = vmatpush1.bf16.msra.mxu0 0
  %327 = vmatprep.subr.bf16.mxu0 0
  %328 = vmatpush1.bf16.msra.mxu0 0
  %329 = vmatprep.subr.bf16.mxu0 0
  %330 = vmatpush1.bf16.msra.mxu0 %v313
  %331 = vmatprep.subr.bf16.mxu0 0
  %332 = vmatpush2.bf16.msra.mxu0 0
  %333 = vmatprep.subr.bf16.mxu0 0
  %334 = vmatpush2.bf16.msra.mxu0 0
  %335 = vmatprep.subr.bf16.mxu0 0
  %336 = vmatpush2.bf16.msra.mxu0 0
  %337 = vmatprep.subr.bf16.mxu0 0
  %338 = vmatpush2.bf16.msra.mxu0 0
  %339 = vmatprep.subr.bf16.mxu0 0
  %340 = vmatpush2.bf16.msra.mxu0 0
  %341 = vmatprep.subr.bf16.mxu0 0
  %342 = vmatpush2.bf16.msra.mxu0 0
  %343 = vmatprep.subr.bf16.mxu0 0
  %344 = vmatpush2.bf16.msra.mxu0 0
  %345 = vmatprep.subr.bf16.mxu0 0
  %346 = vmatpush2.bf16.msra.mxu0 0
  %347 = vmatprep.mubr.bf16.mxu0 0
  %348 = vmatmul.mubr.bf16.gmra.mxu0 %v288
  %v349 = vpop.f32.mrf.mxu0
  %v350 = vadd.f32 0.0, %v349
  %v351 = vpop.f32.mrf.mxu0
  %v352 = vpop.f32.mrf.mxu0
  %v353 = vadd.f32 0.0, %v352
  %v354 = vpop.f32.mrf.mxu0
  %355 = vmatprep.mubr.bf16.mxu0 0
  %356 = vmatmul.mubr.bf16.gmra.mxu0 %v291
  %v357 = vpop.f32.mrf.mxu0
  %v358 = vadd.f32 0.0, %v357
  %v359 = vpop.f32.mrf.mxu0
  %v360 = vpop.f32.mrf.mxu0
  %v361 = vadd.f32 0.0, %v360
  %v362 = vpop.f32.mrf.mxu0
  %363 = vmatprep.mubr.bf16.mxu0 0
  %364 = vmatmul.mubr.bf16.gmra.mxu0 %v294
  %v365 = vpop.f32.mrf.mxu0
  %v366 = vadd.f32 0.0, %v365
  %v367 = vpop.f32.mrf.mxu0
  %v368 = vpop.f32.mrf.mxu0
  %v369 = vadd.f32 0.0, %v368
  %v370 = vpop.f32.mrf.mxu0
  %371 = vmatprep.mubr.bf16.mxu0 0
  %372 = vmatmul.mubr.bf16.gmra.mxu0 %v297
  %v373 = vpop.f32.mrf.mxu0
  %v374 = vadd.f32 0.0, %v373
  %v375 = vpop.f32.mrf.mxu0
  %v376 = vpop.f32.mrf.mxu0
  %v377 = vadd.f32 0.0, %v376
  %v378 = vpop.f32.mrf.mxu0
  %379 = vmatprep.mubr.bf16.mxu0 0
  %380 = vmatmul.mubr.bf16.gmra.mxu0 %v300
  %v381 = vpop.f32.mrf.mxu0
  %v382 = vadd.f32 0.0, %v381
  %v383 = vpop.f32.mrf.mxu0
  %v384 = vpop.f32.mrf.mxu0
  %v385 = vadd.f32 0.0, %v384
  %v386 = vpop.f32.mrf.mxu0
  %387 = vmatprep.mubr.bf16.mxu0 0
  %388 = vmatmul.mubr.bf16.gmra.mxu0 %v303
  %v389 = vpop.f32.mrf.mxu0
  %v390 = vadd.f32 0.0, %v389
  %v391 = vpop.f32.mrf.mxu0
  %v392 = vpop.f32.mrf.mxu0
  %v393 = vadd.f32 0.0, %v392
  %v394 = vpop.f32.mrf.mxu0
  %395 = vmatprep.mubr.bf16.mxu0 0
  %396 = vmatmul.mubr.bf16.gmra.mxu0 %v306
  %v397 = vpop.f32.mrf.mxu0
  %v398 = vadd.f32 0.0, %v397
  %v399 = vpop.f32.mrf.mxu0
  %v400 = vpop.f32.mrf.mxu0
  %v401 = vadd.f32 0.0, %v400
  %v402 = vpop.f32.mrf.mxu0
  %403 = vmatprep.mubr.bf16.mxu0 0
  %404 = vmatmul.mubr.bf16.gmra.mxu0 %v309
  %v405 = vpop.f32.mrf.mxu0
  %v406 = vadd.f32 0.0, %v405
  %v407 = vpop.f32.mrf.mxu0
  %v408 = vpop.f32.mrf.mxu0
  %v409 = vadd.f32 0.0, %v408
  %v410 = vpop.f32.mrf.mxu0
  %411 = vdwg.mxu0
  %v412 = vpack.c.bf16 %v353, %v350
  %v413 = vpack.c.bf16 %v361, %v358
  %v414 = vpack.c.bf16 %v369, %v366
  %v415 = vpack.c.bf16 %v377, %v374
  %v416 = vpack.c.bf16 %v385, %v382
  %v417 = vpack.c.bf16 %v393, %v390
  %v418 = vpack.c.bf16 %v401, %v398
  %v419 = vpack.c.bf16 %v409, %v406
  %v428 = vunpack.c.l.b16 %v412
  %v429 = vunpack.c.h.b16 %v412
  %v430 = vunpack.c.l.b16 %v413
  %v431 = vunpack.c.h.b16 %v413
  %v432 = vunpack.c.l.b16 %v414
  %v433 = vunpack.c.h.b16 %v414
  %v434 = vunpack.c.l.b16 %v415
  %v435 = vunpack.c.h.b16 %v415
  %v436 = vunpack.c.l.b16 %v416
  %v437 = vunpack.c.h.b16 %v416
  %v438 = vunpack.c.l.b16 %v417
  %v439 = vunpack.c.h.b16 %v417
  %v440 = vunpack.c.l.b16 %v418
  %v441 = vunpack.c.h.b16 %v418
  %v442 = vunpack.c.l.b16 %v419
  %v443 = vunpack.c.h.b16 %v419
  %v444 = vpack.c.b16 %v428, %v428
  %v445 = vpack.c.b16 %v429, %v429
  %v446 = vpack.c.b16 %v430, %v430
  %v447 = vpack.c.b16 %v431, %v431
  %v448 = vpack.c.b16 %v432, %v432
  %v449 = vpack.c.b16 %v433, %v433
  %v450 = vpack.c.b16 %v434, %v434
  %v451 = vpack.c.b16 %v435, %v435
  %v452 = vpack.c.b16 %v436, %v436
  %v453 = vpack.c.b16 %v437, %v437
  %v454 = vpack.c.b16 %v438, %v438
  %v455 = vpack.c.b16 %v439, %v439
  %v456 = vpack.c.b16 %v440, %v440
  %v457 = vpack.c.b16 %v441, %v441
  %v458 = vpack.c.b16 %v442, %v442
  %v459 = vpack.c.b16 %v443, %v443
  %vm476 = vcmask 781312
  %477 = vst.msk [vmem:[%s5] sm:$0xf] %vm476, %v444
  %478 = vst.msk [vmem:[%s5 + $0x4] sm:$0xf] %vm476, %v445
  %479 = vst.msk [vmem:[%s5 + $0x8] sm:$0xf] %vm476, %v446
  %480 = vst.msk [vmem:[%s5 + $0xc] sm:$0xf] %vm476, %v447
  %481 = vst.msk [vmem:[%s5 + $0x10] sm:$0xf] %vm476, %v448
  %482 = vst.msk [vmem:[%s5 + $0x14] sm:$0xf] %vm476, %v449
  %483 = vst.msk [vmem:[%s5 + $0x18] sm:$0xf] %vm476, %v450
  %484 = vst.msk [vmem:[%s5 + $0x1c] sm:$0xf] %vm476, %v451
  %485 = vst.msk [vmem:[%s5 + $0x20] sm:$0xf] %vm476, %v452
  %486 = vst.msk [vmem:[%s5 + $0x24] sm:$0xf] %vm476, %v453
  %487 = vst.msk [vmem:[%s5 + $0x28] sm:$0xf] %vm476, %v454
  %488 = vst.msk [vmem:[%s5 + $0x2c] sm:$0xf] %vm476, %v455
  %489 = vst.msk [vmem:[%s5 + $0x30] sm:$0xf] %vm476, %v456
  %490 = vst.msk [vmem:[%s5 + $0x34] sm:$0xf] %vm476, %v457
  %491 = vst.msk [vmem:[%s5 + $0x38] sm:$0xf] %vm476, %v458
  %492 = vst.msk [vmem:[%s5 + $0x3c] sm:$0xf] %vm476, %v459
  // Predicated region
  $region22: #{bottle_stack_forward.14} parent=0 // pred_check
    _
  $region23: #{bottle_stack_forward.14} parent=0 // pred_check_branch
    %494 = sbr.rel (0) target = $region25
  $region24: #{bottle_stack_forward.14} parent=0 // pred_region
    _
  $region25: #{bottle_stack_forward.14} parent=0 // pred_fallthru
    _
  // Predicated region
  $region26: #{bottle_stack_forward.14} parent=0 // pred_check
    _
  $region27: #{bottle_stack_forward.14} parent=0 // pred_check_branch
    %496 = sbr.rel (0) target = $region29
  $region28: #{bottle_stack_forward.14} parent=0 // pred_region
    _
  $region29: #{bottle_stack_forward.14} parent=0 // pred_fallthru
    _

// kernel: bottle_stack_forward.15
$region0: #{bottle_stack_forward.15}
  #allocation0 [shape = 'u32[]', space=smem, size = 0x4, offset = 0x4, fixed_abs, tag = 'smem constant byte address 0x4 - core index']
  #allocation1 [shape = 'u32[144,128]{1,0:T(1,128)}', space=vmem, size = 0x12000, scoped, tag = 'internal scratch']
  %s0 = inlined_call_operand.vmem [shape: bf16[2,64,96], index: 0, kind: input, shape index: {}, may-alias: {0,1}]
  %s1 = inlined_call_operand.vmem [shape: bf16[2,64,96], index: 1, kind: input, shape index: {}, may-alias: {0,1}]
  %s2 = inlined_call_operand.vmem [shape: f32[64,16], index: 2, kind: input, shape index: {}]
  %s3 = inlined_call_operand.vmem [shape: bf16[2,64,32], index: 3, kind: output, shape index: {}]
  %s4 = sld [smem:[#allocation0]]
  $region45: #{bottle_stack_forward.15} parent=0
    _
  %s6 = ssub.s32 1, %s4
  %s7 = scalar_select 0, %s6, %s4
  loop: start=0, step=1, limit=4
  $region2: #{bottle_stack_forward.15} parent=0 // loop_pre_header
    _
  $region3: #{bottle_stack_forward.15} parent=0 // loop_header
    %s9 = sphi 0, %s13
    %p10 = scmp.ge.s32.totalorder %s9, 4
    %s16 = sphi 0, %s28
    %s17 = sphi 0, %s24
    %s18 = sphi 0, %s16
    %s19 = sphi 0, %s17
    %s20 = sphi 0, %s18
    %s21 = sphi 0, %s19
    %s33 = sphi 0, %s35
    %s36 = sphi 0, %s33
    %s37 = sphi 0, %s36
    %s53 = sphi 0, %s37
    %s59 = sphi 0, %s61
    %s62 = sphi 0, %s59
    %s63 = sphi 0, %s62
    %s79 = sphi 0, %s63
    %s83 = sphi 0, %s83
    %s85 = sphi 0, %s83
    %s86 = sphi 0, %s85
    %s100 = sphi 0, %s86
    %s108 = sphi 0, %s110
    %s111 = sphi 0, %s108
    %s112 = sphi 0, %s111
    %s128 = sphi 0, %s112
  $region4: #{bottle_stack_forward.15} parent=0 // loop_header_branch
    %12 = sbr.rel (%p10) target = $region8
  $region5: #{bottle_stack_forward.15} parent=0 // loop_body
    %s14 = ssub.s32 %s9, 1
    %s15 = ssub.s32 %s9, 2
    %s22 = sadd.s32 1, %s17
    %p23 = scmp.ge.s32.totalorder %s22, 1
    %s24 = scalar_select %p23, 0, %s22
    %s25 = sadd.s32 1, %s16
    %s26 = scalar_select %p23, %s25, %s16
    %p27 = scmp.ge.s32.totalorder %s26, 2
    %s28 = scalar_select %p27, 0, %s26
    %s29 = ssub.s32 %s16, %s28
    %s30 = ssub.s32 %s17, %s24
    %s31 = sor.u32 %s29, %s30
    %p32 = scmp.eq.s32.totalorder %s31, 0
    %s34 = sadd.s32 %s33, 1
    %s35 = scalar_select %p32, %s33, %s34
    %p38 = pneg %p32
    %p39 = scmp.eq.s32.totalorder %s9, 1
    %p40 = por %p38, %p39
    %p41 = scmp.ne.s32.totalorder %s33, %s36
    %p42 = scmp.eq.s32.totalorder %s9, 0
    %p43 = por %p41, %p42
    %p44 = scmp.ne.s32.totalorder %s33, %s36
    %p45 = scmp.eq.s32.totalorder %s14, 1
    %p46 = por %p44, %p45
    %p47 = scmp.ne.s32.totalorder %s36, %s37
    %p48 = scmp.eq.s32.totalorder %s14, 0
    %p49 = por %p47, %p48
    %p50 = scmp.ne.s32.totalorder %s36, %s37
    %p51 = scmp.eq.s32.totalorder %s15, 1
    %p52 = por %p50, %p51
    %p54 = scmp.ne.s32.totalorder %s37, %s53
    %p55 = scmp.eq.s32.totalorder %s15, 0
    %p56 = por %p54, %p55
    %s57 = ssub.s32 %s16, %s28
    %p58 = scmp.eq.s32.totalorder %s57, 0
    %s60 = sadd.s32 %s59, 1
    %s61 = scalar_select %p58, %s59, %s60
    %p64 = pneg %p58
    %p65 = scmp.eq.s32.totalorder %s9, 1
    %p66 = por %p64, %p65
    %p67 = scmp.ne.s32.totalorder %s59, %s62
    %p68 = scmp.eq.s32.totalorder %s9, 0
    %p69 = por %p67, %p68
    %p70 = scmp.ne.s32.totalorder %s59, %s62
    %p71 = scmp.eq.s32.totalorder %s14, 1
    %p72 = por %p70, %p71
    %p73 = scmp.ne.s32.totalorder %s62, %s63
    %p74 = scmp.eq.s32.totalorder %s14, 0
    %p75 = por %p73, %p74
    %p76 = scmp.ne.s32.totalorder %s62, %s63
    %p77 = scmp.eq.s32.totalorder %s15, 1
    %p78 = por %p76, %p77
    %p80 = scmp.ne.s32.totalorder %s63, %s79
    %p81 = scmp.eq.s32.totalorder %s15, 0
    %p82 = por %p80, %p81
    %s84 = sadd.s32 %s83, 1
    %p87 = scmp.eq.s32.totalorder %s9, 1
    %p88 = scmp.ne.s32.totalorder %s83, %s85
    %p89 = scmp.eq.s32.totalorder %s9, 0
    %p90 = por %p88, %p89
    %p91 = scmp.ne.s32.totalorder %s83, %s85
    %p92 = scmp.eq.s32.totalorder %s14, 1
    %p93 = por %p91, %p92
    %p94 = scmp.ne.s32.totalorder %s85, %s86
    %p95 = scmp.eq.s32.totalorder %s14, 0
    %p96 = por %p94, %p95
    %p97 = scmp.ne.s32.totalorder %s85, %s86
    %p98 = scmp.eq.s32.totalorder %s15, 1
    %p99 = por %p97, %p98
    %p101 = scmp.ne.s32.totalorder %s86, %s100
    %p102 = scmp.eq.s32.totalorder %s15, 0
    %p103 = por %p101, %p102
    %s104 = ssub.s32 %s16, %s28
    %s105 = ssub.s32 %s17, %s24
    %s106 = sor.u32 %s104, %s105
    %p107 = scmp.eq.s32.totalorder %s106, 0
    %s109 = sadd.s32 %s108, 1
    %s110 = scalar_select %p107, %s108, %s109
    %p113 = pneg %p107
    %p114 = scmp.eq.s32.totalorder %s9, 1
    %p115 = por %p113, %p114
    %p116 = scmp.ne.s32.totalorder %s108, %s111
    %p117 = scmp.eq.s32.totalorder %s9, 0
    %p118 = por %p116, %p117
    %p119 = scmp.ne.s32.totalorder %s108, %s111
    %p120 = scmp.eq.s32.totalorder %s14, 1
    %p121 = por %p119, %p120
    %p122 = scmp.ne.s32.totalorder %s111, %s112
    %p123 = scmp.eq.s32.totalorder %s14, 0
    %p124 = por %p122, %p123
    %p125 = scmp.ne.s32.totalorder %s111, %s112
    %p126 = scmp.eq.s32.totalorder %s15, 1
    %p127 = por %p125, %p126
    %p129 = scmp.ne.s32.totalorder %s112, %s128
    %p130 = scmp.eq.s32.totalorder %s15, 0
    %p131 = por %p129, %p130
    %p132 = scmp.le.s32.totalorder 1, %s9
    %p133 = scmp.lt.s32.totalorder %s9, 3
    %p134 = pnand %p132, %p133
    %p135 = pneg %p134
    // Predicated region
    $region9: #{bottle_stack_forward.15} parent=5 // pred_check
      _
    $region10: #{bottle_stack_forward.15} parent=5 // pred_check_branch
      %137 = sbr.rel (%p134) target = $region12
    $region11: #{bottle_stack_forward.15} parent=5 // pred_region
      %s138 = ssub.s32 %s9, 1
      // Predicated region
      $region13: #{bottle_stack_forward.15} parent=11 // pred_check
        %p139 = pneg %p96
      $region14: #{bottle_stack_forward.15} parent=11 // pred_check_branch
        %141 = sbr.rel (%p139) target = $region16
      $region15: #{bottle_stack_forward.15} parent=11 // pred_region
        _
      $region16: #{bottle_stack_forward.15} parent=11 // pred_fallthru
        _
    $region12: #{bottle_stack_forward.15} parent=5 // pred_fallthru
      _
    %p142 = scmp.lt.s32.totalorder %s9, 2
    // Predicated region
    $region17: #{bottle_stack_forward.15} parent=5 // pred_check
      %p143 = pneg %p142
    $region18: #{bottle_stack_forward.15} parent=5 // pred_check_branch
      %145 = sbr.rel (%p143) target = $region20
    $region19: #{bottle_stack_forward.15} parent=5 // pred_region
      // Predicated region
      $region21: #{bottle_stack_forward.15} parent=19 // pred_check
        %p146 = pneg %p43
      $region22: #{bottle_stack_forward.15} parent=19 // pred_check_branch
        %148 = sbr.rel (%p146) target = $region24
      $region23: #{bottle_stack_forward.15} parent=19 // pred_region
        %s149 = smul.u32 8, %s17
        %p150 = scmp.lt.s32.totalorder %s16, 1
        %s151 = scalar_select %p150, %s16, 1
        %p152 = scmp.lt.s32.totalorder %s149, 7
        %s153 = scalar_select %p152, %s149, 7
        %s154 = smul.addr %s151, 8
        %s155 = sadd.s32 %s153, %s154
        %s156 = smul.addr %s155, 4
        %s157 = scalar_lea.vmem %s0, %s156
        %s158 = smul.u32 8, %s17
      $region24: #{bottle_stack_forward.15} parent=19 // pred_fallthru
        _
      // Predicated region
      $region25: #{bottle_stack_forward.15} parent=19 // pred_check
        %p159 = pneg %p69
      $region26: #{bottle_stack_forward.15} parent=19 // pred_check_branch
        %161 = sbr.rel (%p159) target = $region28
      $region27: #{bottle_stack_forward.15} parent=19 // pred_region
        %p162 = scmp.lt.s32.totalorder %s16, 1
        %s163 = scalar_select %p162, %s16, 1
        %s164 = smul.addr %s163, 8
        %s165 = smul.addr %s164, 4
        %s166 = scalar_lea.vmem %s1, %s165
      $region28: #{bottle_stack_forward.15} parent=19 // pred_fallthru
        _
    $region20: #{bottle_stack_forward.15} parent=5 // pred_fallthru
      _
    %p167 = scmp.le.s32.totalorder 1, %s9
    %p168 = scmp.lt.s32.totalorder %s9, 3
    %p169 = pnand %p167, %p168
    %p170 = pneg %p169
    // Predicated region
    $region29: #{bottle_stack_forward.15} parent=5 // pred_check
      _
    $region30: #{bottle_stack_forward.15} parent=5 // pred_check_branch
      %172 = sbr.rel (%p169) target = $region32
    $region31: #{bottle_stack_forward.15} parent=5 // pred_region
      %s173 = ssub.s32 %s9, 1
      %s174 = smul.u32 8, %s19
      %p175 = scmp.lt.s32.totalorder %s18, 1
      %s176 = scalar_select %p175, %s18, 1
      %p177 = scmp.lt.s32.totalorder %s174, 7
      %s178 = scalar_select %p177, %s174, 7
      %s179 = smul.addr %s176, 8
      %s180 = sadd.s32 %s178, %s179
      %s181 = smul.addr %s180, 4
      %s182 = scalar_lea.vmem %s0, %s181
      %p183 = pneg %p49
      %p184 = pneg %p46
      %p185 = scmp.lt.s32.totalorder %s18, 1
      %s186 = scalar_select %p185, %s18, 1
      %s187 = smul.addr %s186, 8
      %s188 = smul.addr %s187, 4
      %s189 = scalar_lea.vmem %s1, %s188
      %p190 = pneg %p75
      %p191 = pneg %p72
      %p192 = pneg %p96
      %p193 = pneg %p93
      %p194 = pneg %p124
      %p195 = pneg %p121
      %s196 = smul.u32 8, %s19
      %p197 = scmp.lt.s32.totalorder %s18, 1
      %s198 = scalar_select %p197, %s18, 1
      %p199 = scmp.lt.s32.totalorder %s196, 7
      %s200 = scalar_select %p199, %s196, 7
      %s201 = smul.addr %s198, 8
      %s202 = sadd.s32 %s200, %s201
      %s203 = smul.addr %s202, 4
      %s204 = scalar_lea.vmem %s3, %s203
      %s205 = smul.u32 8, %s19
      %p206 = scmp.lt.s32.totalorder %s18, 1
      %s207 = scalar_select %p206, %s18, 1
      %p208 = scmp.lt.s32.totalorder %s205, 7
      %s209 = scalar_select %p208, %s205, 7
      %s210 = smul.addr %s207, 8
      %s211 = sadd.s32 %s209, %s210
      %s212 = smul.addr %s211, 4
      %s213 = scalar_lea.vmem %s0, %s212
      %s214 = smul.u32 8, %s19
      %p215 = scmp.lt.s32.totalorder %s18, 1
      %s216 = scalar_select %p215, %s18, 1
      %s217 = smul.addr %s216, 8
      %s218 = smul.addr %s217, 4
      %s219 = scalar_lea.vmem %s1, %s218
      %s220 = smul.u32 8, %s19
      %p221 = scmp.lt.s32.totalorder %s18, 1
      %s222 = scalar_select %p221, %s18, 1
      %p223 = scmp.lt.s32.totalorder %s220, 7
      %s224 = scalar_select %p223, %s220, 7
      %s225 = smul.addr %s222, 8
      %s226 = sadd.s32 %s224, %s225
      %s227 = smul.addr %s226, 4
      %s228 = scalar_lea.vmem %s3, %s227
      %s229 = smul.u32 8, %s19
      %v231 = vld [vmem:[%s213] sm:$0xf]
      %v232 = vld [vmem:[%s213 + $0x4] sm:$0xf]
      %v233 = vld [vmem:[%s213 + $0x8] sm:$0xf]
      %v234 = vld [vmem:[%s213 + $0xc] sm:$0xf]
      %v235 = vld [vmem:[%s213 + $0x10] sm:$0xf]
      %v236 = vld [vmem:[%s213 + $0x14] sm:$0xf]
      %v237 = vld [vmem:[%s213 + $0x18] sm:$0xf]
      %v238 = vld [vmem:[%s213 + $0x1c] sm:$0xf]
      %v239 = vld [vmem:[%s219] sm:$0xf]
      %v240 = vld [vmem:[%s219 + $0x4] sm:$0xf]
      %v241 = vld [vmem:[%s219 + $0x8] sm:$0xf]
      %v242 = vld [vmem:[%s219 + $0xc] sm:$0xf]
      %v243 = vld [vmem:[%s219 + $0x10] sm:$0xf]
      %v244 = vld [vmem:[%s219 + $0x14] sm:$0xf]
      %v245 = vld [vmem:[%s219 + $0x18] sm:$0xf]
      %v246 = vld [vmem:[%s219 + $0x1c] sm:$0xf]
      %v247 = vld [vmem:[%s2] sm:$0xff]
      %v248 = vld [vmem:[%s2 + $0x8] sm:$0xff]
      %v249 = vld [vmem:[%s2 + $0x10] sm:$0xff]
      %v250 = vld [vmem:[%s2 + $0x18] sm:$0xff]
      %v251 = vld [vmem:[%s2 + $0x20] sm:$0xff]
      %v252 = vld [vmem:[%s2 + $0x28] sm:$0xff]
      %v253 = vld [vmem:[%s2 + $0x30] sm:$0xff]
      %v254 = vld [vmem:[%s2 + $0x38] sm:$0xff]
      %v255 = vunpack.c.l.bf16 %v239
      %v256 = vunpack.c.l.bf16 %v240
      %v257 = vunpack.c.l.bf16 %v241
      %v258 = vunpack.c.l.bf16 %v242
      %v259 = vunpack.c.l.bf16 %v243
      %v260 = vunpack.c.l.bf16 %v244
      %v261 = vunpack.c.l.bf16 %v245
      %v262 = vunpack.c.l.bf16 %v246
      %271 = vrot.lane.b32.xlu0 %v247, 32
      %v272 = vpop.permute.xlu0 %271
      %273 = vrot.lane.b32.xlu0 %v248, 32
      %v274 = vpop.permute.xlu0 %273
      %275 = vrot.lane.b32.xlu0 %v249, 32
      %v276 = vpop.permute.xlu0 %275
      %277 = vrot.lane.b32.xlu0 %v250, 32
      %v278 = vpop.permute.xlu0 %277
      %279 = vrot.lane.b32.xlu0 %v251, 32
      %v280 = vpop.permute.xlu0 %279
      %281 = vrot.lane.b32.xlu0 %v252, 32
      %v282 = vpop.permute.xlu0 %281
      %283 = vrot.lane.b32.xlu0 %v253, 32
      %v284 = vpop.permute.xlu0 %283
      %285 = vrot.lane.b32.xlu0 %v254, 32
      %v286 = vpop.permute.xlu0 %285
      %v295 = vadd.f32 %v255, %v272
      %v296 = vadd.f32 %v256, %v274
      %v297 = vadd.f32 %v257, %v276
      %v298 = vadd.f32 %v258, %v278
      %v299 = vadd.f32 %v259, %v280
      %v300 = vadd.f32 %v260, %v282
      %v301 = vadd.f32 %v261, %v284
      %v302 = vadd.f32 %v262, %v286
      %v303 = vpack.c.bf16 %v296, %v295
      %v304 = vpack.c.bf16 %v298, %v297
      %v305 = vpack.c.bf16 %v300, %v299
      %v306 = vpack.c.bf16 %v302, %v301
      %v315 = vunpack.c.l.b16 %v231
      %v316 = vunpack.c.l.b16 %v232
      %v317 = vunpack.c.l.b16 %v233
      %v318 = vunpack.c.l.b16 %v234
      %v319 = vunpack.c.l.b16 %v235
      %v320 = vunpack.c.l.b16 %v236
      %v321 = vunpack.c.l.b16 %v237
      %v322 = vunpack.c.l.b16 %v238
      %v323 = vpack.c.b16 %v316, %v315
      %v324 = vpack.c.b16 %v318, %v317
      %v325 = vpack.c.b16 %v320, %v319
      %v326 = vpack.c.b16 %v322, %v321
      %331 = vrot.lane.b32.xlu0 %v303, 96
      %v332 = vpop.permute.xlu0 %331
      %333 = vrot.lane.b32.xlu0 %v304, 96
      %v334 = vpop.permute.xlu0 %333
      %335 = vrot.lane.b32.xlu0 %v305, 96
      %v336 = vpop.permute.xlu0 %335
      %337 = vrot.lane.b32.xlu0 %v306, 96
      %v338 = vpop.permute.xlu0 %337
      %vm339 = vcmask 130048
      %v341 = vsel %vm339, %v323, 0
      %v344 = vsel %vm339, %v324, 0
      %v347 = vsel %vm339, %v325, 0
      %v350 = vsel %vm339, %v326, 0
      %v353 = vsel %vm339, %v332, 0
      %v356 = vsel %vm339, %v334, 0
      %v359 = vsel %vm339, %v336, 0
      %v362 = vsel %vm339, %v338, 0
      %364 = vmatprep.subr.bf16.mxu0 0
      %365 = vmatpush1.bf16.xpose.msra.mxu0 0
      %366 = vmatprep.subr.bf16.mxu0 0
      %367 = vmatpush1.bf16.xpose.msra.mxu0 0
      %368 = vmatprep.subr.bf16.mxu0 0
      %369 = vmatpush1.bf16.xpose.msra.mxu0 0
      %370 = vmatprep.subr.bf16.mxu0 0
      %371 = vmatpush1.bf16.xpose.msra.mxu0 0
      %372 = vmatprep.subr.bf16.mxu0 0
      %373 = vmatpush1.bf16.xpose.msra.mxu0 %v362
      %374 = vmatprep.subr.bf16.mxu0 0
      %375 = vmatpush1.bf16.xpose.msra.mxu0 %v359
      %376 = vmatprep.subr.bf16.mxu0 0
      %377 = vmatpush1.bf16.xpose.msra.mxu0 %v356
      %378 = vmatprep.subr.bf16.mxu0 0
      %379 = vmatpush1.bf16.xpose.msra.mxu0 %v353
      %380 = vmatprep.subr.bf16.mxu0 0
      %381 = vmatpush2.bf16.xpose.msra.mxu0 0
      %382 = vmatprep.subr.bf16.mxu0 0
      %383 = vmatpush2.bf16.xpose.msra.mxu0 0
      %384 = vmatprep.subr.bf16.mxu0 0
      %385 = vmatpush2.bf16.xpose.msra.mxu0 0
      %386 = vmatprep.subr.bf16.mxu0 0
      %387 = vmatpush2.bf16.xpose.msra.mxu0 0
      %388 = vmatprep.subr.bf16.mxu0 0
      %389 = vmatpush2.bf16.xpose.msra.mxu0 0
      %390 = vmatprep.subr.bf16.mxu0 0
      %391 = vmatpush2.bf16.xpose.msra.mxu0 0
      %392 = vmatprep.subr.bf16.mxu0 0
      %393 = vmatpush2.bf16.xpose.msra.mxu0 0
      %394 = vmatprep.subr.bf16.mxu0 0
      %395 = vmatpush2.bf16.xpose.msra.mxu0 0
      %396 = vmatprep.mubr.bf16.mxu0 0
      %397 = vmatmul.mubr.bf16.gmra.mxu0 %v341
      %v398 = vpop.f32.mrf.mxu0
      %v399 = vadd.f32 0.0, %v398
      %v400 = vpop.f32.mrf.mxu0
      %v401 = vpop.f32.mrf.mxu0
      %v402 = vadd.f32 0.0, %v401
      %v403 = vpop.f32.mrf.mxu0
      %404 = vmatprep.mubr.bf16.mxu0 0
      %405 = vmatmul.mubr.bf16.gmra.mxu0 %v344
      %v406 = vpop.f32.mrf.mxu0
      %v407 = vadd.f32 0.0, %v406
      %v408 = vpop.f32.mrf.mxu0
      %v409 = vpop.f32.mrf.mxu0
      %v410 = vadd.f32 0.0, %v409
      %v411 = vpop.f32.mrf.mxu0
      %412 = vmatprep.mubr.bf16.mxu0 0
      %413 = vmatmul.mubr.bf16.gmra.mxu0 %v347
      %v414 = vpop.f32.mrf.mxu0
      %v415 = vadd.f32 0.0, %v414
      %v416 = vpop.f32.mrf.mxu0
      %v417 = vpop.f32.mrf.mxu0
      %v418 = vadd.f32 0.0, %v417
      %v419 = vpop.f32.mrf.mxu0
      %420 = vmatprep.mubr.bf16.mxu0 0
      %421 = vmatmul.mubr.bf16.gmra.mxu0 %v350
      %v422 = vpop.f32.mrf.mxu0
      %v423 = vadd.f32 0.0, %v422
      %v424 = vpop.f32.mrf.mxu0
      %v425 = vpop.f32.mrf.mxu0
      %v426 = vadd.f32 0.0, %v425
      %v427 = vpop.f32.mrf.mxu0
      %428 = vdwg.mxu0
      %vm429 = vcmask 523264
      %v430 = vsel %vm429, %v399, -inf
      %431 = vmax.xlane.f32.xlu0 %v430
      %v432 = vpop.xlane.xlu0 %431
      %v433 = vsel %vm429, %v402, -inf
      %434 = vmax.xlane.f32.xlu0 %v433
      %v435 = vpop.xlane.xlu0 %434
      %v436 = vsel %vm429, %v407, -inf
      %437 = vmax.xlane.f32.xlu0 %v436
      %v438 = vpop.xlane.xlu0 %437
      %v439 = vsel %vm429, %v410, -inf
      %440 = vmax.xlane.f32.xlu0 %v439
      %v441 = vpop.xlane.xlu0 %440
      %v442 = vsel %vm429, %v415, -inf
      %443 = vmax.xlane.f32.xlu0 %v442
      %v444 = vpop.xlane.xlu0 %443
      %v445 = vsel %vm429, %v418, -inf
      %446 = vmax.xlane.f32.xlu0 %v445
      %v447 = vpop.xlane.xlu0 %446
      %v448 = vsel %vm429, %v423, -inf
      %449 = vmax.xlane.f32.xlu0 %v448
      %v450 = vpop.xlane.xlu0 %449
      %v451 = vsel %vm429, %v426, -inf
      %452 = vmax.xlane.f32.xlu0 %v451
      %v453 = vpop.xlane.xlu0 %452
      %v454 = vsub.f32 %v399, %v432
      %v455 = vsub.f32 %v402, %v435
      %v456 = vsub.f32 %v407, %v438
      %v457 = vsub.f32 %v410, %v441
      %v458 = vsub.f32 %v415, %v444
      %v459 = vsub.f32 %v418, %v447
      %v460 = vsub.f32 %v423, %v450
      %v461 = vsub.f32 %v426, %v453
      %v462 = vmul.f32 %v454, 1.442695
      %v463 = vpow.pop %v462
      %v464 = vmul.f32 %v455, 1.442695
      %v465 = vpow.pop %v464
      %v466 = vmul.f32 %v456, 1.442695
      %v467 = vpow.pop %v466
      %v468 = vmul.f32 %v457, 1.442695
      %v469 = vpow.pop %v468
      %v470 = vmul.f32 %v458, 1.442695
      %v471 = vpow.pop %v470
      %v472 = vmul.f32 %v459, 1.442695
      %v473 = vpow.pop %v472
      %v474 = vmul.f32 %v460, 1.442695
      %v475 = vpow.pop %v474
      %v476 = vmul.f32 %v461, 1.442695
      %v477 = vpow.pop %v476
      %v478 = vsel %vm429, %v463, 0.0
      %479 = vadd.xlane.f32.xlu0 %v478
      %v480 = vpop.xlane.xlu0 %479
      %v481 = vsel %vm429, %v465, 0.0
      %482 = vadd.xlane.f32.xlu0 %v481
      %v483 = vpop.xlane.xlu0 %482
      %v484 = vsel %vm429, %v467, 0.0
      %485 = vadd.xlane.f32.xlu0 %v484
      %v486 = vpop.xlane.xlu0 %485
      %v487 = vsel %vm429, %v469, 0.0
      %488 = vadd.xlane.f32.xlu0 %v487
      %v489 = vpop.xlane.xlu0 %488
      %v490 = vsel %vm429, %v471, 0.0
      %491 = vadd.xlane.f32.xlu0 %v490
      %v492 = vpop.xlane.xlu0 %491
      %v493 = vsel %vm429, %v473, 0.0
      %494 = vadd.xlane.f32.xlu0 %v493
      %v495 = vpop.xlane.xlu0 %494
      %v496 = vsel %vm429, %v475, 0.0
      %497 = vadd.xlane.f32.xlu0 %v496
      %v498 = vpop.xlane.xlu0 %497
      %v499 = vsel %vm429, %v477, 0.0
      %500 = vadd.xlane.f32.xlu0 %v499
      %v501 = vpop.xlane.xlu0 %500
      %v502 = vpack.c.bf16 %v465, %v463
      %v503 = vpack.c.bf16 %v469, %v467
      %v504 = vpack.c.bf16 %v473, %v471
      %v505 = vpack.c.bf16 %v477, %v475
      %v514 = vunpack.c.l.b16 %v239
      %v515 = vunpack.c.l.b16 %v240
      %v516 = vunpack.c.l.b16 %v241
      %v517 = vunpack.c.l.b16 %v242
      %v518 = vunpack.c.l.b16 %v243
      %v519 = vunpack.c.l.b16 %v244
      %v520 = vunpack.c.l.b16 %v245
      %v521 = vunpack.c.l.b16 %v246
      %v522 = vpack.c.b16 %v515, %v514
      %v523 = vpack.c.b16 %v517, %v516
      %v524 = vpack.c.b16 %v519, %v518
      %v525 = vpack.c.b16 %v521, %v520
      %526 = vrot.lane.b32.xlu0 %v522, 64
      %v527 = vpop.permute.xlu0 %526
      %528 = vrot.lane.b32.xlu0 %v523, 64
      %v529 = vpop.permute.xlu0 %528
      %530 = vrot.lane.b32.xlu0 %v524, 64
      %v531 = vpop.permute.xlu0 %530
      %532 = vrot.lane.b32.xlu0 %v525, 64
      %v533 = vpop.permute.xlu0 %532
      %v539 = vsel %vm429, %v502, 0
      %v542 = vsel %vm429, %v503, 0
      %v545 = vsel %vm429, %v504, 0
      %v548 = vsel %vm429, %v505, 0
      %550 = vmatprep.subr.bf16.mxu0 0
      %551 = vmatpush1.bf16.msra.mxu0 0
      %552 = vmatprep.subr.bf16.mxu0 0
      %553 = vmatpush1.bf16.msra.mxu0 0
      %554 = vmatprep.subr.bf16.mxu0 0
      %555 = vmatpush1.bf16.msra.mxu0 0
      %556 = vmatprep.subr.bf16.mxu0 0
      %557 = vmatpush1.bf16.msra.mxu0 0
      %558 = vmatprep.subr.bf16.mxu0 0
      %559 = vmatpush1.bf16.msra.mxu0 %v533
      %560 = vmatprep.subr.bf16.mxu0 0
      %561 = vmatpush1.bf16.msra.mxu0 %v531
      %562 = vmatprep.subr.bf16.mxu0 0
      %563 = vmatpush1.bf16.msra.mxu0 %v529
      %564 = vmatprep.subr.bf16.mxu0 0
      %565 = vmatpush1.bf16.msra.mxu0 %v527
      %566 = vmatprep.subr.bf16.mxu0 0
      %567 = vmatpush2.bf16.msra.mxu0 0
      %568 = vmatprep.subr.bf16.mxu0 0
      %569 = vmatpush2.bf16.msra.mxu0 0
      %570 = vmatprep.subr.bf16.mxu0 0
      %571 = vmatpush2.bf16.msra.mxu0 0
      %572 = vmatprep.subr.bf16.mxu0 0
      %573 = vmatpush2.bf16.msra.mxu0 0
      %574 = vmatprep.subr.bf16.mxu0 0
      %575 = vmatpush2.bf16.msra.mxu0 0
      %576 = vmatprep.subr.bf16.mxu0 0
      %577 = vmatpush2.bf16.msra.mxu0 0
      %578 = vmatprep.subr.bf16.mxu0 0
      %579 = vmatpush2.bf16.msra.mxu0 0
      %580 = vmatprep.subr.bf16.mxu0 0
      %581 = vmatpush2.bf16.msra.mxu0 0
      %582 = vmatprep.mubr.bf16.mxu0 0
      %583 = vmatmul.mubr.bf16.gmra.mxu0 %v539
      %v584 = vpop.f32.mrf.mxu0
      %v585 = vadd.f32 0.0, %v584
      %v586 = vpop.f32.mrf.mxu0
      %v587 = vpop.f32.mrf.mxu0
      %v588 = vadd.f32 0.0, %v587
      %v589 = vpop.f32.mrf.mxu0
      %590 = vmatprep.mubr.bf16.mxu0 0
      %591 = vmatmul.mubr.bf16.gmra.mxu0 %v542
      %v592 = vpop.f32.mrf.mxu0
      %v593 = vadd.f32 0.0, %v592
      %v594 = vpop.f32.mrf.mxu0
      %v595 = vpop.f32.mrf.mxu0
      %v596 = vadd.f32 0.0, %v595
      %v597 = vpop.f32.mrf.mxu0
      %598 = vmatprep.mubr.bf16.mxu0 0
      %599 = vmatmul.mubr.bf16.gmra.mxu0 %v545
      %v600 = vpop.f32.mrf.mxu0
      %v601 = vadd.f32 0.0, %v600
      %v602 = vpop.f32.mrf.mxu0
      %v603 = vpop.f32.mrf.mxu0
      %v604 = vadd.f32 0.0, %v603
      %v605 = vpop.f32.mrf.mxu0
      %606 = vmatprep.mubr.bf16.mxu0 0
      %607 = vmatmul.mubr.bf16.gmra.mxu0 %v548
      %v608 = vpop.f32.mrf.mxu0
      %v609 = vadd.f32 0.0, %v608
      %v610 = vpop.f32.mrf.mxu0
      %v611 = vpop.f32.mrf.mxu0
      %v612 = vadd.f32 0.0, %v611
      %v613 = vpop.f32.mrf.mxu0
      %614 = vdwg.mxu0
      %v615 = vrcp.pop %v480
      %v616 = vrcp.pop %v483
      %v617 = vrcp.pop %v486
      %v618 = vrcp.pop %v489
      %v619 = vrcp.pop %v492
      %v620 = vrcp.pop %v495
      %v621 = vrcp.pop %v498
      %v622 = vrcp.pop %v501
      %v623 = vmul.f32 %v585, %v615
      %v624 = vmul.f32 %v588, %v616
      %v625 = vmul.f32 %v593, %v617
      %v626 = vmul.f32 %v596, %v618
      %v627 = vmul.f32 %v601, %v619
      %v628 = vmul.f32 %v604, %v620
      %v629 = vmul.f32 %v609, %v621
      %v630 = vmul.f32 %v612, %v622
      %631 = vrot.lane.b32.xlu0 %v247, 48
      %v632 = vpop.permute.xlu0 %631
      %633 = vrot.lane.b32.xlu0 %v248, 48
      %v634 = vpop.permute.xlu0 %633
      %635 = vrot.lane.b32.xlu0 %v249, 48
      %v636 = vpop.permute.xlu0 %635
      %637 = vrot.lane.b32.xlu0 %v250, 48
      %v638 = vpop.permute.xlu0 %637
      %639 = vrot.lane.b32.xlu0 %v251, 48
      %v640 = vpop.permute.xlu0 %639
      %641 = vrot.lane.b32.xlu0 %v252, 48
      %v642 = vpop.permute.xlu0 %641
      %643 = vrot.lane.b32.xlu0 %v253, 48
      %v644 = vpop.permute.xlu0 %643
      %645 = vrot.lane.b32.xlu0 %v254, 48
      %v646 = vpop.permute.xlu0 %645
      %v655 = vadd.f32 %v255, %v632
      %v656 = vadd.f32 %v256, %v634
      %v657 = vadd.f32 %v257, %v636
      %v658 = vadd.f32 %v258, %v638
      %v659 = vadd.f32 %v259, %v640
      %v660 = vadd.f32 %v260, %v642
      %v661 = vadd.f32 %v261, %v644
      %v662 = vadd.f32 %v262, %v646
      %v663 = vpack.c.bf16 %v656, %v655
      %v664 = vpack.c.bf16 %v658, %v657
      %v665 = vpack.c.bf16 %v660, %v659
      %v666 = vpack.c.bf16 %v662, %v661
      %667 = vrot.lane.b32.xlu0 %v323, 112
      %v668 = vpop.permute.xlu0 %667
      %669 = vrot.lane.b32.xlu0 %v324, 112
      %v670 = vpop.permute.xlu0 %669
      %671 = vrot.lane.b32.xlu0 %v325, 112
      %v672 = vpop.permute.xlu0 %671
      %673 = vrot.lane.b32.xlu0 %v326, 112
      %v674 = vpop.permute.xlu0 %673
      %679 = vrot.lane.b32.xlu0 %v663, 80
      %v680 = vpop.permute.xlu0 %679
      %681 = vrot.lane.b32.xlu0 %v664, 80
      %v682 = vpop.permute.xlu0 %681
      %683 = vrot.lane.b32.xlu0 %v665, 80
      %v684 = vpop.permute.xlu0 %683
      %685 = vrot.lane.b32.xlu0 %v666, 80
      %v686 = vpop.permute.xlu0 %685
      %v688 = vsel %vm339, %v668, 0
      %v691 = vsel %vm339, %v670, 0
      %v694 = vsel %vm339, %v672, 0
      %v697 = vsel %vm339, %v674, 0
      %v700 = vsel %vm339, %v680, 0
      %v703 = vsel %vm339, %v682, 0
      %v706 = vsel %vm339, %v684, 0
      %v709 = vsel %vm339, %v686, 0
      %711 = vmatprep.subr.bf16.mxu0 0
      %712 = vmatpush1.bf16.xpose.msra.mxu0 0
      %713 = vmatprep.subr.bf16.mxu0 0
      %714 = vmatpush1.bf16.xpose.msra.mxu0 0
      %715 = vmatprep.subr.bf16.mxu0 0
      %716 = vmatpush1.bf16.xpose.msra.mxu0 0
      %717 = vmatprep.subr.bf16.mxu0 0
      %718 = vmatpush1.bf16.xpose.msra.mxu0 0
      %719 = vmatprep.subr.bf16.mxu0 0
      %720 = vmatpush1.bf16.xpose.msra.mxu0 %v709
      %721 = vmatprep.subr.bf16.mxu0 0
      %722 = vmatpush1.bf16.xpose.msra.mxu0 %v706
      %723 = vmatprep.subr.bf16.mxu0 0
      %724 = vmatpush1.bf16.xpose.msra.mxu0 %v703
      %725 = vmatprep.subr.bf16.mxu0 0
      %726 = vmatpush1.bf16.xpose.msra.mxu0 %v700
      %727 = vmatprep.subr.bf16.mxu0 0
      %728 = vmatpush2.bf16.xpose.msra.mxu0 0
      %729 = vmatprep.subr.bf16.mxu0 0
      %730 = vmatpush2.bf16.xpose.msra.mxu0 0
      %731 = vmatprep.subr.bf16.mxu0 0
      %732 = vmatpush2.bf16.xpose.msra.mxu0 0
      %733 = vmatprep.subr.bf16.mxu0 0
      %734 = vmatpush2.bf16.xpose.msra.mxu0 0
      %735 = vmatprep.subr.bf16.mxu0 0
      %736 = vmatpush2.bf16.xpose.msra.mxu0 0
      %737 = vmatprep.subr.bf16.mxu0 0
      %738 = vmatpush2.bf16.xpose.msra.mxu0 0
      %739 = vmatprep.subr.bf16.mxu0 0
      %740 = vmatpush2.bf16.xpose.msra.mxu0 0
      %741 = vmatprep.subr.bf16.mxu0 0
      %742 = vmatpush2.bf16.xpose.msra.mxu0 0
      %743 = vmatprep.mubr.bf16.mxu0 0
      %744 = vmatmul.mubr.bf16.gmra.mxu0 %v688
      %v745 = vpop.f32.mrf.mxu0
      %v746 = vadd.f32 0.0, %v745
      %v747 = vpop.f32.mrf.mxu0
      %v748 = vpop.f32.mrf.mxu0
      %v749 = vadd.f32 0.0, %v748
      %v750 = vpop.f32.mrf.mxu0
      %751 = vmatprep.mubr.bf16.mxu0 0
      %752 = vmatmul.mubr.bf16.gmra.mxu0 %v691
      %v753 = vpop.f32.mrf.mxu0
      %v754 = vadd.f32 0.0, %v753
      %v755 = vpop.f32.mrf.mxu0
      %v756 = vpop.f32.mrf.mxu0
      %v757 = vadd.f32 0.0, %v756
      %v758 = vpop.f32.mrf.mxu0
      %759 = vmatprep.mubr.bf16.mxu0 0
      %760 = vmatmul.mubr.bf16.gmra.mxu0 %v694
      %v761 = vpop.f32.mrf.mxu0
      %v762 = vadd.f32 0.0, %v761
      %v763 = vpop.f32.mrf.mxu0
      %v764 = vpop.f32.mrf.mxu0
      %v765 = vadd.f32 0.0, %v764
      %v766 = vpop.f32.mrf.mxu0
      %767 = vmatprep.mubr.bf16.mxu0 0
      %768 = vmatmul.mubr.bf16.gmra.mxu0 %v697
      %v769 = vpop.f32.mrf.mxu0
      %v770 = vadd.f32 0.0, %v769
      %v771 = vpop.f32.mrf.mxu0
      %v772 = vpop.f32.mrf.mxu0
      %v773 = vadd.f32 0.0, %v772
      %v774 = vpop.f32.mrf.mxu0
      %775 = vdwg.mxu0
      %v776 = vsel %vm429, %v746, -inf
      %777 = vmax.xlane.f32.xlu0 %v776
      %v778 = vpop.xlane.xlu0 %777
      %v779 = vsel %vm429, %v749, -inf
      %780 = vmax.xlane.f32.xlu0 %v779
      %v781 = vpop.xlane.xlu0 %780
      %v782 = vsel %vm429, %v754, -inf
      %783 = vmax.xlane.f32.xlu0 %v782
      %v784 = vpop.xlane.xlu0 %783
      %v785 = vsel %vm429, %v757, -inf
      %786 = vmax.xlane.f32.xlu0 %v785
      %v787 = vpop.xlane.xlu0 %786
      %v788 = vsel %vm429, %v762, -inf
      %789 = vmax.xlane.f32.xlu0 %v788
      %v790 = vpop.xlane.xlu0 %789
      %v791 = vsel %vm429, %v765, -inf
      %792 = vmax.xlane.f32.xlu0 %v791
      %v793 = vpop.xlane.xlu0 %792
      %v794 = vsel %vm429, %v770, -inf
      %795 = vmax.xlane.f32.xlu0 %v794
      %v796 = vpop.xlane.xlu0 %795
      %v797 = vsel %vm429, %v773, -inf
      %798 = vmax.xlane.f32.xlu0 %v797
      %v799 = vpop.xlane.xlu0 %798
      %v800 = vsub.f32 %v746, %v778
      %v801 = vsub.f32 %v749, %v781
      %v802 = vsub.f32 %v754, %v784
      %v803 = vsub.f32 %v757, %v787
      %v804 = vsub.f32 %v762, %v790
      %v805 = vsub.f32 %v765, %v793
      %v806 = vsub.f32 %v770, %v796
      %v807 = vsub.f32 %v773, %v799
      %v808 = vmul.f32 %v800, 1.442695
      %v809 = vpow.pop %v808
      %v810 = vmul.f32 %v801, 1.442695
      %v811 = vpow.pop %v810
      %v812 = vmul.f32 %v802, 1.442695
      %v813 = vpow.pop %v812
      %v814 = vmul.f32 %v803, 1.442695
      %v815 = vpow.pop %v814
      %v816 = vmul.f32 %v804, 1.442695
      %v817 = vpow.pop %v816
      %v818 = vmul.f32 %v805, 1.442695
      %v819 = vpow.pop %v818
      %v820 = vmul.f32 %v806, 1.442695
      %v821 = vpow.pop %v820
      %v822 = vmul.f32 %v807, 1.442695
      %v823 = vpow.pop %v822
      %v824 = vsel %vm429, %v809, 0.0
      %825 = vadd.xlane.f32.xlu0 %v824
      %v826 = vpop.xlane.xlu0 %825
      %v827 = vsel %vm429, %v811, 0.0
      %828 = vadd.xlane.f32.xlu0 %v827
      %v829 = vpop.xlane.xlu0 %828
      %v830 = vsel %vm429, %v813, 0.0
      %831 = vadd.xlane.f32.xlu0 %v830
      %v832 = vpop.xlane.xlu0 %831
      %v833 = vsel %vm429, %v815, 0.0
      %834 = vadd.xlane.f32.xlu0 %v833
      %v835 = vpop.xlane.xlu0 %834
      %v836 = vsel %vm429, %v817, 0.0
      %837 = vadd.xlane.f32.xlu0 %v836
      %v838 = vpop.xlane.xlu0 %837
      %v839 = vsel %vm429, %v819, 0.0
      %840 = vadd.xlane.f32.xlu0 %v839
      %v841 = vpop.xlane.xlu0 %840
      %v842 = vsel %vm429, %v821, 0.0
      %843 = vadd.xlane.f32.xlu0 %v842
      %v844 = vpop.xlane.xlu0 %843
      %v845 = vsel %vm429, %v823, 0.0
      %846 = vadd.xlane.f32.xlu0 %v845
      %v847 = vpop.xlane.xlu0 %846
      %v848 = vpack.c.bf16 %v811, %v809
      %v849 = vpack.c.bf16 %v815, %v813
      %v850 = vpack.c.bf16 %v819, %v817
      %v851 = vpack.c.bf16 %v823, %v821
      %852 = vrot.lane.b32.xlu0 %v522, 48
      %v853 = vpop.permute.xlu0 %852
      %854 = vrot.lane.b32.xlu0 %v523, 48
      %v855 = vpop.permute.xlu0 %854
      %856 = vrot.lane.b32.xlu0 %v524, 48
      %v857 = vpop.permute.xlu0 %856
      %858 = vrot.lane.b32.xlu0 %v525, 48
      %v859 = vpop.permute.xlu0 %858
      %v865 = vsel %vm429, %v848, 0
      %v868 = vsel %vm429, %v849, 0
      %v871 = vsel %vm429, %v850, 0
      %v874 = vsel %vm429, %v851, 0
      %876 = vmatprep.subr.bf16.mxu0 0
      %877 = vmatpush1.bf16.msra.mxu0 0
      %878 = vmatprep.subr.bf16.mxu0 0
      %879 = vmatpush1.bf16.msra.mxu0 0
      %880 = vmatprep.subr.bf16.mxu0 0
      %881 = vmatpush1.bf16.msra.mxu0 0
      %882 = vmatprep.subr.bf16.mxu0 0
      %883 = vmatpush1.bf16.msra.mxu0 0
      %884 = vmatprep.subr.bf16.mxu0 0
      %885 = vmatpush1.bf16.msra.mxu0 %v859
      %886 = vmatprep.subr.bf16.mxu0 0
      %887 = vmatpush1.bf16.msra.mxu0 %v857
      %888 = vmatprep.subr.bf16.mxu0 0
      %889 = vmatpush1.bf16.msra.mxu0 %v855
      %890 = vmatprep.subr.bf16.mxu0 0
      %891 = vmatpush1.bf16.msra.mxu0 %v853
      %892 = vmatprep.subr.bf16.mxu0 0
      %893 = vmatpush2.bf16.msra.mxu0 0
      %894 = vmatprep.subr.bf16.mxu0 0
      %895 = vmatpush2.bf16.msra.mxu0 0
      %896 = vmatprep.subr.bf16.mxu0 0
      %897 = vmatpush2.bf16.msra.mxu0 0
      %898 = vmatprep.subr.bf16.mxu0 0
      %899 = vmatpush2.bf16.msra.mxu0 0
      %900 = vmatprep.subr.bf16.mxu0 0
      %901 = vmatpush2.bf16.msra.mxu0 0
      %902 = vmatprep.subr.bf16.mxu0 0
      %903 = vmatpush2.bf16.msra.mxu0 0
      %904 = vmatprep.subr.bf16.mxu0 0
      %905 = vmatpush2.bf16.msra.mxu0 0
      %906 = vmatprep.subr.bf16.mxu0 0
      %907 = vmatpush2.bf16.msra.mxu0 0
      %908 = vmatprep.mubr.bf16.mxu0 0
      %909 = vmatmul.mubr.bf16.gmra.mxu0 %v865
      %v910 = vpop.f32.mrf.mxu0
      %v911 = vadd.f32 0.0, %v910
      %v912 = vpop.f32.mrf.mxu0
      %v913 = vpop.f32.mrf.mxu0
      %v914 = vadd.f32 0.0, %v913
      %v915 = vpop.f32.mrf.mxu0
      %916 = vmatprep.mubr.bf16.mxu0 0
      %917 = vmatmul.mubr.bf16.gmra.mxu0 %v868
      %v918 = vpop.f32.mrf.mxu0
      %v919 = vadd.f32 0.0, %v918
      %v920 = vpop.f32.mrf.mxu0
      %v921 = vpop.f32.mrf.mxu0
      %v922 = vadd.f32 0.0, %v921
      %v923 = vpop.f32.mrf.mxu0
      %924 = vmatprep.mubr.bf16.mxu0 0
      %925 = vmatmul.mubr.bf16.gmra.mxu0 %v871
      %v926 = vpop.f32.mrf.mxu0
      %v927 = vadd.f32 0.0, %v926
      %v928 = vpop.f32.mrf.mxu0
      %v929 = vpop.f32.mrf.mxu0
      %v930 = vadd.f32 0.0, %v929
      %v931 = vpop.f32.mrf.mxu0
      %932 = vmatprep.mubr.bf16.mxu0 0
      %933 = vmatmul.mubr.bf16.gmra.mxu0 %v874
      %v934 = vpop.f32.mrf.mxu0
      %v935 = vadd.f32 0.0, %v934
      %v936 = vpop.f32.mrf.mxu0
      %v937 = vpop.f32.mrf.mxu0
      %v938 = vadd.f32 0.0, %v937
      %v939 = vpop.f32.mrf.mxu0
      %940 = vdwg.mxu0
      %v941 = vrcp.pop %v826
      %v942 = vrcp.pop %v829
      %v943 = vrcp.pop %v832
      %v944 = vrcp.pop %v835
      %v945 = vrcp.pop %v838
      %v946 = vrcp.pop %v841
      %v947 = vrcp.pop %v844
      %v948 = vrcp.pop %v847
      %v949 = vmul.f32 %v911, %v941
      %v950 = vmul.f32 %v914, %v942
      %v951 = vmul.f32 %v919, %v943
      %v952 = vmul.f32 %v922, %v944
      %v953 = vmul.f32 %v927, %v945
      %v954 = vmul.f32 %v930, %v946
      %v955 = vmul.f32 %v935, %v947
      %v956 = vmul.f32 %v938, %v948
      %965 = vrot.lane.b32.xlu0 %v949, 16
      %v966 = vpop.permute.xlu0 %965
      %967 = vrot.lane.b32.xlu0 %v950, 16
      %v968 = vpop.permute.xlu0 %967
      %969 = vrot.lane.b32.xlu0 %v951, 16
      %v970 = vpop.permute.xlu0 %969
      %971 = vrot.lane.b32.xlu0 %v952, 16
      %v972 = vpop.permute.xlu0 %971
      %973 = vrot.lane.b32.xlu0 %v953, 16
      %v974 = vpop.permute.xlu0 %973
      %975 = vrot.lane.b32.xlu0 %v954, 16
      %v976 = vpop.permute.xlu0 %975
      %977 = vrot.lane.b32.xlu0 %v955, 16
      %v978 = vpop.permute.xlu0 %977
      %979 = vrot.lane.b32.xlu0 %v956, 16
      %v980 = vpop.permute.xlu0 %979
      %v989 = vsel %vm339, %v623, %v966
      %v990 = vsel %vm339, %v624, %v968
      %v991 = vsel %vm339, %v625, %v970
      %v992 = vsel %vm339, %v626, %v972
      %v993 = vsel %vm339, %v627, %v974
      %v994 = vsel %vm339, %v628, %v976
      %v995 = vsel %vm339, %v629, %v978
      %v996 = vsel %vm339, %v630, %v980
      %v997 = vpack.c.bf16 %v990, %v989
      %v998 = vpack.c.bf16 %v992, %v991
      %v999 = vpack.c.bf16 %v994, %v993
      %v1000 = vpack.c.bf16 %v996, %v995
      %v1005 = vunpack.c.l.b16 %v997
      %v1006 = vunpack.c.h.b16 %v997
      %v1007 = vunpack.c.l.b16 %v998
      %v1008 = vunpack.c.h.b16 %v998
      %v1009 = vunpack.c.l.b16 %v999
      %v1010 = vunpack.c.h.b16 %v999
      %v1011 = vunpack.c.l.b16 %v1000
      %v1012 = vunpack.c.h.b16 %v1000
      %v1013 = vpack.c.b16 %v1005, %v1005
      %v1014 = vpack.c.b16 %v1006, %v1006
      %v1015 = vpack.c.b16 %v1007, %v1007
      %v1016 = vpack.c.b16 %v1008, %v1008
      %v1017 = vpack.c.b16 %v1009, %v1009
      %v1018 = vpack.c.b16 %v1010, %v1010
      %v1019 = vpack.c.b16 %v1011, %v1011
      %v1020 = vpack.c.b16 %v1012, %v1012
      %vm1029 = vcmask 257024
      %1030 = vst.msk [vmem:[%s228] sm:$0xf] %vm1029, %v1013
      %1031 = vst.msk [vmem:[%s228 + $0x4] sm:$0xf] %vm1029, %v1014
      %1032 = vst.msk [vmem:[%s228 + $0x8] sm:$0xf] %vm1029, %v1015
      %1033 = vst.msk [vmem:[%s228 + $0xc] sm:$0xf] %vm1029, %v1016
      %1034 = vst.msk [vmem:[%s228 + $0x10] sm:$0xf] %vm1029, %v1017
      %1035 = vst.msk [vmem:[%s228 + $0x14] sm:$0xf] %vm1029, %v1018
      %1036 = vst.msk [vmem:[%s228 + $0x18] sm:$0xf] %vm1029, %v1019
      %1037 = vst.msk [vmem:[%s228 + $0x1c] sm:$0xf] %vm1029, %v1020
      %s1038 = smul.u32 8, %s19
      %p1039 = scmp.lt.s32.totalorder %s18, 1
      %s1040 = scalar_select %p1039, %s18, 1
      %p1041 = scmp.lt.s32.totalorder %s1038, 7
      %s1042 = scalar_select %p1041, %s1038, 7
      %s1043 = smul.addr %s1040, 8
      %s1044 = sadd.s32 %s1042, %s1043
      %s1045 = smul.addr %s1044, 4
      %s1046 = scalar_lea.vmem %s3, %s1045
      // Predicated region
      $region33: #{bottle_stack_forward.15} parent=31 // pred_check
        %p1047 = pneg %p121
      $region34: #{bottle_stack_forward.15} parent=31 // pred_check_branch
        %1049 = sbr.rel (%p1047) target = $region36
      $region35: #{bottle_stack_forward.15} parent=31 // pred_region
        %s1050 = smul.u32 8, %s19
      $region36: #{bottle_stack_forward.15} parent=31 // pred_fallthru
        _
    $region32: #{bottle_stack_forward.15} parent=5 // pred_fallthru
      _
    %p1051 = scmp.le.s32.totalorder 2, %s9
    // Predicated region
    $region37: #{bottle_stack_forward.15} parent=5 // pred_check
      %p1052 = pneg %p1051
    $region38: #{bottle_stack_forward.15} parent=5 // pred_check_branch
      %1054 = sbr.rel (%p1052) target = $region40
    $region39: #{bottle_stack_forward.15} parent=5 // pred_region
      %s1055 = ssub.s32 %s9, 2
      // Predicated region
      $region41: #{bottle_stack_forward.15} parent=39 // pred_check
        %p1056 = pneg %p127
      $region42: #{bottle_stack_forward.15} parent=39 // pred_check_branch
        %1058 = sbr.rel (%p1056) target = $region44
      $region43: #{bottle_stack_forward.15} parent=39 // pred_region
        %s1059 = smul.u32 8, %s21
        %p1060 = scmp.lt.s32.totalorder %s20, 1
        %s1061 = scalar_select %p1060, %s20, 1
        %p1062 = scmp.lt.s32.totalorder %s1059, 7
        %s1063 = scalar_select %p1062, %s1059, 7
        %s1064 = smul.addr %s1061, 8
        %s1065 = sadd.s32 %s1063, %s1064
        %s1066 = smul.addr %s1065, 4
        %s1067 = scalar_lea.vmem %s3, %s1066
      $region44: #{bottle_stack_forward.15} parent=39 // pred_fallthru
        _
    $region40: #{bottle_stack_forward.15} parent=5 // pred_fallthru
      _
  $region6: #{bottle_stack_forward.15} parent=0 // loop_footer
    %s13 = sadd.s32 1, %s9
  $region7: #{bottle_stack_forward.15} parent=0 // loop_footer_branch
    %8 = sbr.rel target = $region3
  $region8: #{bottle_stack_forward.15} parent=0 // loop_exit
    _

// kernel: bottle_stack_forward.16
$region0: #{bottle_stack_forward.16}
  #allocation0 [shape = 'u32[]', space=smem, size = 0x4, offset = 0x4, fixed_abs, tag = 'smem constant byte address 0x4 - core index']
  #allocation1 [shape = 'u32[144,128]{1,0:T(1,128)}', space=vmem, size = 0x12000, scoped, tag = 'internal scratch']
  %s0 = inlined_call_operand.vmem [shape: bf16[128,32], index: 0, kind: input, shape index: {}]
  %s1 = inlined_call_operand.vmem [shape: f32[1,32], index: 1, kind: input, shape index: {}]
  %s2 = inlined_call_operand.vmem [shape: f32[1,32], index: 2, kind: input, shape index: {}]
  %s3 = inlined_call_operand.vmem [shape: bf16[32,32], index: 3, kind: input, shape index: {}]
  %s4 = inlined_call_operand.vmem [shape: f32[1,32], index: 4, kind: input, shape index: {}]
  %s5 = inlined_call_operand.vmem [shape: f32[1,32], index: 5, kind: input, shape index: {}]
  %s6 = inlined_call_operand.vmem [shape: bf16[128,32], index: 6, kind: input, shape index: {}]
  %s7 = inlined_call_operand.vmem [shape: bf16[128,32], index: 7, kind: output, shape index: {}]
  %s8 = sld [smem:[#allocation0]]
  $region38: #{bottle_stack_forward.16} parent=0
    _
  %s10 = ssub.s32 1, %s8
  %s11 = scalar_select 0, %s10, %s8
  // Predicated region
  $region2: #{bottle_stack_forward.16} parent=0 // pred_check
    _
  $region3: #{bottle_stack_forward.16} parent=0 // pred_check_branch
    %13 = sbr.rel (0) target = $region5
  $region4: #{bottle_stack_forward.16} parent=0 // pred_region
    _
  $region5: #{bottle_stack_forward.16} parent=0 // pred_fallthru
    _
  // Predicated region
  $region6: #{bottle_stack_forward.16} parent=0 // pred_check
    _
  $region7: #{bottle_stack_forward.16} parent=0 // pred_check_branch
    %15 = sbr.rel (0) target = $region9
  $region8: #{bottle_stack_forward.16} parent=0 // pred_region
    _
  $region9: #{bottle_stack_forward.16} parent=0 // pred_fallthru
    _
  // Predicated region
  $region10: #{bottle_stack_forward.16} parent=0 // pred_check
    _
  $region11: #{bottle_stack_forward.16} parent=0 // pred_check_branch
    %17 = sbr.rel (0) target = $region13
  $region12: #{bottle_stack_forward.16} parent=0 // pred_region
    _
  $region13: #{bottle_stack_forward.16} parent=0 // pred_fallthru
    _
  // Predicated region
  $region14: #{bottle_stack_forward.16} parent=0 // pred_check
    _
  $region15: #{bottle_stack_forward.16} parent=0 // pred_check_branch
    %19 = sbr.rel (0) target = $region17
  $region16: #{bottle_stack_forward.16} parent=0 // pred_region
    _
  $region17: #{bottle_stack_forward.16} parent=0 // pred_fallthru
    _
  // Predicated region
  $region18: #{bottle_stack_forward.16} parent=0 // pred_check
    _
  $region19: #{bottle_stack_forward.16} parent=0 // pred_check_branch
    %21 = sbr.rel (0) target = $region21
  $region20: #{bottle_stack_forward.16} parent=0 // pred_region
    _
  $region21: #{bottle_stack_forward.16} parent=0 // pred_fallthru
    _
  // Predicated region
  $region22: #{bottle_stack_forward.16} parent=0 // pred_check
    _
  $region23: #{bottle_stack_forward.16} parent=0 // pred_check_branch
    %23 = sbr.rel (0) target = $region25
  $region24: #{bottle_stack_forward.16} parent=0 // pred_region
    _
  $region25: #{bottle_stack_forward.16} parent=0 // pred_fallthru
    _
  // Predicated region
  $region26: #{bottle_stack_forward.16} parent=0 // pred_check
    _
  $region27: #{bottle_stack_forward.16} parent=0 // pred_check_branch
    %25 = sbr.rel (0) target = $region29
  $region28: #{bottle_stack_forward.16} parent=0 // pred_region
    _
  $region29: #{bottle_stack_forward.16} parent=0 // pred_fallthru
    _
  %v27 = vld [vmem:[%s0] sm:$0xf]
  %v28 = vld [vmem:[%s0 + $0x4] sm:$0xf]
  %v29 = vld [vmem:[%s0 + $0x8] sm:$0xf]
  %v30 = vld [vmem:[%s0 + $0xc] sm:$0xf]
  %v31 = vld [vmem:[%s0 + $0x10] sm:$0xf]
  %v32 = vld [vmem:[%s0 + $0x14] sm:$0xf]
  %v33 = vld [vmem:[%s0 + $0x18] sm:$0xf]
  %v34 = vld [vmem:[%s0 + $0x1c] sm:$0xf]
  %v35 = vld [vmem:[%s0 + $0x20] sm:$0xf]
  %v36 = vld [vmem:[%s0 + $0x24] sm:$0xf]
  %v37 = vld [vmem:[%s0 + $0x28] sm:$0xf]
  %v38 = vld [vmem:[%s0 + $0x2c] sm:$0xf]
  %v39 = vld [vmem:[%s0 + $0x30] sm:$0xf]
  %v40 = vld [vmem:[%s0 + $0x34] sm:$0xf]
  %v41 = vld [vmem:[%s0 + $0x38] sm:$0xf]
  %v42 = vld [vmem:[%s0 + $0x3c] sm:$0xf]
  %v43 = vunpack.c.l.bf16 %v27
  %v44 = vunpack.c.l.bf16 %v28
  %v45 = vunpack.c.l.bf16 %v29
  %v46 = vunpack.c.l.bf16 %v30
  %v47 = vunpack.c.l.bf16 %v31
  %v48 = vunpack.c.l.bf16 %v32
  %v49 = vunpack.c.l.bf16 %v33
  %v50 = vunpack.c.l.bf16 %v34
  %v51 = vunpack.c.l.bf16 %v35
  %v52 = vunpack.c.l.bf16 %v36
  %v53 = vunpack.c.l.bf16 %v37
  %v54 = vunpack.c.l.bf16 %v38
  %v55 = vunpack.c.l.bf16 %v39
  %v56 = vunpack.c.l.bf16 %v40
  %v57 = vunpack.c.l.bf16 %v41
  %v58 = vunpack.c.l.bf16 %v42
  %v59 = vld [vmem:[%s1] sm:$0x1]
  %v61 = vlaneseq
  %v62 = vshrl.u32 %v61, 7
  %v63 = vsub.s32 0, %v62
  %v64 = vrot.slane %v59, %v63
  %v66 = vmul.f32 %v43, %v64
  %v67 = vmul.f32 %v44, %v64
  %v68 = vmul.f32 %v45, %v64
  %v69 = vmul.f32 %v46, %v64
  %v70 = vmul.f32 %v47, %v64
  %v71 = vmul.f32 %v48, %v64
  %v72 = vmul.f32 %v49, %v64
  %v73 = vmul.f32 %v50, %v64
  %v74 = vmul.f32 %v51, %v64
  %v75 = vmul.f32 %v52, %v64
  %v76 = vmul.f32 %v53, %v64
  %v77 = vmul.f32 %v54, %v64
  %v78 = vmul.f32 %v55, %v64
  %v79 = vmul.f32 %v56, %v64
  %v80 = vmul.f32 %v57, %v64
  %v81 = vmul.f32 %v58, %v64
  %v82 = vld [vmem:[%s2] sm:$0x1]
  %v84 = vlaneseq
  %v85 = vshrl.u32 %v84, 7
  %v86 = vsub.s32 0, %v85
  %v87 = vrot.slane %v82, %v86
  %v89 = vadd.f32 %v66, %v87
  %v90 = vadd.f32 %v67, %v87
  %v91 = vadd.f32 %v68, %v87
  %v92 = vadd.f32 %v69, %v87
  %v93 = vadd.f32 %v70, %v87
  %v94 = vadd.f32 %v71, %v87
  %v95 = vadd.f32 %v72, %v87
  %v96 = vadd.f32 %v73, %v87
  %v97 = vadd.f32 %v74, %v87
  %v98 = vadd.f32 %v75, %v87
  %v99 = vadd.f32 %v76, %v87
  %v100 = vadd.f32 %v77, %v87
  %v101 = vadd.f32 %v78, %v87
  %v102 = vadd.f32 %v79, %v87
  %v103 = vadd.f32 %v80, %v87
  %v104 = vadd.f32 %v81, %v87
  %v105 = vmax.f32 %v89, 0.0
  %v106 = vmax.f32 %v90, 0.0
  %v107 = vmax.f32 %v91, 0.0
  %v108 = vmax.f32 %v92, 0.0
  %v109 = vmax.f32 %v93, 0.0
  %v110 = vmax.f32 %v94, 0.0
  %v111 = vmax.f32 %v95, 0.0
  %v112 = vmax.f32 %v96, 0.0
  %v113 = vmax.f32 %v97, 0.0
  %v114 = vmax.f32 %v98, 0.0
  %v115 = vmax.f32 %v99, 0.0
  %v116 = vmax.f32 %v100, 0.0
  %v117 = vmax.f32 %v101, 0.0
  %v118 = vmax.f32 %v102, 0.0
  %v119 = vmax.f32 %v103, 0.0
  %v120 = vmax.f32 %v104, 0.0
  %v121 = vpack.c.bf16 %v106, %v105
  %v122 = vpack.c.bf16 %v108, %v107
  %v123 = vpack.c.bf16 %v110, %v109
  %v124 = vpack.c.bf16 %v112, %v111
  %v125 = vpack.c.bf16 %v114, %v113
  %v126 = vpack.c.bf16 %v116, %v115
  %v127 = vpack.c.bf16 %v118, %v117
  %v128 = vpack.c.bf16 %v120, %v119
  %v129 = vld [vmem:[%s3] sm:$0xf]
  %v130 = vld [vmem:[%s3 + $0x4] sm:$0xf]
  %v131 = vld [vmem:[%s3 + $0x8] sm:$0xf]
  %v132 = vld [vmem:[%s3 + $0xc] sm:$0xf]
  %v137 = vunpack.c.l.b16 %v129
  %v138 = vunpack.c.l.b16 %v130
  %v139 = vunpack.c.l.b16 %v131
  %v140 = vunpack.c.l.b16 %v132
  %v141 = vpack.c.b16 %v138, %v137
  %v142 = vpack.c.b16 %v140, %v139
  %vm145 = vcmask 261120
  %v147 = vsel %vm145, %v121, 0
  %v150 = vsel %vm145, %v122, 0
  %v153 = vsel %vm145, %v123, 0
  %v156 = vsel %vm145, %v124, 0
  %v159 = vsel %vm145, %v125, 0
  %v162 = vsel %vm145, %v126, 0
  %v165 = vsel %vm145, %v127, 0
  %v168 = vsel %vm145, %v128, 0
  %170 = vmatprep.subr.bf16.mxu0 0
  %171 = vmatpush1.bf16.msra.mxu0 0
  %172 = vmatprep.subr.bf16.mxu0 0
  %173 = vmatpush1.bf16.msra.mxu0 0
  %174 = vmatprep.subr.bf16.mxu0 0
  %175 = vmatpush1.bf16.msra.mxu0 0
  %176 = vmatprep.subr.bf16.mxu0 0
  %177 = vmatpush1.bf16.msra.mxu0 0
  %178 = vmatprep.subr.bf16.mxu0 0
  %179 = vmatpush1.bf16.msra.mxu0 0
  %180 = vmatprep.subr.bf16.mxu0 0
  %181 = vmatpush1.bf16.msra.mxu0 0
  %182 = vmatprep.subr.bf16.mxu0 0
  %183 = vmatpush1.bf16.msra.mxu0 %v142
  %184 = vmatprep.subr.bf16.mxu0 0
  %185 = vmatpush1.bf16.msra.mxu0 %v141
  %186 = vmatprep.subr.bf16.mxu0 0
  %187 = vmatpush2.bf16.msra.mxu0 0
  %188 = vmatprep.subr.bf16.mxu0 0
  %189 = vmatpush2.bf16.msra.mxu0 0
  %190 = vmatprep.subr.bf16.mxu0 0
  %191 = vmatpush2.bf16.msra.mxu0 0
  %192 = vmatprep.subr.bf16.mxu0 0
  %193 = vmatpush2.bf16.msra.mxu0 0
  %194 = vmatprep.subr.bf16.mxu0 0
  %195 = vmatpush2.bf16.msra.mxu0 0
  %196 = vmatprep.subr.bf16.mxu0 0
  %197 = vmatpush2.bf16.msra.mxu0 0
  %198 = vmatprep.subr.bf16.mxu0 0
  %199 = vmatpush2.bf16.msra.mxu0 0
  %200 = vmatprep.subr.bf16.mxu0 0
  %201 = vmatpush2.bf16.msra.mxu0 0
  %202 = vmatprep.mubr.bf16.mxu0 0
  %203 = vmatmul.mubr.bf16.gmra.mxu0 %v147
  %v204 = vpop.f32.mrf.mxu0
  %v205 = vadd.f32 0.0, %v204
  %v206 = vpop.f32.mrf.mxu0
  %v207 = vpop.f32.mrf.mxu0
  %v208 = vadd.f32 0.0, %v207
  %v209 = vpop.f32.mrf.mxu0
  %210 = vmatprep.mubr.bf16.mxu0 0
  %211 = vmatmul.mubr.bf16.gmra.mxu0 %v150
  %v212 = vpop.f32.mrf.mxu0
  %v213 = vadd.f32 0.0, %v212
  %v214 = vpop.f32.mrf.mxu0
  %v215 = vpop.f32.mrf.mxu0
  %v216 = vadd.f32 0.0, %v215
  %v217 = vpop.f32.mrf.mxu0
  %218 = vmatprep.mubr.bf16.mxu0 0
  %219 = vmatmul.mubr.bf16.gmra.mxu0 %v153
  %v220 = vpop.f32.mrf.mxu0
  %v221 = vadd.f32 0.0, %v220
  %v222 = vpop.f32.mrf.mxu0
  %v223 = vpop.f32.mrf.mxu0
  %v224 = vadd.f32 0.0, %v223
  %v225 = vpop.f32.mrf.mxu0
  %226 = vmatprep.mubr.bf16.mxu0 0
  %227 = vmatmul.mubr.bf16.gmra.mxu0 %v156
  %v228 = vpop.f32.mrf.mxu0
  %v229 = vadd.f32 0.0, %v228
  %v230 = vpop.f32.mrf.mxu0
  %v231 = vpop.f32.mrf.mxu0
  %v232 = vadd.f32 0.0, %v231
  %v233 = vpop.f32.mrf.mxu0
  %234 = vmatprep.mubr.bf16.mxu0 0
  %235 = vmatmul.mubr.bf16.gmra.mxu0 %v159
  %v236 = vpop.f32.mrf.mxu0
  %v237 = vadd.f32 0.0, %v236
  %v238 = vpop.f32.mrf.mxu0
  %v239 = vpop.f32.mrf.mxu0
  %v240 = vadd.f32 0.0, %v239
  %v241 = vpop.f32.mrf.mxu0
  %242 = vmatprep.mubr.bf16.mxu0 0
  %243 = vmatmul.mubr.bf16.gmra.mxu0 %v162
  %v244 = vpop.f32.mrf.mxu0
  %v245 = vadd.f32 0.0, %v244
  %v246 = vpop.f32.mrf.mxu0
  %v247 = vpop.f32.mrf.mxu0
  %v248 = vadd.f32 0.0, %v247
  %v249 = vpop.f32.mrf.mxu0
  %250 = vmatprep.mubr.bf16.mxu0 0
  %251 = vmatmul.mubr.bf16.gmra.mxu0 %v165
  %v252 = vpop.f32.mrf.mxu0
  %v253 = vadd.f32 0.0, %v252
  %v254 = vpop.f32.mrf.mxu0
  %v255 = vpop.f32.mrf.mxu0
  %v256 = vadd.f32 0.0, %v255
  %v257 = vpop.f32.mrf.mxu0
  %258 = vmatprep.mubr.bf16.mxu0 0
  %259 = vmatmul.mubr.bf16.gmra.mxu0 %v168
  %v260 = vpop.f32.mrf.mxu0
  %v261 = vadd.f32 0.0, %v260
  %v262 = vpop.f32.mrf.mxu0
  %v263 = vpop.f32.mrf.mxu0
  %v264 = vadd.f32 0.0, %v263
  %v265 = vpop.f32.mrf.mxu0
  %266 = vdwg.mxu0
  %v267 = vld [vmem:[%s4] sm:$0x1]
  %v269 = vlaneseq
  %v270 = vshrl.u32 %v269, 7
  %v271 = vsub.s32 0, %v270
  %v272 = vrot.slane %v267, %v271
  %v274 = vmul.f32 %v205, %v272
  %v275 = vmul.f32 %v208, %v272
  %v276 = vmul.f32 %v213, %v272
  %v277 = vmul.f32 %v216, %v272
  %v278 = vmul.f32 %v221, %v272
  %v279 = vmul.f32 %v224, %v272
  %v280 = vmul.f32 %v229, %v272
  %v281 = vmul.f32 %v232, %v272
  %v282 = vmul.f32 %v237, %v272
  %v283 = vmul.f32 %v240, %v272
  %v284 = vmul.f32 %v245, %v272
  %v285 = vmul.f32 %v248, %v272
  %v286 = vmul.f32 %v253, %v272
  %v287 = vmul.f32 %v256, %v272
  %v288 = vmul.f32 %v261, %v272
  %v289 = vmul.f32 %v264, %v272
  %v290 = vld [vmem:[%s5] sm:$0x1]
  %v292 = vlaneseq
  %v293 = vshrl.u32 %v292, 7
  %v294 = vsub.s32 0, %v293
  %v295 = vrot.slane %v290, %v294
  %v297 = vadd.f32 %v274, %v295
  %v298 = vadd.f32 %v275, %v295
  %v299 = vadd.f32 %v276, %v295
  %v300 = vadd.f32 %v277, %v295
  %v301 = vadd.f32 %v278, %v295
  %v302 = vadd.f32 %v279, %v295
  %v303 = vadd.f32 %v280, %v295
  %v304 = vadd.f32 %v281, %v295
  %v305 = vadd.f32 %v282, %v295
  %v306 = vadd.f32 %v283, %v295
  %v307 = vadd.f32 %v284, %v295
  %v308 = vadd.f32 %v285, %v295
  %v309 = vadd.f32 %v286, %v295
  %v310 = vadd.f32 %v287, %v295
  %v311 = vadd.f32 %v288, %v295
  %v312 = vadd.f32 %v289, %v295
  %v313 = vld [vmem:[%s6] sm:$0xf]
  %v314 = vld [vmem:[%s6 + $0x4] sm:$0xf]
  %v315 = vld [vmem:[%s6 + $0x8] sm:$0xf]
  %v316 = vld [vmem:[%s6 + $0xc] sm:$0xf]
  %v317 = vld [vmem:[%s6 + $0x10] sm:$0xf]
  %v318 = vld [vmem:[%s6 + $0x14] sm:$0xf]
  %v319 = vld [vmem:[%s6 + $0x18] sm:$0xf]
  %v320 = vld [vmem:[%s6 + $0x1c] sm:$0xf]
  %v321 = vld [vmem:[%s6 + $0x20] sm:$0xf]
  %v322 = vld [vmem:[%s6 + $0x24] sm:$0xf]
  %v323 = vld [vmem:[%s6 + $0x28] sm:$0xf]
  %v324 = vld [vmem:[%s6 + $0x2c] sm:$0xf]
  %v325 = vld [vmem:[%s6 + $0x30] sm:$0xf]
  %v326 = vld [vmem:[%s6 + $0x34] sm:$0xf]
  %v327 = vld [vmem:[%s6 + $0x38] sm:$0xf]
  %v328 = vld [vmem:[%s6 + $0x3c] sm:$0xf]
  %v329 = vunpack.c.l.bf16 %v313
  %v330 = vunpack.c.l.bf16 %v314
  %v331 = vunpack.c.l.bf16 %v315
  %v332 = vunpack.c.l.bf16 %v316
  %v333 = vunpack.c.l.bf16 %v317
  %v334 = vunpack.c.l.bf16 %v318
  %v335 = vunpack.c.l.bf16 %v319
  %v336 = vunpack.c.l.bf16 %v320
  %v337 = vunpack.c.l.bf16 %v321
  %v338 = vunpack.c.l.bf16 %v322
  %v339 = vunpack.c.l.bf16 %v323
  %v340 = vunpack.c.l.bf16 %v324
  %v341 = vunpack.c.l.bf16 %v325
  %v342 = vunpack.c.l.bf16 %v326
  %v343 = vunpack.c.l.bf16 %v327
  %v344 = vunpack.c.l.bf16 %v328
  %v345 = vadd.f32 %v297, %v329
  %v346 = vadd.f32 %v298, %v330
  %v347 = vadd.f32 %v299, %v331
  %v348 = vadd.f32 %v300, %v332
  %v349 = vadd.f32 %v301, %v333
  %v350 = vadd.f32 %v302, %v334
  %v351 = vadd.f32 %v303, %v335
  %v352 = vadd.f32 %v304, %v336
  %v353 = vadd.f32 %v305, %v337
  %v354 = vadd.f32 %v306, %v338
  %v355 = vadd.f32 %v307, %v339
  %v356 = vadd.f32 %v308, %v340
  %v357 = vadd.f32 %v309, %v341
  %v358 = vadd.f32 %v310, %v342
  %v359 = vadd.f32 %v311, %v343
  %v360 = vadd.f32 %v312, %v344
  %v361 = vmax.f32 %v345, 0.0
  %v362 = vmax.f32 %v346, 0.0
  %v363 = vmax.f32 %v347, 0.0
  %v364 = vmax.f32 %v348, 0.0
  %v365 = vmax.f32 %v349, 0.0
  %v366 = vmax.f32 %v350, 0.0
  %v367 = vmax.f32 %v351, 0.0
  %v368 = vmax.f32 %v352, 0.0
  %v369 = vmax.f32 %v353, 0.0
  %v370 = vmax.f32 %v354, 0.0
  %v371 = vmax.f32 %v355, 0.0
  %v372 = vmax.f32 %v356, 0.0
  %v373 = vmax.f32 %v357, 0.0
  %v374 = vmax.f32 %v358, 0.0
  %v375 = vmax.f32 %v359, 0.0
  %v376 = vmax.f32 %v360, 0.0
  %v377 = vpack.c.bf16 %v362, %v361
  %v378 = vpack.c.bf16 %v364, %v363
  %v379 = vpack.c.bf16 %v366, %v365
  %v380 = vpack.c.bf16 %v368, %v367
  %v381 = vpack.c.bf16 %v370, %v369
  %v382 = vpack.c.bf16 %v372, %v371
  %v383 = vpack.c.bf16 %v374, %v373
  %v384 = vpack.c.bf16 %v376, %v375
  %v393 = vunpack.c.l.b16 %v377
  %v394 = vunpack.c.h.b16 %v377
  %v395 = vunpack.c.l.b16 %v378
  %v396 = vunpack.c.h.b16 %v378
  %v397 = vunpack.c.l.b16 %v379
  %v398 = vunpack.c.h.b16 %v379
  %v399 = vunpack.c.l.b16 %v380
  %v400 = vunpack.c.h.b16 %v380
  %v401 = vunpack.c.l.b16 %v381
  %v402 = vunpack.c.h.b16 %v381
  %v403 = vunpack.c.l.b16 %v382
  %v404 = vunpack.c.h.b16 %v382
  %v405 = vunpack.c.l.b16 %v383
  %v406 = vunpack.c.h.b16 %v383
  %v407 = vunpack.c.l.b16 %v384
  %v408 = vunpack.c.h.b16 %v384
  %v409 = vpack.c.b16 %v393, %v393
  %v410 = vpack.c.b16 %v394, %v394
  %v411 = vpack.c.b16 %v395, %v395
  %v412 = vpack.c.b16 %v396, %v396
  %v413 = vpack.c.b16 %v397, %v397
  %v414 = vpack.c.b16 %v398, %v398
  %v415 = vpack.c.b16 %v399, %v399
  %v416 = vpack.c.b16 %v400, %v400
  %v417 = vpack.c.b16 %v401, %v401
  %v418 = vpack.c.b16 %v402, %v402
  %v419 = vpack.c.b16 %v403, %v403
  %v420 = vpack.c.b16 %v404, %v404
  %v421 = vpack.c.b16 %v405, %v405
  %v422 = vpack.c.b16 %v406, %v406
  %v423 = vpack.c.b16 %v407, %v407
  %v424 = vpack.c.b16 %v408, %v408
  %vm441 = vcmask 257024
  %442 = vst.msk [vmem:[%s7] sm:$0xf] %vm441, %v409
  %443 = vst.msk [vmem:[%s7 + $0x4] sm:$0xf] %vm441, %v410
  %444 = vst.msk [vmem:[%s7 + $0x8] sm:$0xf] %vm441, %v411
  %445 = vst.msk [vmem:[%s7 + $0xc] sm:$0xf] %vm441, %v412
  %446 = vst.msk [vmem:[%s7 + $0x10] sm:$0xf] %vm441, %v413
  %447 = vst.msk [vmem:[%s7 + $0x14] sm:$0xf] %vm441, %v414
  %448 = vst.msk [vmem:[%s7 + $0x18] sm:$0xf] %vm441, %v415
  %449 = vst.msk [vmem:[%s7 + $0x1c] sm:$0xf] %vm441, %v416
  %450 = vst.msk [vmem:[%s7 + $0x20] sm:$0xf] %vm441, %v417
  %451 = vst.msk [vmem:[%s7 + $0x24] sm:$0xf] %vm441, %v418
  %452 = vst.msk [vmem:[%s7 + $0x28] sm:$0xf] %vm441, %v419
  %453 = vst.msk [vmem:[%s7 + $0x2c] sm:$0xf] %vm441, %v420
  %454 = vst.msk [vmem:[%s7 + $0x30] sm:$0xf] %vm441, %v421
  %455 = vst.msk [vmem:[%s7 + $0x34] sm:$0xf] %vm441, %v422
  %456 = vst.msk [vmem:[%s7 + $0x38] sm:$0xf] %vm441, %v423
  %457 = vst.msk [vmem:[%s7 + $0x3c] sm:$0xf] %vm441, %v424
  // Predicated region
  $region30: #{bottle_stack_forward.16} parent=0 // pred_check
    _
  $region31: #{bottle_stack_forward.16} parent=0 // pred_check_branch
    %459 = sbr.rel (0) target = $region33
  $region32: #{bottle_stack_forward.16} parent=0 // pred_region
    _
  $region33: #{bottle_stack_forward.16} parent=0 // pred_fallthru
    _
  // Predicated region
  $region34: #{bottle_stack_forward.16} parent=0 // pred_check
    _
  $region35: #{bottle_stack_forward.16} parent=0 // pred_check_branch
    %461 = sbr.rel (0) target = $region37
  $region36: #{bottle_stack_forward.16} parent=0 // pred_region
    _
  $region37: #{bottle_stack_forward.16} parent=0 // pred_fallthru
    _

</llo_original>
